<compile_context>
chip_gen: v7x
topology: tpu7x:2x2x1
jax: 0.10.0
libtpu: 0.0.40
codegen_flags: <defaults>
</compile_context>

<pallas_src>
import functools
import math

import jax
import jax.numpy as jnp
from jax.experimental import pallas as pl
from jax.experimental.pallas import tpu as pltpu


# ---------------------------------------------------------------------------
# helpers
# ---------------------------------------------------------------------------
def _round_up(x, m):
    return ((x + m - 1) // m) * m


def _pcall(kernel, out_shape, *args):
    """Single-invocation pallas_call: whole operands resident in VMEM."""
    return pl.pallas_call(kernel, out_shape=out_shape)(*args)


def _ln(x, g, b, eps):
    mean = jnp.mean(x, axis=-1, keepdims=True)
    xc = x - mean
    var = jnp.mean(xc * xc, axis=-1, keepdims=True)
    return xc * jax.lax.rsqrt(var + eps) * g + b


def _gelu(x):  # exact erf GELU == torch.nn.GELU()
    return 0.5 * x * (1.0 + jax.lax.erf(x * (1.0 / math.sqrt(2.0))))


# ---------------------------------------------------------------------------
# Pallas kernels
# ---------------------------------------------------------------------------
def _patch_embed_kernel(x_ref, w_ref, b_ref, o_ref):
    # patchified pixels (bf16, cast in the wrapper) @ patch_w [C*P*P, D] + bias
    y = jnp.dot(x_ref[...], w_ref[...], preferred_element_type=jnp.float32)
    o_ref[...] = (y + b_ref[...].astype(jnp.float32)).astype(o_ref.dtype)


def _ln_kernel(x_ref, g_ref, b_ref, o_ref, *, eps):
    o_ref[...] = _ln(x_ref[...].astype(jnp.float32),
                     g_ref[...].astype(jnp.float32),
                     b_ref[...].astype(jnp.float32), eps).astype(o_ref.dtype)


def _ln_head_kernel(x_ref, g_ref, b_ref, w_ref, hb_ref, o_ref, *, eps):
    # final LayerNorm fused with the `self.last` linear head
    h = _ln(x_ref[...].astype(jnp.float32),
            g_ref[...].astype(jnp.float32),
            b_ref[...].astype(jnp.float32), eps)
    y = jnp.dot(h.astype(w_ref.dtype), w_ref[...],
                preferred_element_type=jnp.float32)
    o_ref[...] = (y + hb_ref[...].astype(jnp.float32)).astype(o_ref.dtype)


def _block_kernel(*refs, S, Sp, Sk, Hd, Dh, half, scale, eps, prompted):
    """One full pre-norm transformer block for ONE batch element (grid over B),
    optionally with a CODA prompt KV-prefix (eval / task_count=0 path) fused
    in as real key/value columns of a lane-dense (Sk-wide) key axis."""
    if prompted:
        (q_ref, A_ref, nK_ref, p_ref,
         tok_ref, ln1g_ref, ln1b_ref, qkvw_ref, qkvb_ref, projw_ref, projb_ref,
         ln2g_ref, ln2b_ref, fc1w_ref, fc1b_ref, fc2w_ref, fc2b_ref,
         o_ref) = refs
    else:
        (tok_ref, ln1g_ref, ln1b_ref, qkvw_ref, qkvb_ref, projw_ref, projb_ref,
         ln2g_ref, ln2b_ref, fc1w_ref, fc1b_ref, fc2w_ref, fc2b_ref,
         o_ref) = refs

    D = Hd * Dh
    cdt = qkvw_ref.dtype                     # bf16 MXU-input dtype
    b = pl.program_id(0)
    n_prompt = half if prompted else 0

    tok = tok_ref[0].astype(jnp.float32)     # [Sp, D] residual stream (f32 math)

    # ---- attention branch: LN1 -> fused QKV matmul ------------------------
    h1 = _ln(tok, ln1g_ref[...].astype(jnp.float32),
             ln1b_ref[...].astype(jnp.float32), eps)
    qkv = jnp.dot(h1.astype(cdt), qkvw_ref[...],
                  preferred_element_type=jnp.float32)
    qkv = qkv + qkvb_ref[...].astype(jnp.float32)            # [Sp, 3D]
    q_t = qkv[:, 0:D]
    k_t = qkv[:, D:2 * D]
    v_t = qkv[:, 2 * D:3 * D]

    # ---- CODA prompt: P_ = einsum('k,kld->ld', aq_k, p) fused in one pass --
    if prompted:
        xq = q_ref[pl.ds(b, 1), :].astype(jnp.float32)        # [1, Dk]
        A = A_ref[...].astype(jnp.float32)                    # [Kp, Dk]
        nK = nK_ref[...].astype(jnp.float32)                  # [Kp, Dk]
        a_q = xq * A                                          # [Kp, Dk]
        qn = a_q / jnp.maximum(
            jnp.sqrt(jnp.sum(a_q * a_q, axis=-1, keepdims=True)), 1e-12)
        aq_k = jnp.sum(qn * nK, axis=-1, keepdims=True)       # [Kp, 1]
        # single fused contraction against the flattened [Kp, 2*half*D] table
        E_row = jnp.sum(aq_k * p_ref[...].astype(jnp.float32),
                        axis=0, keepdims=True)                # [1, 2*half*D]
        k_extra = [E_row[:, l * D:(l + 1) * D] for l in range(half)]
        v_extra = [E_row[:, (half + l) * D:(half + l + 1) * D]
                   for l in range(half)]
    else:
        k_extra, v_extra = [], []

    # ---- lane-dense key/value tiles (Sk = round_up multiple of 128) -------
    pad = jnp.zeros((Sk - Sp - n_prompt, D), jnp.float32)
    k_full = jnp.concatenate([k_t] + k_extra + [pad], axis=0).astype(cdt)
    v_full = jnp.concatenate([v_t] + v_extra + [pad], axis=0).astype(cdt)
    q_b = q_t.astype(cdt)

    # -inf mask for padded token rows / zero-padded key columns
    col = jax.lax.broadcasted_iota(jnp.int32, (1, Sk), 1)
    valid = (col < S) | ((col >= Sp) & (col < Sp + n_prompt))
    bias = jnp.where(valid, 0.0, -1e30).astype(jnp.float32)   # [1, Sk]

    # ---- multi-head SDPA; per-head outputs gathered, ONE K=D projection ----
    outs = []
    for h in range(Hd):
        sl = slice(h * Dh, (h + 1) * Dh)
        s = jnp.einsum("qd,kd->qk", q_b[:, sl], k_full[:, sl],
                       preferred_element_type=jnp.float32)    # [Sp, Sk]
        s = s * scale + bias
        m = jnp.max(s, axis=-1, keepdims=True)
        e = jnp.exp(s - m)
        denom = jnp.sum(e, axis=-1, keepdims=True)
        o = jnp.dot(e.astype(cdt), v_full[:, sl],
                    preferred_element_type=jnp.float32)       # [Sp, Dh]
        outs.append((o * pl.reciprocal(denom, approx=True)).astype(cdt))
    attn = jnp.concatenate(outs, axis=-1)                     # [Sp, D] bf16

    proj = jnp.dot(attn, projw_ref[...],                      # single K=D matmul
                   preferred_element_type=jnp.float32)
    tok = tok + proj + projb_ref[...].astype(jnp.float32)

    # ---- MLP branch: LN2 -> FC1 + GELU -> FC2 -----------------------------
    h2 = _ln(tok, ln2g_ref[...].astype(jnp.float32),
             ln2b_ref[...].astype(jnp.float32), eps)
    f1 = jnp.dot(h2.astype(cdt), fc1w_ref[...],
                 preferred_element_type=jnp.float32) + fc1b_ref[...].astype(jnp.float32)
    f1 = _gelu(f1)
    f2 = jnp.dot(f1.astype(cdt), fc2w_ref[...],
                 preferred_element_type=jnp.float32) + fc2b_ref[...].astype(jnp.float32)
    o_ref[0] = (tok + f2).astype(o_ref.dtype)


# ---------------------------------------------------------------------------
# kernel wrappers
# ---------------------------------------------------------------------------
def patch_embed(xp, w, b):
    return _pcall(_patch_embed_kernel,
                  jax.ShapeDtypeStruct((xp.shape[0], w.shape[1]), jnp.float32),
                  xp, w, b)


def layernorm(x, g, b, eps=1e-6):
    return _pcall(functools.partial(_ln_kernel, eps=eps),
                  jax.ShapeDtypeStruct(x.shape, jnp.float32), x, g, b)


def ln_head(x, g, b, w, hb, eps=1e-6):
    return _pcall(functools.partial(_ln_head_kernel, eps=eps),
                  jax.ShapeDtypeStruct((x.shape[0], w.shape[1]), jnp.float32),
                  x, g, b, w, hb)


def transformer_block(tok, blk, *, S, Sp, Sk, Hd, Dh, half, prompt_args=None):
    B = tok.shape[0]
    D = Hd * Dh
    hidden = blk["fc1_w"].shape[1]
    prompted = prompt_args is not None
    kern = functools.partial(
        _block_kernel, S=S, Sp=Sp, Sk=Sk, Hd=Hd, Dh=Dh, half=half,
        scale=Dh ** -0.5, eps=1e-6, prompted=prompted)

    def full(a):  # whole-array block, resident across the batch grid
        nd = a.ndim
        return pl.BlockSpec(a.shape, lambda b, _nd=nd: (0,) * _nd)

    args, specs = [], []
    if prompted:
        q, A, nK, p_flat = prompt_args
        args += [q, A, nK, p_flat]
        specs += [full(q), full(A), full(nK), full(p_flat)]
    weights = [blk["ln1_g"], blk["ln1_b"], blk["qkv_w"], blk["qkv_b"],
               blk["proj_w"], blk["proj_b"], blk["ln2_g"], blk["ln2_b"],
               blk["fc1_w"], blk["fc1_b"], blk["fc2_w"], blk["fc2_b"]]
    args += [tok] + weights
    specs += [pl.BlockSpec((1, Sp, D), lambda b: (b, 0, 0))]
    specs += [full(w) for w in weights]

    # advisory cost hint so XLA schedules the sequential block chain sensibly
    flops = 2 * B * Sp * D * (4 * D + 2 * hidden) + 4 * B * Hd * Sp * Sk * Dh
    transc = B * Hd * Sp * Sk + B * Sp * hidden
    wbytes = sum(w.size * w.dtype.itemsize for w in weights)
    bytes_acc = wbytes + 2 * B * Sp * D * tok.dtype.itemsize

    return pl.pallas_call(
        kern,
        out_shape=jax.ShapeDtypeStruct((B, Sp, D), jnp.bfloat16),
        grid=(B,),
        in_specs=specs,
        out_specs=pl.BlockSpec((1, Sp, D), lambda b: (b, 0, 0)),
        compiler_params=pltpu.CompilerParams(
            dimension_semantics=("parallel",),
            vmem_limit_bytes=32 * 1024 * 1024),
        cost_estimate=pl.CostEstimate(flops=int(flops),
                                      transcendentals=int(transc),
                                      bytes_accessed=int(bytes_acc)),
    )(*args)


# ---------------------------------------------------------------------------
# ViT backbone (self.feat) and ViTZoo forward — thin JAX glue around kernels
# ---------------------------------------------------------------------------
def embed_tokens(params, x, cfg, Sp):
    """Patch-embedding conv + cls token + positional embedding, padded to Sp."""
    B, C, H, W = x.shape
    P, D = cfg["patch_size"], cfg["embed_dim"]
    nH, nW = H // P, W // P
    # Conv2d(kernel=stride=P) == patchify in (C, ph, pw) order + matmul
    xp = x.reshape(B, C, nH, P, nW, P)
    xp = jnp.transpose(xp, (0, 2, 4, 1, 3, 5)).reshape(B * nH * nW, C * P * P)
    xp = xp.astype(jnp.bfloat16)                 # halve HBM->VMEM DMA traffic
    body = patch_embed(xp, params["patch_w"], params["patch_b"]).reshape(B, nH * nW, D)
    cls = jnp.broadcast_to(params["cls_token"], (B, 1, D))
    tok = jnp.concatenate([cls, body], axis=1) + params["pos_embed"]
    S = tok.shape[1]
    tok = jnp.pad(tok, ((0, 0), (0, Sp - S), (0, 0)))   # sublane-aligned slab
    return tok.astype(jnp.bfloat16)              # bf16 inter-block residual


def vit_backbone(params, tok, cfg, *, S, Sp, Sk, prompted=False, q_feat=None):
    D, Hd = cfg["embed_dim"], cfg["num_heads"]
    Dh = D // Hd
    half = cfg["e_p_length"] // 2
    for l, blk in enumerate(params["blocks"]):
        pargs = None
        if prompted and l in cfg["e_layers"]:
            pp = params["prompt"][f"layer_{l}"]
            pargs = (q_feat, pp["A"], pp["nK"], pp["p_flat"])
        tok = transformer_block(tok, blk, S=S, Sp=Sp, Sk=Sk, Hd=Hd, Dh=Dh,
                                half=half, prompt_args=pargs)
    return tok[:, 0, :]                           # CLS token (pre final-norm)


def vit_zoo_forward(params, x, cfg, pen=False):
    """ViTZoo.forward, eval path. With a prompt attached: a first pass builds
    the CLS query, a second pass injects CODA prompts as KV prefixes."""
    B = x.shape[0]
    P = cfg["patch_size"]
    S = 1 + (x.shape[2] // P) * (x.shape[3] // P)
    Sp = _round_up(S, 8)
    half = cfg["e_p_length"] // 2
    tok0 = embed_tokens(params, x, cfg, Sp)       # shared by both passes

    if cfg["use_prompt"]:
        cls_q = vit_backbone(params, tok0, cfg, S=S, Sp=Sp,
                             Sk=_round_up(Sp, 128))
        q = layernorm(cls_q, params["norm_g"], params["norm_b"])  # norm'd CLS query
        cls = vit_backbone(params, tok0, cfg, S=S, Sp=Sp,
                           Sk=_round_up(Sp + half, 128),
                           prompted=True, q_feat=q)
    else:
        cls = vit_backbone(params, tok0, cfg, S=S, Sp=Sp,
                           Sk=_round_up(Sp, 128))

    if pen:
        return layernorm(cls, params["norm_g"], params["norm_b"])
    out = ln_head(cls, params["norm_g"], params["norm_b"],
                  params["last_w"], params["last_b"])
    return out[:, :cfg["num_classes"]]


# ---------------------------------------------------------------------------
# deterministic synthetic parameter init (small shapes)
# ---------------------------------------------------------------------------
def make_model(key, *, num_classes=10, img_size=16, patch_size=4, in_chans=3,
               embed_dim=128, depth=2, num_heads=4, mlp_ratio=4,
               prompt_flag="coda", n_tasks=2, e_pool_size=8, e_p_length=4):
    keys = iter(jax.random.split(key, 256))

    def nrm(shape, scale=0.02, dtype=jnp.float32):
        return (scale * jax.random.normal(next(keys), shape)).astype(dtype)

    D = embed_dim
    n_patches = (img_size // patch_size) ** 2
    hidden = D * mlp_ratio
    ncls_pad = _round_up(num_classes, 128)        # lane-dense head output

    params = {
        "patch_w": nrm((in_chans * patch_size * patch_size, D), dtype=jnp.bfloat16),
        "patch_b": jnp.zeros((1, D), jnp.float32),
        "cls_token": nrm((1, 1, D)),
        "pos_embed": nrm((1, 1 + n_patches, D)),
        "norm_g": jnp.ones((1, D), jnp.float32),
        "norm_b": jnp.zeros((1, D), jnp.float32),
        "blocks": [],
        "last_w": jnp.zeros((D, ncls_pad), jnp.bfloat16).at[:, :num_classes].set(
            nrm((D, num_classes), dtype=jnp.bfloat16)),
        "last_b": jnp.zeros((1, ncls_pad), jnp.float32),
    }
    for _ in range(depth):
        params["blocks"].append({
            "ln1_g": jnp.ones((1, D), jnp.float32),
            "ln1_b": jnp.zeros((1, D), jnp.float32),
            "qkv_w": nrm((D, 3 * D), dtype=jnp.bfloat16),
            "qkv_b": jnp.zeros((1, 3 * D), jnp.float32),
            "proj_w": nrm((D, D), dtype=jnp.bfloat16),
            "proj_b": jnp.zeros((1, D), jnp.float32),
            "ln2_g": jnp.ones((1, D), jnp.float32),
            "ln2_b": jnp.zeros((1, D), jnp.float32),
            "fc1_w": nrm((D, hidden), dtype=jnp.bfloat16),
            "fc1_b": jnp.zeros((1, hidden), jnp.float32),
            "fc2_w": nrm((hidden, D), dtype=jnp.bfloat16),
            "fc2_b": jnp.zeros((1, D), jnp.float32),
        })

    e_layers = [l for l in (0, 1, 2, 3, 4) if l < depth]   # CodaPrompt.e_layers
    use_prompt = prompt_flag == "coda"
    if use_prompt:
        # eval / task_count=0 path: only the first e_pool_size/n_tasks prompts are used
        f = e_pool_size // n_tasks
        prompt = {}
        for l in e_layers:
            K = jax.random.uniform(next(keys), (e_pool_size, D)).astype(jnp.float32)[:f]
            A = jax.random.uniform(next(keys), (e_pool_size, D)).astype(jnp.float32)[:f]
            p = jax.random.uniform(next(keys), (e_pool_size, e_p_length, D)
                                   ).astype(jnp.float32)[:f]
            # F.normalize(K, dim=1) is input-independent -> precompute once here
            nK = K / jnp.maximum(jnp.linalg.norm(K, axis=1, keepdims=True), 1e-12)
            prompt[f"layer_{l}"] = {
                "A": A,
                "nK": nK,
                # flattened [Kp, e_p_length*D] prompt table for one fused contraction
                "p_flat": p.reshape(f, e_p_length * D).astype(jnp.bfloat16),
            }
        params["prompt"] = prompt

    cfg = dict(num_classes=num_classes, patch_size=patch_size, embed_dim=D,
               num_heads=num_heads, use_prompt=use_prompt,
               e_layers=e_layers, e_p_length=e_p_length)
    return params, cfg


if __name__ == "__main__":
    key = jax.random.PRNGKey(0)
    pkey, xkey = jax.random.split(key)
    params, cfg = make_model(pkey)
    # PyTorch-style NCHW input
    x = jax.random.normal(xkey, (2, 3, 16, 16), dtype=jnp.float32)

    fwd = jax.jit(functools.partial(vit_zoo_forward, cfg=cfg, pen=False))
    out = jax.block_until_ready(fwd(params, x))
    assert out.shape == (2, 10) and out.dtype == jnp.float32
    print("KERNEL_OK")
</pallas_src>

<mosaic_0001>
module attributes {stable_mosaic.version = 11 : i64} {
  func.func @_ln_kernel(%arg0: memref<2x128xbf16, #tpu.memory_space<vmem>>, %arg1: memref<1x128xf32, #tpu.memory_space<vmem>>, %arg2: memref<1x128xf32, #tpu.memory_space<vmem>>, %arg3: memref<2x128xf32, #tpu.memory_space<vmem>>) attributes {dimension_semantics = [], scalar_prefetch = 0 : i64, scratch_operands = 0 : i64, tpu.core_type = #tpu.core_type<tc>} {
    %c0 = arith.constant 0 : index
    %c0_0 = arith.constant 0 : index
    %0 = vector.load %arg0[%c0, %c0_0] : memref<2x128xbf16, #tpu.memory_space<vmem>>, vector<2x128xbf16>
    %1 = arith.extf %0 : vector<2x128xbf16> to vector<2x128xf32>
    %c0_1 = arith.constant 0 : index
    %c0_2 = arith.constant 0 : index
    %2 = vector.load %arg1[%c0_1, %c0_2] : memref<1x128xf32, #tpu.memory_space<vmem>>, vector<1x128xf32>
    %c0_3 = arith.constant 0 : index
    %c0_4 = arith.constant 0 : index
    %3 = vector.load %arg2[%c0_3, %c0_4] : memref<1x128xf32, #tpu.memory_space<vmem>>, vector<1x128xf32>
    %cst = arith.constant dense<0.000000e+00> : vector<2xf32>
    %4 = vector.multi_reduction <add>, %1, %cst [1] : vector<2x128xf32> to vector<2xf32>
    %5 = vector.shape_cast %4 : vector<2xf32> to vector<2x1xf32>
    %cst_5 = arith.constant 1.280000e+02 : f32
    %6 = vector.broadcast %cst_5 : f32 to vector<2x1xf32>
    %7 = arith.divf %5, %6 : vector<2x1xf32>
    %8 = vector.broadcast %7 : vector<2x1xf32> to vector<2x128xf32>
    %9 = arith.subf %1, %8 : vector<2x128xf32>
    %10 = arith.mulf %9, %9 : vector<2x128xf32>
    %cst_6 = arith.constant dense<0.000000e+00> : vector<2xf32>
    %11 = vector.multi_reduction <add>, %10, %cst_6 [1] : vector<2x128xf32> to vector<2xf32>
    %12 = vector.shape_cast %11 : vector<2xf32> to vector<2x1xf32>
    %cst_7 = arith.constant 1.280000e+02 : f32
    %13 = vector.broadcast %cst_7 : f32 to vector<2x1xf32>
    %14 = arith.divf %12, %13 : vector<2x1xf32>
    %cst_8 = arith.constant 9.99999997E-7 : f32
    %15 = vector.broadcast %cst_8 : f32 to vector<2x1xf32>
    %16 = arith.addf %14, %15 : vector<2x1xf32>
    %17 = math.rsqrt %16 : vector<2x1xf32>
    %18 = vector.broadcast %17 : vector<2x1xf32> to vector<2x128xf32>
    %19 = arith.mulf %9, %18 : vector<2x128xf32>
    %20 = vector.broadcast %2 : vector<1x128xf32> to vector<2x128xf32>
    %21 = arith.mulf %19, %20 : vector<2x128xf32>
    %22 = vector.broadcast %3 : vector<1x128xf32> to vector<2x128xf32>
    %23 = arith.addf %21, %22 : vector<2x128xf32>
    %c0_9 = arith.constant 0 : index
    %c0_10 = arith.constant 0 : index
    %24 = vector.load %arg3[%c0_9, %c0_10] : memref<2x128xf32, #tpu.memory_space<vmem>>, vector<2x128xf32>
    tpu.vector_store %arg3[%c0_9, %c0_10], %23 {strides = array<i32>} : memref<2x128xf32, #tpu.memory_space<vmem>>, vector<2x128xf32>,
    return
  }
}

module attributes {stable_mosaic.version = 11 : i64} {
  func.func @_patch_embed_kernel(%arg0: memref<32x48xbf16, #tpu.memory_space<vmem>>, %arg1: memref<48x128xbf16, #tpu.memory_space<vmem>>, %arg2: memref<1x128xf32, #tpu.memory_space<vmem>>, %arg3: memref<32x128xf32, #tpu.memory_space<vmem>>) attributes {dimension_semantics = [], scalar_prefetch = 0 : i64, scratch_operands = 0 : i64, tpu.core_type = #tpu.core_type<tc>} {
    %c0 = arith.constant 0 : index
    %c0_0 = arith.constant 0 : index
    %0 = vector.load %arg0[%c0, %c0_0] : memref<32x48xbf16, #tpu.memory_space<vmem>>, vector<32x48xbf16>
    %c0_1 = arith.constant 0 : index
    %c0_2 = arith.constant 0 : index
    %1 = vector.load %arg1[%c0_1, %c0_2] : memref<48x128xbf16, #tpu.memory_space<vmem>>, vector<48x128xbf16>
    %cst = arith.constant dense<0.000000e+00> : vector<32x128xf32>
    %2 = tpu.matmul %0, %1, %cst {dimension_numbers = #tpu.dot_dimension_numbers<[1], [0], [0], [1], [0, 0, 1, 1], [], []>} : vector<32x48xbf16>, vector<48x128xbf16>, vector<32x128xf32> -> vector<32x128xf32>
    %c0_3 = arith.constant 0 : index
    %c0_4 = arith.constant 0 : index
    %3 = vector.load %arg2[%c0_3, %c0_4] : memref<1x128xf32, #tpu.memory_space<vmem>>, vector<1x128xf32>
    %4 = vector.broadcast %3 : vector<1x128xf32> to vector<32x128xf32>
    %5 = arith.addf %2, %4 : vector<32x128xf32>
    %c0_5 = arith.constant 0 : index
    %c0_6 = arith.constant 0 : index
    %6 = vector.load %arg3[%c0_5, %c0_6] : memref<32x128xf32, #tpu.memory_space<vmem>>, vector<32x128xf32>
    tpu.vector_store %arg3[%c0_5, %c0_6], %5 {strides = array<i32>} : memref<32x128xf32, #tpu.memory_space<vmem>>, vector<32x128xf32>,
    return
  }
}

module attributes {stable_mosaic.version = 11 : i64} {
  func.func @_block_kernel(%arg0: i32, %arg1: memref<1x24x128xbf16, #tpu.memory_space<vmem>>, %arg2: memref<1x128xf32, #tpu.memory_space<vmem>>, %arg3: memref<1x128xf32, #tpu.memory_space<vmem>>, %arg4: memref<128x384xbf16, #tpu.memory_space<vmem>>, %arg5: memref<1x384xf32, #tpu.memory_space<vmem>>, %arg6: memref<128x128xbf16, #tpu.memory_space<vmem>>, %arg7: memref<1x128xf32, #tpu.memory_space<vmem>>, %arg8: memref<1x128xf32, #tpu.memory_space<vmem>>, %arg9: memref<1x128xf32, #tpu.memory_space<vmem>>, %arg10: memref<128x512xbf16, #tpu.memory_space<vmem>>, %arg11: memref<1x512xf32, #tpu.memory_space<vmem>>, %arg12: memref<512x128xbf16, #tpu.memory_space<vmem>>, %arg13: memref<1x128xf32, #tpu.memory_space<vmem>>, %arg14: memref<1x24x128xbf16, #tpu.memory_space<vmem>>) attributes {dimension_semantics = [#tpu.dimension_semantics<parallel>], iteration_bounds = array<i64: 2>, scalar_prefetch = 0 : i64, scratch_operands = 0 : i64, tpu.core_type = #tpu.core_type<tc>, window_params = [{transform_indices = @transform_0, window_bounds = array<i64: 1, 24, 128>}, {pipeline_mode = #tpu.pipeline_mode<synchronous>, transform_indices = @transform_1, window_bounds = array<i64: 1, 128>}, {pipeline_mode = #tpu.pipeline_mode<synchronous>, transform_indices = @transform_2, window_bounds = array<i64: 1, 128>}, {pipeline_mode = #tpu.pipeline_mode<synchronous>, transform_indices = @transform_3, window_bounds = array<i64: 128, 384>}, {pipeline_mode = #tpu.pipeline_mode<synchronous>, transform_indices = @transform_4, window_bounds = array<i64: 1, 384>}, {pipeline_mode = #tpu.pipeline_mode<synchronous>, transform_indices = @transform_5, window_bounds = array<i64: 128, 128>}, {pipeline_mode = #tpu.pipeline_mode<synchronous>, transform_indices = @transform_6, window_bounds = array<i64: 1, 128>}, {pipeline_mode = #tpu.pipeline_mode<synchronous>, transform_indices = @transform_7, window_bounds = array<i64: 1, 128>}, {pipeline_mode = #tpu.pipeline_mode<synchronous>, transform_indices = @transform_8, window_bounds = array<i64: 1, 128>}, {pipeline_mode = #tpu.pipeline_mode<synchronous>, transform_indices = @transform_9, window_bounds = array<i64: 128, 512>}, {pipeline_mode = #tpu.pipeline_mode<synchronous>, transform_indices = @transform_10, window_bounds = array<i64: 1, 512>}, {pipeline_mode = #tpu.pipeline_mode<synchronous>, transform_indices = @transform_11, window_bounds = array<i64: 512, 128>}, {pipeline_mode = #tpu.pipeline_mode<synchronous>, transform_indices = @transform_12, window_bounds = array<i64: 1, 128>}, {transform_indices = @transform_13, window_bounds = array<i64: 1, 24, 128>}]} {
    %c0 = arith.constant 0 : index
    %c0_0 = arith.constant 0 : index
    %c0_1 = arith.constant 0 : index
    %0 = vector.load %arg1[%c0, %c0_0, %c0_1] : memref<1x24x128xbf16, #tpu.memory_space<vmem>>, vector<1x24x128xbf16>
    %1 = vector.shape_cast %0 : vector<1x24x128xbf16> to vector<24x128xbf16>
    %2 = arith.extf %1 : vector<24x128xbf16> to vector<24x128xf32>
    %c0_2 = arith.constant 0 : index
    %c0_3 = arith.constant 0 : index
    %3 = vector.load %arg2[%c0_2, %c0_3] : memref<1x128xf32, #tpu.memory_space<vmem>>, vector<1x128xf32>
    %c0_4 = arith.constant 0 : index
    %c0_5 = arith.constant 0 : index
    %4 = vector.load %arg3[%c0_4, %c0_5] : memref<1x128xf32, #tpu.memory_space<vmem>>, vector<1x128xf32>
    %cst = arith.constant dense<0.000000e+00> : vector<24xf32>
    %5 = vector.multi_reduction <add>, %2, %cst [1] : vector<24x128xf32> to vector<24xf32>
    %6 = vector.shape_cast %5 : vector<24xf32> to vector<24x1xf32>
    %cst_6 = arith.constant 1.280000e+02 : f32
    %7 = vector.broadcast %cst_6 : f32 to vector<24x1xf32>
    %8 = arith.divf %6, %7 : vector<24x1xf32>
    %9 = vector.broadcast %8 : vector<24x1xf32> to vector<24x128xf32>
    %10 = arith.subf %2, %9 : vector<24x128xf32>
    %11 = arith.mulf %10, %10 : vector<24x128xf32>
    %cst_7 = arith.constant dense<0.000000e+00> : vector<24xf32>
    %12 = vector.multi_reduction <add>, %11, %cst_7 [1] : vector<24x128xf32> to vector<24xf32>
    %13 = vector.shape_cast %12 : vector<24xf32> to vector<24x1xf32>
    %cst_8 = arith.constant 1.280000e+02 : f32
    %14 = vector.broadcast %cst_8 : f32 to vector<24x1xf32>
    %15 = arith.divf %13, %14 : vector<24x1xf32>
    %cst_9 = arith.constant 9.99999997E-7 : f32
    %16 = vector.broadcast %cst_9 : f32 to vector<24x1xf32>
    %17 = arith.addf %15, %16 : vector<24x1xf32>
    %18 = math.rsqrt %17 : vector<24x1xf32>
    %19 = vector.broadcast %18 : vector<24x1xf32> to vector<24x128xf32>
    %20 = arith.mulf %10, %19 : vector<24x128xf32>
    %21 = vector.broadcast %3 : vector<1x128xf32> to vector<24x128xf32>
    %22 = arith.mulf %20, %21 : vector<24x128xf32>
    %23 = vector.broadcast %4 : vector<1x128xf32> to vector<24x128xf32>
    %24 = arith.addf %22, %23 : vector<24x128xf32>
    %25 = arith.truncf %24 : vector<24x128xf32> to vector<24x128xbf16>
    %c0_10 = arith.constant 0 : index
    %c0_11 = arith.constant 0 : index
    %26 = vector.load %arg4[%c0_10, %c0_11] : memref<128x384xbf16, #tpu.memory_space<vmem>>, vector<128x384xbf16>
    %cst_12 = arith.constant dense<0.000000e+00> : vector<24x384xf32>
    %27 = tpu.matmul %25, %26, %cst_12 {dimension_numbers = #tpu.dot_dimension_numbers<[1], [0], [0], [1], [0, 0, 1, 1], [], []>} : vector<24x128xbf16>, vector<128x384xbf16>, vector<24x384xf32> -> vector<24x384xf32>
    %c0_13 = arith.constant 0 : index
    %c0_14 = arith.constant 0 : index
    %28 = vector.load %arg5[%c0_13, %c0_14] : memref<1x384xf32, #tpu.memory_space<vmem>>, vector<1x384xf32>
    %29 = vector.broadcast %28 : vector<1x384xf32> to vector<24x384xf32>
    %30 = arith.addf %27, %29 : vector<24x384xf32>
    %31 = vector.extract_strided_slice %30 {offsets = [0, 0], sizes = [24, 128], strides = [1, 1]} : vector<24x384xf32> to vector<24x128xf32>
    %32 = vector.extract_strided_slice %30 {offsets = [0, 128], sizes = [24, 128], strides = [1, 1]} : vector<24x384xf32> to vector<24x128xf32>
    %33 = vector.extract_strided_slice %30 {offsets = [0, 256], sizes = [24, 128], strides = [1, 1]} : vector<24x384xf32> to vector<24x128xf32>
    %cst_15 = arith.constant 0.000000e+00 : f32
    %34 = vector.broadcast %cst_15 : f32 to vector<104x128xf32>
    %35 = tpu.concatenate %32, %34 in 0 : vector<24x128xf32>, vector<104x128xf32> -> vector<128x128xf32>
    %36 = arith.truncf %35 : vector<128x128xf32> to vector<128x128xbf16>
    %37 = tpu.concatenate %33, %34 in 0 : vector<24x128xf32>, vector<104x128xf32> -> vector<128x128xf32>
    %38 = arith.truncf %37 : vector<128x128xf32> to vector<128x128xbf16>
    %39 = arith.truncf %31 : vector<24x128xf32> to vector<24x128xbf16>
    %40 = tpu.iota {dimensions = array<i32: 1>} : vector<1x128xi32>
    %c17_i32 = arith.constant 17 : i32
    %41 = vector.broadcast %c17_i32 : i32 to vector<1x128xi32>
    %42 = arith.cmpi slt, %40, %41 : vector<1x128xi32>
    %c24_i32 = arith.constant 24 : i32
    %43 = vector.broadcast %c24_i32 : i32 to vector<1x128xi32>
    %44 = arith.cmpi sge, %40, %43 : vector<1x128xi32>
    %c24_i32_16 = arith.constant 24 : i32
    %45 = vector.broadcast %c24_i32_16 : i32 to vector<1x128xi32>
    %46 = arith.cmpi slt, %40, %45 : vector<1x128xi32>
    %47 = arith.andi %44, %46 : vector<1x128xi1>
    %48 = arith.ori %42, %47 : vector<1x128xi1>
    %cst_17 = arith.constant 0.000000e+00 : f32
    %cst_18 = arith.constant -1.000000e+30 : f32
    %49 = vector.broadcast %cst_17 : f32 to vector<1x128xf32>
    %50 = vector.broadcast %cst_18 : f32 to vector<1x128xf32>
    %51 = arith.select %48, %49, %50 : vector<1x128xi1>, vector<1x128xf32>
    %52 = vector.extract_strided_slice %39 {offsets = [0, 0], sizes = [24, 32], strides = [1, 1]} : vector<24x128xbf16> to vector<24x32xbf16>
    %53 = vector.extract_strided_slice %36 {offsets = [0, 0], sizes = [128, 32], strides = [1, 1]} : vector<128x128xbf16> to vector<128x32xbf16>
    "tpu.trace_start"() <{level = 10 : i32, message = "qd,kd->qk"}> : () -> ()
    %cst_19 = arith.constant dense<0.000000e+00> : vector<24x128xf32>
    %54 = tpu.matmul %52, %53, %cst_19 {dimension_numbers = #tpu.dot_dimension_numbers<[1], [1], [0], [0], [0, 0, 1, 0], [], []>} : vector<24x32xbf16>, vector<128x32xbf16>, vector<24x128xf32> -> vector<24x128xf32>
    "tpu.trace_stop"() : () -> ()
    %cst_20 = arith.constant 0.176776692 : f32
    %55 = vector.broadcast %cst_20 : f32 to vector<24x128xf32>
    %56 = arith.mulf %54, %55 : vector<24x128xf32>
    %57 = vector.broadcast %51 : vector<1x128xf32> to vector<24x128xf32>
    %58 = arith.addf %56, %57 : vector<24x128xf32>
    %cst_21 = arith.constant dense<0xFF800000> : vector<24xf32>
    %59 = vector.multi_reduction <maximumf>, %58, %cst_21 [1] : vector<24x128xf32> to vector<24xf32>
    %60 = vector.shape_cast %59 : vector<24xf32> to vector<24x1xf32>
    %61 = vector.broadcast %60 : vector<24x1xf32> to vector<24x128xf32>
    %62 = arith.subf %58, %61 : vector<24x128xf32>
    %63 = math.exp %62 : vector<24x128xf32>
    %cst_22 = arith.constant dense<0.000000e+00> : vector<24xf32>
    %64 = vector.multi_reduction <add>, %63, %cst_22 [1] : vector<24x128xf32> to vector<24xf32>
    %65 = vector.shape_cast %64 : vector<24xf32> to vector<24x1xf32>
    %66 = arith.truncf %63 : vector<24x128xf32> to vector<24x128xbf16>
    %67 = vector.extract_strided_slice %38 {offsets = [0, 0], sizes = [128, 32], strides = [1, 1]} : vector<128x128xbf16> to vector<128x32xbf16>
    %cst_23 = arith.constant dense<0.000000e+00> : vector<24x32xf32>
    %68 = tpu.matmul %66, %67, %cst_23 {dimension_numbers = #tpu.dot_dimension_numbers<[1], [0], [0], [1], [0, 0, 1, 1], [], []>} : vector<24x128xbf16>, vector<128x32xbf16>, vector<24x32xf32> -> vector<24x32xf32>
    %69 = tpu.reciprocal %65 {approx = true} : vector<24x1xf32> -> vector<24x1xf32>
    %70 = vector.broadcast %69 : vector<24x1xf32> to vector<24x32xf32>
    %71 = arith.mulf %68, %70 : vector<24x32xf32>
    %72 = arith.truncf %71 : vector<24x32xf32> to vector<24x32xbf16>
    %73 = vector.extract_strided_slice %39 {offsets = [0, 32], sizes = [24, 32], strides = [1, 1]} : vector<24x128xbf16> to vector<24x32xbf16>
    %74 = vector.extract_strided_slice %36 {offsets = [0, 32], sizes = [128, 32], strides = [1, 1]} : vector<128x128xbf16> to vector<128x32xbf16>
    "tpu.trace_start"() <{level = 10 : i32, message = "qd,kd->qk"}> : () -> ()
    %cst_24 = arith.constant dense<0.000000e+00> : vector<24x128xf32>
    %75 = tpu.matmul %73, %74, %cst_24 {dimension_numbers = #tpu.dot_dimension_numbers<[1], [1], [0], [0], [0, 0, 1, 0], [], []>} : vector<24x32xbf16>, vector<128x32xbf16>, vector<24x128xf32> -> vector<24x128xf32>
    "tpu.trace_stop"() : () -> ()
    %cst_25 = arith.constant 0.176776692 : f32
    %76 = vector.broadcast %cst_25 : f32 to vector<24x128xf32>
    %77 = arith.mulf %75, %76 : vector<24x128xf32>
    %78 = vector.broadcast %51 : vector<1x128xf32> to vector<24x128xf32>
    %79 = arith.addf %77, %78 : vector<24x128xf32>
    %cst_26 = arith.constant dense<0xFF800000> : vector<24xf32>
    %80 = vector.multi_reduction <maximumf>, %79, %cst_26 [1] : vector<24x128xf32> to vector<24xf32>
    %81 = vector.shape_cast %80 : vector<24xf32> to vector<24x1xf32>
    %82 = vector.broadcast %81 : vector<24x1xf32> to vector<24x128xf32>
    %83 = arith.subf %79, %82 : vector<24x128xf32>
    %84 = math.exp %83 : vector<24x128xf32>
    %cst_27 = arith.constant dense<0.000000e+00> : vector<24xf32>
    %85 = vector.multi_reduction <add>, %84, %cst_27 [1] : vector<24x128xf32> to vector<24xf32>
    %86 = vector.shape_cast %85 : vector<24xf32> to vector<24x1xf32>
    %87 = arith.truncf %84 : vector<24x128xf32> to vector<24x128xbf16>
    %88 = vector.extract_strided_slice %38 {offsets = [0, 32], sizes = [128, 32], strides = [1, 1]} : vector<128x128xbf16> to vector<128x32xbf16>
    %cst_28 = arith.constant dense<0.000000e+00> : vector<24x32xf32>
    %89 = tpu.matmul %87, %88, %cst_28 {dimension_numbers = #tpu.dot_dimension_numbers<[1], [0], [0], [1], [0, 0, 1, 1], [], []>} : vector<24x128xbf16>, vector<128x32xbf16>, vector<24x32xf32> -> vector<24x32xf32>
    %90 = tpu.reciprocal %86 {approx = true} : vector<24x1xf32> -> vector<24x1xf32>
    %91 = vector.broadcast %90 : vector<24x1xf32> to vector<24x32xf32>
    %92 = arith.mulf %89, %91 : vector<24x32xf32>
    %93 = arith.truncf %92 : vector<24x32xf32> to vector<24x32xbf16>
    %94 = vector.extract_strided_slice %39 {offsets = [0, 64], sizes = [24, 32], strides = [1, 1]} : vector<24x128xbf16> to vector<24x32xbf16>
    %95 = vector.extract_strided_slice %36 {offsets = [0, 64], sizes = [128, 32], strides = [1, 1]} : vector<128x128xbf16> to vector<128x32xbf16>
    "tpu.trace_start"() <{level = 10 : i32, message = "qd,kd->qk"}> : () -> ()
    %cst_29 = arith.constant dense<0.000000e+00> : vector<24x128xf32>
    %96 = tpu.matmul %94, %95, %cst_29 {dimension_numbers = #tpu.dot_dimension_numbers<[1], [1], [0], [0], [0, 0, 1, 0], [], []>} : vector<24x32xbf16>, vector<128x32xbf16>, vector<24x128xf32> -> vector<24x128xf32>
    "tpu.trace_stop"() : () -> ()
    %cst_30 = arith.constant 0.176776692 : f32
    %97 = vector.broadcast %cst_30 : f32 to vector<24x128xf32>
    %98 = arith.mulf %96, %97 : vector<24x128xf32>
    %99 = vector.broadcast %51 : vector<1x128xf32> to vector<24x128xf32>
    %100 = arith.addf %98, %99 : vector<24x128xf32>
    %cst_31 = arith.constant dense<0xFF800000> : vector<24xf32>
    %101 = vector.multi_reduction <maximumf>, %100, %cst_31 [1] : vector<24x128xf32> to vector<24xf32>
    %102 = vector.shape_cast %101 : vector<24xf32> to vector<24x1xf32>
    %103 = vector.broadcast %102 : vector<24x1xf32> to vector<24x128xf32>
    %104 = arith.subf %100, %103 : vector<24x128xf32>
    %105 = math.exp %104 : vector<24x128xf32>
    %cst_32 = arith.constant dense<0.000000e+00> : vector<24xf32>
    %106 = vector.multi_reduction <add>, %105, %cst_32 [1] : vector<24x128xf32> to vector<24xf32>
    %107 = vector.shape_cast %106 : vector<24xf32> to vector<24x1xf32>
    %108 = arith.truncf %105 : vector<24x128xf32> to vector<24x128xbf16>
    %109 = vector.extract_strided_slice %38 {offsets = [0, 64], sizes = [128, 32], strides = [1, 1]} : vector<128x128xbf16> to vector<128x32xbf16>
    %cst_33 = arith.constant dense<0.000000e+00> : vector<24x32xf32>
    %110 = tpu.matmul %108, %109, %cst_33 {dimension_numbers = #tpu.dot_dimension_numbers<[1], [0], [0], [1], [0, 0, 1, 1], [], []>} : vector<24x128xbf16>, vector<128x32xbf16>, vector<24x32xf32> -> vector<24x32xf32>
    %111 = tpu.reciprocal %107 {approx = true} : vector<24x1xf32> -> vector<24x1xf32>
    %112 = vector.broadcast %111 : vector<24x1xf32> to vector<24x32xf32>
    %113 = arith.mulf %110, %112 : vector<24x32xf32>
    %114 = arith.truncf %113 : vector<24x32xf32> to vector<24x32xbf16>
    %115 = vector.extract_strided_slice %39 {offsets = [0, 96], sizes = [24, 32], strides = [1, 1]} : vector<24x128xbf16> to vector<24x32xbf16>
    %116 = vector.extract_strided_slice %36 {offsets = [0, 96], sizes = [128, 32], strides = [1, 1]} : vector<128x128xbf16> to vector<128x32xbf16>
    "tpu.trace_start"() <{level = 10 : i32, message = "qd,kd->qk"}> : () -> ()
    %cst_34 = arith.constant dense<0.000000e+00> : vector<24x128xf32>
    %117 = tpu.matmul %115, %116, %cst_34 {dimension_numbers = #tpu.dot_dimension_numbers<[1], [1], [0], [0], [0, 0, 1, 0], [], []>} : vector<24x32xbf16>, vector<128x32xbf16>, vector<24x128xf32> -> vector<24x128xf32>
    "tpu.trace_stop"() : () -> ()
    %cst_35 = arith.constant 0.176776692 : f32
    %118 = vector.broadcast %cst_35 : f32 to vector<24x128xf32>
    %119 = arith.mulf %117, %118 : vector<24x128xf32>
    %120 = vector.broadcast %51 : vector<1x128xf32> to vector<24x128xf32>
    %121 = arith.addf %119, %120 : vector<24x128xf32>
    %cst_36 = arith.constant dense<0xFF800000> : vector<24xf32>
    %122 = vector.multi_reduction <maximumf>, %121, %cst_36 [1] : vector<24x128xf32> to vector<24xf32>
    %123 = vector.shape_cast %122 : vector<24xf32> to vector<24x1xf32>
    %124 = vector.broadcast %123 : vector<24x1xf32> to vector<24x128xf32>
    %125 = arith.subf %121, %124 : vector<24x128xf32>
    %126 = math.exp %125 : vector<24x128xf32>
    %cst_37 = arith.constant dense<0.000000e+00> : vector<24xf32>
    %127 = vector.multi_reduction <add>, %126, %cst_37 [1] : vector<24x128xf32> to vector<24xf32>
    %128 = vector.shape_cast %127 : vector<24xf32> to vector<24x1xf32>
    %129 = arith.truncf %126 : vector<24x128xf32> to vector<24x128xbf16>
    %130 = vector.extract_strided_slice %38 {offsets = [0, 96], sizes = [128, 32], strides = [1, 1]} : vector<128x128xbf16> to vector<128x32xbf16>
    %cst_38 = arith.constant dense<0.000000e+00> : vector<24x32xf32>
    %131 = tpu.matmul %129, %130, %cst_38 {dimension_numbers = #tpu.dot_dimension_numbers<[1], [0], [0], [1], [0, 0, 1, 1], [], []>} : vector<24x128xbf16>, vector<128x32xbf16>, vector<24x32xf32> -> vector<24x32xf32>
    %132 = tpu.reciprocal %128 {approx = true} : vector<24x1xf32> -> vector<24x1xf32>
    %133 = vector.broadcast %132 : vector<24x1xf32> to vector<24x32xf32>
    %134 = arith.mulf %131, %133 : vector<24x32xf32>
    %135 = arith.truncf %134 : vector<24x32xf32> to vector<24x32xbf16>
    %136 = tpu.concatenate %72, %93, %114, %135 in 1 : vector<24x32xbf16>, vector<24x32xbf16>, vector<24x32xbf16>, vector<24x32xbf16> -> vector<24x128xbf16>
    %c0_39 = arith.constant 0 : index
    %c0_40 = arith.constant 0 : index
    %137 = vector.load %arg6[%c0_39, %c0_40] : memref<128x128xbf16, #tpu.memory_space<vmem>>, vector<128x128xbf16>
    %cst_41 = arith.constant dense<0.000000e+00> : vector<24x128xf32>
    %138 = tpu.matmul %136, %137, %cst_41 {dimension_numbers = #tpu.dot_dimension_numbers<[1], [0], [0], [1], [0, 0, 1, 1], [], []>} : vector<24x128xbf16>, vector<128x128xbf16>, vector<24x128xf32> -> vector<24x128xf32>
    %139 = arith.addf %2, %138 : vector<24x128xf32>
    %c0_42 = arith.constant 0 : index
    %c0_43 = arith.constant 0 : index
    %140 = vector.load %arg7[%c0_42, %c0_43] : memref<1x128xf32, #tpu.memory_space<vmem>>, vector<1x128xf32>
    %141 = vector.broadcast %140 : vector<1x128xf32> to vector<24x128xf32>
    %142 = arith.addf %139, %141 : vector<24x128xf32>
    %c0_44 = arith.constant 0 : index
    %c0_45 = arith.constant 0 : index
    %143 = vector.load %arg8[%c0_44, %c0_45] : memref<1x128xf32, #tpu.memory_space<vmem>>, vector<1x128xf32>
    %c0_46 = arith.constant 0 : index
    %c0_47 = arith.constant 0 : index
    %144 = vector.load %arg9[%c0_46, %c0_47] : memref<1x128xf32, #tpu.memory_space<vmem>>, vector<1x128xf32>
    %cst_48 = arith.constant dense<0.000000e+00> : vector<24xf32>
    %145 = vector.multi_reduction <add>, %142, %cst_48 [1] : vector<24x128xf32> to vector<24xf32>
    %146 = vector.shape_cast %145 : vector<24xf32> to vector<24x1xf32>
    %cst_49 = arith.constant 1.280000e+02 : f32
    %147 = vector.broadcast %cst_49 : f32 to vector<24x1xf32>
    %148 = arith.divf %146, %147 : vector<24x1xf32>
    %149 = vector.broadcast %148 : vector<24x1xf32> to vector<24x128xf32>
    %150 = arith.subf %142, %149 : vector<24x128xf32>
    %151 = arith.mulf %150, %150 : vector<24x128xf32>
    %cst_50 = arith.constant dense<0.000000e+00> : vector<24xf32>
    %152 = vector.multi_reduction <add>, %151, %cst_50 [1] : vector<24x128xf32> to vector<24xf32>
    %153 = vector.shape_cast %152 : vector<24xf32> to vector<24x1xf32>
    %cst_51 = arith.constant 1.280000e+02 : f32
    %154 = vector.broadcast %cst_51 : f32 to vector<24x1xf32>
    %155 = arith.divf %153, %154 : vector<24x1xf32>
    %cst_52 = arith.constant 9.99999997E-7 : f32
    %156 = vector.broadcast %cst_52 : f32 to vector<24x1xf32>
    %157 = arith.addf %155, %156 : vector<24x1xf32>
    %158 = math.rsqrt %157 : vector<24x1xf32>
    %159 = vector.broadcast %158 : vector<24x1xf32> to vector<24x128xf32>
    %160 = arith.mulf %150, %159 : vector<24x128xf32>
    %161 = vector.broadcast %143 : vector<1x128xf32> to vector<24x128xf32>
    %162 = arith.mulf %160, %161 : vector<24x128xf32>
    %163 = vector.broadcast %144 : vector<1x128xf32> to vector<24x128xf32>
    %164 = arith.addf %162, %163 : vector<24x128xf32>
    %165 = arith.truncf %164 : vector<24x128xf32> to vector<24x128xbf16>
    %c0_53 = arith.constant 0 : index
    %c0_54 = arith.constant 0 : index
    %166 = vector.load %arg10[%c0_53, %c0_54] : memref<128x512xbf16, #tpu.memory_space<vmem>>, vector<128x512xbf16>
    %cst_55 = arith.constant dense<0.000000e+00> : vector<24x512xf32>
    %167 = tpu.matmul %165, %166, %cst_55 {dimension_numbers = #tpu.dot_dimension_numbers<[1], [0], [0], [1], [0, 0, 1, 1], [], []>} : vector<24x128xbf16>, vector<128x512xbf16>, vector<24x512xf32> -> vector<24x512xf32>
    %c0_56 = arith.constant 0 : index
    %c0_57 = arith.constant 0 : index
    %168 = vector.load %arg11[%c0_56, %c0_57] : memref<1x512xf32, #tpu.memory_space<vmem>>, vector<1x512xf32>
    %169 = vector.broadcast %168 : vector<1x512xf32> to vector<24x512xf32>
    %170 = arith.addf %167, %169 : vector<24x512xf32>
    %cst_58 = arith.constant 5.000000e-01 : f32
    %171 = vector.broadcast %cst_58 : f32 to vector<24x512xf32>
    %172 = arith.mulf %171, %170 : vector<24x512xf32>
    %cst_59 = arith.constant 0.707106769 : f32
    %173 = vector.broadcast %cst_59 : f32 to vector<24x512xf32>
    %174 = arith.mulf %170, %173 : vector<24x512xf32>
    %175 = math.erf %174 : vector<24x512xf32>
    %cst_60 = arith.constant 1.000000e+00 : f32
    %176 = vector.broadcast %cst_60 : f32 to vector<24x512xf32>
    %177 = arith.addf %176, %175 : vector<24x512xf32>
    %178 = arith.mulf %172, %177 : vector<24x512xf32>
    %179 = arith.truncf %178 : vector<24x512xf32> to vector<24x512xbf16>
    %c0_61 = arith.constant 0 : index
    %c0_62 = arith.constant 0 : index
    %180 = vector.load %arg12[%c0_61, %c0_62] : memref<512x128xbf16, #tpu.memory_space<vmem>>, vector<512x128xbf16>
    %cst_63 = arith.constant dense<0.000000e+00> : vector<24x128xf32>
    %181 = tpu.matmul %179, %180, %cst_63 {dimension_numbers = #tpu.dot_dimension_numbers<[1], [0], [0], [1], [0, 0, 1, 1], [], []>} : vector<24x512xbf16>, vector<512x128xbf16>, vector<24x128xf32> -> vector<24x128xf32>
    %c0_64 = arith.constant 0 : index
    %c0_65 = arith.constant 0 : index
    %182 = vector.load %arg13[%c0_64, %c0_65] : memref<1x128xf32, #tpu.memory_space<vmem>>, vector<1x128xf32>
    %183 = vector.broadcast %182 : vector<1x128xf32> to vector<24x128xf32>
    %184 = arith.addf %181, %183 : vector<24x128xf32>
    %185 = arith.addf %142, %184 : vector<24x128xf32>
    %186 = arith.truncf %185 : vector<24x128xf32> to vector<24x128xbf16>
    %c0_66 = arith.constant 0 : index
    %c0_67 = arith.constant 0 : index
    %c0_68 = arith.constant 0 : index
    %187 = vector.load %arg14[%c0_66, %c0_67, %c0_68] : memref<1x24x128xbf16, #tpu.memory_space<vmem>>, vector<1x24x128xbf16>
    %188 = vector.shape_cast %187 : vector<1x24x128xbf16> to vector<24x128xbf16>
    %189 = vector.shape_cast %186 : vector<24x128xbf16> to vector<1x24x128xbf16>
    tpu.vector_store %arg14[%c0_66, %c0_67, %c0_68], %189 {strides = array<i32>} : memref<1x24x128xbf16, #tpu.memory_space<vmem>>, vector<1x24x128xbf16>,
    return
  }
  func.func @transform_0(%arg0: i32) -> (i32, i32, i32) {
    %c0_i32 = arith.constant 0 : i32
    %c0_i32_0 = arith.constant 0 : i32
    %c0_i32_1 = arith.constant 0 : i32
    return %arg0, %c0_i32, %c0_i32_0 : i32, i32, i32
  }
  func.func @transform_1(%arg0: i32) -> (i32, i32) {
    %c0_i32 = arith.constant 0 : i32
    %c0_i32_0 = arith.constant 0 : i32
    %c0_i32_1 = arith.constant 0 : i32
    return %c0_i32, %c0_i32_0 : i32, i32
  }
  func.func @transform_2(%arg0: i32) -> (i32, i32) {
    %c0_i32 = arith.constant 0 : i32
    %c0_i32_0 = arith.constant 0 : i32
    %c0_i32_1 = arith.constant 0 : i32
    return %c0_i32, %c0_i32_0 : i32, i32
  }
  func.func @transform_3(%arg0: i32) -> (i32, i32) {
    %c0_i32 = arith.constant 0 : i32
    %c0_i32_0 = arith.constant 0 : i32
    %c0_i32_1 = arith.constant 0 : i32
    return %c0_i32, %c0_i32_0 : i32, i32
  }
  func.func @transform_4(%arg0: i32) -> (i32, i32) {
    %c0_i32 = arith.constant 0 : i32
    %c0_i32_0 = arith.constant 0 : i32
    %c0_i32_1 = arith.constant 0 : i32
    return %c0_i32, %c0_i32_0 : i32, i32
  }
  func.func @transform_5(%arg0: i32) -> (i32, i32) {
    %c0_i32 = arith.constant 0 : i32
    %c0_i32_0 = arith.constant 0 : i32
    %c0_i32_1 = arith.constant 0 : i32
    return %c0_i32, %c0_i32_0 : i32, i32
  }
  func.func @transform_6(%arg0: i32) -> (i32, i32) {
    %c0_i32 = arith.constant 0 : i32
    %c0_i32_0 = arith.constant 0 : i32
    %c0_i32_1 = arith.constant 0 : i32
    return %c0_i32, %c0_i32_0 : i32, i32
  }
  func.func @transform_7(%arg0: i32) -> (i32, i32) {
    %c0_i32 = arith.constant 0 : i32
    %c0_i32_0 = arith.constant 0 : i32
    %c0_i32_1 = arith.constant 0 : i32
    return %c0_i32, %c0_i32_0 : i32, i32
  }
  func.func @transform_8(%arg0: i32) -> (i32, i32) {
    %c0_i32 = arith.constant 0 : i32
    %c0_i32_0 = arith.constant 0 : i32
    %c0_i32_1 = arith.constant 0 : i32
    return %c0_i32, %c0_i32_0 : i32, i32
  }
  func.func @transform_9(%arg0: i32) -> (i32, i32) {
    %c0_i32 = arith.constant 0 : i32
    %c0_i32_0 = arith.constant 0 : i32
    %c0_i32_1 = arith.constant 0 : i32
    return %c0_i32, %c0_i32_0 : i32, i32
  }
  func.func @transform_10(%arg0: i32) -> (i32, i32) {
    %c0_i32 = arith.constant 0 : i32
    %c0_i32_0 = arith.constant 0 : i32
    %c0_i32_1 = arith.constant 0 : i32
    return %c0_i32, %c0_i32_0 : i32, i32
  }
  func.func @transform_11(%arg0: i32) -> (i32, i32) {
    %c0_i32 = arith.constant 0 : i32
    %c0_i32_0 = arith.constant 0 : i32
    %c0_i32_1 = arith.constant 0 : i32
    return %c0_i32, %c0_i32_0 : i32, i32
  }
  func.func @transform_12(%arg0: i32) -> (i32, i32) {
    %c0_i32 = arith.constant 0 : i32
    %c0_i32_0 = arith.constant 0 : i32
    %c0_i32_1 = arith.constant 0 : i32
    return %c0_i32, %c0_i32_0 : i32, i32
  }
  func.func @transform_13(%arg0: i32) -> (i32, i32, i32) {
    %c0_i32 = arith.constant 0 : i32
    %c0_i32_0 = arith.constant 0 : i32
    %c0_i32_1 = arith.constant 0 : i32
    return %arg0, %c0_i32, %c0_i32_0 : i32, i32, i32
  }
}

module attributes {stable_mosaic.version = 11 : i64} {
  func.func @_block_kernel(%arg0: i32, %arg1: memref<2x128xf32, #tpu.memory_space<vmem>>, %arg2: memref<4x128xf32, #tpu.memory_space<vmem>>, %arg3: memref<4x128xf32, #tpu.memory_space<vmem>>, %arg4: memref<4x512xbf16, #tpu.memory_space<vmem>>, %arg5: memref<1x24x128xbf16, #tpu.memory_space<vmem>>, %arg6: memref<1x128xf32, #tpu.memory_space<vmem>>, %arg7: memref<1x128xf32, #tpu.memory_space<vmem>>, %arg8: memref<128x384xbf16, #tpu.memory_space<vmem>>, %arg9: memref<1x384xf32, #tpu.memory_space<vmem>>, %arg10: memref<128x128xbf16, #tpu.memory_space<vmem>>, %arg11: memref<1x128xf32, #tpu.memory_space<vmem>>, %arg12: memref<1x128xf32, #tpu.memory_space<vmem>>, %arg13: memref<1x128xf32, #tpu.memory_space<vmem>>, %arg14: memref<128x512xbf16, #tpu.memory_space<vmem>>, %arg15: memref<1x512xf32, #tpu.memory_space<vmem>>, %arg16: memref<512x128xbf16, #tpu.memory_space<vmem>>, %arg17: memref<1x128xf32, #tpu.memory_space<vmem>>, %arg18: memref<1x24x128xbf16, #tpu.memory_space<vmem>>) attributes {dimension_semantics = [#tpu.dimension_semantics<parallel>], iteration_bounds = array<i64: 2>, scalar_prefetch = 0 : i64, scratch_operands = 0 : i64, tpu.core_type = #tpu.core_type<tc>, window_params = [{pipeline_mode = #tpu.pipeline_mode<synchronous>, transform_indices = @transform_0, window_bounds = array<i64: 2, 128>}, {pipeline_mode = #tpu.pipeline_mode<synchronous>, transform_indices = @transform_1, window_bounds = array<i64: 4, 128>}, {pipeline_mode = #tpu.pipeline_mode<synchronous>, transform_indices = @transform_2, window_bounds = array<i64: 4, 128>}, {pipeline_mode = #tpu.pipeline_mode<synchronous>, transform_indices = @transform_3, window_bounds = array<i64: 4, 512>}, {transform_indices = @transform_4, window_bounds = array<i64: 1, 24, 128>}, {pipeline_mode = #tpu.pipeline_mode<synchronous>, transform_indices = @transform_5, window_bounds = array<i64: 1, 128>}, {pipeline_mode = #tpu.pipeline_mode<synchronous>, transform_indices = @transform_6, window_bounds = array<i64: 1, 128>}, {pipeline_mode = #tpu.pipeline_mode<synchronous>, transform_indices = @transform_7, window_bounds = array<i64: 128, 384>}, {pipeline_mode = #tpu.pipeline_mode<synchronous>, transform_indices = @transform_8, window_bounds = array<i64: 1, 384>}, {pipeline_mode = #tpu.pipeline_mode<synchronous>, transform_indices = @transform_9, window_bounds = array<i64: 128, 128>}, {pipeline_mode = #tpu.pipeline_mode<synchronous>, transform_indices = @transform_10, window_bounds = array<i64: 1, 128>}, {pipeline_mode = #tpu.pipeline_mode<synchronous>, transform_indices = @transform_11, window_bounds = array<i64: 1, 128>}, {pipeline_mode = #tpu.pipeline_mode<synchronous>, transform_indices = @transform_12, window_bounds = array<i64: 1, 128>}, {pipeline_mode = #tpu.pipeline_mode<synchronous>, transform_indices = @transform_13, window_bounds = array<i64: 128, 512>}, {pipeline_mode = #tpu.pipeline_mode<synchronous>, transform_indices = @transform_14, window_bounds = array<i64: 1, 512>}, {pipeline_mode = #tpu.pipeline_mode<synchronous>, transform_indices = @transform_15, window_bounds = array<i64: 512, 128>}, {pipeline_mode = #tpu.pipeline_mode<synchronous>, transform_indices = @transform_16, window_bounds = array<i64: 1, 128>}, {transform_indices = @transform_17, window_bounds = array<i64: 1, 24, 128>}]} {
    %c0 = arith.constant 0 : index
    %c0_0 = arith.constant 0 : index
    %c0_1 = arith.constant 0 : index
    %0 = vector.load %arg5[%c0, %c0_0, %c0_1] : memref<1x24x128xbf16, #tpu.memory_space<vmem>>, vector<1x24x128xbf16>
    %1 = vector.shape_cast %0 : vector<1x24x128xbf16> to vector<24x128xbf16>
    %2 = arith.extf %1 : vector<24x128xbf16> to vector<24x128xf32>
    %c0_2 = arith.constant 0 : index
    %c0_3 = arith.constant 0 : index
    %3 = vector.load %arg6[%c0_2, %c0_3] : memref<1x128xf32, #tpu.memory_space<vmem>>, vector<1x128xf32>
    %c0_4 = arith.constant 0 : index
    %c0_5 = arith.constant 0 : index
    %4 = vector.load %arg7[%c0_4, %c0_5] : memref<1x128xf32, #tpu.memory_space<vmem>>, vector<1x128xf32>
    %cst = arith.constant dense<0.000000e+00> : vector<24xf32>
    %5 = vector.multi_reduction <add>, %2, %cst [1] : vector<24x128xf32> to vector<24xf32>
    %6 = vector.shape_cast %5 : vector<24xf32> to vector<24x1xf32>
    %cst_6 = arith.constant 1.280000e+02 : f32
    %7 = vector.broadcast %cst_6 : f32 to vector<24x1xf32>
    %8 = arith.divf %6, %7 : vector<24x1xf32>
    %9 = vector.broadcast %8 : vector<24x1xf32> to vector<24x128xf32>
    %10 = arith.subf %2, %9 : vector<24x128xf32>
    %11 = arith.mulf %10, %10 : vector<24x128xf32>
    %cst_7 = arith.constant dense<0.000000e+00> : vector<24xf32>
    %12 = vector.multi_reduction <add>, %11, %cst_7 [1] : vector<24x128xf32> to vector<24xf32>
    %13 = vector.shape_cast %12 : vector<24xf32> to vector<24x1xf32>
    %cst_8 = arith.constant 1.280000e+02 : f32
    %14 = vector.broadcast %cst_8 : f32 to vector<24x1xf32>
    %15 = arith.divf %13, %14 : vector<24x1xf32>
    %cst_9 = arith.constant 9.99999997E-7 : f32
    %16 = vector.broadcast %cst_9 : f32 to vector<24x1xf32>
    %17 = arith.addf %15, %16 : vector<24x1xf32>
    %18 = math.rsqrt %17 : vector<24x1xf32>
    %19 = vector.broadcast %18 : vector<24x1xf32> to vector<24x128xf32>
    %20 = arith.mulf %10, %19 : vector<24x128xf32>
    %21 = vector.broadcast %3 : vector<1x128xf32> to vector<24x128xf32>
    %22 = arith.mulf %20, %21 : vector<24x128xf32>
    %23 = vector.broadcast %4 : vector<1x128xf32> to vector<24x128xf32>
    %24 = arith.addf %22, %23 : vector<24x128xf32>
    %25 = arith.truncf %24 : vector<24x128xf32> to vector<24x128xbf16>
    %c0_10 = arith.constant 0 : index
    %c0_11 = arith.constant 0 : index
    %26 = vector.load %arg8[%c0_10, %c0_11] : memref<128x384xbf16, #tpu.memory_space<vmem>>, vector<128x384xbf16>
    %cst_12 = arith.constant dense<0.000000e+00> : vector<24x384xf32>
    %27 = tpu.matmul %25, %26, %cst_12 {dimension_numbers = #tpu.dot_dimension_numbers<[1], [0], [0], [1], [0, 0, 1, 1], [], []>} : vector<24x128xbf16>, vector<128x384xbf16>, vector<24x384xf32> -> vector<24x384xf32>
    %c0_13 = arith.constant 0 : index
    %c0_14 = arith.constant 0 : index
    %28 = vector.load %arg9[%c0_13, %c0_14] : memref<1x384xf32, #tpu.memory_space<vmem>>, vector<1x384xf32>
    %29 = vector.broadcast %28 : vector<1x384xf32> to vector<24x384xf32>
    %30 = arith.addf %27, %29 : vector<24x384xf32>
    %31 = vector.extract_strided_slice %30 {offsets = [0, 0], sizes = [24, 128], strides = [1, 1]} : vector<24x384xf32> to vector<24x128xf32>
    %32 = vector.extract_strided_slice %30 {offsets = [0, 128], sizes = [24, 128], strides = [1, 1]} : vector<24x384xf32> to vector<24x128xf32>
    %33 = vector.extract_strided_slice %30 {offsets = [0, 256], sizes = [24, 128], strides = [1, 1]} : vector<24x384xf32> to vector<24x128xf32>
    %34 = arith.index_cast %arg0 : i32 to index
    %c0_15 = arith.constant 0 : index
    %35 = vector.load %arg1[%34, %c0_15] : memref<2x128xf32, #tpu.memory_space<vmem>>, vector<1x128xf32>
    %c0_16 = arith.constant 0 : index
    %c0_17 = arith.constant 0 : index
    %36 = vector.load %arg2[%c0_16, %c0_17] : memref<4x128xf32, #tpu.memory_space<vmem>>, vector<4x128xf32>
    %c0_18 = arith.constant 0 : index
    %c0_19 = arith.constant 0 : index
    %37 = vector.load %arg3[%c0_18, %c0_19] : memref<4x128xf32, #tpu.memory_space<vmem>>, vector<4x128xf32>
    %38 = vector.broadcast %35 : vector<1x128xf32> to vector<4x128xf32>
    %39 = arith.mulf %38, %36 : vector<4x128xf32>
    %40 = arith.mulf %39, %39 : vector<4x128xf32>
    %cst_20 = arith.constant dense<0.000000e+00> : vector<4xf32>
    %41 = vector.multi_reduction <add>, %40, %cst_20 [1] : vector<4x128xf32> to vector<4xf32>
    %42 = vector.shape_cast %41 : vector<4xf32> to vector<4x1xf32>
    %43 = math.sqrt %42 : vector<4x1xf32>
    %cst_21 = arith.constant 9.99999996E-13 : f32
    %44 = vector.broadcast %cst_21 : f32 to vector<4x1xf32>
    %45 = arith.maximumf %43, %44 : vector<4x1xf32>
    %46 = vector.broadcast %45 : vector<4x1xf32> to vector<4x128xf32>
    %47 = arith.divf %39, %46 : vector<4x128xf32>
    %48 = arith.mulf %47, %37 : vector<4x128xf32>
    %cst_22 = arith.constant dense<0.000000e+00> : vector<4xf32>
    %49 = vector.multi_reduction <add>, %48, %cst_22 [1] : vector<4x128xf32> to vector<4xf32>
    %50 = vector.shape_cast %49 : vector<4xf32> to vector<4x1xf32>
    %c0_23 = arith.constant 0 : index
    %c0_24 = arith.constant 0 : index
    %51 = vector.load %arg4[%c0_23, %c0_24] : memref<4x512xbf16, #tpu.memory_space<vmem>>, vector<4x512xbf16>
    %52 = arith.extf %51 : vector<4x512xbf16> to vector<4x512xf32>
    %53 = vector.broadcast %50 : vector<4x1xf32> to vector<4x512xf32>
    %54 = arith.mulf %53, %52 : vector<4x512xf32>
    %cst_25 = arith.constant dense<0.000000e+00> : vector<512xf32>
    %55 = vector.multi_reduction <add>, %54, %cst_25 [0] : vector<4x512xf32> to vector<512xf32>
    %56 = vector.shape_cast %55 : vector<512xf32> to vector<1x512xf32>
    %57 = vector.extract_strided_slice %56 {offsets = [0, 0], sizes = [1, 128], strides = [1, 1]} : vector<1x512xf32> to vector<1x128xf32>
    %58 = vector.extract_strided_slice %56 {offsets = [0, 128], sizes = [1, 128], strides = [1, 1]} : vector<1x512xf32> to vector<1x128xf32>
    %59 = vector.extract_strided_slice %56 {offsets = [0, 256], sizes = [1, 128], strides = [1, 1]} : vector<1x512xf32> to vector<1x128xf32>
    %60 = vector.extract_strided_slice %56 {offsets = [0, 384], sizes = [1, 128], strides = [1, 1]} : vector<1x512xf32> to vector<1x128xf32>
    %cst_26 = arith.constant 0.000000e+00 : f32
    %61 = vector.broadcast %cst_26 : f32 to vector<102x128xf32>
    %62 = tpu.concatenate %32, %57, %58, %61 in 0 : vector<24x128xf32>, vector<1x128xf32>, vector<1x128xf32>, vector<102x128xf32> -> vector<128x128xf32>
    %63 = arith.truncf %62 : vector<128x128xf32> to vector<128x128xbf16>
    %64 = tpu.concatenate %33, %59, %60, %61 in 0 : vector<24x128xf32>, vector<1x128xf32>, vector<1x128xf32>, vector<102x128xf32> -> vector<128x128xf32>
    %65 = arith.truncf %64 : vector<128x128xf32> to vector<128x128xbf16>
    %66 = arith.truncf %31 : vector<24x128xf32> to vector<24x128xbf16>
    %67 = tpu.iota {dimensions = array<i32: 1>} : vector<1x128xi32>
    %c17_i32 = arith.constant 17 : i32
    %68 = vector.broadcast %c17_i32 : i32 to vector<1x128xi32>
    %69 = arith.cmpi slt, %67, %68 : vector<1x128xi32>
    %c24_i32 = arith.constant 24 : i32
    %70 = vector.broadcast %c24_i32 : i32 to vector<1x128xi32>
    %71 = arith.cmpi sge, %67, %70 : vector<1x128xi32>
    %c26_i32 = arith.constant 26 : i32
    %72 = vector.broadcast %c26_i32 : i32 to vector<1x128xi32>
    %73 = arith.cmpi slt, %67, %72 : vector<1x128xi32>
    %74 = arith.andi %71, %73 : vector<1x128xi1>
    %75 = arith.ori %69, %74 : vector<1x128xi1>
    %cst_27 = arith.constant 0.000000e+00 : f32
    %cst_28 = arith.constant -1.000000e+30 : f32
    %76 = vector.broadcast %cst_27 : f32 to vector<1x128xf32>
    %77 = vector.broadcast %cst_28 : f32 to vector<1x128xf32>
    %78 = arith.select %75, %76, %77 : vector<1x128xi1>, vector<1x128xf32>
    %79 = vector.extract_strided_slice %66 {offsets = [0, 0], sizes = [24, 32], strides = [1, 1]} : vector<24x128xbf16> to vector<24x32xbf16>
    %80 = vector.extract_strided_slice %63 {offsets = [0, 0], sizes = [128, 32], strides = [1, 1]} : vector<128x128xbf16> to vector<128x32xbf16>
    "tpu.trace_start"() <{level = 10 : i32, message = "qd,kd->qk"}> : () -> ()
    %cst_29 = arith.constant dense<0.000000e+00> : vector<24x128xf32>
    %81 = tpu.matmul %79, %80, %cst_29 {dimension_numbers = #tpu.dot_dimension_numbers<[1], [1], [0], [0], [0, 0, 1, 0], [], []>} : vector<24x32xbf16>, vector<128x32xbf16>, vector<24x128xf32> -> vector<24x128xf32>
    "tpu.trace_stop"() : () -> ()
    %cst_30 = arith.constant 0.176776692 : f32
    %82 = vector.broadcast %cst_30 : f32 to vector<24x128xf32>
    %83 = arith.mulf %81, %82 : vector<24x128xf32>
    %84 = vector.broadcast %78 : vector<1x128xf32> to vector<24x128xf32>
    %85 = arith.addf %83, %84 : vector<24x128xf32>
    %cst_31 = arith.constant dense<0xFF800000> : vector<24xf32>
    %86 = vector.multi_reduction <maximumf>, %85, %cst_31 [1] : vector<24x128xf32> to vector<24xf32>
    %87 = vector.shape_cast %86 : vector<24xf32> to vector<24x1xf32>
    %88 = vector.broadcast %87 : vector<24x1xf32> to vector<24x128xf32>
    %89 = arith.subf %85, %88 : vector<24x128xf32>
    %90 = math.exp %89 : vector<24x128xf32>
    %cst_32 = arith.constant dense<0.000000e+00> : vector<24xf32>
    %91 = vector.multi_reduction <add>, %90, %cst_32 [1] : vector<24x128xf32> to vector<24xf32>
    %92 = vector.shape_cast %91 : vector<24xf32> to vector<24x1xf32>
    %93 = arith.truncf %90 : vector<24x128xf32> to vector<24x128xbf16>
    %94 = vector.extract_strided_slice %65 {offsets = [0, 0], sizes = [128, 32], strides = [1, 1]} : vector<128x128xbf16> to vector<128x32xbf16>
    %cst_33 = arith.constant dense<0.000000e+00> : vector<24x32xf32>
    %95 = tpu.matmul %93, %94, %cst_33 {dimension_numbers = #tpu.dot_dimension_numbers<[1], [0], [0], [1], [0, 0, 1, 1], [], []>} : vector<24x128xbf16>, vector<128x32xbf16>, vector<24x32xf32> -> vector<24x32xf32>
    %96 = tpu.reciprocal %92 {approx = true} : vector<24x1xf32> -> vector<24x1xf32>
    %97 = vector.broadcast %96 : vector<24x1xf32> to vector<24x32xf32>
    %98 = arith.mulf %95, %97 : vector<24x32xf32>
    %99 = arith.truncf %98 : vector<24x32xf32> to vector<24x32xbf16>
    %100 = vector.extract_strided_slice %66 {offsets = [0, 32], sizes = [24, 32], strides = [1, 1]} : vector<24x128xbf16> to vector<24x32xbf16>
    %101 = vector.extract_strided_slice %63 {offsets = [0, 32], sizes = [128, 32], strides = [1, 1]} : vector<128x128xbf16> to vector<128x32xbf16>
    "tpu.trace_start"() <{level = 10 : i32, message = "qd,kd->qk"}> : () -> ()
    %cst_34 = arith.constant dense<0.000000e+00> : vector<24x128xf32>
    %102 = tpu.matmul %100, %101, %cst_34 {dimension_numbers = #tpu.dot_dimension_numbers<[1], [1], [0], [0], [0, 0, 1, 0], [], []>} : vector<24x32xbf16>, vector<128x32xbf16>, vector<24x128xf32> -> vector<24x128xf32>
    "tpu.trace_stop"() : () -> ()
    %cst_35 = arith.constant 0.176776692 : f32
    %103 = vector.broadcast %cst_35 : f32 to vector<24x128xf32>
    %104 = arith.mulf %102, %103 : vector<24x128xf32>
    %105 = vector.broadcast %78 : vector<1x128xf32> to vector<24x128xf32>
    %106 = arith.addf %104, %105 : vector<24x128xf32>
    %cst_36 = arith.constant dense<0xFF800000> : vector<24xf32>
    %107 = vector.multi_reduction <maximumf>, %106, %cst_36 [1] : vector<24x128xf32> to vector<24xf32>
    %108 = vector.shape_cast %107 : vector<24xf32> to vector<24x1xf32>
    %109 = vector.broadcast %108 : vector<24x1xf32> to vector<24x128xf32>
    %110 = arith.subf %106, %109 : vector<24x128xf32>
    %111 = math.exp %110 : vector<24x128xf32>
    %cst_37 = arith.constant dense<0.000000e+00> : vector<24xf32>
    %112 = vector.multi_reduction <add>, %111, %cst_37 [1] : vector<24x128xf32> to vector<24xf32>
    %113 = vector.shape_cast %112 : vector<24xf32> to vector<24x1xf32>
    %114 = arith.truncf %111 : vector<24x128xf32> to vector<24x128xbf16>
    %115 = vector.extract_strided_slice %65 {offsets = [0, 32], sizes = [128, 32], strides = [1, 1]} : vector<128x128xbf16> to vector<128x32xbf16>
    %cst_38 = arith.constant dense<0.000000e+00> : vector<24x32xf32>
    %116 = tpu.matmul %114, %115, %cst_38 {dimension_numbers = #tpu.dot_dimension_numbers<[1], [0], [0], [1], [0, 0, 1, 1], [], []>} : vector<24x128xbf16>, vector<128x32xbf16>, vector<24x32xf32> -> vector<24x32xf32>
    %117 = tpu.reciprocal %113 {approx = true} : vector<24x1xf32> -> vector<24x1xf32>
    %118 = vector.broadcast %117 : vector<24x1xf32> to vector<24x32xf32>
    %119 = arith.mulf %116, %118 : vector<24x32xf32>
    %120 = arith.truncf %119 : vector<24x32xf32> to vector<24x32xbf16>
    %121 = vector.extract_strided_slice %66 {offsets = [0, 64], sizes = [24, 32], strides = [1, 1]} : vector<24x128xbf16> to vector<24x32xbf16>
    %122 = vector.extract_strided_slice %63 {offsets = [0, 64], sizes = [128, 32], strides = [1, 1]} : vector<128x128xbf16> to vector<128x32xbf16>
    "tpu.trace_start"() <{level = 10 : i32, message = "qd,kd->qk"}> : () -> ()
    %cst_39 = arith.constant dense<0.000000e+00> : vector<24x128xf32>
    %123 = tpu.matmul %121, %122, %cst_39 {dimension_numbers = #tpu.dot_dimension_numbers<[1], [1], [0], [0], [0, 0, 1, 0], [], []>} : vector<24x32xbf16>, vector<128x32xbf16>, vector<24x128xf32> -> vector<24x128xf32>
    "tpu.trace_stop"() : () -> ()
    %cst_40 = arith.constant 0.176776692 : f32
    %124 = vector.broadcast %cst_40 : f32 to vector<24x128xf32>
    %125 = arith.mulf %123, %124 : vector<24x128xf32>
    %126 = vector.broadcast %78 : vector<1x128xf32> to vector<24x128xf32>
    %127 = arith.addf %125, %126 : vector<24x128xf32>
    %cst_41 = arith.constant dense<0xFF800000> : vector<24xf32>
    %128 = vector.multi_reduction <maximumf>, %127, %cst_41 [1] : vector<24x128xf32> to vector<24xf32>
    %129 = vector.shape_cast %128 : vector<24xf32> to vector<24x1xf32>
    %130 = vector.broadcast %129 : vector<24x1xf32> to vector<24x128xf32>
    %131 = arith.subf %127, %130 : vector<24x128xf32>
    %132 = math.exp %131 : vector<24x128xf32>
    %cst_42 = arith.constant dense<0.000000e+00> : vector<24xf32>
    %133 = vector.multi_reduction <add>, %132, %cst_42 [1] : vector<24x128xf32> to vector<24xf32>
    %134 = vector.shape_cast %133 : vector<24xf32> to vector<24x1xf32>
    %135 = arith.truncf %132 : vector<24x128xf32> to vector<24x128xbf16>
    %136 = vector.extract_strided_slice %65 {offsets = [0, 64], sizes = [128, 32], strides = [1, 1]} : vector<128x128xbf16> to vector<128x32xbf16>
    %cst_43 = arith.constant dense<0.000000e+00> : vector<24x32xf32>
    %137 = tpu.matmul %135, %136, %cst_43 {dimension_numbers = #tpu.dot_dimension_numbers<[1], [0], [0], [1], [0, 0, 1, 1], [], []>} : vector<24x128xbf16>, vector<128x32xbf16>, vector<24x32xf32> -> vector<24x32xf32>
    %138 = tpu.reciprocal %134 {approx = true} : vector<24x1xf32> -> vector<24x1xf32>
    %139 = vector.broadcast %138 : vector<24x1xf32> to vector<24x32xf32>
    %140 = arith.mulf %137, %139 : vector<24x32xf32>
    %141 = arith.truncf %140 : vector<24x32xf32> to vector<24x32xbf16>
    %142 = vector.extract_strided_slice %66 {offsets = [0, 96], sizes = [24, 32], strides = [1, 1]} : vector<24x128xbf16> to vector<24x32xbf16>
    %143 = vector.extract_strided_slice %63 {offsets = [0, 96], sizes = [128, 32], strides = [1, 1]} : vector<128x128xbf16> to vector<128x32xbf16>
    "tpu.trace_start"() <{level = 10 : i32, message = "qd,kd->qk"}> : () -> ()
    %cst_44 = arith.constant dense<0.000000e+00> : vector<24x128xf32>
    %144 = tpu.matmul %142, %143, %cst_44 {dimension_numbers = #tpu.dot_dimension_numbers<[1], [1], [0], [0], [0, 0, 1, 0], [], []>} : vector<24x32xbf16>, vector<128x32xbf16>, vector<24x128xf32> -> vector<24x128xf32>
    "tpu.trace_stop"() : () -> ()
    %cst_45 = arith.constant 0.176776692 : f32
    %145 = vector.broadcast %cst_45 : f32 to vector<24x128xf32>
    %146 = arith.mulf %144, %145 : vector<24x128xf32>
    %147 = vector.broadcast %78 : vector<1x128xf32> to vector<24x128xf32>
    %148 = arith.addf %146, %147 : vector<24x128xf32>
    %cst_46 = arith.constant dense<0xFF800000> : vector<24xf32>
    %149 = vector.multi_reduction <maximumf>, %148, %cst_46 [1] : vector<24x128xf32> to vector<24xf32>
    %150 = vector.shape_cast %149 : vector<24xf32> to vector<24x1xf32>
    %151 = vector.broadcast %150 : vector<24x1xf32> to vector<24x128xf32>
    %152 = arith.subf %148, %151 : vector<24x128xf32>
    %153 = math.exp %152 : vector<24x128xf32>
    %cst_47 = arith.constant dense<0.000000e+00> : vector<24xf32>
    %154 = vector.multi_reduction <add>, %153, %cst_47 [1] : vector<24x128xf32> to vector<24xf32>
    %155 = vector.shape_cast %154 : vector<24xf32> to vector<24x1xf32>
    %156 = arith.truncf %153 : vector<24x128xf32> to vector<24x128xbf16>
    %157 = vector.extract_strided_slice %65 {offsets = [0, 96], sizes = [128, 32], strides = [1, 1]} : vector<128x128xbf16> to vector<128x32xbf16>
    %cst_48 = arith.constant dense<0.000000e+00> : vector<24x32xf32>
    %158 = tpu.matmul %156, %157, %cst_48 {dimension_numbers = #tpu.dot_dimension_numbers<[1], [0], [0], [1], [0, 0, 1, 1], [], []>} : vector<24x128xbf16>, vector<128x32xbf16>, vector<24x32xf32> -> vector<24x32xf32>
    %159 = tpu.reciprocal %155 {approx = true} : vector<24x1xf32> -> vector<24x1xf32>
    %160 = vector.broadcast %159 : vector<24x1xf32> to vector<24x32xf32>
    %161 = arith.mulf %158, %160 : vector<24x32xf32>
    %162 = arith.truncf %161 : vector<24x32xf32> to vector<24x32xbf16>
    %163 = tpu.concatenate %99, %120, %141, %162 in 1 : vector<24x32xbf16>, vector<24x32xbf16>, vector<24x32xbf16>, vector<24x32xbf16> -> vector<24x128xbf16>
    %c0_49 = arith.constant 0 : index
    %c0_50 = arith.constant 0 : index
    %164 = vector.load %arg10[%c0_49, %c0_50] : memref<128x128xbf16, #tpu.memory_space<vmem>>, vector<128x128xbf16>
    %cst_51 = arith.constant dense<0.000000e+00> : vector<24x128xf32>
    %165 = tpu.matmul %163, %164, %cst_51 {dimension_numbers = #tpu.dot_dimension_numbers<[1], [0], [0], [1], [0, 0, 1, 1], [], []>} : vector<24x128xbf16>, vector<128x128xbf16>, vector<24x128xf32> -> vector<24x128xf32>
    %166 = arith.addf %2, %165 : vector<24x128xf32>
    %c0_52 = arith.constant 0 : index
    %c0_53 = arith.constant 0 : index
    %167 = vector.load %arg11[%c0_52, %c0_53] : memref<1x128xf32, #tpu.memory_space<vmem>>, vector<1x128xf32>
    %168 = vector.broadcast %167 : vector<1x128xf32> to vector<24x128xf32>
    %169 = arith.addf %166, %168 : vector<24x128xf32>
    %c0_54 = arith.constant 0 : index
    %c0_55 = arith.constant 0 : index
    %170 = vector.load %arg12[%c0_54, %c0_55] : memref<1x128xf32, #tpu.memory_space<vmem>>, vector<1x128xf32>
    %c0_56 = arith.constant 0 : index
    %c0_57 = arith.constant 0 : index
    %171 = vector.load %arg13[%c0_56, %c0_57] : memref<1x128xf32, #tpu.memory_space<vmem>>, vector<1x128xf32>
    %cst_58 = arith.constant dense<0.000000e+00> : vector<24xf32>
    %172 = vector.multi_reduction <add>, %169, %cst_58 [1] : vector<24x128xf32> to vector<24xf32>
    %173 = vector.shape_cast %172 : vector<24xf32> to vector<24x1xf32>
    %cst_59 = arith.constant 1.280000e+02 : f32
    %174 = vector.broadcast %cst_59 : f32 to vector<24x1xf32>
    %175 = arith.divf %173, %174 : vector<24x1xf32>
    %176 = vector.broadcast %175 : vector<24x1xf32> to vector<24x128xf32>
    %177 = arith.subf %169, %176 : vector<24x128xf32>
    %178 = arith.mulf %177, %177 : vector<24x128xf32>
    %cst_60 = arith.constant dense<0.000000e+00> : vector<24xf32>
    %179 = vector.multi_reduction <add>, %178, %cst_60 [1] : vector<24x128xf32> to vector<24xf32>
    %180 = vector.shape_cast %179 : vector<24xf32> to vector<24x1xf32>
    %cst_61 = arith.constant 1.280000e+02 : f32
    %181 = vector.broadcast %cst_61 : f32 to vector<24x1xf32>
    %182 = arith.divf %180, %181 : vector<24x1xf32>
    %cst_62 = arith.constant 9.99999997E-7 : f32
    %183 = vector.broadcast %cst_62 : f32 to vector<24x1xf32>
    %184 = arith.addf %182, %183 : vector<24x1xf32>
    %185 = math.rsqrt %184 : vector<24x1xf32>
    %186 = vector.broadcast %185 : vector<24x1xf32> to vector<24x128xf32>
    %187 = arith.mulf %177, %186 : vector<24x128xf32>
    %188 = vector.broadcast %170 : vector<1x128xf32> to vector<24x128xf32>
    %189 = arith.mulf %187, %188 : vector<24x128xf32>
    %190 = vector.broadcast %171 : vector<1x128xf32> to vector<24x128xf32>
    %191 = arith.addf %189, %190 : vector<24x128xf32>
    %192 = arith.truncf %191 : vector<24x128xf32> to vector<24x128xbf16>
    %c0_63 = arith.constant 0 : index
    %c0_64 = arith.constant 0 : index
    %193 = vector.load %arg14[%c0_63, %c0_64] : memref<128x512xbf16, #tpu.memory_space<vmem>>, vector<128x512xbf16>
    %cst_65 = arith.constant dense<0.000000e+00> : vector<24x512xf32>
    %194 = tpu.matmul %192, %193, %cst_65 {dimension_numbers = #tpu.dot_dimension_numbers<[1], [0], [0], [1], [0, 0, 1, 1], [], []>} : vector<24x128xbf16>, vector<128x512xbf16>, vector<24x512xf32> -> vector<24x512xf32>
    %c0_66 = arith.constant 0 : index
    %c0_67 = arith.constant 0 : index
    %195 = vector.load %arg15[%c0_66, %c0_67] : memref<1x512xf32, #tpu.memory_space<vmem>>, vector<1x512xf32>
    %196 = vector.broadcast %195 : vector<1x512xf32> to vector<24x512xf32>
    %197 = arith.addf %194, %196 : vector<24x512xf32>
    %cst_68 = arith.constant 5.000000e-01 : f32
    %198 = vector.broadcast %cst_68 : f32 to vector<24x512xf32>
    %199 = arith.mulf %198, %197 : vector<24x512xf32>
    %cst_69 = arith.constant 0.707106769 : f32
    %200 = vector.broadcast %cst_69 : f32 to vector<24x512xf32>
    %201 = arith.mulf %197, %200 : vector<24x512xf32>
    %202 = math.erf %201 : vector<24x512xf32>
    %cst_70 = arith.constant 1.000000e+00 : f32
    %203 = vector.broadcast %cst_70 : f32 to vector<24x512xf32>
    %204 = arith.addf %203, %202 : vector<24x512xf32>
    %205 = arith.mulf %199, %204 : vector<24x512xf32>
    %206 = arith.truncf %205 : vector<24x512xf32> to vector<24x512xbf16>
    %c0_71 = arith.constant 0 : index
    %c0_72 = arith.constant 0 : index
    %207 = vector.load %arg16[%c0_71, %c0_72] : memref<512x128xbf16, #tpu.memory_space<vmem>>, vector<512x128xbf16>
    %cst_73 = arith.constant dense<0.000000e+00> : vector<24x128xf32>
    %208 = tpu.matmul %206, %207, %cst_73 {dimension_numbers = #tpu.dot_dimension_numbers<[1], [0], [0], [1], [0, 0, 1, 1], [], []>} : vector<24x512xbf16>, vector<512x128xbf16>, vector<24x128xf32> -> vector<24x128xf32>
    %c0_74 = arith.constant 0 : index
    %c0_75 = arith.constant 0 : index
    %209 = vector.load %arg17[%c0_74, %c0_75] : memref<1x128xf32, #tpu.memory_space<vmem>>, vector<1x128xf32>
    %210 = vector.broadcast %209 : vector<1x128xf32> to vector<24x128xf32>
    %211 = arith.addf %208, %210 : vector<24x128xf32>
    %212 = arith.addf %169, %211 : vector<24x128xf32>
    %213 = arith.truncf %212 : vector<24x128xf32> to vector<24x128xbf16>
    %c0_76 = arith.constant 0 : index
    %c0_77 = arith.constant 0 : index
    %c0_78 = arith.constant 0 : index
    %214 = vector.load %arg18[%c0_76, %c0_77, %c0_78] : memref<1x24x128xbf16, #tpu.memory_space<vmem>>, vector<1x24x128xbf16>
    %215 = vector.shape_cast %214 : vector<1x24x128xbf16> to vector<24x128xbf16>
    %216 = vector.shape_cast %213 : vector<24x128xbf16> to vector<1x24x128xbf16>
    tpu.vector_store %arg18[%c0_76, %c0_77, %c0_78], %216 {strides = array<i32>} : memref<1x24x128xbf16, #tpu.memory_space<vmem>>, vector<1x24x128xbf16>,
    return
  }
  func.func @transform_0(%arg0: i32) -> (i32, i32) {
    %c0_i32 = arith.constant 0 : i32
    %c0_i32_0 = arith.constant 0 : i32
    %c0_i32_1 = arith.constant 0 : i32
    return %c0_i32, %c0_i32_0 : i32, i32
  }
  func.func @transform_1(%arg0: i32) -> (i32, i32) {
    %c0_i32 = arith.constant 0 : i32
    %c0_i32_0 = arith.constant 0 : i32
    %c0_i32_1 = arith.constant 0 : i32
    return %c0_i32, %c0_i32_0 : i32, i32
  }
  func.func @transform_2(%arg0: i32) -> (i32, i32) {
    %c0_i32 = arith.constant 0 : i32
    %c0_i32_0 = arith.constant 0 : i32
    %c0_i32_1 = arith.constant 0 : i32
    return %c0_i32, %c0_i32_0 : i32, i32
  }
  func.func @transform_3(%arg0: i32) -> (i32, i32) {
    %c0_i32 = arith.constant 0 : i32
    %c0_i32_0 = arith.constant 0 : i32
    %c0_i32_1 = arith.constant 0 : i32
    return %c0_i32, %c0_i32_0 : i32, i32
  }
  func.func @transform_4(%arg0: i32) -> (i32, i32, i32) {
    %c0_i32 = arith.constant 0 : i32
    %c0_i32_0 = arith.constant 0 : i32
    %c0_i32_1 = arith.constant 0 : i32
    return %arg0, %c0_i32, %c0_i32_0 : i32, i32, i32
  }
  func.func @transform_5(%arg0: i32) -> (i32, i32) {
    %c0_i32 = arith.constant 0 : i32
    %c0_i32_0 = arith.constant 0 : i32
    %c0_i32_1 = arith.constant 0 : i32
    return %c0_i32, %c0_i32_0 : i32, i32
  }
  func.func @transform_6(%arg0: i32) -> (i32, i32) {
    %c0_i32 = arith.constant 0 : i32
    %c0_i32_0 = arith.constant 0 : i32
    %c0_i32_1 = arith.constant 0 : i32
    return %c0_i32, %c0_i32_0 : i32, i32
  }
  func.func @transform_7(%arg0: i32) -> (i32, i32) {
    %c0_i32 = arith.constant 0 : i32
    %c0_i32_0 = arith.constant 0 : i32
    %c0_i32_1 = arith.constant 0 : i32
    return %c0_i32, %c0_i32_0 : i32, i32
  }
  func.func @transform_8(%arg0: i32) -> (i32, i32) {
    %c0_i32 = arith.constant 0 : i32
    %c0_i32_0 = arith.constant 0 : i32
    %c0_i32_1 = arith.constant 0 : i32
    return %c0_i32, %c0_i32_0 : i32, i32
  }
  func.func @transform_9(%arg0: i32) -> (i32, i32) {
    %c0_i32 = arith.constant 0 : i32
    %c0_i32_0 = arith.constant 0 : i32
    %c0_i32_1 = arith.constant 0 : i32
    return %c0_i32, %c0_i32_0 : i32, i32
  }
  func.func @transform_10(%arg0: i32) -> (i32, i32) {
    %c0_i32 = arith.constant 0 : i32
    %c0_i32_0 = arith.constant 0 : i32
    %c0_i32_1 = arith.constant 0 : i32
    return %c0_i32, %c0_i32_0 : i32, i32
  }
  func.func @transform_11(%arg0: i32) -> (i32, i32) {
    %c0_i32 = arith.constant 0 : i32
    %c0_i32_0 = arith.constant 0 : i32
    %c0_i32_1 = arith.constant 0 : i32
    return %c0_i32, %c0_i32_0 : i32, i32
  }
  func.func @transform_12(%arg0: i32) -> (i32, i32) {
    %c0_i32 = arith.constant 0 : i32
    %c0_i32_0 = arith.constant 0 : i32
    %c0_i32_1 = arith.constant 0 : i32
    return %c0_i32, %c0_i32_0 : i32, i32
  }
  func.func @transform_13(%arg0: i32) -> (i32, i32) {
    %c0_i32 = arith.constant 0 : i32
    %c0_i32_0 = arith.constant 0 : i32
    %c0_i32_1 = arith.constant 0 : i32
    return %c0_i32, %c0_i32_0 : i32, i32
  }
  func.func @transform_14(%arg0: i32) -> (i32, i32) {
    %c0_i32 = arith.constant 0 : i32
    %c0_i32_0 = arith.constant 0 : i32
    %c0_i32_1 = arith.constant 0 : i32
    return %c0_i32, %c0_i32_0 : i32, i32
  }
  func.func @transform_15(%arg0: i32) -> (i32, i32) {
    %c0_i32 = arith.constant 0 : i32
    %c0_i32_0 = arith.constant 0 : i32
    %c0_i32_1 = arith.constant 0 : i32
    return %c0_i32, %c0_i32_0 : i32, i32
  }
  func.func @transform_16(%arg0: i32) -> (i32, i32) {
    %c0_i32 = arith.constant 0 : i32
    %c0_i32_0 = arith.constant 0 : i32
    %c0_i32_1 = arith.constant 0 : i32
    return %c0_i32, %c0_i32_0 : i32, i32
  }
  func.func @transform_17(%arg0: i32) -> (i32, i32, i32) {
    %c0_i32 = arith.constant 0 : i32
    %c0_i32_0 = arith.constant 0 : i32
    %c0_i32_1 = arith.constant 0 : i32
    return %arg0, %c0_i32, %c0_i32_0 : i32, i32, i32
  }
}

module attributes {stable_mosaic.version = 11 : i64} {
  func.func @_ln_head_kernel(%arg0: memref<2x128xbf16, #tpu.memory_space<vmem>>, %arg1: memref<1x128xf32, #tpu.memory_space<vmem>>, %arg2: memref<1x128xf32, #tpu.memory_space<vmem>>, %arg3: memref<128x128xbf16, #tpu.memory_space<vmem>>, %arg4: memref<1x128xf32, #tpu.memory_space<vmem>>, %arg5: memref<2x128xf32, #tpu.memory_space<vmem>>) attributes {dimension_semantics = [], scalar_prefetch = 0 : i64, scratch_operands = 0 : i64, tpu.core_type = #tpu.core_type<tc>} {
    %c0 = arith.constant 0 : index
    %c0_0 = arith.constant 0 : index
    %0 = vector.load %arg0[%c0, %c0_0] : memref<2x128xbf16, #tpu.memory_space<vmem>>, vector<2x128xbf16>
    %1 = arith.extf %0 : vector<2x128xbf16> to vector<2x128xf32>
    %c0_1 = arith.constant 0 : index
    %c0_2 = arith.constant 0 : index
    %2 = vector.load %arg1[%c0_1, %c0_2] : memref<1x128xf32, #tpu.memory_space<vmem>>, vector<1x128xf32>
    %c0_3 = arith.constant 0 : index
    %c0_4 = arith.constant 0 : index
    %3 = vector.load %arg2[%c0_3, %c0_4] : memref<1x128xf32, #tpu.memory_space<vmem>>, vector<1x128xf32>
    %cst = arith.constant dense<0.000000e+00> : vector<2xf32>
    %4 = vector.multi_reduction <add>, %1, %cst [1] : vector<2x128xf32> to vector<2xf32>
    %5 = vector.shape_cast %4 : vector<2xf32> to vector<2x1xf32>
    %cst_5 = arith.constant 1.280000e+02 : f32
    %6 = vector.broadcast %cst_5 : f32 to vector<2x1xf32>
    %7 = arith.divf %5, %6 : vector<2x1xf32>
    %8 = vector.broadcast %7 : vector<2x1xf32> to vector<2x128xf32>
    %9 = arith.subf %1, %8 : vector<2x128xf32>
    %10 = arith.mulf %9, %9 : vector<2x128xf32>
    %cst_6 = arith.constant dense<0.000000e+00> : vector<2xf32>
    %11 = vector.multi_reduction <add>, %10, %cst_6 [1] : vector<2x128xf32> to vector<2xf32>
    %12 = vector.shape_cast %11 : vector<2xf32> to vector<2x1xf32>
    %cst_7 = arith.constant 1.280000e+02 : f32
    %13 = vector.broadcast %cst_7 : f32 to vector<2x1xf32>
    %14 = arith.divf %12, %13 : vector<2x1xf32>
    %cst_8 = arith.constant 9.99999997E-7 : f32
    %15 = vector.broadcast %cst_8 : f32 to vector<2x1xf32>
    %16 = arith.addf %14, %15 : vector<2x1xf32>
    %17 = math.rsqrt %16 : vector<2x1xf32>
    %18 = vector.broadcast %17 : vector<2x1xf32> to vector<2x128xf32>
    %19 = arith.mulf %9, %18 : vector<2x128xf32>
    %20 = vector.broadcast %2 : vector<1x128xf32> to vector<2x128xf32>
    %21 = arith.mulf %19, %20 : vector<2x128xf32>
    %22 = vector.broadcast %3 : vector<1x128xf32> to vector<2x128xf32>
    %23 = arith.addf %21, %22 : vector<2x128xf32>
    %24 = arith.truncf %23 : vector<2x128xf32> to vector<2x128xbf16>
    %c0_9 = arith.constant 0 : index
    %c0_10 = arith.constant 0 : index
    %25 = vector.load %arg3[%c0_9, %c0_10] : memref<128x128xbf16, #tpu.memory_space<vmem>>, vector<128x128xbf16>
    %cst_11 = arith.constant dense<0.000000e+00> : vector<2x128xf32>
    %26 = tpu.matmul %24, %25, %cst_11 {dimension_numbers = #tpu.dot_dimension_numbers<[1], [0], [0], [1], [0, 0, 1, 1], [], []>} : vector<2x128xbf16>, vector<128x128xbf16>, vector<2x128xf32> -> vector<2x128xf32>
    %c0_12 = arith.constant 0 : index
    %c0_13 = arith.constant 0 : index
    %27 = vector.load %arg4[%c0_12, %c0_13] : memref<1x128xf32, #tpu.memory_space<vmem>>, vector<1x128xf32>
    %28 = vector.broadcast %27 : vector<1x128xf32> to vector<2x128xf32>
    %29 = arith.addf %26, %28 : vector<2x128xf32>
    %c0_14 = arith.constant 0 : index
    %c0_15 = arith.constant 0 : index
    %30 = vector.load %arg5[%c0_14, %c0_15] : memref<2x128xf32, #tpu.memory_space<vmem>>, vector<2x128xf32>
    tpu.vector_store %arg5[%c0_14, %c0_15], %29 {strides = array<i32>} : memref<2x128xf32, #tpu.memory_space<vmem>>, vector<2x128xf32>,
    return
  }
}

</mosaic_0001>

<llo_original>
// kernel: vit_zoo_forward.10
$region0: #{vit_zoo_forward.10}
  #allocation0 [shape = 'u32[]', space=smem, size = 0x4, offset = 0x4, fixed_abs, tag = 'smem constant byte address 0x4 - core index']
  #allocation1 [shape = 'u32[144,128]{1,0:T(1,128)}', space=vmem, size = 0x12000, scoped, tag = 'internal scratch']
  %s0 = inlined_call_operand.vmem [shape: bf16[2,128], index: 0, kind: input, shape index: {}]
  %s1 = inlined_call_operand.vmem [shape: f32[1,128], index: 1, kind: input, shape index: {}]
  %s2 = inlined_call_operand.vmem [shape: f32[1,128], index: 2, kind: input, shape index: {}]
  %s3 = inlined_call_operand.vmem [shape: f32[2,128], index: 3, kind: output, shape index: {}]
  %s4 = sld [smem:[#allocation0]]
  $region22: #{vit_zoo_forward.10} parent=0
    _
  %s6 = ssub.s32 1, %s4
  %s7 = scalar_select 0, %s6, %s4
  // Predicated region
  $region2: #{vit_zoo_forward.10} parent=0 // pred_check
    _
  $region3: #{vit_zoo_forward.10} parent=0 // pred_check_branch
    %9 = sbr.rel (0) target = $region5
  $region4: #{vit_zoo_forward.10} parent=0 // pred_region
    _
  $region5: #{vit_zoo_forward.10} parent=0 // pred_fallthru
    _
  // Predicated region
  $region6: #{vit_zoo_forward.10} parent=0 // pred_check
    _
  $region7: #{vit_zoo_forward.10} parent=0 // pred_check_branch
    %11 = sbr.rel (0) target = $region9
  $region8: #{vit_zoo_forward.10} parent=0 // pred_region
    _
  $region9: #{vit_zoo_forward.10} parent=0 // pred_fallthru
    _
  // Predicated region
  $region10: #{vit_zoo_forward.10} parent=0 // pred_check
    _
  $region11: #{vit_zoo_forward.10} parent=0 // pred_check_branch
    %13 = sbr.rel (0) target = $region13
  $region12: #{vit_zoo_forward.10} parent=0 // pred_region
    _
  $region13: #{vit_zoo_forward.10} parent=0 // pred_fallthru
    _
  %v14 = vld [vmem:[%s0] sm:$0x1]
  %v15 = vunpack.c.l.bf16 %v14
  %v16 = vld [vmem:[%s1] sm:$0x1]
  %v17 = vld [vmem:[%s2] sm:$0x1]
  %vm18 = vcmask 1041408
  %v19 = vsel %vm18, %v15, 0.0
  %20 = vadd.xlane.f32.xlu0 %v19
  %v21 = vpop.xlane.xlu0 %20
  %v22 = vrcp.pop 128.0
  %v23 = vmul.f32 %v21, %v22
  %v24 = vsub.f32 %v15, %v23
  %v25 = vmul.f32 %v24, %v24
  %v26 = vsel %vm18, %v25, 0.0
  %27 = vadd.xlane.f32.xlu0 %v26
  %v28 = vpop.xlane.xlu0 %27
  %v29 = vmul.f32 %v28, %v22
  %v30 = vadd.f32 %v29, 1e-06
  %v31 = vrsqrt.pop %v30
  %v32 = vmul.f32 %v24, %v31
  %v34 = vlaneseq
  %v35 = vshrl.u32 %v34, 7
  %v36 = vsub.s32 0, %v35
  %v37 = vrot.slane %v16, %v36
  %v39 = vmul.f32 %v32, %v37
  %v41 = vlaneseq
  %v42 = vshrl.u32 %v41, 7
  %v43 = vsub.s32 0, %v42
  %v44 = vrot.slane %v17, %v43
  %v46 = vadd.f32 %v39, %v44
  %47 = vst [vmem:[%s3] sm:$0x3] %v46
  // Predicated region
  $region14: #{vit_zoo_forward.10} parent=0 // pred_check
    _
  $region15: #{vit_zoo_forward.10} parent=0 // pred_check_branch
    %49 = sbr.rel (0) target = $region17
  $region16: #{vit_zoo_forward.10} parent=0 // pred_region
    _
  $region17: #{vit_zoo_forward.10} parent=0 // pred_fallthru
    _
  // Predicated region
  $region18: #{vit_zoo_forward.10} parent=0 // pred_check
    _
  $region19: #{vit_zoo_forward.10} parent=0 // pred_check_branch
    %51 = sbr.rel (0) target = $region21
  $region20: #{vit_zoo_forward.10} parent=0 // pred_region
    _
  $region21: #{vit_zoo_forward.10} parent=0 // pred_fallthru
    _

// kernel: vit_zoo_forward.7
$region0: #{vit_zoo_forward.7}
  #allocation0 [shape = 'u32[]', space=smem, size = 0x4, offset = 0x4, fixed_abs, tag = 'smem constant byte address 0x4 - core index']
  #allocation1 [shape = 'u32[144,128]{1,0:T(1,128)}', space=vmem, size = 0x12000, scoped, tag = 'internal scratch']
  %s0 = inlined_call_operand.vmem [shape: bf16[32,48], index: 0, kind: input, shape index: {}]
  %s1 = inlined_call_operand.vmem [shape: bf16[48,128], index: 1, kind: input, shape index: {}]
  %s2 = inlined_call_operand.vmem [shape: f32[1,128], index: 2, kind: input, shape index: {}]
  %s3 = inlined_call_operand.vmem [shape: f32[32,128], index: 3, kind: output, shape index: {}]
  %s4 = sld [smem:[#allocation0]]
  $region22: #{vit_zoo_forward.7} parent=0
    _
  %s6 = ssub.s32 1, %s4
  %s7 = scalar_select 0, %s6, %s4
  // Predicated region
  $region2: #{vit_zoo_forward.7} parent=0 // pred_check
    _
  $region3: #{vit_zoo_forward.7} parent=0 // pred_check_branch
    %9 = sbr.rel (0) target = $region5
  $region4: #{vit_zoo_forward.7} parent=0 // pred_region
    _
  $region5: #{vit_zoo_forward.7} parent=0 // pred_fallthru
    _
  // Predicated region
  $region6: #{vit_zoo_forward.7} parent=0 // pred_check
    _
  $region7: #{vit_zoo_forward.7} parent=0 // pred_check_branch
    %11 = sbr.rel (0) target = $region9
  $region8: #{vit_zoo_forward.7} parent=0 // pred_region
    _
  $region9: #{vit_zoo_forward.7} parent=0 // pred_fallthru
    _
  // Predicated region
  $region10: #{vit_zoo_forward.7} parent=0 // pred_check
    _
  $region11: #{vit_zoo_forward.7} parent=0 // pred_check_branch
    %13 = sbr.rel (0) target = $region13
  $region12: #{vit_zoo_forward.7} parent=0 // pred_region
    _
  $region13: #{vit_zoo_forward.7} parent=0 // pred_fallthru
    _
  %v15 = vld [vmem:[%s0] sm:$0xf]
  %v16 = vld [vmem:[%s0 + $0x4] sm:$0xf]
  %v17 = vld [vmem:[%s0 + $0x8] sm:$0xf]
  %v18 = vld [vmem:[%s0 + $0xc] sm:$0xf]
  %v19 = vld [vmem:[%s1] sm:$0xf]
  %v20 = vld [vmem:[%s1 + $0x4] sm:$0xf]
  %v21 = vld [vmem:[%s1 + $0x8] sm:$0xf]
  %v22 = vld [vmem:[%s1 + $0xc] sm:$0xf]
  %v23 = vld [vmem:[%s1 + $0x10] sm:$0xf]
  %v24 = vld [vmem:[%s1 + $0x14] sm:$0xf]
  %v25 = vld [vmem:[%s2] sm:$0x1]
  %v27 = vlaneseq
  %v28 = vshrl.u32 %v27, 7
  %v29 = vsub.s32 0, %v28
  %v30 = vrot.slane %v25, %v29
  %v36 = vunpack.c.l.b16 %v15
  %v37 = vunpack.c.l.b16 %v16
  %v38 = vunpack.c.l.b16 %v17
  %v39 = vunpack.c.l.b16 %v18
  %v40 = vpack.c.b16 %v37, %v36
  %v41 = vpack.c.b16 %v39, %v38
  %v48 = vunpack.c.l.b16 %v19
  %v49 = vunpack.c.l.b16 %v20
  %v50 = vunpack.c.l.b16 %v21
  %v51 = vunpack.c.l.b16 %v22
  %v52 = vunpack.c.l.b16 %v23
  %v53 = vunpack.c.l.b16 %v24
  %v54 = vpack.c.b16 %v49, %v48
  %v55 = vpack.c.b16 %v51, %v50
  %v56 = vpack.c.b16 %v53, %v52
  %vm60 = vcmask 392192
  %v62 = vsel %vm60, %v40, 0
  %v65 = vsel %vm60, %v41, 0
  %67 = vmatprep.subr.bf16.mxu0 0
  %68 = vmatpush1.bf16.msra.mxu0 %v54
  %69 = vmatprep.subr.bf16.mxu0 0
  %70 = vmatpush1.bf16.msra.mxu0 %v55
  %71 = vmatprep.subr.bf16.mxu0 0
  %72 = vmatpush1.bf16.msra.mxu0 %v56
  %73 = vmatprep.subr.bf16.mxu0 0
  %74 = vmatpush1.bf16.msra.mxu0 0
  %75 = vmatprep.subr.bf16.mxu0 0
  %76 = vmatpush1.bf16.msra.mxu0 0
  %77 = vmatprep.subr.bf16.mxu0 0
  %78 = vmatpush1.bf16.msra.mxu0 0
  %79 = vmatprep.subr.bf16.mxu0 0
  %80 = vmatpush1.bf16.msra.mxu0 0
  %81 = vmatprep.subr.bf16.mxu0 0
  %82 = vmatpush1.bf16.msra.mxu0 0
  %83 = vmatprep.subr.bf16.mxu0 0
  %84 = vmatpush1.bf16.msra.mxu0 0
  %85 = vmatprep.subr.bf16.mxu0 0
  %86 = vmatpush1.bf16.msra.mxu0 0
  %87 = vmatprep.subr.bf16.mxu0 0
  %88 = vmatpush1.bf16.msra.mxu0 0
  %89 = vmatprep.subr.bf16.mxu0 0
  %90 = vmatpush1.bf16.msra.mxu0 0
  %91 = vmatprep.subr.bf16.mxu0 0
  %92 = vmatpush1.bf16.msra.mxu0 0
  %93 = vmatprep.subr.bf16.mxu0 0
  %94 = vmatpush1.bf16.msra.mxu0 0
  %95 = vmatprep.subr.bf16.mxu0 0
  %96 = vmatpush1.bf16.msra.mxu0 0
  %97 = vmatprep.subr.bf16.mxu0 0
  %98 = vmatpush1.bf16.msra.mxu0 0
  %99 = vmatprep.mubr.bf16.mxu0 0
  %100 = vmatmul.mubr.bf16.gmra.mrb[0].mxu0 %v62
  %v101 = vpop.f32.mrb[0].mxu0
  %v102 = vadd.f32 %v30, %v101
  %v103 = vpop.f32.mrb[0].mxu0
  %v104 = vpop.f32.mrb[0].mxu0
  %v105 = vadd.f32 %v30, %v104
  %v106 = vpop.f32.mrb[0].mxu0
  %107 = vmatprep.mubr.bf16.mxu0 0
  %108 = vmatmul.mubr.bf16.gmra.mrb[0].mxu0 %v65
  %v109 = vpop.f32.mrb[0].mxu0
  %v110 = vadd.f32 %v30, %v109
  %v111 = vpop.f32.mrb[0].mxu0
  %v112 = vpop.f32.mrb[0].mxu0
  %v113 = vadd.f32 %v30, %v112
  %v114 = vpop.f32.mrb[0].mxu0
  %115 = vdwg.mxu0
  %116 = vst [vmem:[%s3] sm:$0xff] %v102
  %117 = vst [vmem:[%s3 + $0x8] sm:$0xff] %v105
  %118 = vst [vmem:[%s3 + $0x10] sm:$0xff] %v110
  %119 = vst [vmem:[%s3 + $0x18] sm:$0xff] %v113
  // Predicated region
  $region14: #{vit_zoo_forward.7} parent=0 // pred_check
    _
  $region15: #{vit_zoo_forward.7} parent=0 // pred_check_branch
    %121 = sbr.rel (0) target = $region17
  $region16: #{vit_zoo_forward.7} parent=0 // pred_region
    _
  $region17: #{vit_zoo_forward.7} parent=0 // pred_fallthru
    _
  // Predicated region
  $region18: #{vit_zoo_forward.7} parent=0 // pred_check
    _
  $region19: #{vit_zoo_forward.7} parent=0 // pred_check_branch
    %123 = sbr.rel (0) target = $region21
  $region20: #{vit_zoo_forward.7} parent=0 // pred_region
    _
  $region21: #{vit_zoo_forward.7} parent=0 // pred_fallthru
    _

// kernel: vit_zoo_forward.13
$region0: #{vit_zoo_forward.13}
  #allocation0 [shape = 'u32[]', space=smem, size = 0x4, offset = 0x4, fixed_abs, tag = 'smem constant byte address 0x4 - core index']
  #allocation1 [shape = 'u32[144,128]{1,0:T(1,128)}', space=vmem, size = 0x12000, scoped, tag = 'internal scratch']
  %s0 = inlined_call_operand.vmem [shape: bf16[2,128], index: 0, kind: input, shape index: {}]
  %s1 = inlined_call_operand.vmem [shape: f32[1,128], index: 1, kind: input, shape index: {}]
  %s2 = inlined_call_operand.vmem [shape: f32[1,128], index: 2, kind: input, shape index: {}]
  %s3 = inlined_call_operand.vmem [shape: bf16[128,128], index: 3, kind: input, shape index: {}]
  %s4 = inlined_call_operand.vmem [shape: f32[1,128], index: 4, kind: input, shape index: {}]
  %s5 = inlined_call_operand.hbm [shape: f32[2,128], index: 5, kind: output, shape index: {}]
  %s6 = sld [smem:[#allocation0]]
  $region30: #{vit_zoo_forward.13} parent=0
    _
  %s8 = ssub.s32 1, %s6
  %s9 = scalar_select 0, %s8, %s6
  $region1: #{vit_zoo_forward.13} parent=0
    #allocation2 [shape = 'u8[1024]{0}', space=vmem, size = 0x400, scoped, tag = 'output window, operand 0, single buffered']
    #allocation3 [shape = 's32[1]{0}', space=sflag, size = 0x4, scoped, tag = 'scoped memory for vit_zoo_forward.13']
    %10 = vsyncpa [#allocation3], 0
    // Predicated region
    $region2: #{vit_zoo_forward.13} parent=1 // pred_check
      _
    $region3: #{vit_zoo_forward.13} parent=1 // pred_check_branch
      %12 = sbr.rel (0) target = $region5
    $region4: #{vit_zoo_forward.13} parent=1 // pred_region
      _
    $region5: #{vit_zoo_forward.13} parent=1 // pred_fallthru
      _
    // Predicated region
    $region6: #{vit_zoo_forward.13} parent=1 // pred_check
      _
    $region7: #{vit_zoo_forward.13} parent=1 // pred_check_branch
      %14 = sbr.rel (0) target = $region9
    $region8: #{vit_zoo_forward.13} parent=1 // pred_region
      _
    $region9: #{vit_zoo_forward.13} parent=1 // pred_fallthru
      _
    // Predicated region
    $region10: #{vit_zoo_forward.13} parent=1 // pred_check
      _
    $region11: #{vit_zoo_forward.13} parent=1 // pred_check_branch
      %16 = sbr.rel (0) target = $region13
    $region12: #{vit_zoo_forward.13} parent=1 // pred_region
      _
    $region13: #{vit_zoo_forward.13} parent=1 // pred_fallthru
      _
    // Predicated region
    $region14: #{vit_zoo_forward.13} parent=1 // pred_check
      _
    $region15: #{vit_zoo_forward.13} parent=1 // pred_check_branch
      %18 = sbr.rel (0) target = $region17
    $region16: #{vit_zoo_forward.13} parent=1 // pred_region
      _
    $region17: #{vit_zoo_forward.13} parent=1 // pred_fallthru
      _
    // Predicated region
    $region18: #{vit_zoo_forward.13} parent=1 // pred_check
      _
    $region19: #{vit_zoo_forward.13} parent=1 // pred_check_branch
      %20 = sbr.rel (0) target = $region21
    $region20: #{vit_zoo_forward.13} parent=1 // pred_region
      _
    $region21: #{vit_zoo_forward.13} parent=1 // pred_fallthru
      _
    %v22 = vld [vmem:[%s0] sm:$0x1]
    %v23 = vunpack.c.l.bf16 %v22
    %v24 = vld [vmem:[%s1] sm:$0x1]
    %v25 = vld [vmem:[%s2] sm:$0x1]
    %vm26 = vcmask 1041408
    %v27 = vsel %vm26, %v23, 0.0
    %28 = vadd.xlane.f32.xlu0 %v27
    %v29 = vpop.xlane.xlu0 %28
    %v30 = vrcp.pop 128.0
    %v31 = vmul.f32 %v29, %v30
    %v32 = vsub.f32 %v23, %v31
    %v33 = vmul.f32 %v32, %v32
    %v34 = vsel %vm26, %v33, 0.0
    %35 = vadd.xlane.f32.xlu0 %v34
    %v36 = vpop.xlane.xlu0 %35
    %v37 = vmul.f32 %v36, %v30
    %v38 = vadd.f32 %v37, 1e-06
    %v39 = vrsqrt.pop %v38
    %v40 = vmul.f32 %v32, %v39
    %v42 = vlaneseq
    %v43 = vshrl.u32 %v42, 7
    %v44 = vsub.s32 0, %v43
    %v45 = vrot.slane %v24, %v44
    %v47 = vmul.f32 %v40, %v45
    %v49 = vlaneseq
    %v50 = vshrl.u32 %v49, 7
    %v51 = vsub.s32 0, %v50
    %v52 = vrot.slane %v25, %v51
    %v54 = vadd.f32 %v47, %v52
    %v55 = vpack.c.bf16 %v54, %v54
    %v56 = vld [vmem:[%s3] sm:$0xf]
    %v57 = vld [vmem:[%s3 + $0x4] sm:$0xf]
    %v58 = vld [vmem:[%s3 + $0x8] sm:$0xf]
    %v59 = vld [vmem:[%s3 + $0xc] sm:$0xf]
    %v60 = vld [vmem:[%s3 + $0x10] sm:$0xf]
    %v61 = vld [vmem:[%s3 + $0x14] sm:$0xf]
    %v62 = vld [vmem:[%s3 + $0x18] sm:$0xf]
    %v63 = vld [vmem:[%s3 + $0x1c] sm:$0xf]
    %v64 = vld [vmem:[%s3 + $0x20] sm:$0xf]
    %v65 = vld [vmem:[%s3 + $0x24] sm:$0xf]
    %v66 = vld [vmem:[%s3 + $0x28] sm:$0xf]
    %v67 = vld [vmem:[%s3 + $0x2c] sm:$0xf]
    %v68 = vld [vmem:[%s3 + $0x30] sm:$0xf]
    %v69 = vld [vmem:[%s3 + $0x34] sm:$0xf]
    %v70 = vld [vmem:[%s3 + $0x38] sm:$0xf]
    %v71 = vld [vmem:[%s3 + $0x3c] sm:$0xf]
    %v72 = vld [vmem:[%s4] sm:$0x1]
    %v74 = vlaneseq
    %v75 = vshrl.u32 %v74, 7
    %v76 = vsub.s32 0, %v75
    %v77 = vrot.slane %v72, %v76
    %v95 = vunpack.c.l.b16 %v56
    %v96 = vunpack.c.l.b16 %v57
    %v97 = vunpack.c.l.b16 %v58
    %v98 = vunpack.c.l.b16 %v59
    %v99 = vunpack.c.l.b16 %v60
    %v100 = vunpack.c.l.b16 %v61
    %v101 = vunpack.c.l.b16 %v62
    %v102 = vunpack.c.l.b16 %v63
    %v103 = vunpack.c.l.b16 %v64
    %v104 = vunpack.c.l.b16 %v65
    %v105 = vunpack.c.l.b16 %v66
    %v106 = vunpack.c.l.b16 %v67
    %v107 = vunpack.c.l.b16 %v68
    %v108 = vunpack.c.l.b16 %v69
    %v109 = vunpack.c.l.b16 %v70
    %v110 = vunpack.c.l.b16 %v71
    %v111 = vpack.c.b16 %v96, %v95
    %v112 = vpack.c.b16 %v98, %v97
    %v113 = vpack.c.b16 %v100, %v99
    %v114 = vpack.c.b16 %v102, %v101
    %v115 = vpack.c.b16 %v104, %v103
    %v116 = vpack.c.b16 %v106, %v105
    %v117 = vpack.c.b16 %v108, %v107
    %v118 = vpack.c.b16 %v110, %v109
    %127 = vmatprep.subr.bf16.mxu0 0
    %128 = vmatpush1.bf16.msra.mxu0 %v111
    %129 = vmatprep.subr.bf16.mxu0 0
    %130 = vmatpush1.bf16.msra.mxu0 %v112
    %131 = vmatprep.subr.bf16.mxu0 0
    %132 = vmatpush1.bf16.msra.mxu0 %v113
    %133 = vmatprep.subr.bf16.mxu0 0
    %134 = vmatpush1.bf16.msra.mxu0 %v114
    %135 = vmatprep.subr.bf16.mxu0 0
    %136 = vmatpush1.bf16.msra.mxu0 %v115
    %137 = vmatprep.subr.bf16.mxu0 0
    %138 = vmatpush1.bf16.msra.mxu0 %v116
    %139 = vmatprep.subr.bf16.mxu0 0
    %140 = vmatpush1.bf16.msra.mxu0 %v117
    %141 = vmatprep.subr.bf16.mxu0 0
    %142 = vmatpush1.bf16.msra.mxu0 %v118
    %143 = vmatprep.subr.bf16.mxu0 0
    %144 = vmatpush1.bf16.msra.mxu0 0
    %145 = vmatprep.subr.bf16.mxu0 0
    %146 = vmatpush1.bf16.msra.mxu0 0
    %147 = vmatprep.subr.bf16.mxu0 0
    %148 = vmatpush1.bf16.msra.mxu0 0
    %149 = vmatprep.subr.bf16.mxu0 0
    %150 = vmatpush1.bf16.msra.mxu0 0
    %151 = vmatprep.subr.bf16.mxu0 0
    %152 = vmatpush1.bf16.msra.mxu0 0
    %153 = vmatprep.subr.bf16.mxu0 0
    %154 = vmatpush1.bf16.msra.mxu0 0
    %155 = vmatprep.subr.bf16.mxu0 0
    %156 = vmatpush1.bf16.msra.mxu0 0
    %157 = vmatprep.subr.bf16.mxu0 0
    %158 = vmatpush1.bf16.msra.mxu0 0
    %159 = vmatprep.mubr.bf16.mxu0 0
    %160 = vmatmul.mubr.bf16.gmra.mrb[0].mxu0 %v55
    %v161 = vpop.f32.mrb[0].mxu0
    %v162 = vadd.f32 %v77, %v161
    %v163 = vpop.f32.mrb[0].mxu0
    %v164 = vpop.f32.mrb[0].mxu0
    %v165 = vpop.f32.mrb[0].mxu0
    %166 = vdwg.mxu0
    %167 = vst [vmem:[#allocation2] sm:$0x3] %v162
    // Predicated region
    $region22: #{vit_zoo_forward.13} parent=1 // pred_check
      _
    $region23: #{vit_zoo_forward.13} parent=1 // pred_check_branch
      %169 = sbr.rel (0) target = $region25
    $region24: #{vit_zoo_forward.13} parent=1 // pred_region
      %s171 = ssub.s32 32, 32
      %172 = vsyncadd [#allocation3], %s171
      %s174 = sshll.u32 [#allocation2], 4
      %s175 = int_to_ptr.vmem [resolvable:$true] %s174
      %177 = dma.vmem_to_hbm [thread:$0]  %s175, 32, %s5, [#allocation3]
    $region25: #{vit_zoo_forward.13} parent=1 // pred_fallthru
      _
    // Predicated region
    $region26: #{vit_zoo_forward.13} parent=1 // pred_check
      _
    $region27: #{vit_zoo_forward.13} parent=1 // pred_check_branch
      %179 = sbr.rel (0) target = $region29
    $region28: #{vit_zoo_forward.13} parent=1 // pred_region
      %180 = dma.done [#allocation3], 32
    $region29: #{vit_zoo_forward.13} parent=1 // pred_fallthru
      _
    %181 = vsyncpa [#allocation3], 1

// kernel: vit_zoo_forward.8
$region0: #{vit_zoo_forward.8}
  #allocation0 [shape = 'u32[]', space=smem, size = 0x4, offset = 0x4, fixed_abs, tag = 'smem constant byte address 0x4 - core index']
  #allocation1 [shape = 'u32[144,128]{1,0:T(1,128)}', space=vmem, size = 0x12000, scoped, tag = 'internal scratch']
  %s0 = inlined_call_operand.vmem [shape: bf16[2,24,128], index: 0, kind: input, shape index: {}]
  %s1 = inlined_call_operand.vmem [shape: f32[1,128], index: 1, kind: input, shape index: {}]
  %s2 = inlined_call_operand.vmem [shape: f32[1,128], index: 2, kind: input, shape index: {}]
  %s3 = inlined_call_operand.vmem [shape: bf16[128,384], index: 3, kind: input, shape index: {}]
  %s4 = inlined_call_operand.vmem [shape: f32[1,384], index: 4, kind: input, shape index: {}]
  %s5 = inlined_call_operand.vmem [shape: bf16[128,128], index: 5, kind: input, shape index: {}]
  %s6 = inlined_call_operand.vmem [shape: f32[1,128], index: 6, kind: input, shape index: {}]
  %s7 = inlined_call_operand.vmem [shape: f32[1,128], index: 7, kind: input, shape index: {}]
  %s8 = inlined_call_operand.vmem [shape: f32[1,128], index: 8, kind: input, shape index: {}]
  %s9 = inlined_call_operand.vmem [shape: bf16[128,512], index: 9, kind: input, shape index: {}]
  %s10 = inlined_call_operand.vmem [shape: f32[1,512], index: 10, kind: input, shape index: {}]
  %s11 = inlined_call_operand.vmem [shape: bf16[512,128], index: 11, kind: input, shape index: {}]
  %s12 = inlined_call_operand.vmem [shape: f32[1,128], index: 12, kind: input, shape index: {}]
  %s13 = inlined_call_operand.vmem [shape: bf16[2,24,128], index: 13, kind: output, shape index: {}]
  %s14 = sld [smem:[#allocation0]]
  $region85: #{vit_zoo_forward.8} parent=0
    _
  %s16 = ssub.s32 1, %s14
  %s17 = scalar_select 0, %s16, %s14
  loop: start=0, step=1, limit=4
  $region2: #{vit_zoo_forward.8} parent=0 // loop_pre_header
    _
  $region3: #{vit_zoo_forward.8} parent=0 // loop_header
    %s19 = sphi 0, %s23
    %p20 = scmp.ge.s32.totalorder %s19, 4
    %s29 = sphi 0, %s31
    %s32 = sphi 0, %s29
    %s33 = sphi 0, %s32
    %s49 = sphi 0, %s33
    %s53 = sphi 0, %s53
    %s55 = sphi 0, %s53
    %s56 = sphi 0, %s55
    %s70 = sphi 0, %s56
    %s74 = sphi 0, %s74
    %s76 = sphi 0, %s74
    %s77 = sphi 0, %s76
    %s91 = sphi 0, %s77
    %s95 = sphi 0, %s95
    %s97 = sphi 0, %s95
    %s98 = sphi 0, %s97
    %s112 = sphi 0, %s98
    %s116 = sphi 0, %s116
    %s118 = sphi 0, %s116
    %s119 = sphi 0, %s118
    %s133 = sphi 0, %s119
    %s137 = sphi 0, %s137
    %s139 = sphi 0, %s137
    %s140 = sphi 0, %s139
    %s154 = sphi 0, %s140
    %s158 = sphi 0, %s158
    %s160 = sphi 0, %s158
    %s161 = sphi 0, %s160
    %s175 = sphi 0, %s161
    %s179 = sphi 0, %s179
    %s181 = sphi 0, %s179
    %s182 = sphi 0, %s181
    %s196 = sphi 0, %s182
    %s200 = sphi 0, %s200
    %s202 = sphi 0, %s200
    %s203 = sphi 0, %s202
    %s217 = sphi 0, %s203
    %s221 = sphi 0, %s221
    %s223 = sphi 0, %s221
    %s224 = sphi 0, %s223
    %s238 = sphi 0, %s224
    %s242 = sphi 0, %s242
    %s244 = sphi 0, %s242
    %s245 = sphi 0, %s244
    %s259 = sphi 0, %s245
    %s263 = sphi 0, %s263
    %s265 = sphi 0, %s263
    %s266 = sphi 0, %s265
    %s280 = sphi 0, %s266
    %s284 = sphi 0, %s284
    %s286 = sphi 0, %s284
    %s287 = sphi 0, %s286
    %s301 = sphi 0, %s287
    %s307 = sphi 0, %s309
    %s310 = sphi 0, %s307
    %s311 = sphi 0, %s310
    %s327 = sphi 0, %s311
  $region4: #{vit_zoo_forward.8} parent=0 // loop_header_branch
    %22 = sbr.rel (%p20) target = $region8
  $region5: #{vit_zoo_forward.8} parent=0 // loop_body
    %s24 = ssub.s32 %s19, 1
    %s25 = ssub.s32 %s19, 2
    %s26 = sadd.s32 %s19, 1
    %s27 = ssub.s32 %s19, %s26
    %p28 = scmp.eq.s32.totalorder %s27, 0
    %s30 = sadd.s32 %s29, 1
    %s31 = scalar_select %p28, %s29, %s30
    %p34 = pneg %p28
    %p35 = scmp.eq.s32.totalorder %s19, 1
    %p36 = por %p34, %p35
    %p37 = scmp.ne.s32.totalorder %s29, %s32
    %p38 = scmp.eq.s32.totalorder %s19, 0
    %p39 = por %p37, %p38
    %p40 = scmp.ne.s32.totalorder %s29, %s32
    %p41 = scmp.eq.s32.totalorder %s24, 1
    %p42 = por %p40, %p41
    %p43 = scmp.ne.s32.totalorder %s32, %s33
    %p44 = scmp.eq.s32.totalorder %s24, 0
    %p45 = por %p43, %p44
    %p46 = scmp.ne.s32.totalorder %s32, %s33
    %p47 = scmp.eq.s32.totalorder %s25, 1
    %p48 = por %p46, %p47
    %p50 = scmp.ne.s32.totalorder %s33, %s49
    %p51 = scmp.eq.s32.totalorder %s25, 0
    %p52 = por %p50, %p51
    %s54 = sadd.s32 %s53, 1
    %p57 = scmp.eq.s32.totalorder %s19, 1
    %p58 = scmp.ne.s32.totalorder %s53, %s55
    %p59 = scmp.eq.s32.totalorder %s19, 0
    %p60 = por %p58, %p59
    %p61 = scmp.ne.s32.totalorder %s53, %s55
    %p62 = scmp.eq.s32.totalorder %s24, 1
    %p63 = por %p61, %p62
    %p64 = scmp.ne.s32.totalorder %s55, %s56
    %p65 = scmp.eq.s32.totalorder %s24, 0
    %p66 = por %p64, %p65
    %p67 = scmp.ne.s32.totalorder %s55, %s56
    %p68 = scmp.eq.s32.totalorder %s25, 1
    %p69 = por %p67, %p68
    %p71 = scmp.ne.s32.totalorder %s56, %s70
    %p72 = scmp.eq.s32.totalorder %s25, 0
    %p73 = por %p71, %p72
    %s75 = sadd.s32 %s74, 1
    %p78 = scmp.eq.s32.totalorder %s19, 1
    %p79 = scmp.ne.s32.totalorder %s74, %s76
    %p80 = scmp.eq.s32.totalorder %s19, 0
    %p81 = por %p79, %p80
    %p82 = scmp.ne.s32.totalorder %s74, %s76
    %p83 = scmp.eq.s32.totalorder %s24, 1
    %p84 = por %p82, %p83
    %p85 = scmp.ne.s32.totalorder %s76, %s77
    %p86 = scmp.eq.s32.totalorder %s24, 0
    %p87 = por %p85, %p86
    %p88 = scmp.ne.s32.totalorder %s76, %s77
    %p89 = scmp.eq.s32.totalorder %s25, 1
    %p90 = por %p88, %p89
    %p92 = scmp.ne.s32.totalorder %s77, %s91
    %p93 = scmp.eq.s32.totalorder %s25, 0
    %p94 = por %p92, %p93
    %s96 = sadd.s32 %s95, 1
    %p99 = scmp.eq.s32.totalorder %s19, 1
    %p100 = scmp.ne.s32.totalorder %s95, %s97
    %p101 = scmp.eq.s32.totalorder %s19, 0
    %p102 = por %p100, %p101
    %p103 = scmp.ne.s32.totalorder %s95, %s97
    %p104 = scmp.eq.s32.totalorder %s24, 1
    %p105 = por %p103, %p104
    %p106 = scmp.ne.s32.totalorder %s97, %s98
    %p107 = scmp.eq.s32.totalorder %s24, 0
    %p108 = por %p106, %p107
    %p109 = scmp.ne.s32.totalorder %s97, %s98
    %p110 = scmp.eq.s32.totalorder %s25, 1
    %p111 = por %p109, %p110
    %p113 = scmp.ne.s32.totalorder %s98, %s112
    %p114 = scmp.eq.s32.totalorder %s25, 0
    %p115 = por %p113, %p114
    %s117 = sadd.s32 %s116, 1
    %p120 = scmp.eq.s32.totalorder %s19, 1
    %p121 = scmp.ne.s32.totalorder %s116, %s118
    %p122 = scmp.eq.s32.totalorder %s19, 0
    %p123 = por %p121, %p122
    %p124 = scmp.ne.s32.totalorder %s116, %s118
    %p125 = scmp.eq.s32.totalorder %s24, 1
    %p126 = por %p124, %p125
    %p127 = scmp.ne.s32.totalorder %s118, %s119
    %p128 = scmp.eq.s32.totalorder %s24, 0
    %p129 = por %p127, %p128
    %p130 = scmp.ne.s32.totalorder %s118, %s119
    %p131 = scmp.eq.s32.totalorder %s25, 1
    %p132 = por %p130, %p131
    %p134 = scmp.ne.s32.totalorder %s119, %s133
    %p135 = scmp.eq.s32.totalorder %s25, 0
    %p136 = por %p134, %p135
    %s138 = sadd.s32 %s137, 1
    %p141 = scmp.eq.s32.totalorder %s19, 1
    %p142 = scmp.ne.s32.totalorder %s137, %s139
    %p143 = scmp.eq.s32.totalorder %s19, 0
    %p144 = por %p142, %p143
    %p145 = scmp.ne.s32.totalorder %s137, %s139
    %p146 = scmp.eq.s32.totalorder %s24, 1
    %p147 = por %p145, %p146
    %p148 = scmp.ne.s32.totalorder %s139, %s140
    %p149 = scmp.eq.s32.totalorder %s24, 0
    %p150 = por %p148, %p149
    %p151 = scmp.ne.s32.totalorder %s139, %s140
    %p152 = scmp.eq.s32.totalorder %s25, 1
    %p153 = por %p151, %p152
    %p155 = scmp.ne.s32.totalorder %s140, %s154
    %p156 = scmp.eq.s32.totalorder %s25, 0
    %p157 = por %p155, %p156
    %s159 = sadd.s32 %s158, 1
    %p162 = scmp.eq.s32.totalorder %s19, 1
    %p163 = scmp.ne.s32.totalorder %s158, %s160
    %p164 = scmp.eq.s32.totalorder %s19, 0
    %p165 = por %p163, %p164
    %p166 = scmp.ne.s32.totalorder %s158, %s160
    %p167 = scmp.eq.s32.totalorder %s24, 1
    %p168 = por %p166, %p167
    %p169 = scmp.ne.s32.totalorder %s160, %s161
    %p170 = scmp.eq.s32.totalorder %s24, 0
    %p171 = por %p169, %p170
    %p172 = scmp.ne.s32.totalorder %s160, %s161
    %p173 = scmp.eq.s32.totalorder %s25, 1
    %p174 = por %p172, %p173
    %p176 = scmp.ne.s32.totalorder %s161, %s175
    %p177 = scmp.eq.s32.totalorder %s25, 0
    %p178 = por %p176, %p177
    %s180 = sadd.s32 %s179, 1
    %p183 = scmp.eq.s32.totalorder %s19, 1
    %p184 = scmp.ne.s32.totalorder %s179, %s181
    %p185 = scmp.eq.s32.totalorder %s19, 0
    %p186 = por %p184, %p185
    %p187 = scmp.ne.s32.totalorder %s179, %s181
    %p188 = scmp.eq.s32.totalorder %s24, 1
    %p189 = por %p187, %p188
    %p190 = scmp.ne.s32.totalorder %s181, %s182
    %p191 = scmp.eq.s32.totalorder %s24, 0
    %p192 = por %p190, %p191
    %p193 = scmp.ne.s32.totalorder %s181, %s182
    %p194 = scmp.eq.s32.totalorder %s25, 1
    %p195 = por %p193, %p194
    %p197 = scmp.ne.s32.totalorder %s182, %s196
    %p198 = scmp.eq.s32.totalorder %s25, 0
    %p199 = por %p197, %p198
    %s201 = sadd.s32 %s200, 1
    %p204 = scmp.eq.s32.totalorder %s19, 1
    %p205 = scmp.ne.s32.totalorder %s200, %s202
    %p206 = scmp.eq.s32.totalorder %s19, 0
    %p207 = por %p205, %p206
    %p208 = scmp.ne.s32.totalorder %s200, %s202
    %p209 = scmp.eq.s32.totalorder %s24, 1
    %p210 = por %p208, %p209
    %p211 = scmp.ne.s32.totalorder %s202, %s203
    %p212 = scmp.eq.s32.totalorder %s24, 0
    %p213 = por %p211, %p212
    %p214 = scmp.ne.s32.totalorder %s202, %s203
    %p215 = scmp.eq.s32.totalorder %s25, 1
    %p216 = por %p214, %p215
    %p218 = scmp.ne.s32.totalorder %s203, %s217
    %p219 = scmp.eq.s32.totalorder %s25, 0
    %p220 = por %p218, %p219
    %s222 = sadd.s32 %s221, 1
    %p225 = scmp.eq.s32.totalorder %s19, 1
    %p226 = scmp.ne.s32.totalorder %s221, %s223
    %p227 = scmp.eq.s32.totalorder %s19, 0
    %p228 = por %p226, %p227
    %p229 = scmp.ne.s32.totalorder %s221, %s223
    %p230 = scmp.eq.s32.totalorder %s24, 1
    %p231 = por %p229, %p230
    %p232 = scmp.ne.s32.totalorder %s223, %s224
    %p233 = scmp.eq.s32.totalorder %s24, 0
    %p234 = por %p232, %p233
    %p235 = scmp.ne.s32.totalorder %s223, %s224
    %p236 = scmp.eq.s32.totalorder %s25, 1
    %p237 = por %p235, %p236
    %p239 = scmp.ne.s32.totalorder %s224, %s238
    %p240 = scmp.eq.s32.totalorder %s25, 0
    %p241 = por %p239, %p240
    %s243 = sadd.s32 %s242, 1
    %p246 = scmp.eq.s32.totalorder %s19, 1
    %p247 = scmp.ne.s32.totalorder %s242, %s244
    %p248 = scmp.eq.s32.totalorder %s19, 0
    %p249 = por %p247, %p248
    %p250 = scmp.ne.s32.totalorder %s242, %s244
    %p251 = scmp.eq.s32.totalorder %s24, 1
    %p252 = por %p250, %p251
    %p253 = scmp.ne.s32.totalorder %s244, %s245
    %p254 = scmp.eq.s32.totalorder %s24, 0
    %p255 = por %p253, %p254
    %p256 = scmp.ne.s32.totalorder %s244, %s245
    %p257 = scmp.eq.s32.totalorder %s25, 1
    %p258 = por %p256, %p257
    %p260 = scmp.ne.s32.totalorder %s245, %s259
    %p261 = scmp.eq.s32.totalorder %s25, 0
    %p262 = por %p260, %p261
    %s264 = sadd.s32 %s263, 1
    %p267 = scmp.eq.s32.totalorder %s19, 1
    %p268 = scmp.ne.s32.totalorder %s263, %s265
    %p269 = scmp.eq.s32.totalorder %s19, 0
    %p270 = por %p268, %p269
    %p271 = scmp.ne.s32.totalorder %s263, %s265
    %p272 = scmp.eq.s32.totalorder %s24, 1
    %p273 = por %p271, %p272
    %p274 = scmp.ne.s32.totalorder %s265, %s266
    %p275 = scmp.eq.s32.totalorder %s24, 0
    %p276 = por %p274, %p275
    %p277 = scmp.ne.s32.totalorder %s265, %s266
    %p278 = scmp.eq.s32.totalorder %s25, 1
    %p279 = por %p277, %p278
    %p281 = scmp.ne.s32.totalorder %s266, %s280
    %p282 = scmp.eq.s32.totalorder %s25, 0
    %p283 = por %p281, %p282
    %s285 = sadd.s32 %s284, 1
    %p288 = scmp.eq.s32.totalorder %s19, 1
    %p289 = scmp.ne.s32.totalorder %s284, %s286
    %p290 = scmp.eq.s32.totalorder %s19, 0
    %p291 = por %p289, %p290
    %p292 = scmp.ne.s32.totalorder %s284, %s286
    %p293 = scmp.eq.s32.totalorder %s24, 1
    %p294 = por %p292, %p293
    %p295 = scmp.ne.s32.totalorder %s286, %s287
    %p296 = scmp.eq.s32.totalorder %s24, 0
    %p297 = por %p295, %p296
    %p298 = scmp.ne.s32.totalorder %s286, %s287
    %p299 = scmp.eq.s32.totalorder %s25, 1
    %p300 = por %p298, %p299
    %p302 = scmp.ne.s32.totalorder %s287, %s301
    %p303 = scmp.eq.s32.totalorder %s25, 0
    %p304 = por %p302, %p303
    %s305 = ssub.s32 %s19, %s26
    %p306 = scmp.eq.s32.totalorder %s305, 0
    %s308 = sadd.s32 %s307, 1
    %s309 = scalar_select %p306, %s307, %s308
    %p312 = pneg %p306
    %p313 = scmp.eq.s32.totalorder %s19, 1
    %p314 = por %p312, %p313
    %p315 = scmp.ne.s32.totalorder %s307, %s310
    %p316 = scmp.eq.s32.totalorder %s19, 0
    %p317 = por %p315, %p316
    %p318 = scmp.ne.s32.totalorder %s307, %s310
    %p319 = scmp.eq.s32.totalorder %s24, 1
    %p320 = por %p318, %p319
    %p321 = scmp.ne.s32.totalorder %s310, %s311
    %p322 = scmp.eq.s32.totalorder %s24, 0
    %p323 = por %p321, %p322
    %p324 = scmp.ne.s32.totalorder %s310, %s311
    %p325 = scmp.eq.s32.totalorder %s25, 1
    %p326 = por %p324, %p325
    %p328 = scmp.ne.s32.totalorder %s311, %s327
    %p329 = scmp.eq.s32.totalorder %s25, 0
    %p330 = por %p328, %p329
    %p331 = scmp.le.s32.totalorder 1, %s19
    %p332 = scmp.lt.s32.totalorder %s19, 3
    %p333 = pnand %p331, %p332
    %p334 = pneg %p333
    // Predicated region
    $region9: #{vit_zoo_forward.8} parent=5 // pred_check
      _
    $region10: #{vit_zoo_forward.8} parent=5 // pred_check_branch
      %336 = sbr.rel (%p333) target = $region12
    $region11: #{vit_zoo_forward.8} parent=5 // pred_region
      %s337 = ssub.s32 %s19, 1
      // Predicated region
      $region13: #{vit_zoo_forward.8} parent=11 // pred_check
        %p338 = pneg %p66
      $region14: #{vit_zoo_forward.8} parent=11 // pred_check_branch
        %340 = sbr.rel (%p338) target = $region16
      $region15: #{vit_zoo_forward.8} parent=11 // pred_region
        _
      $region16: #{vit_zoo_forward.8} parent=11 // pred_fallthru
        _
      // Predicated region
      $region17: #{vit_zoo_forward.8} parent=11 // pred_check
        %p341 = pneg %p87
      $region18: #{vit_zoo_forward.8} parent=11 // pred_check_branch
        %343 = sbr.rel (%p341) target = $region20
      $region19: #{vit_zoo_forward.8} parent=11 // pred_region
        _
      $region20: #{vit_zoo_forward.8} parent=11 // pred_fallthru
        _
      // Predicated region
      $region21: #{vit_zoo_forward.8} parent=11 // pred_check
        %p344 = pneg %p108
      $region22: #{vit_zoo_forward.8} parent=11 // pred_check_branch
        %346 = sbr.rel (%p344) target = $region24
      $region23: #{vit_zoo_forward.8} parent=11 // pred_region
        _
      $region24: #{vit_zoo_forward.8} parent=11 // pred_fallthru
        _
      // Predicated region
      $region25: #{vit_zoo_forward.8} parent=11 // pred_check
        %p347 = pneg %p129
      $region26: #{vit_zoo_forward.8} parent=11 // pred_check_branch
        %349 = sbr.rel (%p347) target = $region28
      $region27: #{vit_zoo_forward.8} parent=11 // pred_region
        _
      $region28: #{vit_zoo_forward.8} parent=11 // pred_fallthru
        _
      // Predicated region
      $region29: #{vit_zoo_forward.8} parent=11 // pred_check
        %p350 = pneg %p150
      $region30: #{vit_zoo_forward.8} parent=11 // pred_check_branch
        %352 = sbr.rel (%p350) target = $region32
      $region31: #{vit_zoo_forward.8} parent=11 // pred_region
        _
      $region32: #{vit_zoo_forward.8} parent=11 // pred_fallthru
        _
      // Predicated region
      $region33: #{vit_zoo_forward.8} parent=11 // pred_check
        %p353 = pneg %p171
      $region34: #{vit_zoo_forward.8} parent=11 // pred_check_branch
        %355 = sbr.rel (%p353) target = $region36
      $region35: #{vit_zoo_forward.8} parent=11 // pred_region
        _
      $region36: #{vit_zoo_forward.8} parent=11 // pred_fallthru
        _
      // Predicated region
      $region37: #{vit_zoo_forward.8} parent=11 // pred_check
        %p356 = pneg %p192
      $region38: #{vit_zoo_forward.8} parent=11 // pred_check_branch
        %358 = sbr.rel (%p356) target = $region40
      $region39: #{vit_zoo_forward.8} parent=11 // pred_region
        _
      $region40: #{vit_zoo_forward.8} parent=11 // pred_fallthru
        _
      // Predicated region
      $region41: #{vit_zoo_forward.8} parent=11 // pred_check
        %p359 = pneg %p213
      $region42: #{vit_zoo_forward.8} parent=11 // pred_check_branch
        %361 = sbr.rel (%p359) target = $region44
      $region43: #{vit_zoo_forward.8} parent=11 // pred_region
        _
      $region44: #{vit_zoo_forward.8} parent=11 // pred_fallthru
        _
      // Predicated region
      $region45: #{vit_zoo_forward.8} parent=11 // pred_check
        %p362 = pneg %p234
      $region46: #{vit_zoo_forward.8} parent=11 // pred_check_branch
        %364 = sbr.rel (%p362) target = $region48
      $region47: #{vit_zoo_forward.8} parent=11 // pred_region
        _
      $region48: #{vit_zoo_forward.8} parent=11 // pred_fallthru
        _
      // Predicated region
      $region49: #{vit_zoo_forward.8} parent=11 // pred_check
        %p365 = pneg %p255
      $region50: #{vit_zoo_forward.8} parent=11 // pred_check_branch
        %367 = sbr.rel (%p365) target = $region52
      $region51: #{vit_zoo_forward.8} parent=11 // pred_region
        _
      $region52: #{vit_zoo_forward.8} parent=11 // pred_fallthru
        _
      // Predicated region
      $region53: #{vit_zoo_forward.8} parent=11 // pred_check
        %p368 = pneg %p276
      $region54: #{vit_zoo_forward.8} parent=11 // pred_check_branch
        %370 = sbr.rel (%p368) target = $region56
      $region55: #{vit_zoo_forward.8} parent=11 // pred_region
        _
      $region56: #{vit_zoo_forward.8} parent=11 // pred_fallthru
        _
      // Predicated region
      $region57: #{vit_zoo_forward.8} parent=11 // pred_check
        %p371 = pneg %p297
      $region58: #{vit_zoo_forward.8} parent=11 // pred_check_branch
        %373 = sbr.rel (%p371) target = $region60
      $region59: #{vit_zoo_forward.8} parent=11 // pred_region
        _
      $region60: #{vit_zoo_forward.8} parent=11 // pred_fallthru
        _
    $region12: #{vit_zoo_forward.8} parent=5 // pred_fallthru
      _
    %p374 = scmp.lt.s32.totalorder %s19, 2
    // Predicated region
    $region61: #{vit_zoo_forward.8} parent=5 // pred_check
      %p375 = pneg %p374
    $region62: #{vit_zoo_forward.8} parent=5 // pred_check_branch
      %377 = sbr.rel (%p375) target = $region64
    $region63: #{vit_zoo_forward.8} parent=5 // pred_region
      // Predicated region
      $region65: #{vit_zoo_forward.8} parent=63 // pred_check
        %p378 = pneg %p39
      $region66: #{vit_zoo_forward.8} parent=63 // pred_check_branch
        %380 = sbr.rel (%p378) target = $region68
      $region67: #{vit_zoo_forward.8} parent=63 // pred_region
        %p381 = scmp.lt.s32.totalorder %s19, 1
        %s382 = scalar_select %p381, %s19, 1
        %s383 = smul.addr %s382, 3
        %s384 = smul.addr %s383, 4
        %s385 = scalar_lea.vmem %s0, %s384
      $region68: #{vit_zoo_forward.8} parent=63 // pred_fallthru
        _
    $region64: #{vit_zoo_forward.8} parent=5 // pred_fallthru
      _
    %p386 = scmp.le.s32.totalorder 1, %s19
    %p387 = scmp.lt.s32.totalorder %s19, 3
    %p388 = pnand %p386, %p387
    %p389 = pneg %p388
    // Predicated region
    $region69: #{vit_zoo_forward.8} parent=5 // pred_check
      _
    $region70: #{vit_zoo_forward.8} parent=5 // pred_check_branch
      %391 = sbr.rel (%p388) target = $region72
    $region71: #{vit_zoo_forward.8} parent=5 // pred_region
      %s392 = ssub.s32 %s19, 1
      %p393 = scmp.lt.s32.totalorder %s24, 1
      %s394 = scalar_select %p393, %s24, 1
      %s395 = smul.addr %s394, 3
      %s396 = smul.addr %s395, 4
      %s397 = scalar_lea.vmem %s0, %s396
      %p398 = pneg %p45
      %p399 = pneg %p42
      %p400 = pneg %p66
      %p401 = pneg %p63
      %p402 = pneg %p87
      %p403 = pneg %p84
      %p404 = pneg %p108
      %p405 = pneg %p105
      %p406 = pneg %p129
      %p407 = pneg %p126
      %p408 = pneg %p150
      %p409 = pneg %p147
      %p410 = pneg %p171
      %p411 = pneg %p168
      %p412 = pneg %p192
      %p413 = pneg %p189
      %p414 = pneg %p213
      %p415 = pneg %p210
      %p416 = pneg %p234
      %p417 = pneg %p231
      %p418 = pneg %p255
      %p419 = pneg %p252
      %p420 = pneg %p276
      %p421 = pneg %p273
      %p422 = pneg %p297
      %p423 = pneg %p294
      %p424 = pneg %p323
      %p425 = pneg %p320
      %p426 = scmp.lt.s32.totalorder %s24, 1
      %s427 = scalar_select %p426, %s24, 1
      %s428 = smul.addr %s427, 3
      %s429 = smul.addr %s428, 4
      %s430 = scalar_lea.vmem %s13, %s429
      %p431 = scmp.lt.s32.totalorder %s24, 1
      %s432 = scalar_select %p431, %s24, 1
      %s433 = smul.addr %s432, 3
      %s434 = smul.addr %s433, 4
      %s435 = scalar_lea.vmem %s0, %s434
      %p436 = scmp.lt.s32.totalorder %s24, 1
      %s437 = scalar_select %p436, %s24, 1
      %s438 = smul.addr %s437, 3
      %s439 = smul.addr %s438, 4
      %s440 = scalar_lea.vmem %s13, %s439
      %v442 = vld [vmem:[%s435] sm:$0xf]
      %v443 = vld [vmem:[%s435 + $0x4] sm:$0xf]
      %v444 = vld [vmem:[%s435 + $0x8] sm:$0xf]
      %v445 = vunpack.c.l.bf16 %v442
      %v446 = vunpack.c.l.bf16 %v443
      %v447 = vunpack.c.l.bf16 %v444
      %v448 = vld [vmem:[%s1] sm:$0x1]
      %v449 = vld [vmem:[%s2] sm:$0x1]
      %450 = vadd.xlane.f32.xlu0 %v445
      %v451 = vpop.xlane.xlu0 %450
      %452 = vadd.xlane.f32.xlu0 %v446
      %v453 = vpop.xlane.xlu0 %452
      %454 = vadd.xlane.f32.xlu0 %v447
      %v455 = vpop.xlane.xlu0 %454
      %v456 = vrcp.pop 128.0
      %v457 = vmul.f32 %v451, %v456
      %v458 = vmul.f32 %v453, %v456
      %v459 = vmul.f32 %v455, %v456
      %v460 = vsub.f32 %v445, %v457
      %v461 = vsub.f32 %v446, %v458
      %v462 = vsub.f32 %v447, %v459
      %v463 = vmul.f32 %v460, %v460
      %v464 = vmul.f32 %v461, %v461
      %v465 = vmul.f32 %v462, %v462
      %466 = vadd.xlane.f32.xlu0 %v463
      %v467 = vpop.xlane.xlu0 %466
      %468 = vadd.xlane.f32.xlu0 %v464
      %v469 = vpop.xlane.xlu0 %468
      %470 = vadd.xlane.f32.xlu0 %v465
      %v471 = vpop.xlane.xlu0 %470
      %v472 = vmul.f32 %v467, %v456
      %v473 = vmul.f32 %v469, %v456
      %v474 = vmul.f32 %v471, %v456
      %v475 = vadd.f32 %v472, 1e-06
      %v476 = vadd.f32 %v473, 1e-06
      %v477 = vadd.f32 %v474, 1e-06
      %v478 = vrsqrt.pop %v475
      %v479 = vrsqrt.pop %v476
      %v480 = vrsqrt.pop %v477
      %v481 = vmul.f32 %v460, %v478
      %v482 = vmul.f32 %v461, %v479
      %v483 = vmul.f32 %v462, %v480
      %v485 = vlaneseq
      %v486 = vshrl.u32 %v485, 7
      %v487 = vsub.s32 0, %v486
      %v488 = vrot.slane %v448, %v487
      %v490 = vmul.f32 %v481, %v488
      %v491 = vmul.f32 %v482, %v488
      %v492 = vmul.f32 %v483, %v488
      %v494 = vlaneseq
      %v495 = vshrl.u32 %v494, 7
      %v496 = vsub.s32 0, %v495
      %v497 = vrot.slane %v449, %v496
      %v499 = vadd.f32 %v490, %v497
      %v500 = vadd.f32 %v491, %v497
      %v501 = vadd.f32 %v492, %v497
      %v502 = vpack.c.bf16 %v500, %v499
      %v503 = vpack.c.bf16 %v501, %v501
      %v504 = vld [vmem:[%s3] sm:$0xff]
      %v505 = vld [vmem:[%s3 + $0x8] sm:$0xf]
      %v506 = vld [vmem:[%s3 + $0xc] sm:$0xff]
      %v507 = vld [vmem:[%s3 + $0x14] sm:$0xf]
      %v508 = vld [vmem:[%s3 + $0x18] sm:$0xff]
      %v509 = vld [vmem:[%s3 + $0x20] sm:$0xf]
      %v510 = vld [vmem:[%s3 + $0x24] sm:$0xff]
      %v511 = vld [vmem:[%s3 + $0x2c] sm:$0xf]
      %v512 = vld [vmem:[%s3 + $0x30] sm:$0xff]
      %v513 = vld [vmem:[%s3 + $0x38] sm:$0xf]
      %v514 = vld [vmem:[%s3 + $0x3c] sm:$0xff]
      %v515 = vld [vmem:[%s3 + $0x44] sm:$0xf]
      %v516 = vld [vmem:[%s3 + $0x48] sm:$0xff]
      %v517 = vld [vmem:[%s3 + $0x50] sm:$0xf]
      %v518 = vld [vmem:[%s3 + $0x54] sm:$0xff]
      %v519 = vld [vmem:[%s3 + $0x5c] sm:$0xf]
      %v520 = vld [vmem:[%s3 + $0x60] sm:$0xff]
      %v521 = vld [vmem:[%s3 + $0x68] sm:$0xf]
      %v522 = vld [vmem:[%s3 + $0x6c] sm:$0xff]
      %v523 = vld [vmem:[%s3 + $0x74] sm:$0xf]
      %v524 = vld [vmem:[%s3 + $0x78] sm:$0xff]
      %v525 = vld [vmem:[%s3 + $0x80] sm:$0xf]
      %v526 = vld [vmem:[%s3 + $0x84] sm:$0xff]
      %v527 = vld [vmem:[%s3 + $0x8c] sm:$0xf]
      %v528 = vld [vmem:[%s3 + $0x90] sm:$0xff]
      %v529 = vld [vmem:[%s3 + $0x98] sm:$0xf]
      %v530 = vld [vmem:[%s3 + $0x9c] sm:$0xff]
      %v531 = vld [vmem:[%s3 + $0xa4] sm:$0xf]
      %v532 = vld [vmem:[%s3 + $0xa8] sm:$0xff]
      %v533 = vld [vmem:[%s3 + $0xb0] sm:$0xf]
      %v534 = vld [vmem:[%s3 + $0xb4] sm:$0xff]
      %v535 = vld [vmem:[%s3 + $0xbc] sm:$0xf]
      %v536 = vld [vmem:[%s4] sm:$0x7]
      %v538 = vlaneseq
      %v539 = vshrl.u32 %v538, 7
      %v540 = vsub.s32 0, %v539
      %v541 = vrot.slane %v536, %v540
      %v542 = vlaneseq
      %v543 = vshrl.u32 %v542, 7
      %v544 = vsub.s32 1, %v543
      %v545 = vrot.slane %v536, %v544
      %v546 = vlaneseq
      %v547 = vshrl.u32 %v546, 7
      %v548 = vsub.s32 2, %v547
      %v549 = vrot.slane %v536, %v548
      %v585 = vunpack.c.l.b16 %v504
      %v586 = vunpack.c.h.b16 %v504
      %v587 = vunpack.c.l.b16 %v505
      %v588 = vunpack.c.l.b16 %v506
      %v589 = vunpack.c.h.b16 %v506
      %v590 = vunpack.c.l.b16 %v507
      %v591 = vunpack.c.l.b16 %v508
      %v592 = vunpack.c.h.b16 %v508
      %v593 = vunpack.c.l.b16 %v509
      %v594 = vunpack.c.l.b16 %v510
      %v595 = vunpack.c.h.b16 %v510
      %v596 = vunpack.c.l.b16 %v511
      %v597 = vunpack.c.l.b16 %v512
      %v598 = vunpack.c.h.b16 %v512
      %v599 = vunpack.c.l.b16 %v513
      %v600 = vunpack.c.l.b16 %v514
      %v601 = vunpack.c.h.b16 %v514
      %v602 = vunpack.c.l.b16 %v515
      %v603 = vunpack.c.l.b16 %v516
      %v604 = vunpack.c.h.b16 %v516
      %v605 = vunpack.c.l.b16 %v517
      %v606 = vunpack.c.l.b16 %v518
      %v607 = vunpack.c.h.b16 %v518
      %v608 = vunpack.c.l.b16 %v519
      %v609 = vunpack.c.l.b16 %v520
      %v610 = vunpack.c.h.b16 %v520
      %v611 = vunpack.c.l.b16 %v521
      %v612 = vunpack.c.l.b16 %v522
      %v613 = vunpack.c.h.b16 %v522
      %v614 = vunpack.c.l.b16 %v523
      %v615 = vunpack.c.l.b16 %v524
      %v616 = vunpack.c.h.b16 %v524
      %v617 = vunpack.c.l.b16 %v525
      %v618 = vunpack.c.l.b16 %v526
      %v619 = vunpack.c.h.b16 %v526
      %v620 = vunpack.c.l.b16 %v527
      %v621 = vunpack.c.l.b16 %v528
      %v622 = vunpack.c.h.b16 %v528
      %v623 = vunpack.c.l.b16 %v529
      %v624 = vunpack.c.l.b16 %v530
      %v625 = vunpack.c.h.b16 %v530
      %v626 = vunpack.c.l.b16 %v531
      %v627 = vunpack.c.l.b16 %v532
      %v628 = vunpack.c.h.b16 %v532
      %v629 = vunpack.c.l.b16 %v533
      %v630 = vunpack.c.l.b16 %v534
      %v631 = vunpack.c.h.b16 %v534
      %v632 = vunpack.c.l.b16 %v535
      %v633 = vpack.c.b16 %v588, %v585
      %v634 = vpack.c.b16 %v589, %v586
      %v635 = vpack.c.b16 %v590, %v587
      %v636 = vpack.c.b16 %v594, %v591
      %v637 = vpack.c.b16 %v595, %v592
      %v638 = vpack.c.b16 %v596, %v593
      %v639 = vpack.c.b16 %v600, %v597
      %v640 = vpack.c.b16 %v601, %v598
      %v641 = vpack.c.b16 %v602, %v599
      %v642 = vpack.c.b16 %v606, %v603
      %v643 = vpack.c.b16 %v607, %v604
      %v644 = vpack.c.b16 %v608, %v605
      %v645 = vpack.c.b16 %v612, %v609
      %v646 = vpack.c.b16 %v613, %v610
      %v647 = vpack.c.b16 %v614, %v611
      %v648 = vpack.c.b16 %v618, %v615
      %v649 = vpack.c.b16 %v619, %v616
      %v650 = vpack.c.b16 %v620, %v617
      %v651 = vpack.c.b16 %v624, %v621
      %v652 = vpack.c.b16 %v625, %v622
      %v653 = vpack.c.b16 %v626, %v623
      %v654 = vpack.c.b16 %v630, %v627
      %v655 = vpack.c.b16 %v631, %v628
      %v656 = vpack.c.b16 %v632, %v629
      %681 = vmatprep.subr.bf16.mxu0 %v634
      %682 = vmatpush1.bf16.msra.mxu0 %v633
      %683 = vmatprep.subr.bf16.mxu0 %v637
      %684 = vmatpush1.bf16.msra.mxu0 %v636
      %685 = vmatprep.subr.bf16.mxu0 %v640
      %686 = vmatpush1.bf16.msra.mxu0 %v639
      %687 = vmatprep.subr.bf16.mxu0 %v643
      %688 = vmatpush1.bf16.msra.mxu0 %v642
      %689 = vmatprep.subr.bf16.mxu0 %v646
      %690 = vmatpush1.bf16.msra.mxu0 %v645
      %691 = vmatprep.subr.bf16.mxu0 %v649
      %692 = vmatpush1.bf16.msra.mxu0 %v648
      %693 = vmatprep.subr.bf16.mxu0 %v652
      %694 = vmatpush1.bf16.msra.mxu0 %v651
      %695 = vmatprep.subr.bf16.mxu0 %v655
      %696 = vmatpush1.bf16.msra.mxu0 %v654
      %697 = vmatprep.subr.bf16.mxu0 0
      %698 = vmatpush1.bf16.msra.mxu0 0
      %699 = vmatprep.subr.bf16.mxu0 0
      %700 = vmatpush1.bf16.msra.mxu0 0
      %701 = vmatprep.subr.bf16.mxu0 0
      %702 = vmatpush1.bf16.msra.mxu0 0
      %703 = vmatprep.subr.bf16.mxu0 0
      %704 = vmatpush1.bf16.msra.mxu0 0
      %705 = vmatprep.subr.bf16.mxu0 0
      %706 = vmatpush1.bf16.msra.mxu0 0
      %707 = vmatprep.subr.bf16.mxu0 0
      %708 = vmatpush1.bf16.msra.mxu0 0
      %709 = vmatprep.subr.bf16.mxu0 0
      %710 = vmatpush1.bf16.msra.mxu0 0
      %711 = vmatprep.subr.bf16.mxu0 0
      %712 = vmatpush1.bf16.msra.mxu0 0
      %713 = vmatprep.mubr.bf16.mxu0 0
      %714 = vmatmul.mubr.bf16.gmra.mrb[0].mxu0 %v502
      %v715 = vpop.f32.mrb[0].mxu0
      %v716 = vadd.f32 %v541, %v715
      %v717 = vpop.f32.mrb[0].mxu0
      %v718 = vadd.f32 %v545, %v717
      %v719 = vpop.f32.mrb[0].mxu0
      %v720 = vadd.f32 %v541, %v719
      %v721 = vpop.f32.mrb[0].mxu0
      %v722 = vadd.f32 %v545, %v721
      %723 = vmatprep.mubr.bf16.mxu0 0
      %724 = vmatmul.mubr.bf16.gmra.mrb[0].mxu0 %v503
      %v725 = vpop.f32.mrb[0].mxu0
      %v726 = vadd.f32 %v541, %v725
      %v727 = vpop.f32.mrb[0].mxu0
      %v728 = vadd.f32 %v545, %v727
      %v729 = vpop.f32.mrb[0].mxu0
      %v730 = vpop.f32.mrb[0].mxu0
      %731 = vdwg.mxu0
      %732 = vmatprep.subr.bf16.mxu0 0
      %733 = vmatpush1.bf16.msra.mxu0 %v635
      %734 = vmatprep.subr.bf16.mxu0 0
      %735 = vmatpush1.bf16.msra.mxu0 %v638
      %736 = vmatprep.subr.bf16.mxu0 0
      %737 = vmatpush1.bf16.msra.mxu0 %v641
      %738 = vmatprep.subr.bf16.mxu0 0
      %739 = vmatpush1.bf16.msra.mxu0 %v644
      %740 = vmatprep.subr.bf16.mxu0 0
      %741 = vmatpush1.bf16.msra.mxu0 %v647
      %742 = vmatprep.subr.bf16.mxu0 0
      %743 = vmatpush1.bf16.msra.mxu0 %v650
      %744 = vmatprep.subr.bf16.mxu0 0
      %745 = vmatpush1.bf16.msra.mxu0 %v653
      %746 = vmatprep.subr.bf16.mxu0 0
      %747 = vmatpush1.bf16.msra.mxu0 %v656
      %748 = vmatprep.subr.bf16.mxu0 0
      %749 = vmatpush1.bf16.msra.mxu0 0
      %750 = vmatprep.subr.bf16.mxu0 0
      %751 = vmatpush1.bf16.msra.mxu0 0
      %752 = vmatprep.subr.bf16.mxu0 0
      %753 = vmatpush1.bf16.msra.mxu0 0
      %754 = vmatprep.subr.bf16.mxu0 0
      %755 = vmatpush1.bf16.msra.mxu0 0
      %756 = vmatprep.subr.bf16.mxu0 0
      %757 = vmatpush1.bf16.msra.mxu0 0
      %758 = vmatprep.subr.bf16.mxu0 0
      %759 = vmatpush1.bf16.msra.mxu0 0
      %760 = vmatprep.subr.bf16.mxu0 0
      %761 = vmatpush1.bf16.msra.mxu0 0
      %762 = vmatprep.subr.bf16.mxu0 0
      %763 = vmatpush1.bf16.msra.mxu0 0
      %764 = vmatprep.mubr.bf16.mxu0 0
      %765 = vmatmul.mubr.bf16.gmra.mrb[0].mxu0 %v502
      %v766 = vpop.f32.mrb[0].mxu0
      %v767 = vadd.f32 %v549, %v766
      %v768 = vpop.f32.mrb[0].mxu0
      %v769 = vpop.f32.mrb[0].mxu0
      %v770 = vadd.f32 %v549, %v769
      %v771 = vpop.f32.mrb[0].mxu0
      %772 = vmatprep.mubr.bf16.mxu0 0
      %773 = vmatmul.mubr.bf16.gmra.mrb[0].mxu0 %v503
      %v774 = vpop.f32.mrb[0].mxu0
      %v775 = vadd.f32 %v549, %v774
      %v776 = vpop.f32.mrb[0].mxu0
      %v777 = vpop.f32.mrb[0].mxu0
      %v778 = vpop.f32.mrb[0].mxu0
      %779 = vdwg.mxu0
      %v780 = vpack.c.bf16 %v722, %v718
      %v781 = vpack.c.bf16 0.0, %v728
      %v782 = vpack.c.bf16 0.0, 0.0
      %v783 = vpack.c.bf16 %v770, %v767
      %v784 = vpack.c.bf16 0.0, %v775
      %v785 = vpack.c.bf16 %v720, %v716
      %v786 = vpack.c.bf16 %v726, %v726
      %v787 = vlaneseq
      %v788 = vand.u32 %v787, 127
      %vm789 = vcmp.lt.s32.totalorder %v788, 17
      %vm790 = vcmp.ge.s32.totalorder %v788, 24
      %vm791 = vcmp.lt.s32.totalorder %v788, 24
      %vm792 = vmand %vm790, %vm791
      %vm793 = vmor %vm789, %vm792
      %v794 = vsel %vm793, 0.0, -1e+30
      %vm795 = vcmask 261120
      %v797 = vsel %vm795, %v785, 0
      %v800 = vsel %vm795, %v786, 0
      %v803 = vsel %vm795, %v780, 0
      %v806 = vsel %vm795, %v781, 0
      %v809 = vsel %vm795, %v782, 0
      %811 = vmatprep.subr.bf16.mxu0 0
      %812 = vmatpush1.bf16.xpose.msra.mxu0 %v803
      %813 = vmatprep.subr.bf16.mxu0 0
      %814 = vmatpush1.bf16.xpose.msra.mxu0 %v806
      %815 = vmatprep.subr.bf16.mxu0 0
      %816 = vmatpush1.bf16.xpose.msra.mxu0 %v809
      %817 = vmatprep.subr.bf16.mxu0 0
      %818 = vmatpush1.bf16.xpose.msra.mxu0 %v809
      %819 = vmatprep.subr.bf16.mxu0 0
      %820 = vmatpush1.bf16.xpose.msra.mxu0 %v809
      %821 = vmatprep.subr.bf16.mxu0 0
      %822 = vmatpush1.bf16.xpose.msra.mxu0 %v809
      %823 = vmatprep.subr.bf16.mxu0 0
      %824 = vmatpush1.bf16.xpose.msra.mxu0 %v809
      %825 = vmatprep.subr.bf16.mxu0 0
      %826 = vmatpush1.bf16.xpose.msra.mxu0 %v809
      %827 = vmatprep.subr.bf16.mxu0 0
      %828 = vmatpush1.bf16.xpose.msra.mxu0 0
      %829 = vmatprep.subr.bf16.mxu0 0
      %830 = vmatpush1.bf16.xpose.msra.mxu0 0
      %831 = vmatprep.subr.bf16.mxu0 0
      %832 = vmatpush1.bf16.xpose.msra.mxu0 0
      %833 = vmatprep.subr.bf16.mxu0 0
      %834 = vmatpush1.bf16.xpose.msra.mxu0 0
      %835 = vmatprep.subr.bf16.mxu0 0
      %836 = vmatpush1.bf16.xpose.msra.mxu0 0
      %837 = vmatprep.subr.bf16.mxu0 0
      %838 = vmatpush1.bf16.xpose.msra.mxu0 0
      %839 = vmatprep.subr.bf16.mxu0 0
      %840 = vmatpush1.bf16.xpose.msra.mxu0 0
      %841 = vmatprep.subr.bf16.mxu0 0
      %842 = vmatpush1.bf16.xpose.msra.mxu0 0
      %843 = vmatprep.mubr.bf16.mxu0 0
      %844 = vmatmul.mubr.bf16.gmra.mrb[0].mxu0 %v797
      %v845 = vpop.f32.mrb[0].mxu0
      %v846 = vadd.f32 0.0, %v845
      %v847 = vpop.f32.mrb[0].mxu0
      %v848 = vpop.f32.mrb[0].mxu0
      %v849 = vadd.f32 0.0, %v848
      %v850 = vpop.f32.mrb[0].mxu0
      %851 = vmatprep.mubr.bf16.mxu0 0
      %852 = vmatmul.mubr.bf16.gmra.mrb[0].mxu0 %v800
      %v853 = vpop.f32.mrb[0].mxu0
      %v854 = vadd.f32 0.0, %v853
      %v855 = vpop.f32.mrb[0].mxu0
      %v856 = vpop.f32.mrb[0].mxu0
      %v857 = vpop.f32.mrb[0].mxu0
      %858 = vdwg.mxu0
      %v859 = vmul.f32 %v846, 0.17677669
      %v860 = vmul.f32 %v849, 0.17677669
      %v861 = vmul.f32 %v854, 0.17677669
      %v862 = vadd.f32 %v859, %v794
      %v863 = vadd.f32 %v860, %v794
      %v864 = vadd.f32 %v861, %v794
      %865 = vmax.xlane.f32.xlu0 %v862
      %v866 = vpop.xlane.xlu0 %865
      %867 = vmax.xlane.f32.xlu0 %v863
      %v868 = vpop.xlane.xlu0 %867
      %869 = vmax.xlane.f32.xlu0 %v864
      %v870 = vpop.xlane.xlu0 %869
      %v871 = vsub.f32 %v862, %v866
      %v872 = vsub.f32 %v863, %v868
      %v873 = vsub.f32 %v864, %v870
      %v874 = vmul.f32 %v871, 1.442695
      %v875 = vpow.pop %v874
      %v876 = vmul.f32 %v872, 1.442695
      %v877 = vpow.pop %v876
      %v878 = vmul.f32 %v873, 1.442695
      %v879 = vpow.pop %v878
      %880 = vadd.xlane.f32.xlu0 %v875
      %v881 = vpop.xlane.xlu0 %880
      %882 = vadd.xlane.f32.xlu0 %v877
      %v883 = vpop.xlane.xlu0 %882
      %884 = vadd.xlane.f32.xlu0 %v879
      %v885 = vpop.xlane.xlu0 %884
      %v886 = vpack.c.bf16 %v877, %v875
      %v887 = vpack.c.bf16 %v879, %v879
      %888 = vmatprep.subr.bf16.mxu0 0
      %889 = vmatpush1.bf16.msra.mxu0 %v783
      %890 = vmatprep.subr.bf16.mxu0 0
      %891 = vmatpush1.bf16.msra.mxu0 %v784
      %892 = vmatprep.subr.bf16.mxu0 0
      %893 = vmatpush1.bf16.msra.mxu0 %v782
      %894 = vmatprep.subr.bf16.mxu0 0
      %895 = vmatpush1.bf16.msra.mxu0 %v782
      %896 = vmatprep.subr.bf16.mxu0 0
      %897 = vmatpush1.bf16.msra.mxu0 %v782
      %898 = vmatprep.subr.bf16.mxu0 0
      %899 = vmatpush1.bf16.msra.mxu0 %v782
      %900 = vmatprep.subr.bf16.mxu0 0
      %901 = vmatpush1.bf16.msra.mxu0 %v782
      %902 = vmatprep.subr.bf16.mxu0 0
      %903 = vmatpush1.bf16.msra.mxu0 %v782
      %904 = vmatprep.subr.bf16.mxu0 0
      %905 = vmatpush1.bf16.msra.mxu0 0
      %906 = vmatprep.subr.bf16.mxu0 0
      %907 = vmatpush1.bf16.msra.mxu0 0
      %908 = vmatprep.subr.bf16.mxu0 0
      %909 = vmatpush1.bf16.msra.mxu0 0
      %910 = vmatprep.subr.bf16.mxu0 0
      %911 = vmatpush1.bf16.msra.mxu0 0
      %912 = vmatprep.subr.bf16.mxu0 0
      %913 = vmatpush1.bf16.msra.mxu0 0
      %914 = vmatprep.subr.bf16.mxu0 0
      %915 = vmatpush1.bf16.msra.mxu0 0
      %916 = vmatprep.subr.bf16.mxu0 0
      %917 = vmatpush1.bf16.msra.mxu0 0
      %918 = vmatprep.subr.bf16.mxu0 0
      %919 = vmatpush1.bf16.msra.mxu0 0
      %920 = vmatprep.mubr.bf16.mxu0 0
      %921 = vmatmul.mubr.bf16.gmra.mrb[0].mxu0 %v886
      %v922 = vpop.f32.mrb[0].mxu0
      %v923 = vadd.f32 0.0, %v922
      %v924 = vpop.f32.mrb[0].mxu0
      %v925 = vpop.f32.mrb[0].mxu0
      %v926 = vadd.f32 0.0, %v925
      %v927 = vpop.f32.mrb[0].mxu0
      %928 = vmatprep.mubr.bf16.mxu0 0
      %929 = vmatmul.mubr.bf16.gmra.mrb[0].mxu0 %v887
      %v930 = vpop.f32.mrb[0].mxu0
      %v931 = vadd.f32 0.0, %v930
      %v932 = vpop.f32.mrb[0].mxu0
      %v933 = vpop.f32.mrb[0].mxu0
      %v934 = vpop.f32.mrb[0].mxu0
      %935 = vdwg.mxu0
      %v936 = vrcp.pop %v881
      %v937 = vrcp.pop %v883
      %v938 = vrcp.pop %v885
      %v939 = vmul.f32 %v923, %v936
      %v940 = vmul.f32 %v926, %v937
      %v941 = vmul.f32 %v931, %v938
      %v942 = vpack.c.bf16 %v940, %v939
      %v943 = vpack.c.bf16 %v941, %v941
      %946 = vrot.lane.b32.xlu0 %v785, 96
      %v947 = vpop.permute.xlu0 %946
      %948 = vrot.lane.b32.xlu0 %v786, 96
      %v949 = vpop.permute.xlu0 %948
      %953 = vrot.lane.b32.xlu0 %v780, 96
      %v954 = vpop.permute.xlu0 %953
      %955 = vrot.lane.b32.xlu0 %v781, 96
      %v956 = vpop.permute.xlu0 %955
      %957 = vrot.lane.b32.xlu0 %v782, 96
      %v958 = vpop.permute.xlu0 %957
      %v960 = vsel %vm795, %v947, 0
      %v963 = vsel %vm795, %v949, 0
      %v966 = vsel %vm795, %v954, 0
      %v969 = vsel %vm795, %v956, 0
      %v972 = vsel %vm795, %v958, 0
      %974 = vmatprep.subr.bf16.mxu0 0
      %975 = vmatpush1.bf16.xpose.msra.mxu0 %v966
      %976 = vmatprep.subr.bf16.mxu0 0
      %977 = vmatpush1.bf16.xpose.msra.mxu0 %v969
      %978 = vmatprep.subr.bf16.mxu0 0
      %979 = vmatpush1.bf16.xpose.msra.mxu0 %v972
      %980 = vmatprep.subr.bf16.mxu0 0
      %981 = vmatpush1.bf16.xpose.msra.mxu0 %v972
      %982 = vmatprep.subr.bf16.mxu0 0
      %983 = vmatpush1.bf16.xpose.msra.mxu0 %v972
      %984 = vmatprep.subr.bf16.mxu0 0
      %985 = vmatpush1.bf16.xpose.msra.mxu0 %v972
      %986 = vmatprep.subr.bf16.mxu0 0
      %987 = vmatpush1.bf16.xpose.msra.mxu0 %v972
      %988 = vmatprep.subr.bf16.mxu0 0
      %989 = vmatpush1.bf16.xpose.msra.mxu0 %v972
      %990 = vmatprep.subr.bf16.mxu0 0
      %991 = vmatpush1.bf16.xpose.msra.mxu0 0
      %992 = vmatprep.subr.bf16.mxu0 0
      %993 = vmatpush1.bf16.xpose.msra.mxu0 0
      %994 = vmatprep.subr.bf16.mxu0 0
      %995 = vmatpush1.bf16.xpose.msra.mxu0 0
      %996 = vmatprep.subr.bf16.mxu0 0
      %997 = vmatpush1.bf16.xpose.msra.mxu0 0
      %998 = vmatprep.subr.bf16.mxu0 0
      %999 = vmatpush1.bf16.xpose.msra.mxu0 0
      %1000 = vmatprep.subr.bf16.mxu0 0
      %1001 = vmatpush1.bf16.xpose.msra.mxu0 0
      %1002 = vmatprep.subr.bf16.mxu0 0
      %1003 = vmatpush1.bf16.xpose.msra.mxu0 0
      %1004 = vmatprep.subr.bf16.mxu0 0
      %1005 = vmatpush1.bf16.xpose.msra.mxu0 0
      %1006 = vmatprep.mubr.bf16.mxu0 0
      %1007 = vmatmul.mubr.bf16.gmra.mrb[0].mxu0 %v960
      %v1008 = vpop.f32.mrb[0].mxu0
      %v1009 = vadd.f32 0.0, %v1008
      %v1010 = vpop.f32.mrb[0].mxu0
      %v1011 = vpop.f32.mrb[0].mxu0
      %v1012 = vadd.f32 0.0, %v1011
      %v1013 = vpop.f32.mrb[0].mxu0
      %1014 = vmatprep.mubr.bf16.mxu0 0
      %1015 = vmatmul.mubr.bf16.gmra.mrb[0].mxu0 %v963
      %v1016 = vpop.f32.mrb[0].mxu0
      %v1017 = vadd.f32 0.0, %v1016
      %v1018 = vpop.f32.mrb[0].mxu0
      %v1019 = vpop.f32.mrb[0].mxu0
      %v1020 = vpop.f32.mrb[0].mxu0
      %1021 = vdwg.mxu0
      %v1022 = vmul.f32 %v1009, 0.17677669
      %v1023 = vmul.f32 %v1012, 0.17677669
      %v1024 = vmul.f32 %v1017, 0.17677669
      %v1025 = vadd.f32 %v1022, %v794
      %v1026 = vadd.f32 %v1023, %v794
      %v1027 = vadd.f32 %v1024, %v794
      %1028 = vmax.xlane.f32.xlu0 %v1025
      %v1029 = vpop.xlane.xlu0 %1028
      %1030 = vmax.xlane.f32.xlu0 %v1026
      %v1031 = vpop.xlane.xlu0 %1030
      %1032 = vmax.xlane.f32.xlu0 %v1027
      %v1033 = vpop.xlane.xlu0 %1032
      %v1034 = vsub.f32 %v1025, %v1029
      %v1035 = vsub.f32 %v1026, %v1031
      %v1036 = vsub.f32 %v1027, %v1033
      %v1037 = vmul.f32 %v1034, 1.442695
      %v1038 = vpow.pop %v1037
      %v1039 = vmul.f32 %v1035, 1.442695
      %v1040 = vpow.pop %v1039
      %v1041 = vmul.f32 %v1036, 1.442695
      %v1042 = vpow.pop %v1041
      %1043 = vadd.xlane.f32.xlu0 %v1038
      %v1044 = vpop.xlane.xlu0 %1043
      %1045 = vadd.xlane.f32.xlu0 %v1040
      %v1046 = vpop.xlane.xlu0 %1045
      %1047 = vadd.xlane.f32.xlu0 %v1042
      %v1048 = vpop.xlane.xlu0 %1047
      %v1049 = vpack.c.bf16 %v1040, %v1038
      %v1050 = vpack.c.bf16 %v1042, %v1042
      %1053 = vrot.lane.b32.xlu0 %v783, 96
      %v1054 = vpop.permute.xlu0 %1053
      %1055 = vrot.lane.b32.xlu0 %v784, 96
      %v1056 = vpop.permute.xlu0 %1055
      %1060 = vmatprep.subr.bf16.mxu0 0
      %1061 = vmatpush1.bf16.msra.mxu0 %v1054
      %1062 = vmatprep.subr.bf16.mxu0 0
      %1063 = vmatpush1.bf16.msra.mxu0 %v1056
      %1064 = vmatprep.subr.bf16.mxu0 0
      %1065 = vmatpush1.bf16.msra.mxu0 %v958
      %1066 = vmatprep.subr.bf16.mxu0 0
      %1067 = vmatpush1.bf16.msra.mxu0 %v958
      %1068 = vmatprep.subr.bf16.mxu0 0
      %1069 = vmatpush1.bf16.msra.mxu0 %v958
      %1070 = vmatprep.subr.bf16.mxu0 0
      %1071 = vmatpush1.bf16.msra.mxu0 %v958
      %1072 = vmatprep.subr.bf16.mxu0 0
      %1073 = vmatpush1.bf16.msra.mxu0 %v958
      %1074 = vmatprep.subr.bf16.mxu0 0
      %1075 = vmatpush1.bf16.msra.mxu0 %v958
      %1076 = vmatprep.subr.bf16.mxu0 0
      %1077 = vmatpush1.bf16.msra.mxu0 0
      %1078 = vmatprep.subr.bf16.mxu0 0
      %1079 = vmatpush1.bf16.msra.mxu0 0
      %1080 = vmatprep.subr.bf16.mxu0 0
      %1081 = vmatpush1.bf16.msra.mxu0 0
      %1082 = vmatprep.subr.bf16.mxu0 0
      %1083 = vmatpush1.bf16.msra.mxu0 0
      %1084 = vmatprep.subr.bf16.mxu0 0
      %1085 = vmatpush1.bf16.msra.mxu0 0
      %1086 = vmatprep.subr.bf16.mxu0 0
      %1087 = vmatpush1.bf16.msra.mxu0 0
      %1088 = vmatprep.subr.bf16.mxu0 0
      %1089 = vmatpush1.bf16.msra.mxu0 0
      %1090 = vmatprep.subr.bf16.mxu0 0
      %1091 = vmatpush1.bf16.msra.mxu0 0
      %1092 = vmatprep.mubr.bf16.mxu0 0
      %1093 = vmatmul.mubr.bf16.gmra.mrb[0].mxu0 %v1049
      %v1094 = vpop.f32.mrb[0].mxu0
      %v1095 = vadd.f32 0.0, %v1094
      %v1096 = vpop.f32.mrb[0].mxu0
      %v1097 = vpop.f32.mrb[0].mxu0
      %v1098 = vadd.f32 0.0, %v1097
      %v1099 = vpop.f32.mrb[0].mxu0
      %1100 = vmatprep.mubr.bf16.mxu0 0
      %1101 = vmatmul.mubr.bf16.gmra.mrb[0].mxu0 %v1050
      %v1102 = vpop.f32.mrb[0].mxu0
      %v1103 = vadd.f32 0.0, %v1102
      %v1104 = vpop.f32.mrb[0].mxu0
      %v1105 = vpop.f32.mrb[0].mxu0
      %v1106 = vpop.f32.mrb[0].mxu0
      %1107 = vdwg.mxu0
      %v1108 = vrcp.pop %v1044
      %v1109 = vrcp.pop %v1046
      %v1110 = vrcp.pop %v1048
      %v1111 = vmul.f32 %v1095, %v1108
      %v1112 = vmul.f32 %v1098, %v1109
      %v1113 = vmul.f32 %v1103, %v1110
      %v1114 = vpack.c.bf16 %v1112, %v1111
      %v1115 = vpack.c.bf16 %v1113, %v1113
      %1116 = vrot.lane.b32.xlu0 %v785, 64
      %v1117 = vpop.permute.xlu0 %1116
      %1118 = vrot.lane.b32.xlu0 %v786, 64
      %v1119 = vpop.permute.xlu0 %1118
      %1120 = vrot.lane.b32.xlu0 %v780, 64
      %v1121 = vpop.permute.xlu0 %1120
      %1122 = vrot.lane.b32.xlu0 %v781, 64
      %v1123 = vpop.permute.xlu0 %1122
      %1124 = vrot.lane.b32.xlu0 %v782, 64
      %v1125 = vpop.permute.xlu0 %1124
      %v1127 = vsel %vm795, %v1117, 0
      %v1130 = vsel %vm795, %v1119, 0
      %v1133 = vsel %vm795, %v1121, 0
      %v1136 = vsel %vm795, %v1123, 0
      %v1139 = vsel %vm795, %v1125, 0
      %1141 = vmatprep.subr.bf16.mxu0 0
      %1142 = vmatpush1.bf16.xpose.msra.mxu0 %v1133
      %1143 = vmatprep.subr.bf16.mxu0 0
      %1144 = vmatpush1.bf16.xpose.msra.mxu0 %v1136
      %1145 = vmatprep.subr.bf16.mxu0 0
      %1146 = vmatpush1.bf16.xpose.msra.mxu0 %v1139
      %1147 = vmatprep.subr.bf16.mxu0 0
      %1148 = vmatpush1.bf16.xpose.msra.mxu0 %v1139
      %1149 = vmatprep.subr.bf16.mxu0 0
      %1150 = vmatpush1.bf16.xpose.msra.mxu0 %v1139
      %1151 = vmatprep.subr.bf16.mxu0 0
      %1152 = vmatpush1.bf16.xpose.msra.mxu0 %v1139
      %1153 = vmatprep.subr.bf16.mxu0 0
      %1154 = vmatpush1.bf16.xpose.msra.mxu0 %v1139
      %1155 = vmatprep.subr.bf16.mxu0 0
      %1156 = vmatpush1.bf16.xpose.msra.mxu0 %v1139
      %1157 = vmatprep.subr.bf16.mxu0 0
      %1158 = vmatpush1.bf16.xpose.msra.mxu0 0
      %1159 = vmatprep.subr.bf16.mxu0 0
      %1160 = vmatpush1.bf16.xpose.msra.mxu0 0
      %1161 = vmatprep.subr.bf16.mxu0 0
      %1162 = vmatpush1.bf16.xpose.msra.mxu0 0
      %1163 = vmatprep.subr.bf16.mxu0 0
      %1164 = vmatpush1.bf16.xpose.msra.mxu0 0
      %1165 = vmatprep.subr.bf16.mxu0 0
      %1166 = vmatpush1.bf16.xpose.msra.mxu0 0
      %1167 = vmatprep.subr.bf16.mxu0 0
      %1168 = vmatpush1.bf16.xpose.msra.mxu0 0
      %1169 = vmatprep.subr.bf16.mxu0 0
      %1170 = vmatpush1.bf16.xpose.msra.mxu0 0
      %1171 = vmatprep.subr.bf16.mxu0 0
      %1172 = vmatpush1.bf16.xpose.msra.mxu0 0
      %1173 = vmatprep.mubr.bf16.mxu0 0
      %1174 = vmatmul.mubr.bf16.gmra.mrb[0].mxu0 %v1127
      %v1175 = vpop.f32.mrb[0].mxu0
      %v1176 = vadd.f32 0.0, %v1175
      %v1177 = vpop.f32.mrb[0].mxu0
      %v1178 = vpop.f32.mrb[0].mxu0
      %v1179 = vadd.f32 0.0, %v1178
      %v1180 = vpop.f32.mrb[0].mxu0
      %1181 = vmatprep.mubr.bf16.mxu0 0
      %1182 = vmatmul.mubr.bf16.gmra.mrb[0].mxu0 %v1130
      %v1183 = vpop.f32.mrb[0].mxu0
      %v1184 = vadd.f32 0.0, %v1183
      %v1185 = vpop.f32.mrb[0].mxu0
      %v1186 = vpop.f32.mrb[0].mxu0
      %v1187 = vpop.f32.mrb[0].mxu0
      %1188 = vdwg.mxu0
      %v1189 = vmul.f32 %v1176, 0.17677669
      %v1190 = vmul.f32 %v1179, 0.17677669
      %v1191 = vmul.f32 %v1184, 0.17677669
      %v1192 = vadd.f32 %v1189, %v794
      %v1193 = vadd.f32 %v1190, %v794
      %v1194 = vadd.f32 %v1191, %v794
      %1195 = vmax.xlane.f32.xlu0 %v1192
      %v1196 = vpop.xlane.xlu0 %1195
      %1197 = vmax.xlane.f32.xlu0 %v1193
      %v1198 = vpop.xlane.xlu0 %1197
      %1199 = vmax.xlane.f32.xlu0 %v1194
      %v1200 = vpop.xlane.xlu0 %1199
      %v1201 = vsub.f32 %v1192, %v1196
      %v1202 = vsub.f32 %v1193, %v1198
      %v1203 = vsub.f32 %v1194, %v1200
      %v1204 = vmul.f32 %v1201, 1.442695
      %v1205 = vpow.pop %v1204
      %v1206 = vmul.f32 %v1202, 1.442695
      %v1207 = vpow.pop %v1206
      %v1208 = vmul.f32 %v1203, 1.442695
      %v1209 = vpow.pop %v1208
      %1210 = vadd.xlane.f32.xlu0 %v1205
      %v1211 = vpop.xlane.xlu0 %1210
      %1212 = vadd.xlane.f32.xlu0 %v1207
      %v1213 = vpop.xlane.xlu0 %1212
      %1214 = vadd.xlane.f32.xlu0 %v1209
      %v1215 = vpop.xlane.xlu0 %1214
      %v1216 = vpack.c.bf16 %v1207, %v1205
      %v1217 = vpack.c.bf16 %v1209, %v1209
      %1218 = vrot.lane.b32.xlu0 %v783, 64
      %v1219 = vpop.permute.xlu0 %1218
      %1220 = vrot.lane.b32.xlu0 %v784, 64
      %v1221 = vpop.permute.xlu0 %1220
      %1225 = vmatprep.subr.bf16.mxu0 0
      %1226 = vmatpush1.bf16.msra.mxu0 %v1219
      %1227 = vmatprep.subr.bf16.mxu0 0
      %1228 = vmatpush1.bf16.msra.mxu0 %v1221
      %1229 = vmatprep.subr.bf16.mxu0 0
      %1230 = vmatpush1.bf16.msra.mxu0 %v1125
      %1231 = vmatprep.subr.bf16.mxu0 0
      %1232 = vmatpush1.bf16.msra.mxu0 %v1125
      %1233 = vmatprep.subr.bf16.mxu0 0
      %1234 = vmatpush1.bf16.msra.mxu0 %v1125
      %1235 = vmatprep.subr.bf16.mxu0 0
      %1236 = vmatpush1.bf16.msra.mxu0 %v1125
      %1237 = vmatprep.subr.bf16.mxu0 0
      %1238 = vmatpush1.bf16.msra.mxu0 %v1125
      %1239 = vmatprep.subr.bf16.mxu0 0
      %1240 = vmatpush1.bf16.msra.mxu0 %v1125
      %1241 = vmatprep.subr.bf16.mxu0 0
      %1242 = vmatpush1.bf16.msra.mxu0 0
      %1243 = vmatprep.subr.bf16.mxu0 0
      %1244 = vmatpush1.bf16.msra.mxu0 0
      %1245 = vmatprep.subr.bf16.mxu0 0
      %1246 = vmatpush1.bf16.msra.mxu0 0
      %1247 = vmatprep.subr.bf16.mxu0 0
      %1248 = vmatpush1.bf16.msra.mxu0 0
      %1249 = vmatprep.subr.bf16.mxu0 0
      %1250 = vmatpush1.bf16.msra.mxu0 0
      %1251 = vmatprep.subr.bf16.mxu0 0
      %1252 = vmatpush1.bf16.msra.mxu0 0
      %1253 = vmatprep.subr.bf16.mxu0 0
      %1254 = vmatpush1.bf16.msra.mxu0 0
      %1255 = vmatprep.subr.bf16.mxu0 0
      %1256 = vmatpush1.bf16.msra.mxu0 0
      %1257 = vmatprep.mubr.bf16.mxu0 0
      %1258 = vmatmul.mubr.bf16.gmra.mrb[0].mxu0 %v1216
      %v1259 = vpop.f32.mrb[0].mxu0
      %v1260 = vadd.f32 0.0, %v1259
      %v1261 = vpop.f32.mrb[0].mxu0
      %v1262 = vpop.f32.mrb[0].mxu0
      %v1263 = vadd.f32 0.0, %v1262
      %v1264 = vpop.f32.mrb[0].mxu0
      %1265 = vmatprep.mubr.bf16.mxu0 0
      %1266 = vmatmul.mubr.bf16.gmra.mrb[0].mxu0 %v1217
      %v1267 = vpop.f32.mrb[0].mxu0
      %v1268 = vadd.f32 0.0, %v1267
      %v1269 = vpop.f32.mrb[0].mxu0
      %v1270 = vpop.f32.mrb[0].mxu0
      %v1271 = vpop.f32.mrb[0].mxu0
      %1272 = vdwg.mxu0
      %v1273 = vrcp.pop %v1211
      %v1274 = vrcp.pop %v1213
      %v1275 = vrcp.pop %v1215
      %v1276 = vmul.f32 %v1260, %v1273
      %v1277 = vmul.f32 %v1263, %v1274
      %v1278 = vmul.f32 %v1268, %v1275
      %v1279 = vpack.c.bf16 %v1277, %v1276
      %v1280 = vpack.c.bf16 %v1278, %v1278
      %1281 = vrot.lane.b32.xlu0 %v785, 32
      %v1282 = vpop.permute.xlu0 %1281
      %1283 = vrot.lane.b32.xlu0 %v786, 32
      %v1284 = vpop.permute.xlu0 %1283
      %1285 = vrot.lane.b32.xlu0 %v780, 32
      %v1286 = vpop.permute.xlu0 %1285
      %1287 = vrot.lane.b32.xlu0 %v781, 32
      %v1288 = vpop.permute.xlu0 %1287
      %1289 = vrot.lane.b32.xlu0 %v782, 32
      %v1290 = vpop.permute.xlu0 %1289
      %v1292 = vsel %vm795, %v1282, 0
      %v1295 = vsel %vm795, %v1284, 0
      %v1298 = vsel %vm795, %v1286, 0
      %v1301 = vsel %vm795, %v1288, 0
      %v1304 = vsel %vm795, %v1290, 0
      %1306 = vmatprep.subr.bf16.mxu0 0
      %1307 = vmatpush1.bf16.xpose.msra.mxu0 %v1298
      %1308 = vmatprep.subr.bf16.mxu0 0
      %1309 = vmatpush1.bf16.xpose.msra.mxu0 %v1301
      %1310 = vmatprep.subr.bf16.mxu0 0
      %1311 = vmatpush1.bf16.xpose.msra.mxu0 %v1304
      %1312 = vmatprep.subr.bf16.mxu0 0
      %1313 = vmatpush1.bf16.xpose.msra.mxu0 %v1304
      %1314 = vmatprep.subr.bf16.mxu0 0
      %1315 = vmatpush1.bf16.xpose.msra.mxu0 %v1304
      %1316 = vmatprep.subr.bf16.mxu0 0
      %1317 = vmatpush1.bf16.xpose.msra.mxu0 %v1304
      %1318 = vmatprep.subr.bf16.mxu0 0
      %1319 = vmatpush1.bf16.xpose.msra.mxu0 %v1304
      %1320 = vmatprep.subr.bf16.mxu0 0
      %1321 = vmatpush1.bf16.xpose.msra.mxu0 %v1304
      %1322 = vmatprep.subr.bf16.mxu0 0
      %1323 = vmatpush1.bf16.xpose.msra.mxu0 0
      %1324 = vmatprep.subr.bf16.mxu0 0
      %1325 = vmatpush1.bf16.xpose.msra.mxu0 0
      %1326 = vmatprep.subr.bf16.mxu0 0
      %1327 = vmatpush1.bf16.xpose.msra.mxu0 0
      %1328 = vmatprep.subr.bf16.mxu0 0
      %1329 = vmatpush1.bf16.xpose.msra.mxu0 0
      %1330 = vmatprep.subr.bf16.mxu0 0
      %1331 = vmatpush1.bf16.xpose.msra.mxu0 0
      %1332 = vmatprep.subr.bf16.mxu0 0
      %1333 = vmatpush1.bf16.xpose.msra.mxu0 0
      %1334 = vmatprep.subr.bf16.mxu0 0
      %1335 = vmatpush1.bf16.xpose.msra.mxu0 0
      %1336 = vmatprep.subr.bf16.mxu0 0
      %1337 = vmatpush1.bf16.xpose.msra.mxu0 0
      %1338 = vmatprep.mubr.bf16.mxu0 0
      %1339 = vmatmul.mubr.bf16.gmra.mrb[0].mxu0 %v1292
      %v1340 = vpop.f32.mrb[0].mxu0
      %v1341 = vadd.f32 0.0, %v1340
      %v1342 = vpop.f32.mrb[0].mxu0
      %v1343 = vpop.f32.mrb[0].mxu0
      %v1344 = vadd.f32 0.0, %v1343
      %v1345 = vpop.f32.mrb[0].mxu0
      %1346 = vmatprep.mubr.bf16.mxu0 0
      %1347 = vmatmul.mubr.bf16.gmra.mrb[0].mxu0 %v1295
      %v1348 = vpop.f32.mrb[0].mxu0
      %v1349 = vadd.f32 0.0, %v1348
      %v1350 = vpop.f32.mrb[0].mxu0
      %v1351 = vpop.f32.mrb[0].mxu0
      %v1352 = vpop.f32.mrb[0].mxu0
      %1353 = vdwg.mxu0
      %v1354 = vmul.f32 %v1341, 0.17677669
      %v1355 = vmul.f32 %v1344, 0.17677669
      %v1356 = vmul.f32 %v1349, 0.17677669
      %v1357 = vadd.f32 %v1354, %v794
      %v1358 = vadd.f32 %v1355, %v794
      %v1359 = vadd.f32 %v1356, %v794
      %1360 = vmax.xlane.f32.xlu0 %v1357
      %v1361 = vpop.xlane.xlu0 %1360
      %1362 = vmax.xlane.f32.xlu0 %v1358
      %v1363 = vpop.xlane.xlu0 %1362
      %1364 = vmax.xlane.f32.xlu0 %v1359
      %v1365 = vpop.xlane.xlu0 %1364
      %v1366 = vsub.f32 %v1357, %v1361
      %v1367 = vsub.f32 %v1358, %v1363
      %v1368 = vsub.f32 %v1359, %v1365
      %v1369 = vmul.f32 %v1366, 1.442695
      %v1370 = vpow.pop %v1369
      %v1371 = vmul.f32 %v1367, 1.442695
      %v1372 = vpow.pop %v1371
      %v1373 = vmul.f32 %v1368, 1.442695
      %v1374 = vpow.pop %v1373
      %1375 = vadd.xlane.f32.xlu0 %v1370
      %v1376 = vpop.xlane.xlu0 %1375
      %1377 = vadd.xlane.f32.xlu0 %v1372
      %v1378 = vpop.xlane.xlu0 %1377
      %1379 = vadd.xlane.f32.xlu0 %v1374
      %v1380 = vpop.xlane.xlu0 %1379
      %v1381 = vpack.c.bf16 %v1372, %v1370
      %v1382 = vpack.c.bf16 %v1374, %v1374
      %1383 = vrot.lane.b32.xlu0 %v783, 32
      %v1384 = vpop.permute.xlu0 %1383
      %1385 = vrot.lane.b32.xlu0 %v784, 32
      %v1386 = vpop.permute.xlu0 %1385
      %1390 = vmatprep.subr.bf16.mxu0 0
      %1391 = vmatpush1.bf16.msra.mxu0 %v1384
      %1392 = vmatprep.subr.bf16.mxu0 0
      %1393 = vmatpush1.bf16.msra.mxu0 %v1386
      %1394 = vmatprep.subr.bf16.mxu0 0
      %1395 = vmatpush1.bf16.msra.mxu0 %v1290
      %1396 = vmatprep.subr.bf16.mxu0 0
      %1397 = vmatpush1.bf16.msra.mxu0 %v1290
      %1398 = vmatprep.subr.bf16.mxu0 0
      %1399 = vmatpush1.bf16.msra.mxu0 %v1290
      %1400 = vmatprep.subr.bf16.mxu0 0
      %1401 = vmatpush1.bf16.msra.mxu0 %v1290
      %1402 = vmatprep.subr.bf16.mxu0 0
      %1403 = vmatpush1.bf16.msra.mxu0 %v1290
      %1404 = vmatprep.subr.bf16.mxu0 0
      %1405 = vmatpush1.bf16.msra.mxu0 %v1290
      %1406 = vmatprep.subr.bf16.mxu0 0
      %1407 = vmatpush1.bf16.msra.mxu0 0
      %1408 = vmatprep.subr.bf16.mxu0 0
      %1409 = vmatpush1.bf16.msra.mxu0 0
      %1410 = vmatprep.subr.bf16.mxu0 0
      %1411 = vmatpush1.bf16.msra.mxu0 0
      %1412 = vmatprep.subr.bf16.mxu0 0
      %1413 = vmatpush1.bf16.msra.mxu0 0
      %1414 = vmatprep.subr.bf16.mxu0 0
      %1415 = vmatpush1.bf16.msra.mxu0 0
      %1416 = vmatprep.subr.bf16.mxu0 0
      %1417 = vmatpush1.bf16.msra.mxu0 0
      %1418 = vmatprep.subr.bf16.mxu0 0
      %1419 = vmatpush1.bf16.msra.mxu0 0
      %1420 = vmatprep.subr.bf16.mxu0 0
      %1421 = vmatpush1.bf16.msra.mxu0 0
      %1422 = vmatprep.mubr.bf16.mxu0 0
      %1423 = vmatmul.mubr.bf16.gmra.mrb[0].mxu0 %v1381
      %v1424 = vpop.f32.mrb[0].mxu0
      %v1425 = vadd.f32 0.0, %v1424
      %v1426 = vpop.f32.mrb[0].mxu0
      %v1427 = vpop.f32.mrb[0].mxu0
      %v1428 = vadd.f32 0.0, %v1427
      %v1429 = vpop.f32.mrb[0].mxu0
      %1430 = vmatprep.mubr.bf16.mxu0 0
      %1431 = vmatmul.mubr.bf16.gmra.mrb[0].mxu0 %v1382
      %v1432 = vpop.f32.mrb[0].mxu0
      %v1433 = vadd.f32 0.0, %v1432
      %v1434 = vpop.f32.mrb[0].mxu0
      %v1435 = vpop.f32.mrb[0].mxu0
      %v1436 = vpop.f32.mrb[0].mxu0
      %1437 = vdwg.mxu0
      %v1438 = vrcp.pop %v1376
      %v1439 = vrcp.pop %v1378
      %v1440 = vrcp.pop %v1380
      %v1441 = vmul.f32 %v1425, %v1438
      %v1442 = vmul.f32 %v1428, %v1439
      %v1443 = vmul.f32 %v1433, %v1440
      %v1444 = vpack.c.bf16 %v1442, %v1441
      %v1445 = vpack.c.bf16 %v1443, %v1443
      %1448 = vrot.lane.b32.xlu0 %v1114, 32
      %v1449 = vpop.permute.xlu0 %1448
      %1450 = vrot.lane.b32.xlu0 %v1115, 32
      %v1451 = vpop.permute.xlu0 %1450
      %1454 = vrot.lane.b32.xlu0 %v1279, 64
      %v1455 = vpop.permute.xlu0 %1454
      %1456 = vrot.lane.b32.xlu0 %v1280, 64
      %v1457 = vpop.permute.xlu0 %1456
      %1460 = vrot.lane.b32.xlu0 %v1444, 96
      %v1461 = vpop.permute.xlu0 %1460
      %1462 = vrot.lane.b32.xlu0 %v1445, 96
      %v1463 = vpop.permute.xlu0 %1462
      %v1466 = vsel %vm795, %v942, %v1449
      %v1469 = vsel %vm795, %v943, %v1451
      %vm1470 = vcmask 523264
      %v1472 = vsel %vm1470, %v1466, %v1455
      %v1474 = vsel %vm1470, %v1469, %v1457
      %vm1475 = vcmask 785408
      %v1477 = vsel %vm1475, %v1472, %v1461
      %v1480 = vsel %vm1475, %v1474, %v1463
      %v1482 = vld [vmem:[%s5] sm:$0xf]
      %v1483 = vld [vmem:[%s5 + $0x4] sm:$0xf]
      %v1484 = vld [vmem:[%s5 + $0x8] sm:$0xf]
      %v1485 = vld [vmem:[%s5 + $0xc] sm:$0xf]
      %v1486 = vld [vmem:[%s5 + $0x10] sm:$0xf]
      %v1487 = vld [vmem:[%s5 + $0x14] sm:$0xf]
      %v1488 = vld [vmem:[%s5 + $0x18] sm:$0xf]
      %v1489 = vld [vmem:[%s5 + $0x1c] sm:$0xf]
      %v1490 = vld [vmem:[%s5 + $0x20] sm:$0xf]
      %v1491 = vld [vmem:[%s5 + $0x24] sm:$0xf]
      %v1492 = vld [vmem:[%s5 + $0x28] sm:$0xf]
      %v1493 = vld [vmem:[%s5 + $0x2c] sm:$0xf]
      %v1494 = vld [vmem:[%s5 + $0x30] sm:$0xf]
      %v1495 = vld [vmem:[%s5 + $0x34] sm:$0xf]
      %v1496 = vld [vmem:[%s5 + $0x38] sm:$0xf]
      %v1497 = vld [vmem:[%s5 + $0x3c] sm:$0xf]
      %v1514 = vunpack.c.l.b16 %v1482
      %v1515 = vunpack.c.l.b16 %v1483
      %v1516 = vunpack.c.l.b16 %v1484
      %v1517 = vunpack.c.l.b16 %v1485
      %v1518 = vunpack.c.l.b16 %v1486
      %v1519 = vunpack.c.l.b16 %v1487
      %v1520 = vunpack.c.l.b16 %v1488
      %v1521 = vunpack.c.l.b16 %v1489
      %v1522 = vunpack.c.l.b16 %v1490
      %v1523 = vunpack.c.l.b16 %v1491
      %v1524 = vunpack.c.l.b16 %v1492
      %v1525 = vunpack.c.l.b16 %v1493
      %v1526 = vunpack.c.l.b16 %v1494
      %v1527 = vunpack.c.l.b16 %v1495
      %v1528 = vunpack.c.l.b16 %v1496
      %v1529 = vunpack.c.l.b16 %v1497
      %v1530 = vpack.c.b16 %v1515, %v1514
      %v1531 = vpack.c.b16 %v1517, %v1516
      %v1532 = vpack.c.b16 %v1519, %v1518
      %v1533 = vpack.c.b16 %v1521, %v1520
      %v1534 = vpack.c.b16 %v1523, %v1522
      %v1535 = vpack.c.b16 %v1525, %v1524
      %v1536 = vpack.c.b16 %v1527, %v1526
      %v1537 = vpack.c.b16 %v1529, %v1528
      %1546 = vmatprep.subr.bf16.mxu0 0
      %1547 = vmatpush1.bf16.msra.mxu0 %v1530
      %1548 = vmatprep.subr.bf16.mxu0 0
      %1549 = vmatpush1.bf16.msra.mxu0 %v1531
      %1550 = vmatprep.subr.bf16.mxu0 0
      %1551 = vmatpush1.bf16.msra.mxu0 %v1532
      %1552 = vmatprep.subr.bf16.mxu0 0
      %1553 = vmatpush1.bf16.msra.mxu0 %v1533
      %1554 = vmatprep.subr.bf16.mxu0 0
      %1555 = vmatpush1.bf16.msra.mxu0 %v1534
      %1556 = vmatprep.subr.bf16.mxu0 0
      %1557 = vmatpush1.bf16.msra.mxu0 %v1535
      %1558 = vmatprep.subr.bf16.mxu0 0
      %1559 = vmatpush1.bf16.msra.mxu0 %v1536
      %1560 = vmatprep.subr.bf16.mxu0 0
      %1561 = vmatpush1.bf16.msra.mxu0 %v1537
      %1562 = vmatprep.subr.bf16.mxu0 0
      %1563 = vmatpush1.bf16.msra.mxu0 0
      %1564 = vmatprep.subr.bf16.mxu0 0
      %1565 = vmatpush1.bf16.msra.mxu0 0
      %1566 = vmatprep.subr.bf16.mxu0 0
      %1567 = vmatpush1.bf16.msra.mxu0 0
      %1568 = vmatprep.subr.bf16.mxu0 0
      %1569 = vmatpush1.bf16.msra.mxu0 0
      %1570 = vmatprep.subr.bf16.mxu0 0
      %1571 = vmatpush1.bf16.msra.mxu0 0
      %1572 = vmatprep.subr.bf16.mxu0 0
      %1573 = vmatpush1.bf16.msra.mxu0 0
      %1574 = vmatprep.subr.bf16.mxu0 0
      %1575 = vmatpush1.bf16.msra.mxu0 0
      %1576 = vmatprep.subr.bf16.mxu0 0
      %1577 = vmatpush1.bf16.msra.mxu0 0
      %1578 = vmatprep.mubr.bf16.mxu0 0
      %1579 = vmatmul.mubr.bf16.gmra.mrb[0].mxu0 %v1477
      %v1580 = vpop.f32.mrb[0].mxu0
      %v1581 = vadd.f32 0.0, %v1580
      %v1582 = vpop.f32.mrb[0].mxu0
      %v1583 = vpop.f32.mrb[0].mxu0
      %v1584 = vadd.f32 0.0, %v1583
      %v1585 = vpop.f32.mrb[0].mxu0
      %1586 = vmatprep.mubr.bf16.mxu0 0
      %1587 = vmatmul.mubr.bf16.gmra.mrb[0].mxu0 %v1480
      %v1588 = vpop.f32.mrb[0].mxu0
      %v1589 = vadd.f32 0.0, %v1588
      %v1590 = vpop.f32.mrb[0].mxu0
      %v1591 = vpop.f32.mrb[0].mxu0
      %v1592 = vpop.f32.mrb[0].mxu0
      %1593 = vdwg.mxu0
      %v1594 = vadd.f32 %v445, %v1581
      %v1595 = vadd.f32 %v446, %v1584
      %v1596 = vadd.f32 %v447, %v1589
      %v1597 = vld [vmem:[%s6] sm:$0x1]
      %v1599 = vlaneseq
      %v1600 = vshrl.u32 %v1599, 7
      %v1601 = vsub.s32 0, %v1600
      %v1602 = vrot.slane %v1597, %v1601
      %v1604 = vadd.f32 %v1594, %v1602
      %v1605 = vadd.f32 %v1595, %v1602
      %v1606 = vadd.f32 %v1596, %v1602
      %v1607 = vld [vmem:[%s7] sm:$0x1]
      %v1608 = vld [vmem:[%s8] sm:$0x1]
      %1609 = vadd.xlane.f32.xlu0 %v1604
      %v1610 = vpop.xlane.xlu0 %1609
      %1611 = vadd.xlane.f32.xlu0 %v1605
      %v1612 = vpop.xlane.xlu0 %1611
      %1613 = vadd.xlane.f32.xlu0 %v1606
      %v1614 = vpop.xlane.xlu0 %1613
      %v1615 = vmul.f32 %v1610, %v456
      %v1616 = vmul.f32 %v1612, %v456
      %v1617 = vmul.f32 %v1614, %v456
      %v1618 = vsub.f32 %v1604, %v1615
      %v1619 = vsub.f32 %v1605, %v1616
      %v1620 = vsub.f32 %v1606, %v1617
      %v1621 = vmul.f32 %v1618, %v1618
      %v1622 = vmul.f32 %v1619, %v1619
      %v1623 = vmul.f32 %v1620, %v1620
      %1624 = vadd.xlane.f32.xlu0 %v1621
      %v1625 = vpop.xlane.xlu0 %1624
      %1626 = vadd.xlane.f32.xlu0 %v1622
      %v1627 = vpop.xlane.xlu0 %1626
      %1628 = vadd.xlane.f32.xlu0 %v1623
      %v1629 = vpop.xlane.xlu0 %1628
      %v1630 = vmul.f32 %v1625, %v456
      %v1631 = vmul.f32 %v1627, %v456
      %v1632 = vmul.f32 %v1629, %v456
      %v1633 = vadd.f32 %v1630, 1e-06
      %v1634 = vadd.f32 %v1631, 1e-06
      %v1635 = vadd.f32 %v1632, 1e-06
      %v1636 = vrsqrt.pop %v1633
      %v1637 = vrsqrt.pop %v1634
      %v1638 = vrsqrt.pop %v1635
      %v1639 = vmul.f32 %v1618, %v1636
      %v1640 = vmul.f32 %v1619, %v1637
      %v1641 = vmul.f32 %v1620, %v1638
      %v1643 = vlaneseq
      %v1644 = vshrl.u32 %v1643, 7
      %v1645 = vsub.s32 0, %v1644
      %v1646 = vrot.slane %v1607, %v1645
      %v1648 = vmul.f32 %v1639, %v1646
      %v1649 = vmul.f32 %v1640, %v1646
      %v1650 = vmul.f32 %v1641, %v1646
      %v1652 = vlaneseq
      %v1653 = vshrl.u32 %v1652, 7
      %v1654 = vsub.s32 0, %v1653
      %v1655 = vrot.slane %v1608, %v1654
      %v1657 = vadd.f32 %v1648, %v1655
      %v1658 = vadd.f32 %v1649, %v1655
      %v1659 = vadd.f32 %v1650, %v1655
      %v1660 = vpack.c.bf16 %v1658, %v1657
      %v1661 = vpack.c.bf16 %v1659, %v1659
      %v1662 = vld [vmem:[%s9] sm:$0xff]
      %v1663 = vld [vmem:[%s9 + $0x8] sm:$0xff]
      %v1664 = vld [vmem:[%s9 + $0x10] sm:$0xff]
      %v1665 = vld [vmem:[%s9 + $0x18] sm:$0xff]
      %v1666 = vld [vmem:[%s9 + $0x20] sm:$0xff]
      %v1667 = vld [vmem:[%s9 + $0x28] sm:$0xff]
      %v1668 = vld [vmem:[%s9 + $0x30] sm:$0xff]
      %v1669 = vld [vmem:[%s9 + $0x38] sm:$0xff]
      %v1670 = vld [vmem:[%s9 + $0x40] sm:$0xff]
      %v1671 = vld [vmem:[%s9 + $0x48] sm:$0xff]
      %v1672 = vld [vmem:[%s9 + $0x50] sm:$0xff]
      %v1673 = vld [vmem:[%s9 + $0x58] sm:$0xff]
      %v1674 = vld [vmem:[%s9 + $0x60] sm:$0xff]
      %v1675 = vld [vmem:[%s9 + $0x68] sm:$0xff]
      %v1676 = vld [vmem:[%s9 + $0x70] sm:$0xff]
      %v1677 = vld [vmem:[%s9 + $0x78] sm:$0xff]
      %v1678 = vld [vmem:[%s9 + $0x80] sm:$0xff]
      %v1679 = vld [vmem:[%s9 + $0x88] sm:$0xff]
      %v1680 = vld [vmem:[%s9 + $0x90] sm:$0xff]
      %v1681 = vld [vmem:[%s9 + $0x98] sm:$0xff]
      %v1682 = vld [vmem:[%s9 + $0xa0] sm:$0xff]
      %v1683 = vld [vmem:[%s9 + $0xa8] sm:$0xff]
      %v1684 = vld [vmem:[%s9 + $0xb0] sm:$0xff]
      %v1685 = vld [vmem:[%s9 + $0xb8] sm:$0xff]
      %v1686 = vld [vmem:[%s9 + $0xc0] sm:$0xff]
      %v1687 = vld [vmem:[%s9 + $0xc8] sm:$0xff]
      %v1688 = vld [vmem:[%s9 + $0xd0] sm:$0xff]
      %v1689 = vld [vmem:[%s9 + $0xd8] sm:$0xff]
      %v1690 = vld [vmem:[%s9 + $0xe0] sm:$0xff]
      %v1691 = vld [vmem:[%s9 + $0xe8] sm:$0xff]
      %v1692 = vld [vmem:[%s9 + $0xf0] sm:$0xff]
      %v1693 = vld [vmem:[%s9 + $0xf8] sm:$0xff]
      %v1694 = vld [vmem:[%s10] sm:$0xf]
      %v1696 = vlaneseq
      %v1697 = vshrl.u32 %v1696, 7
      %v1698 = vsub.s32 0, %v1697
      %v1699 = vrot.slane %v1694, %v1698
      %v1700 = vlaneseq
      %v1701 = vshrl.u32 %v1700, 7
      %v1702 = vsub.s32 1, %v1701
      %v1703 = vrot.slane %v1694, %v1702
      %v1704 = vlaneseq
      %v1705 = vshrl.u32 %v1704, 7
      %v1706 = vsub.s32 2, %v1705
      %v1707 = vrot.slane %v1694, %v1706
      %v1708 = vlaneseq
      %v1709 = vshrl.u32 %v1708, 7
      %v1710 = vsub.s32 3, %v1709
      %v1711 = vrot.slane %v1694, %v1710
      %v1748 = vunpack.c.l.b16 %v1662
      %v1749 = vunpack.c.h.b16 %v1662
      %v1750 = vunpack.c.l.b16 %v1663
      %v1751 = vunpack.c.h.b16 %v1663
      %v1752 = vunpack.c.l.b16 %v1664
      %v1753 = vunpack.c.h.b16 %v1664
      %v1754 = vunpack.c.l.b16 %v1665
      %v1755 = vunpack.c.h.b16 %v1665
      %v1756 = vunpack.c.l.b16 %v1666
      %v1757 = vunpack.c.h.b16 %v1666
      %v1758 = vunpack.c.l.b16 %v1667
      %v1759 = vunpack.c.h.b16 %v1667
      %v1760 = vunpack.c.l.b16 %v1668
      %v1761 = vunpack.c.h.b16 %v1668
      %v1762 = vunpack.c.l.b16 %v1669
      %v1763 = vunpack.c.h.b16 %v1669
      %v1764 = vunpack.c.l.b16 %v1670
      %v1765 = vunpack.c.h.b16 %v1670
      %v1766 = vunpack.c.l.b16 %v1671
      %v1767 = vunpack.c.h.b16 %v1671
      %v1768 = vunpack.c.l.b16 %v1672
      %v1769 = vunpack.c.h.b16 %v1672
      %v1770 = vunpack.c.l.b16 %v1673
      %v1771 = vunpack.c.h.b16 %v1673
      %v1772 = vunpack.c.l.b16 %v1674
      %v1773 = vunpack.c.h.b16 %v1674
      %v1774 = vunpack.c.l.b16 %v1675
      %v1775 = vunpack.c.h.b16 %v1675
      %v1776 = vunpack.c.l.b16 %v1676
      %v1777 = vunpack.c.h.b16 %v1676
      %v1778 = vunpack.c.l.b16 %v1677
      %v1779 = vunpack.c.h.b16 %v1677
      %v1780 = vunpack.c.l.b16 %v1678
      %v1781 = vunpack.c.h.b16 %v1678
      %v1782 = vunpack.c.l.b16 %v1679
      %v1783 = vunpack.c.h.b16 %v1679
      %v1784 = vunpack.c.l.b16 %v1680
      %v1785 = vunpack.c.h.b16 %v1680
      %v1786 = vunpack.c.l.b16 %v1681
      %v1787 = vunpack.c.h.b16 %v1681
      %v1788 = vunpack.c.l.b16 %v1682
      %v1789 = vunpack.c.h.b16 %v1682
      %v1790 = vunpack.c.l.b16 %v1683
      %v1791 = vunpack.c.h.b16 %v1683
      %v1792 = vunpack.c.l.b16 %v1684
      %v1793 = vunpack.c.h.b16 %v1684
      %v1794 = vunpack.c.l.b16 %v1685
      %v1795 = vunpack.c.h.b16 %v1685
      %v1796 = vunpack.c.l.b16 %v1686
      %v1797 = vunpack.c.h.b16 %v1686
      %v1798 = vunpack.c.l.b16 %v1687
      %v1799 = vunpack.c.h.b16 %v1687
      %v1800 = vunpack.c.l.b16 %v1688
      %v1801 = vunpack.c.h.b16 %v1688
      %v1802 = vunpack.c.l.b16 %v1689
      %v1803 = vunpack.c.h.b16 %v1689
      %v1804 = vunpack.c.l.b16 %v1690
      %v1805 = vunpack.c.h.b16 %v1690
      %v1806 = vunpack.c.l.b16 %v1691
      %v1807 = vunpack.c.h.b16 %v1691
      %v1808 = vunpack.c.l.b16 %v1692
      %v1809 = vunpack.c.h.b16 %v1692
      %v1810 = vunpack.c.l.b16 %v1693
      %v1811 = vunpack.c.h.b16 %v1693
      %v1812 = vpack.c.b16 %v1752, %v1748
      %v1813 = vpack.c.b16 %v1753, %v1749
      %v1814 = vpack.c.b16 %v1754, %v1750
      %v1815 = vpack.c.b16 %v1755, %v1751
      %v1816 = vpack.c.b16 %v1760, %v1756
      %v1817 = vpack.c.b16 %v1761, %v1757
      %v1818 = vpack.c.b16 %v1762, %v1758
      %v1819 = vpack.c.b16 %v1763, %v1759
      %v1820 = vpack.c.b16 %v1768, %v1764
      %v1821 = vpack.c.b16 %v1769, %v1765
      %v1822 = vpack.c.b16 %v1770, %v1766
      %v1823 = vpack.c.b16 %v1771, %v1767
      %v1824 = vpack.c.b16 %v1776, %v1772
      %v1825 = vpack.c.b16 %v1777, %v1773
      %v1826 = vpack.c.b16 %v1778, %v1774
      %v1827 = vpack.c.b16 %v1779, %v1775
      %v1828 = vpack.c.b16 %v1784, %v1780
      %v1829 = vpack.c.b16 %v1785, %v1781
      %v1830 = vpack.c.b16 %v1786, %v1782
      %v1831 = vpack.c.b16 %v1787, %v1783
      %v1832 = vpack.c.b16 %v1792, %v1788
      %v1833 = vpack.c.b16 %v1793, %v1789
      %v1834 = vpack.c.b16 %v1794, %v1790
      %v1835 = vpack.c.b16 %v1795, %v1791
      %v1836 = vpack.c.b16 %v1800, %v1796
      %v1837 = vpack.c.b16 %v1801, %v1797
      %v1838 = vpack.c.b16 %v1802, %v1798
      %v1839 = vpack.c.b16 %v1803, %v1799
      %v1840 = vpack.c.b16 %v1808, %v1804
      %v1841 = vpack.c.b16 %v1809, %v1805
      %v1842 = vpack.c.b16 %v1810, %v1806
      %v1843 = vpack.c.b16 %v1811, %v1807
      %1876 = vmatprep.subr.bf16.mxu0 %v1813
      %1877 = vmatpush1.bf16.msra.mxu0 %v1812
      %1878 = vmatprep.subr.bf16.mxu0 %v1817
      %1879 = vmatpush1.bf16.msra.mxu0 %v1816
      %1880 = vmatprep.subr.bf16.mxu0 %v1821
      %1881 = vmatpush1.bf16.msra.mxu0 %v1820
      %1882 = vmatprep.subr.bf16.mxu0 %v1825
      %1883 = vmatpush1.bf16.msra.mxu0 %v1824
      %1884 = vmatprep.subr.bf16.mxu0 %v1829
      %1885 = vmatpush1.bf16.msra.mxu0 %v1828
      %1886 = vmatprep.subr.bf16.mxu0 %v1833
      %1887 = vmatpush1.bf16.msra.mxu0 %v1832
      %1888 = vmatprep.subr.bf16.mxu0 %v1837
      %1889 = vmatpush1.bf16.msra.mxu0 %v1836
      %1890 = vmatprep.subr.bf16.mxu0 %v1841
      %1891 = vmatpush1.bf16.msra.mxu0 %v1840
      %1892 = vmatprep.subr.bf16.mxu0 0
      %1893 = vmatpush1.bf16.msra.mxu0 0
      %1894 = vmatprep.subr.bf16.mxu0 0
      %1895 = vmatpush1.bf16.msra.mxu0 0
      %1896 = vmatprep.subr.bf16.mxu0 0
      %1897 = vmatpush1.bf16.msra.mxu0 0
      %1898 = vmatprep.subr.bf16.mxu0 0
      %1899 = vmatpush1.bf16.msra.mxu0 0
      %1900 = vmatprep.subr.bf16.mxu0 0
      %1901 = vmatpush1.bf16.msra.mxu0 0
      %1902 = vmatprep.subr.bf16.mxu0 0
      %1903 = vmatpush1.bf16.msra.mxu0 0
      %1904 = vmatprep.subr.bf16.mxu0 0
      %1905 = vmatpush1.bf16.msra.mxu0 0
      %1906 = vmatprep.subr.bf16.mxu0 0
      %1907 = vmatpush1.bf16.msra.mxu0 0
      %1908 = vmatprep.mubr.bf16.mxu0 0
      %1909 = vmatmul.mubr.bf16.gmra.mrb[0].mxu0 %v1660
      %v1910 = vpop.f32.mrb[0].mxu0
      %v1911 = vadd.f32 %v1699, %v1910
      %v1912 = vpop.f32.mrb[0].mxu0
      %v1913 = vadd.f32 %v1703, %v1912
      %v1914 = vpop.f32.mrb[0].mxu0
      %v1915 = vadd.f32 %v1699, %v1914
      %v1916 = vpop.f32.mrb[0].mxu0
      %v1917 = vadd.f32 %v1703, %v1916
      %1918 = vmatprep.mubr.bf16.mxu0 0
      %1919 = vmatmul.mubr.bf16.gmra.mrb[0].mxu0 %v1661
      %v1920 = vpop.f32.mrb[0].mxu0
      %v1921 = vadd.f32 %v1699, %v1920
      %v1922 = vpop.f32.mrb[0].mxu0
      %v1923 = vadd.f32 %v1703, %v1922
      %v1924 = vpop.f32.mrb[0].mxu0
      %v1925 = vpop.f32.mrb[0].mxu0
      %1926 = vdwg.mxu0
      %1927 = vmatprep.subr.bf16.mxu0 %v1815
      %1928 = vmatpush1.bf16.msra.mxu0 %v1814
      %1929 = vmatprep.subr.bf16.mxu0 %v1819
      %1930 = vmatpush1.bf16.msra.mxu0 %v1818
      %1931 = vmatprep.subr.bf16.mxu0 %v1823
      %1932 = vmatpush1.bf16.msra.mxu0 %v1822
      %1933 = vmatprep.subr.bf16.mxu0 %v1827
      %1934 = vmatpush1.bf16.msra.mxu0 %v1826
      %1935 = vmatprep.subr.bf16.mxu0 %v1831
      %1936 = vmatpush1.bf16.msra.mxu0 %v1830
      %1937 = vmatprep.subr.bf16.mxu0 %v1835
      %1938 = vmatpush1.bf16.msra.mxu0 %v1834
      %1939 = vmatprep.subr.bf16.mxu0 %v1839
      %1940 = vmatpush1.bf16.msra.mxu0 %v1838
      %1941 = vmatprep.subr.bf16.mxu0 %v1843
      %1942 = vmatpush1.bf16.msra.mxu0 %v1842
      %1943 = vmatprep.subr.bf16.mxu0 0
      %1944 = vmatpush1.bf16.msra.mxu0 0
      %1945 = vmatprep.subr.bf16.mxu0 0
      %1946 = vmatpush1.bf16.msra.mxu0 0
      %1947 = vmatprep.subr.bf16.mxu0 0
      %1948 = vmatpush1.bf16.msra.mxu0 0
      %1949 = vmatprep.subr.bf16.mxu0 0
      %1950 = vmatpush1.bf16.msra.mxu0 0
      %1951 = vmatprep.subr.bf16.mxu0 0
      %1952 = vmatpush1.bf16.msra.mxu0 0
      %1953 = vmatprep.subr.bf16.mxu0 0
      %1954 = vmatpush1.bf16.msra.mxu0 0
      %1955 = vmatprep.subr.bf16.mxu0 0
      %1956 = vmatpush1.bf16.msra.mxu0 0
      %1957 = vmatprep.subr.bf16.mxu0 0
      %1958 = vmatpush1.bf16.msra.mxu0 0
      %1959 = vmatprep.mubr.bf16.mxu0 0
      %1960 = vmatmul.mubr.bf16.gmra.mrb[0].mxu0 %v1660
      %v1961 = vpop.f32.mrb[0].mxu0
      %v1962 = vadd.f32 %v1707, %v1961
      %v1963 = vpop.f32.mrb[0].mxu0
      %v1964 = vadd.f32 %v1711, %v1963
      %v1965 = vpop.f32.mrb[0].mxu0
      %v1966 = vadd.f32 %v1707, %v1965
      %v1967 = vpop.f32.mrb[0].mxu0
      %v1968 = vadd.f32 %v1711, %v1967
      %1969 = vmatprep.mubr.bf16.mxu0 0
      %1970 = vmatmul.mubr.bf16.gmra.mrb[0].mxu0 %v1661
      %v1971 = vpop.f32.mrb[0].mxu0
      %v1972 = vadd.f32 %v1707, %v1971
      %v1973 = vpop.f32.mrb[0].mxu0
      %v1974 = vadd.f32 %v1711, %v1973
      %v1975 = vpop.f32.mrb[0].mxu0
      %v1976 = vpop.f32.mrb[0].mxu0
      %1977 = vdwg.mxu0
      %v1978 = vmul.f32 %v1911, 0.5
      %v1979 = vmul.f32 %v1913, 0.5
      %v1980 = vmul.f32 %v1962, 0.5
      %v1981 = vmul.f32 %v1964, 0.5
      %v1982 = vmul.f32 %v1915, 0.5
      %v1983 = vmul.f32 %v1917, 0.5
      %v1984 = vmul.f32 %v1966, 0.5
      %v1985 = vmul.f32 %v1968, 0.5
      %v1986 = vmul.f32 %v1921, 0.5
      %v1987 = vmul.f32 %v1923, 0.5
      %v1988 = vmul.f32 %v1972, 0.5
      %v1989 = vmul.f32 %v1974, 0.5
      %v1990 = vmul.f32 %v1911, 0.70710677
      %v1991 = vmul.f32 %v1913, 0.70710677
      %v1992 = vmul.f32 %v1962, 0.70710677
      %v1993 = vmul.f32 %v1964, 0.70710677
      %v1994 = vmul.f32 %v1915, 0.70710677
      %v1995 = vmul.f32 %v1917, 0.70710677
      %v1996 = vmul.f32 %v1966, 0.70710677
      %v1997 = vmul.f32 %v1968, 0.70710677
      %v1998 = vmul.f32 %v1921, 0.70710677
      %v1999 = vmul.f32 %v1923, 0.70710677
      %v2000 = vmul.f32 %v1972, 0.70710677
      %v2001 = vmul.f32 %v1974, 0.70710677
      %v2002 = verf.f32.pop %v1990
      %v2003 = verf.f32.pop %v1991
      %v2004 = verf.f32.pop %v1992
      %v2005 = verf.f32.pop %v1993
      %v2006 = verf.f32.pop %v1994
      %v2007 = verf.f32.pop %v1995
      %v2008 = verf.f32.pop %v1996
      %v2009 = verf.f32.pop %v1997
      %v2010 = verf.f32.pop %v1998
      %v2011 = verf.f32.pop %v1999
      %v2012 = verf.f32.pop %v2000
      %v2013 = verf.f32.pop %v2001
      %v2014 = vadd.f32 %v2002, 1.0
      %v2015 = vadd.f32 %v2003, 1.0
      %v2016 = vadd.f32 %v2004, 1.0
      %v2017 = vadd.f32 %v2005, 1.0
      %v2018 = vadd.f32 %v2006, 1.0
      %v2019 = vadd.f32 %v2007, 1.0
      %v2020 = vadd.f32 %v2008, 1.0
      %v2021 = vadd.f32 %v2009, 1.0
      %v2022 = vadd.f32 %v2010, 1.0
      %v2023 = vadd.f32 %v2011, 1.0
      %v2024 = vadd.f32 %v2012, 1.0
      %v2025 = vadd.f32 %v2013, 1.0
      %v2026 = vmul.f32 %v1978, %v2014
      %v2027 = vmul.f32 %v1979, %v2015
      %v2028 = vmul.f32 %v1980, %v2016
      %v2029 = vmul.f32 %v1981, %v2017
      %v2030 = vmul.f32 %v1982, %v2018
      %v2031 = vmul.f32 %v1983, %v2019
      %v2032 = vmul.f32 %v1984, %v2020
      %v2033 = vmul.f32 %v1985, %v2021
      %v2034 = vmul.f32 %v1986, %v2022
      %v2035 = vmul.f32 %v1987, %v2023
      %v2036 = vmul.f32 %v1988, %v2024
      %v2037 = vmul.f32 %v1989, %v2025
      %v2038 = vpack.c.bf16 %v2030, %v2026
      %v2039 = vpack.c.bf16 %v2031, %v2027
      %v2040 = vpack.c.bf16 %v2032, %v2028
      %v2041 = vpack.c.bf16 %v2033, %v2029
      %v2042 = vpack.c.bf16 %v2034, %v2034
      %v2043 = vpack.c.bf16 %v2035, %v2035
      %v2044 = vpack.c.bf16 %v2036, %v2036
      %v2045 = vpack.c.bf16 %v2037, %v2037
      %v2046 = vld [vmem:[%s11] sm:$0xf]
      %v2047 = vld [vmem:[%s11 + $0x4] sm:$0xf]
      %v2048 = vld [vmem:[%s11 + $0x8] sm:$0xf]
      %v2049 = vld [vmem:[%s11 + $0xc] sm:$0xf]
      %v2050 = vld [vmem:[%s11 + $0x10] sm:$0xf]
      %v2051 = vld [vmem:[%s11 + $0x14] sm:$0xf]
      %v2052 = vld [vmem:[%s11 + $0x18] sm:$0xf]
      %v2053 = vld [vmem:[%s11 + $0x1c] sm:$0xf]
      %v2054 = vld [vmem:[%s11 + $0x20] sm:$0xf]
      %v2055 = vld [vmem:[%s11 + $0x24] sm:$0xf]
      %v2056 = vld [vmem:[%s11 + $0x28] sm:$0xf]
      %v2057 = vld [vmem:[%s11 + $0x2c] sm:$0xf]
      %v2058 = vld [vmem:[%s11 + $0x30] sm:$0xf]
      %v2059 = vld [vmem:[%s11 + $0x34] sm:$0xf]
      %v2060 = vld [vmem:[%s11 + $0x38] sm:$0xf]
      %v2061 = vld [vmem:[%s11 + $0x3c] sm:$0xf]
      %v2062 = vld [vmem:[%s11 + $0x40] sm:$0xf]
      %v2063 = vld [vmem:[%s11 + $0x44] sm:$0xf]
      %v2064 = vld [vmem:[%s11 + $0x48] sm:$0xf]
      %v2065 = vld [vmem:[%s11 + $0x4c] sm:$0xf]
      %v2066 = vld [vmem:[%s11 + $0x50] sm:$0xf]
      %v2067 = vld [vmem:[%s11 + $0x54] sm:$0xf]
      %v2068 = vld [vmem:[%s11 + $0x58] sm:$0xf]
      %v2069 = vld [vmem:[%s11 + $0x5c] sm:$0xf]
      %v2070 = vld [vmem:[%s11 + $0x60] sm:$0xf]
      %v2071 = vld [vmem:[%s11 + $0x64] sm:$0xf]
      %v2072 = vld [vmem:[%s11 + $0x68] sm:$0xf]
      %v2073 = vld [vmem:[%s11 + $0x6c] sm:$0xf]
      %v2074 = vld [vmem:[%s11 + $0x70] sm:$0xf]
      %v2075 = vld [vmem:[%s11 + $0x74] sm:$0xf]
      %v2076 = vld [vmem:[%s11 + $0x78] sm:$0xf]
      %v2077 = vld [vmem:[%s11 + $0x7c] sm:$0xf]
      %v2078 = vld [vmem:[%s11 + $0x80] sm:$0xf]
      %v2079 = vld [vmem:[%s11 + $0x84] sm:$0xf]
      %v2080 = vld [vmem:[%s11 + $0x88] sm:$0xf]
      %v2081 = vld [vmem:[%s11 + $0x8c] sm:$0xf]
      %v2082 = vld [vmem:[%s11 + $0x90] sm:$0xf]
      %v2083 = vld [vmem:[%s11 + $0x94] sm:$0xf]
      %v2084 = vld [vmem:[%s11 + $0x98] sm:$0xf]
      %v2085 = vld [vmem:[%s11 + $0x9c] sm:$0xf]
      %v2086 = vld [vmem:[%s11 + $0xa0] sm:$0xf]
      %v2087 = vld [vmem:[%s11 + $0xa4] sm:$0xf]
      %v2088 = vld [vmem:[%s11 + $0xa8] sm:$0xf]
      %v2089 = vld [vmem:[%s11 + $0xac] sm:$0xf]
      %v2090 = vld [vmem:[%s11 + $0xb0] sm:$0xf]
      %v2091 = vld [vmem:[%s11 + $0xb4] sm:$0xf]
      %v2092 = vld [vmem:[%s11 + $0xb8] sm:$0xf]
      %v2093 = vld [vmem:[%s11 + $0xbc] sm:$0xf]
      %v2094 = vld [vmem:[%s11 + $0xc0] sm:$0xf]
      %v2095 = vld [vmem:[%s11 + $0xc4] sm:$0xf]
      %v2096 = vld [vmem:[%s11 + $0xc8] sm:$0xf]
      %v2097 = vld [vmem:[%s11 + $0xcc] sm:$0xf]
      %v2098 = vld [vmem:[%s11 + $0xd0] sm:$0xf]
      %v2099 = vld [vmem:[%s11 + $0xd4] sm:$0xf]
      %v2100 = vld [vmem:[%s11 + $0xd8] sm:$0xf]
      %v2101 = vld [vmem:[%s11 + $0xdc] sm:$0xf]
      %v2102 = vld [vmem:[%s11 + $0xe0] sm:$0xf]
      %v2103 = vld [vmem:[%s11 + $0xe4] sm:$0xf]
      %v2104 = vld [vmem:[%s11 + $0xe8] sm:$0xf]
      %v2105 = vld [vmem:[%s11 + $0xec] sm:$0xf]
      %v2106 = vld [vmem:[%s11 + $0xf0] sm:$0xf]
      %v2107 = vld [vmem:[%s11 + $0xf4] sm:$0xf]
      %v2108 = vld [vmem:[%s11 + $0xf8] sm:$0xf]
      %v2109 = vld [vmem:[%s11 + $0xfc] sm:$0xf]
      %v2110 = vld [vmem:[%s12] sm:$0x1]
      %v2112 = vlaneseq
      %v2113 = vshrl.u32 %v2112, 7
      %v2114 = vsub.s32 0, %v2113
      %v2115 = vrot.slane %v2110, %v2114
      %v2181 = vunpack.c.l.b16 %v2046
      %v2182 = vunpack.c.l.b16 %v2047
      %v2183 = vunpack.c.l.b16 %v2048
      %v2184 = vunpack.c.l.b16 %v2049
      %v2185 = vunpack.c.l.b16 %v2050
      %v2186 = vunpack.c.l.b16 %v2051
      %v2187 = vunpack.c.l.b16 %v2052
      %v2188 = vunpack.c.l.b16 %v2053
      %v2189 = vunpack.c.l.b16 %v2054
      %v2190 = vunpack.c.l.b16 %v2055
      %v2191 = vunpack.c.l.b16 %v2056
      %v2192 = vunpack.c.l.b16 %v2057
      %v2193 = vunpack.c.l.b16 %v2058
      %v2194 = vunpack.c.l.b16 %v2059
      %v2195 = vunpack.c.l.b16 %v2060
      %v2196 = vunpack.c.l.b16 %v2061
      %v2197 = vunpack.c.l.b16 %v2062
      %v2198 = vunpack.c.l.b16 %v2063
      %v2199 = vunpack.c.l.b16 %v2064
      %v2200 = vunpack.c.l.b16 %v2065
      %v2201 = vunpack.c.l.b16 %v2066
      %v2202 = vunpack.c.l.b16 %v2067
      %v2203 = vunpack.c.l.b16 %v2068
      %v2204 = vunpack.c.l.b16 %v2069
      %v2205 = vunpack.c.l.b16 %v2070
      %v2206 = vunpack.c.l.b16 %v2071
      %v2207 = vunpack.c.l.b16 %v2072
      %v2208 = vunpack.c.l.b16 %v2073
      %v2209 = vunpack.c.l.b16 %v2074
      %v2210 = vunpack.c.l.b16 %v2075
      %v2211 = vunpack.c.l.b16 %v2076
      %v2212 = vunpack.c.l.b16 %v2077
      %v2213 = vunpack.c.l.b16 %v2078
      %v2214 = vunpack.c.l.b16 %v2079
      %v2215 = vunpack.c.l.b16 %v2080
      %v2216 = vunpack.c.l.b16 %v2081
      %v2217 = vunpack.c.l.b16 %v2082
      %v2218 = vunpack.c.l.b16 %v2083
      %v2219 = vunpack.c.l.b16 %v2084
      %v2220 = vunpack.c.l.b16 %v2085
      %v2221 = vunpack.c.l.b16 %v2086
      %v2222 = vunpack.c.l.b16 %v2087
      %v2223 = vunpack.c.l.b16 %v2088
      %v2224 = vunpack.c.l.b16 %v2089
      %v2225 = vunpack.c.l.b16 %v2090
      %v2226 = vunpack.c.l.b16 %v2091
      %v2227 = vunpack.c.l.b16 %v2092
      %v2228 = vunpack.c.l.b16 %v2093
      %v2229 = vunpack.c.l.b16 %v2094
      %v2230 = vunpack.c.l.b16 %v2095
      %v2231 = vunpack.c.l.b16 %v2096
      %v2232 = vunpack.c.l.b16 %v2097
      %v2233 = vunpack.c.l.b16 %v2098
      %v2234 = vunpack.c.l.b16 %v2099
      %v2235 = vunpack.c.l.b16 %v2100
      %v2236 = vunpack.c.l.b16 %v2101
      %v2237 = vunpack.c.l.b16 %v2102
      %v2238 = vunpack.c.l.b16 %v2103
      %v2239 = vunpack.c.l.b16 %v2104
      %v2240 = vunpack.c.l.b16 %v2105
      %v2241 = vunpack.c.l.b16 %v2106
      %v2242 = vunpack.c.l.b16 %v2107
      %v2243 = vunpack.c.l.b16 %v2108
      %v2244 = vunpack.c.l.b16 %v2109
      %v2245 = vpack.c.b16 %v2182, %v2181
      %v2246 = vpack.c.b16 %v2184, %v2183
      %v2247 = vpack.c.b16 %v2186, %v2185
      %v2248 = vpack.c.b16 %v2188, %v2187
      %v2249 = vpack.c.b16 %v2190, %v2189
      %v2250 = vpack.c.b16 %v2192, %v2191
      %v2251 = vpack.c.b16 %v2194, %v2193
      %v2252 = vpack.c.b16 %v2196, %v2195
      %v2253 = vpack.c.b16 %v2198, %v2197
      %v2254 = vpack.c.b16 %v2200, %v2199
      %v2255 = vpack.c.b16 %v2202, %v2201
      %v2256 = vpack.c.b16 %v2204, %v2203
      %v2257 = vpack.c.b16 %v2206, %v2205
      %v2258 = vpack.c.b16 %v2208, %v2207
      %v2259 = vpack.c.b16 %v2210, %v2209
      %v2260 = vpack.c.b16 %v2212, %v2211
      %v2261 = vpack.c.b16 %v2214, %v2213
      %v2262 = vpack.c.b16 %v2216, %v2215
      %v2263 = vpack.c.b16 %v2218, %v2217
      %v2264 = vpack.c.b16 %v2220, %v2219
      %v2265 = vpack.c.b16 %v2222, %v2221
      %v2266 = vpack.c.b16 %v2224, %v2223
      %v2267 = vpack.c.b16 %v2226, %v2225
      %v2268 = vpack.c.b16 %v2228, %v2227
      %v2269 = vpack.c.b16 %v2230, %v2229
      %v2270 = vpack.c.b16 %v2232, %v2231
      %v2271 = vpack.c.b16 %v2234, %v2233
      %v2272 = vpack.c.b16 %v2236, %v2235
      %v2273 = vpack.c.b16 %v2238, %v2237
      %v2274 = vpack.c.b16 %v2240, %v2239
      %v2275 = vpack.c.b16 %v2242, %v2241
      %v2276 = vpack.c.b16 %v2244, %v2243
      %2309 = vmatprep.subr.bf16.mxu0 0
      %2310 = vmatpush1.bf16.msra.mxu0 %v2245
      %2311 = vmatprep.subr.bf16.mxu0 0
      %2312 = vmatpush1.bf16.msra.mxu0 %v2246
      %2313 = vmatprep.subr.bf16.mxu0 0
      %2314 = vmatpush1.bf16.msra.mxu0 %v2247
      %2315 = vmatprep.subr.bf16.mxu0 0
      %2316 = vmatpush1.bf16.msra.mxu0 %v2248
      %2317 = vmatprep.subr.bf16.mxu0 0
      %2318 = vmatpush1.bf16.msra.mxu0 %v2249
      %2319 = vmatprep.subr.bf16.mxu0 0
      %2320 = vmatpush1.bf16.msra.mxu0 %v2250
      %2321 = vmatprep.subr.bf16.mxu0 0
      %2322 = vmatpush1.bf16.msra.mxu0 %v2251
      %2323 = vmatprep.subr.bf16.mxu0 0
      %2324 = vmatpush1.bf16.msra.mxu0 %v2252
      %2325 = vmatprep.subr.bf16.mxu0 0
      %2326 = vmatpush1.bf16.msra.mxu0 %v2253
      %2327 = vmatprep.subr.bf16.mxu0 0
      %2328 = vmatpush1.bf16.msra.mxu0 %v2254
      %2329 = vmatprep.subr.bf16.mxu0 0
      %2330 = vmatpush1.bf16.msra.mxu0 %v2255
      %2331 = vmatprep.subr.bf16.mxu0 0
      %2332 = vmatpush1.bf16.msra.mxu0 %v2256
      %2333 = vmatprep.subr.bf16.mxu0 0
      %2334 = vmatpush1.bf16.msra.mxu0 %v2257
      %2335 = vmatprep.subr.bf16.mxu0 0
      %2336 = vmatpush1.bf16.msra.mxu0 %v2258
      %2337 = vmatprep.subr.bf16.mxu0 0
      %2338 = vmatpush1.bf16.msra.mxu0 %v2259
      %2339 = vmatprep.subr.bf16.mxu0 0
      %2340 = vmatpush1.bf16.msra.mxu0 %v2260
      %2341 = vmatprep.mubr.bf16.mxu0 %v2039
      %2342 = vmatmul.mubr.bf16.gmra.mrb[0].mxu0 %v2038
      %v2343 = vpop.f32.mrb[0].mxu0
      %v2344 = vadd.f32 %v2115, %v2343
      %v2345 = vpop.f32.mrb[0].mxu0
      %v2346 = vpop.f32.mrb[0].mxu0
      %v2347 = vadd.f32 %v2115, %v2346
      %v2348 = vpop.f32.mrb[0].mxu0
      %2349 = vmatprep.mubr.bf16.mxu0 %v2043
      %2350 = vmatmul.mubr.bf16.gmra.mrb[0].mxu0 %v2042
      %v2351 = vpop.f32.mrb[0].mxu0
      %v2352 = vadd.f32 %v2115, %v2351
      %v2353 = vpop.f32.mrb[0].mxu0
      %v2354 = vpop.f32.mrb[0].mxu0
      %v2355 = vpop.f32.mrb[0].mxu0
      %2356 = vdwg.mxu0
      %2357 = vmatprep.subr.bf16.mxu0 0
      %2358 = vmatpush1.bf16.msra.mxu0 %v2261
      %2359 = vmatprep.subr.bf16.mxu0 0
      %2360 = vmatpush1.bf16.msra.mxu0 %v2262
      %2361 = vmatprep.subr.bf16.mxu0 0
      %2362 = vmatpush1.bf16.msra.mxu0 %v2263
      %2363 = vmatprep.subr.bf16.mxu0 0
      %2364 = vmatpush1.bf16.msra.mxu0 %v2264
      %2365 = vmatprep.subr.bf16.mxu0 0
      %2366 = vmatpush1.bf16.msra.mxu0 %v2265
      %2367 = vmatprep.subr.bf16.mxu0 0
      %2368 = vmatpush1.bf16.msra.mxu0 %v2266
      %2369 = vmatprep.subr.bf16.mxu0 0
      %2370 = vmatpush1.bf16.msra.mxu0 %v2267
      %2371 = vmatprep.subr.bf16.mxu0 0
      %2372 = vmatpush1.bf16.msra.mxu0 %v2268
      %2373 = vmatprep.subr.bf16.mxu0 0
      %2374 = vmatpush1.bf16.msra.mxu0 %v2269
      %2375 = vmatprep.subr.bf16.mxu0 0
      %2376 = vmatpush1.bf16.msra.mxu0 %v2270
      %2377 = vmatprep.subr.bf16.mxu0 0
      %2378 = vmatpush1.bf16.msra.mxu0 %v2271
      %2379 = vmatprep.subr.bf16.mxu0 0
      %2380 = vmatpush1.bf16.msra.mxu0 %v2272
      %2381 = vmatprep.subr.bf16.mxu0 0
      %2382 = vmatpush1.bf16.msra.mxu0 %v2273
      %2383 = vmatprep.subr.bf16.mxu0 0
      %2384 = vmatpush1.bf16.msra.mxu0 %v2274
      %2385 = vmatprep.subr.bf16.mxu0 0
      %2386 = vmatpush1.bf16.msra.mxu0 %v2275
      %2387 = vmatprep.subr.bf16.mxu0 0
      %2388 = vmatpush1.bf16.msra.mxu0 %v2276
      %2389 = vmatprep.mubr.bf16.mxu0 %v2041
      %2390 = vmatmul.mubr.bf16.gmra.mrb[0].mxu0 %v2040
      %v2391 = vpop.f32.mrb[0].mxu0
      %v2392 = vadd.f32 %v2344, %v2391
      %v2393 = vpop.f32.mrb[0].mxu0
      %v2394 = vpop.f32.mrb[0].mxu0
      %v2395 = vadd.f32 %v2347, %v2394
      %v2396 = vpop.f32.mrb[0].mxu0
      %2397 = vmatprep.mubr.bf16.mxu0 %v2045
      %2398 = vmatmul.mubr.bf16.gmra.mrb[0].mxu0 %v2044
      %v2399 = vpop.f32.mrb[0].mxu0
      %v2400 = vadd.f32 %v2352, %v2399
      %v2401 = vpop.f32.mrb[0].mxu0
      %v2402 = vpop.f32.mrb[0].mxu0
      %v2403 = vpop.f32.mrb[0].mxu0
      %2404 = vdwg.mxu0
      %v2405 = vadd.f32 %v1604, %v2392
      %v2406 = vadd.f32 %v1605, %v2395
      %v2407 = vadd.f32 %v1606, %v2400
      %v2408 = vpack.c.bf16 %v2406, %v2405
      %v2409 = vpack.c.bf16 %v2407, %v2407
      %v2412 = vunpack.c.l.b16 %v2408
      %v2413 = vunpack.c.h.b16 %v2408
      %v2414 = vunpack.c.l.b16 %v2409
      %v2415 = vpack.c.b16 %v2412, %v2412
      %v2416 = vpack.c.b16 %v2413, %v2413
      %v2417 = vpack.c.b16 %v2414, %v2414
      %2421 = vst [vmem:[%s440] sm:$0xf] %v2415
      %2422 = vst [vmem:[%s440 + $0x4] sm:$0xf] %v2416
      %2423 = vst [vmem:[%s440 + $0x8] sm:$0xf] %v2417
      %p2424 = scmp.lt.s32.totalorder %s24, 1
      %s2425 = scalar_select %p2424, %s24, 1
      %s2426 = smul.addr %s2425, 3
      %s2427 = smul.addr %s2426, 4
      %s2428 = scalar_lea.vmem %s13, %s2427
      // Predicated region
      $region73: #{vit_zoo_forward.8} parent=71 // pred_check
        %p2429 = pneg %p320
      $region74: #{vit_zoo_forward.8} parent=71 // pred_check_branch
        %2431 = sbr.rel (%p2429) target = $region76
      $region75: #{vit_zoo_forward.8} parent=71 // pred_region
        _
      $region76: #{vit_zoo_forward.8} parent=71 // pred_fallthru
        _
    $region72: #{vit_zoo_forward.8} parent=5 // pred_fallthru
      _
    %p2432 = scmp.le.s32.totalorder 2, %s19
    // Predicated region
    $region77: #{vit_zoo_forward.8} parent=5 // pred_check
      %p2433 = pneg %p2432
    $region78: #{vit_zoo_forward.8} parent=5 // pred_check_branch
      %2435 = sbr.rel (%p2433) target = $region80
    $region79: #{vit_zoo_forward.8} parent=5 // pred_region
      %s2436 = ssub.s32 %s19, 2
      // Predicated region
      $region81: #{vit_zoo_forward.8} parent=79 // pred_check
        %p2437 = pneg %p326
      $region82: #{vit_zoo_forward.8} parent=79 // pred_check_branch
        %2439 = sbr.rel (%p2437) target = $region84
      $region83: #{vit_zoo_forward.8} parent=79 // pred_region
        %p2440 = scmp.lt.s32.totalorder %s25, 1
        %s2441 = scalar_select %p2440, %s25, 1
        %s2442 = smul.addr %s2441, 3
        %s2443 = smul.addr %s2442, 4
        %s2444 = scalar_lea.vmem %s13, %s2443
      $region84: #{vit_zoo_forward.8} parent=79 // pred_fallthru
        _
    $region80: #{vit_zoo_forward.8} parent=5 // pred_fallthru
      _
  $region6: #{vit_zoo_forward.8} parent=0 // loop_footer
    %s23 = sadd.s32 1, %s19
  $region7: #{vit_zoo_forward.8} parent=0 // loop_footer_branch
    %18 = sbr.rel target = $region3
  $region8: #{vit_zoo_forward.8} parent=0 // loop_exit
    _

// kernel: vit_zoo_forward.11
$region0: #{vit_zoo_forward.11}
  #allocation0 [shape = 'u32[]', space=smem, size = 0x4, offset = 0x4, fixed_abs, tag = 'smem constant byte address 0x4 - core index']
  #allocation1 [shape = 'u32[144,128]{1,0:T(1,128)}', space=vmem, size = 0x12000, scoped, tag = 'internal scratch']
  %s0 = inlined_call_operand.vmem [shape: f32[2,128], index: 0, kind: input, shape index: {}]
  %s1 = inlined_call_operand.vmem [shape: f32[4,128], index: 1, kind: input, shape index: {}]
  %s2 = inlined_call_operand.vmem [shape: f32[4,128], index: 2, kind: input, shape index: {}]
  %s3 = inlined_call_operand.vmem [shape: bf16[4,512], index: 3, kind: input, shape index: {}]
  %s4 = inlined_call_operand.vmem [shape: bf16[2,24,128], index: 4, kind: input, shape index: {}]
  %s5 = inlined_call_operand.vmem [shape: f32[1,128], index: 5, kind: input, shape index: {}]
  %s6 = inlined_call_operand.vmem [shape: f32[1,128], index: 6, kind: input, shape index: {}]
  %s7 = inlined_call_operand.vmem [shape: bf16[128,384], index: 7, kind: input, shape index: {}]
  %s8 = inlined_call_operand.vmem [shape: f32[1,384], index: 8, kind: input, shape index: {}]
  %s9 = inlined_call_operand.vmem [shape: bf16[128,128], index: 9, kind: input, shape index: {}]
  %s10 = inlined_call_operand.vmem [shape: f32[1,128], index: 10, kind: input, shape index: {}]
  %s11 = inlined_call_operand.vmem [shape: f32[1,128], index: 11, kind: input, shape index: {}]
  %s12 = inlined_call_operand.vmem [shape: f32[1,128], index: 12, kind: input, shape index: {}]
  %s13 = inlined_call_operand.vmem [shape: bf16[128,512], index: 13, kind: input, shape index: {}]
  %s14 = inlined_call_operand.vmem [shape: f32[1,512], index: 14, kind: input, shape index: {}]
  %s15 = inlined_call_operand.vmem [shape: bf16[512,128], index: 15, kind: input, shape index: {}]
  %s16 = inlined_call_operand.vmem [shape: f32[1,128], index: 16, kind: input, shape index: {}]
  %s17 = inlined_call_operand.vmem [shape: bf16[2,24,128], index: 17, kind: output, shape index: {}]
  %s18 = sld [smem:[#allocation0]]
  $region101: #{vit_zoo_forward.11} parent=0
    _
  %s20 = ssub.s32 1, %s18
  %s21 = scalar_select 0, %s20, %s18
  loop: start=0, step=1, limit=4
  $region2: #{vit_zoo_forward.11} parent=0 // loop_pre_header
    _
  $region3: #{vit_zoo_forward.11} parent=0 // loop_header
    %s23 = sphi 0, %s27
    %p24 = scmp.ge.s32.totalorder %s23, 4
    %s31 = sphi 0, %s31
    %s33 = sphi 0, %s31
    %s34 = sphi 0, %s33
    %s48 = sphi 0, %s34
    %s52 = sphi 0, %s52
    %s54 = sphi 0, %s52
    %s55 = sphi 0, %s54
    %s69 = sphi 0, %s55
    %s73 = sphi 0, %s73
    %s75 = sphi 0, %s73
    %s76 = sphi 0, %s75
    %s90 = sphi 0, %s76
    %s94 = sphi 0, %s94
    %s96 = sphi 0, %s94
    %s97 = sphi 0, %s96
    %s111 = sphi 0, %s97
    %s117 = sphi 0, %s119
    %s120 = sphi 0, %s117
    %s121 = sphi 0, %s120
    %s137 = sphi 0, %s121
    %s141 = sphi 0, %s141
    %s143 = sphi 0, %s141
    %s144 = sphi 0, %s143
    %s158 = sphi 0, %s144
    %s162 = sphi 0, %s162
    %s164 = sphi 0, %s162
    %s165 = sphi 0, %s164
    %s179 = sphi 0, %s165
    %s183 = sphi 0, %s183
    %s185 = sphi 0, %s183
    %s186 = sphi 0, %s185
    %s200 = sphi 0, %s186
    %s204 = sphi 0, %s204
    %s206 = sphi 0, %s204
    %s207 = sphi 0, %s206
    %s221 = sphi 0, %s207
    %s225 = sphi 0, %s225
    %s227 = sphi 0, %s225
    %s228 = sphi 0, %s227
    %s242 = sphi 0, %s228
    %s246 = sphi 0, %s246
    %s248 = sphi 0, %s246
    %s249 = sphi 0, %s248
    %s263 = sphi 0, %s249
    %s267 = sphi 0, %s267
    %s269 = sphi 0, %s267
    %s270 = sphi 0, %s269
    %s284 = sphi 0, %s270
    %s288 = sphi 0, %s288
    %s290 = sphi 0, %s288
    %s291 = sphi 0, %s290
    %s305 = sphi 0, %s291
    %s309 = sphi 0, %s309
    %s311 = sphi 0, %s309
    %s312 = sphi 0, %s311
    %s326 = sphi 0, %s312
    %s330 = sphi 0, %s330
    %s332 = sphi 0, %s330
    %s333 = sphi 0, %s332
    %s347 = sphi 0, %s333
    %s351 = sphi 0, %s351
    %s353 = sphi 0, %s351
    %s354 = sphi 0, %s353
    %s368 = sphi 0, %s354
    %s372 = sphi 0, %s372
    %s374 = sphi 0, %s372
    %s375 = sphi 0, %s374
    %s389 = sphi 0, %s375
    %s395 = sphi 0, %s397
    %s398 = sphi 0, %s395
    %s399 = sphi 0, %s398
    %s415 = sphi 0, %s399
  $region4: #{vit_zoo_forward.11} parent=0 // loop_header_branch
    %26 = sbr.rel (%p24) target = $region8
  $region5: #{vit_zoo_forward.11} parent=0 // loop_body
    %s28 = ssub.s32 %s23, 1
    %s29 = ssub.s32 %s23, 2
    %s30 = sadd.s32 %s23, 1
    %s32 = sadd.s32 %s31, 1
    %p35 = scmp.eq.s32.totalorder %s23, 1
    %p36 = scmp.ne.s32.totalorder %s31, %s33
    %p37 = scmp.eq.s32.totalorder %s23, 0
    %p38 = por %p36, %p37
    %p39 = scmp.ne.s32.totalorder %s31, %s33
    %p40 = scmp.eq.s32.totalorder %s28, 1
    %p41 = por %p39, %p40
    %p42 = scmp.ne.s32.totalorder %s33, %s34
    %p43 = scmp.eq.s32.totalorder %s28, 0
    %p44 = por %p42, %p43
    %p45 = scmp.ne.s32.totalorder %s33, %s34
    %p46 = scmp.eq.s32.totalorder %s29, 1
    %p47 = por %p45, %p46
    %p49 = scmp.ne.s32.totalorder %s34, %s48
    %p50 = scmp.eq.s32.totalorder %s29, 0
    %p51 = por %p49, %p50
    %s53 = sadd.s32 %s52, 1
    %p56 = scmp.eq.s32.totalorder %s23, 1
    %p57 = scmp.ne.s32.totalorder %s52, %s54
    %p58 = scmp.eq.s32.totalorder %s23, 0
    %p59 = por %p57, %p58
    %p60 = scmp.ne.s32.totalorder %s52, %s54
    %p61 = scmp.eq.s32.totalorder %s28, 1
    %p62 = por %p60, %p61
    %p63 = scmp.ne.s32.totalorder %s54, %s55
    %p64 = scmp.eq.s32.totalorder %s28, 0
    %p65 = por %p63, %p64
    %p66 = scmp.ne.s32.totalorder %s54, %s55
    %p67 = scmp.eq.s32.totalorder %s29, 1
    %p68 = por %p66, %p67
    %p70 = scmp.ne.s32.totalorder %s55, %s69
    %p71 = scmp.eq.s32.totalorder %s29, 0
    %p72 = por %p70, %p71
    %s74 = sadd.s32 %s73, 1
    %p77 = scmp.eq.s32.totalorder %s23, 1
    %p78 = scmp.ne.s32.totalorder %s73, %s75
    %p79 = scmp.eq.s32.totalorder %s23, 0
    %p80 = por %p78, %p79
    %p81 = scmp.ne.s32.totalorder %s73, %s75
    %p82 = scmp.eq.s32.totalorder %s28, 1
    %p83 = por %p81, %p82
    %p84 = scmp.ne.s32.totalorder %s75, %s76
    %p85 = scmp.eq.s32.totalorder %s28, 0
    %p86 = por %p84, %p85
    %p87 = scmp.ne.s32.totalorder %s75, %s76
    %p88 = scmp.eq.s32.totalorder %s29, 1
    %p89 = por %p87, %p88
    %p91 = scmp.ne.s32.totalorder %s76, %s90
    %p92 = scmp.eq.s32.totalorder %s29, 0
    %p93 = por %p91, %p92
    %s95 = sadd.s32 %s94, 1
    %p98 = scmp.eq.s32.totalorder %s23, 1
    %p99 = scmp.ne.s32.totalorder %s94, %s96
    %p100 = scmp.eq.s32.totalorder %s23, 0
    %p101 = por %p99, %p100
    %p102 = scmp.ne.s32.totalorder %s94, %s96
    %p103 = scmp.eq.s32.totalorder %s28, 1
    %p104 = por %p102, %p103
    %p105 = scmp.ne.s32.totalorder %s96, %s97
    %p106 = scmp.eq.s32.totalorder %s28, 0
    %p107 = por %p105, %p106
    %p108 = scmp.ne.s32.totalorder %s96, %s97
    %p109 = scmp.eq.s32.totalorder %s29, 1
    %p110 = por %p108, %p109
    %p112 = scmp.ne.s32.totalorder %s97, %s111
    %p113 = scmp.eq.s32.totalorder %s29, 0
    %p114 = por %p112, %p113
    %s115 = ssub.s32 %s23, %s30
    %p116 = scmp.eq.s32.totalorder %s115, 0
    %s118 = sadd.s32 %s117, 1
    %s119 = scalar_select %p116, %s117, %s118
    %p122 = pneg %p116
    %p123 = scmp.eq.s32.totalorder %s23, 1
    %p124 = por %p122, %p123
    %p125 = scmp.ne.s32.totalorder %s117, %s120
    %p126 = scmp.eq.s32.totalorder %s23, 0
    %p127 = por %p125, %p126
    %p128 = scmp.ne.s32.totalorder %s117, %s120
    %p129 = scmp.eq.s32.totalorder %s28, 1
    %p130 = por %p128, %p129
    %p131 = scmp.ne.s32.totalorder %s120, %s121
    %p132 = scmp.eq.s32.totalorder %s28, 0
    %p133 = por %p131, %p132
    %p134 = scmp.ne.s32.totalorder %s120, %s121
    %p135 = scmp.eq.s32.totalorder %s29, 1
    %p136 = por %p134, %p135
    %p138 = scmp.ne.s32.totalorder %s121, %s137
    %p139 = scmp.eq.s32.totalorder %s29, 0
    %p140 = por %p138, %p139
    %s142 = sadd.s32 %s141, 1
    %p145 = scmp.eq.s32.totalorder %s23, 1
    %p146 = scmp.ne.s32.totalorder %s141, %s143
    %p147 = scmp.eq.s32.totalorder %s23, 0
    %p148 = por %p146, %p147
    %p149 = scmp.ne.s32.totalorder %s141, %s143
    %p150 = scmp.eq.s32.totalorder %s28, 1
    %p151 = por %p149, %p150
    %p152 = scmp.ne.s32.totalorder %s143, %s144
    %p153 = scmp.eq.s32.totalorder %s28, 0
    %p154 = por %p152, %p153
    %p155 = scmp.ne.s32.totalorder %s143, %s144
    %p156 = scmp.eq.s32.totalorder %s29, 1
    %p157 = por %p155, %p156
    %p159 = scmp.ne.s32.totalorder %s144, %s158
    %p160 = scmp.eq.s32.totalorder %s29, 0
    %p161 = por %p159, %p160
    %s163 = sadd.s32 %s162, 1
    %p166 = scmp.eq.s32.totalorder %s23, 1
    %p167 = scmp.ne.s32.totalorder %s162, %s164
    %p168 = scmp.eq.s32.totalorder %s23, 0
    %p169 = por %p167, %p168
    %p170 = scmp.ne.s32.totalorder %s162, %s164
    %p171 = scmp.eq.s32.totalorder %s28, 1
    %p172 = por %p170, %p171
    %p173 = scmp.ne.s32.totalorder %s164, %s165
    %p174 = scmp.eq.s32.totalorder %s28, 0
    %p175 = por %p173, %p174
    %p176 = scmp.ne.s32.totalorder %s164, %s165
    %p177 = scmp.eq.s32.totalorder %s29, 1
    %p178 = por %p176, %p177
    %p180 = scmp.ne.s32.totalorder %s165, %s179
    %p181 = scmp.eq.s32.totalorder %s29, 0
    %p182 = por %p180, %p181
    %s184 = sadd.s32 %s183, 1
    %p187 = scmp.eq.s32.totalorder %s23, 1
    %p188 = scmp.ne.s32.totalorder %s183, %s185
    %p189 = scmp.eq.s32.totalorder %s23, 0
    %p190 = por %p188, %p189
    %p191 = scmp.ne.s32.totalorder %s183, %s185
    %p192 = scmp.eq.s32.totalorder %s28, 1
    %p193 = por %p191, %p192
    %p194 = scmp.ne.s32.totalorder %s185, %s186
    %p195 = scmp.eq.s32.totalorder %s28, 0
    %p196 = por %p194, %p195
    %p197 = scmp.ne.s32.totalorder %s185, %s186
    %p198 = scmp.eq.s32.totalorder %s29, 1
    %p199 = por %p197, %p198
    %p201 = scmp.ne.s32.totalorder %s186, %s200
    %p202 = scmp.eq.s32.totalorder %s29, 0
    %p203 = por %p201, %p202
    %s205 = sadd.s32 %s204, 1
    %p208 = scmp.eq.s32.totalorder %s23, 1
    %p209 = scmp.ne.s32.totalorder %s204, %s206
    %p210 = scmp.eq.s32.totalorder %s23, 0
    %p211 = por %p209, %p210
    %p212 = scmp.ne.s32.totalorder %s204, %s206
    %p213 = scmp.eq.s32.totalorder %s28, 1
    %p214 = por %p212, %p213
    %p215 = scmp.ne.s32.totalorder %s206, %s207
    %p216 = scmp.eq.s32.totalorder %s28, 0
    %p217 = por %p215, %p216
    %p218 = scmp.ne.s32.totalorder %s206, %s207
    %p219 = scmp.eq.s32.totalorder %s29, 1
    %p220 = por %p218, %p219
    %p222 = scmp.ne.s32.totalorder %s207, %s221
    %p223 = scmp.eq.s32.totalorder %s29, 0
    %p224 = por %p222, %p223
    %s226 = sadd.s32 %s225, 1
    %p229 = scmp.eq.s32.totalorder %s23, 1
    %p230 = scmp.ne.s32.totalorder %s225, %s227
    %p231 = scmp.eq.s32.totalorder %s23, 0
    %p232 = por %p230, %p231
    %p233 = scmp.ne.s32.totalorder %s225, %s227
    %p234 = scmp.eq.s32.totalorder %s28, 1
    %p235 = por %p233, %p234
    %p236 = scmp.ne.s32.totalorder %s227, %s228
    %p237 = scmp.eq.s32.totalorder %s28, 0
    %p238 = por %p236, %p237
    %p239 = scmp.ne.s32.totalorder %s227, %s228
    %p240 = scmp.eq.s32.totalorder %s29, 1
    %p241 = por %p239, %p240
    %p243 = scmp.ne.s32.totalorder %s228, %s242
    %p244 = scmp.eq.s32.totalorder %s29, 0
    %p245 = por %p243, %p244
    %s247 = sadd.s32 %s246, 1
    %p250 = scmp.eq.s32.totalorder %s23, 1
    %p251 = scmp.ne.s32.totalorder %s246, %s248
    %p252 = scmp.eq.s32.totalorder %s23, 0
    %p253 = por %p251, %p252
    %p254 = scmp.ne.s32.totalorder %s246, %s248
    %p255 = scmp.eq.s32.totalorder %s28, 1
    %p256 = por %p254, %p255
    %p257 = scmp.ne.s32.totalorder %s248, %s249
    %p258 = scmp.eq.s32.totalorder %s28, 0
    %p259 = por %p257, %p258
    %p260 = scmp.ne.s32.totalorder %s248, %s249
    %p261 = scmp.eq.s32.totalorder %s29, 1
    %p262 = por %p260, %p261
    %p264 = scmp.ne.s32.totalorder %s249, %s263
    %p265 = scmp.eq.s32.totalorder %s29, 0
    %p266 = por %p264, %p265
    %s268 = sadd.s32 %s267, 1
    %p271 = scmp.eq.s32.totalorder %s23, 1
    %p272 = scmp.ne.s32.totalorder %s267, %s269
    %p273 = scmp.eq.s32.totalorder %s23, 0
    %p274 = por %p272, %p273
    %p275 = scmp.ne.s32.totalorder %s267, %s269
    %p276 = scmp.eq.s32.totalorder %s28, 1
    %p277 = por %p275, %p276
    %p278 = scmp.ne.s32.totalorder %s269, %s270
    %p279 = scmp.eq.s32.totalorder %s28, 0
    %p280 = por %p278, %p279
    %p281 = scmp.ne.s32.totalorder %s269, %s270
    %p282 = scmp.eq.s32.totalorder %s29, 1
    %p283 = por %p281, %p282
    %p285 = scmp.ne.s32.totalorder %s270, %s284
    %p286 = scmp.eq.s32.totalorder %s29, 0
    %p287 = por %p285, %p286
    %s289 = sadd.s32 %s288, 1
    %p292 = scmp.eq.s32.totalorder %s23, 1
    %p293 = scmp.ne.s32.totalorder %s288, %s290
    %p294 = scmp.eq.s32.totalorder %s23, 0
    %p295 = por %p293, %p294
    %p296 = scmp.ne.s32.totalorder %s288, %s290
    %p297 = scmp.eq.s32.totalorder %s28, 1
    %p298 = por %p296, %p297
    %p299 = scmp.ne.s32.totalorder %s290, %s291
    %p300 = scmp.eq.s32.totalorder %s28, 0
    %p301 = por %p299, %p300
    %p302 = scmp.ne.s32.totalorder %s290, %s291
    %p303 = scmp.eq.s32.totalorder %s29, 1
    %p304 = por %p302, %p303
    %p306 = scmp.ne.s32.totalorder %s291, %s305
    %p307 = scmp.eq.s32.totalorder %s29, 0
    %p308 = por %p306, %p307
    %s310 = sadd.s32 %s309, 1
    %p313 = scmp.eq.s32.totalorder %s23, 1
    %p314 = scmp.ne.s32.totalorder %s309, %s311
    %p315 = scmp.eq.s32.totalorder %s23, 0
    %p316 = por %p314, %p315
    %p317 = scmp.ne.s32.totalorder %s309, %s311
    %p318 = scmp.eq.s32.totalorder %s28, 1
    %p319 = por %p317, %p318
    %p320 = scmp.ne.s32.totalorder %s311, %s312
    %p321 = scmp.eq.s32.totalorder %s28, 0
    %p322 = por %p320, %p321
    %p323 = scmp.ne.s32.totalorder %s311, %s312
    %p324 = scmp.eq.s32.totalorder %s29, 1
    %p325 = por %p323, %p324
    %p327 = scmp.ne.s32.totalorder %s312, %s326
    %p328 = scmp.eq.s32.totalorder %s29, 0
    %p329 = por %p327, %p328
    %s331 = sadd.s32 %s330, 1
    %p334 = scmp.eq.s32.totalorder %s23, 1
    %p335 = scmp.ne.s32.totalorder %s330, %s332
    %p336 = scmp.eq.s32.totalorder %s23, 0
    %p337 = por %p335, %p336
    %p338 = scmp.ne.s32.totalorder %s330, %s332
    %p339 = scmp.eq.s32.totalorder %s28, 1
    %p340 = por %p338, %p339
    %p341 = scmp.ne.s32.totalorder %s332, %s333
    %p342 = scmp.eq.s32.totalorder %s28, 0
    %p343 = por %p341, %p342
    %p344 = scmp.ne.s32.totalorder %s332, %s333
    %p345 = scmp.eq.s32.totalorder %s29, 1
    %p346 = por %p344, %p345
    %p348 = scmp.ne.s32.totalorder %s333, %s347
    %p349 = scmp.eq.s32.totalorder %s29, 0
    %p350 = por %p348, %p349
    %s352 = sadd.s32 %s351, 1
    %p355 = scmp.eq.s32.totalorder %s23, 1
    %p356 = scmp.ne.s32.totalorder %s351, %s353
    %p357 = scmp.eq.s32.totalorder %s23, 0
    %p358 = por %p356, %p357
    %p359 = scmp.ne.s32.totalorder %s351, %s353
    %p360 = scmp.eq.s32.totalorder %s28, 1
    %p361 = por %p359, %p360
    %p362 = scmp.ne.s32.totalorder %s353, %s354
    %p363 = scmp.eq.s32.totalorder %s28, 0
    %p364 = por %p362, %p363
    %p365 = scmp.ne.s32.totalorder %s353, %s354
    %p366 = scmp.eq.s32.totalorder %s29, 1
    %p367 = por %p365, %p366
    %p369 = scmp.ne.s32.totalorder %s354, %s368
    %p370 = scmp.eq.s32.totalorder %s29, 0
    %p371 = por %p369, %p370
    %s373 = sadd.s32 %s372, 1
    %p376 = scmp.eq.s32.totalorder %s23, 1
    %p377 = scmp.ne.s32.totalorder %s372, %s374
    %p378 = scmp.eq.s32.totalorder %s23, 0
    %p379 = por %p377, %p378
    %p380 = scmp.ne.s32.totalorder %s372, %s374
    %p381 = scmp.eq.s32.totalorder %s28, 1
    %p382 = por %p380, %p381
    %p383 = scmp.ne.s32.totalorder %s374, %s375
    %p384 = scmp.eq.s32.totalorder %s28, 0
    %p385 = por %p383, %p384
    %p386 = scmp.ne.s32.totalorder %s374, %s375
    %p387 = scmp.eq.s32.totalorder %s29, 1
    %p388 = por %p386, %p387
    %p390 = scmp.ne.s32.totalorder %s375, %s389
    %p391 = scmp.eq.s32.totalorder %s29, 0
    %p392 = por %p390, %p391
    %s393 = ssub.s32 %s23, %s30
    %p394 = scmp.eq.s32.totalorder %s393, 0
    %s396 = sadd.s32 %s395, 1
    %s397 = scalar_select %p394, %s395, %s396
    %p400 = pneg %p394
    %p401 = scmp.eq.s32.totalorder %s23, 1
    %p402 = por %p400, %p401
    %p403 = scmp.ne.s32.totalorder %s395, %s398
    %p404 = scmp.eq.s32.totalorder %s23, 0
    %p405 = por %p403, %p404
    %p406 = scmp.ne.s32.totalorder %s395, %s398
    %p407 = scmp.eq.s32.totalorder %s28, 1
    %p408 = por %p406, %p407
    %p409 = scmp.ne.s32.totalorder %s398, %s399
    %p410 = scmp.eq.s32.totalorder %s28, 0
    %p411 = por %p409, %p410
    %p412 = scmp.ne.s32.totalorder %s398, %s399
    %p413 = scmp.eq.s32.totalorder %s29, 1
    %p414 = por %p412, %p413
    %p416 = scmp.ne.s32.totalorder %s399, %s415
    %p417 = scmp.eq.s32.totalorder %s29, 0
    %p418 = por %p416, %p417
    %p419 = scmp.le.s32.totalorder 1, %s23
    %p420 = scmp.lt.s32.totalorder %s23, 3
    %p421 = pnand %p419, %p420
    %p422 = pneg %p421
    // Predicated region
    $region9: #{vit_zoo_forward.11} parent=5 // pred_check
      _
    $region10: #{vit_zoo_forward.11} parent=5 // pred_check_branch
      %424 = sbr.rel (%p421) target = $region12
    $region11: #{vit_zoo_forward.11} parent=5 // pred_region
      %s425 = ssub.s32 %s23, 1
      // Predicated region
      $region13: #{vit_zoo_forward.11} parent=11 // pred_check
        %p426 = pneg %p44
      $region14: #{vit_zoo_forward.11} parent=11 // pred_check_branch
        %428 = sbr.rel (%p426) target = $region16
      $region15: #{vit_zoo_forward.11} parent=11 // pred_region
        _
      $region16: #{vit_zoo_forward.11} parent=11 // pred_fallthru
        _
      // Predicated region
      $region17: #{vit_zoo_forward.11} parent=11 // pred_check
        %p429 = pneg %p65
      $region18: #{vit_zoo_forward.11} parent=11 // pred_check_branch
        %431 = sbr.rel (%p429) target = $region20
      $region19: #{vit_zoo_forward.11} parent=11 // pred_region
        _
      $region20: #{vit_zoo_forward.11} parent=11 // pred_fallthru
        _
      // Predicated region
      $region21: #{vit_zoo_forward.11} parent=11 // pred_check
        %p432 = pneg %p86
      $region22: #{vit_zoo_forward.11} parent=11 // pred_check_branch
        %434 = sbr.rel (%p432) target = $region24
      $region23: #{vit_zoo_forward.11} parent=11 // pred_region
        _
      $region24: #{vit_zoo_forward.11} parent=11 // pred_fallthru
        _
      // Predicated region
      $region25: #{vit_zoo_forward.11} parent=11 // pred_check
        %p435 = pneg %p107
      $region26: #{vit_zoo_forward.11} parent=11 // pred_check_branch
        %437 = sbr.rel (%p435) target = $region28
      $region27: #{vit_zoo_forward.11} parent=11 // pred_region
        _
      $region28: #{vit_zoo_forward.11} parent=11 // pred_fallthru
        _
      // Predicated region
      $region29: #{vit_zoo_forward.11} parent=11 // pred_check
        %p438 = pneg %p154
      $region30: #{vit_zoo_forward.11} parent=11 // pred_check_branch
        %440 = sbr.rel (%p438) target = $region32
      $region31: #{vit_zoo_forward.11} parent=11 // pred_region
        _
      $region32: #{vit_zoo_forward.11} parent=11 // pred_fallthru
        _
      // Predicated region
      $region33: #{vit_zoo_forward.11} parent=11 // pred_check
        %p441 = pneg %p175
      $region34: #{vit_zoo_forward.11} parent=11 // pred_check_branch
        %443 = sbr.rel (%p441) target = $region36
      $region35: #{vit_zoo_forward.11} parent=11 // pred_region
        _
      $region36: #{vit_zoo_forward.11} parent=11 // pred_fallthru
        _
      // Predicated region
      $region37: #{vit_zoo_forward.11} parent=11 // pred_check
        %p444 = pneg %p196
      $region38: #{vit_zoo_forward.11} parent=11 // pred_check_branch
        %446 = sbr.rel (%p444) target = $region40
      $region39: #{vit_zoo_forward.11} parent=11 // pred_region
        _
      $region40: #{vit_zoo_forward.11} parent=11 // pred_fallthru
        _
      // Predicated region
      $region41: #{vit_zoo_forward.11} parent=11 // pred_check
        %p447 = pneg %p217
      $region42: #{vit_zoo_forward.11} parent=11 // pred_check_branch
        %449 = sbr.rel (%p447) target = $region44
      $region43: #{vit_zoo_forward.11} parent=11 // pred_region
        _
      $region44: #{vit_zoo_forward.11} parent=11 // pred_fallthru
        _
      // Predicated region
      $region45: #{vit_zoo_forward.11} parent=11 // pred_check
        %p450 = pneg %p238
      $region46: #{vit_zoo_forward.11} parent=11 // pred_check_branch
        %452 = sbr.rel (%p450) target = $region48
      $region47: #{vit_zoo_forward.11} parent=11 // pred_region
        _
      $region48: #{vit_zoo_forward.11} parent=11 // pred_fallthru
        _
      // Predicated region
      $region49: #{vit_zoo_forward.11} parent=11 // pred_check
        %p453 = pneg %p259
      $region50: #{vit_zoo_forward.11} parent=11 // pred_check_branch
        %455 = sbr.rel (%p453) target = $region52
      $region51: #{vit_zoo_forward.11} parent=11 // pred_region
        _
      $region52: #{vit_zoo_forward.11} parent=11 // pred_fallthru
        _
      // Predicated region
      $region53: #{vit_zoo_forward.11} parent=11 // pred_check
        %p456 = pneg %p280
      $region54: #{vit_zoo_forward.11} parent=11 // pred_check_branch
        %458 = sbr.rel (%p456) target = $region56
      $region55: #{vit_zoo_forward.11} parent=11 // pred_region
        _
      $region56: #{vit_zoo_forward.11} parent=11 // pred_fallthru
        _
      // Predicated region
      $region57: #{vit_zoo_forward.11} parent=11 // pred_check
        %p459 = pneg %p301
      $region58: #{vit_zoo_forward.11} parent=11 // pred_check_branch
        %461 = sbr.rel (%p459) target = $region60
      $region59: #{vit_zoo_forward.11} parent=11 // pred_region
        _
      $region60: #{vit_zoo_forward.11} parent=11 // pred_fallthru
        _
      // Predicated region
      $region61: #{vit_zoo_forward.11} parent=11 // pred_check
        %p462 = pneg %p322
      $region62: #{vit_zoo_forward.11} parent=11 // pred_check_branch
        %464 = sbr.rel (%p462) target = $region64
      $region63: #{vit_zoo_forward.11} parent=11 // pred_region
        _
      $region64: #{vit_zoo_forward.11} parent=11 // pred_fallthru
        _
      // Predicated region
      $region65: #{vit_zoo_forward.11} parent=11 // pred_check
        %p465 = pneg %p343
      $region66: #{vit_zoo_forward.11} parent=11 // pred_check_branch
        %467 = sbr.rel (%p465) target = $region68
      $region67: #{vit_zoo_forward.11} parent=11 // pred_region
        _
      $region68: #{vit_zoo_forward.11} parent=11 // pred_fallthru
        _
      // Predicated region
      $region69: #{vit_zoo_forward.11} parent=11 // pred_check
        %p468 = pneg %p364
      $region70: #{vit_zoo_forward.11} parent=11 // pred_check_branch
        %470 = sbr.rel (%p468) target = $region72
      $region71: #{vit_zoo_forward.11} parent=11 // pred_region
        _
      $region72: #{vit_zoo_forward.11} parent=11 // pred_fallthru
        _
      // Predicated region
      $region73: #{vit_zoo_forward.11} parent=11 // pred_check
        %p471 = pneg %p385
      $region74: #{vit_zoo_forward.11} parent=11 // pred_check_branch
        %473 = sbr.rel (%p471) target = $region76
      $region75: #{vit_zoo_forward.11} parent=11 // pred_region
        _
      $region76: #{vit_zoo_forward.11} parent=11 // pred_fallthru
        _
    $region12: #{vit_zoo_forward.11} parent=5 // pred_fallthru
      _
    %p474 = scmp.lt.s32.totalorder %s23, 2
    // Predicated region
    $region77: #{vit_zoo_forward.11} parent=5 // pred_check
      %p475 = pneg %p474
    $region78: #{vit_zoo_forward.11} parent=5 // pred_check_branch
      %477 = sbr.rel (%p475) target = $region80
    $region79: #{vit_zoo_forward.11} parent=5 // pred_region
      // Predicated region
      $region81: #{vit_zoo_forward.11} parent=79 // pred_check
        %p478 = pneg %p127
      $region82: #{vit_zoo_forward.11} parent=79 // pred_check_branch
        %480 = sbr.rel (%p478) target = $region84
      $region83: #{vit_zoo_forward.11} parent=79 // pred_region
        %p481 = scmp.lt.s32.totalorder %s23, 1
        %s482 = scalar_select %p481, %s23, 1
        %s483 = smul.addr %s482, 3
        %s484 = smul.addr %s483, 4
        %s485 = scalar_lea.vmem %s4, %s484
      $region84: #{vit_zoo_forward.11} parent=79 // pred_fallthru
        _
    $region80: #{vit_zoo_forward.11} parent=5 // pred_fallthru
      _
    %p486 = scmp.le.s32.totalorder 1, %s23
    %p487 = scmp.lt.s32.totalorder %s23, 3
    %p488 = pnand %p486, %p487
    %p489 = pneg %p488
    // Predicated region
    $region85: #{vit_zoo_forward.11} parent=5 // pred_check
      _
    $region86: #{vit_zoo_forward.11} parent=5 // pred_check_branch
      %491 = sbr.rel (%p488) target = $region88
    $region87: #{vit_zoo_forward.11} parent=5 // pred_region
      %s492 = ssub.s32 %s23, 1
      %p493 = pneg %p44
      %p494 = pneg %p41
      %p495 = pneg %p65
      %p496 = pneg %p62
      %p497 = pneg %p86
      %p498 = pneg %p83
      %p499 = pneg %p107
      %p500 = pneg %p104
      %p501 = scmp.lt.s32.totalorder %s28, 1
      %s502 = scalar_select %p501, %s28, 1
      %s503 = smul.addr %s502, 3
      %s504 = smul.addr %s503, 4
      %s505 = scalar_lea.vmem %s4, %s504
      %p506 = pneg %p133
      %p507 = pneg %p130
      %p508 = pneg %p154
      %p509 = pneg %p151
      %p510 = pneg %p175
      %p511 = pneg %p172
      %p512 = pneg %p196
      %p513 = pneg %p193
      %p514 = pneg %p217
      %p515 = pneg %p214
      %p516 = pneg %p238
      %p517 = pneg %p235
      %p518 = pneg %p259
      %p519 = pneg %p256
      %p520 = pneg %p280
      %p521 = pneg %p277
      %p522 = pneg %p301
      %p523 = pneg %p298
      %p524 = pneg %p322
      %p525 = pneg %p319
      %p526 = pneg %p343
      %p527 = pneg %p340
      %p528 = pneg %p364
      %p529 = pneg %p361
      %p530 = pneg %p385
      %p531 = pneg %p382
      %p532 = pneg %p411
      %p533 = pneg %p408
      %p534 = scmp.lt.s32.totalorder %s28, 1
      %s535 = scalar_select %p534, %s28, 1
      %s536 = smul.addr %s535, 3
      %s537 = smul.addr %s536, 4
      %s538 = scalar_lea.vmem %s17, %s537
      %p539 = scmp.lt.s32.totalorder %s28, 1
      %s540 = scalar_select %p539, %s28, 1
      %s541 = smul.addr %s540, 3
      %s542 = smul.addr %s541, 4
      %s543 = scalar_lea.vmem %s4, %s542
      %p544 = scmp.lt.s32.totalorder %s28, 1
      %s545 = scalar_select %p544, %s28, 1
      %s546 = smul.addr %s545, 3
      %s547 = smul.addr %s546, 4
      %s548 = scalar_lea.vmem %s17, %s547
      %v550 = vld [vmem:[%s543] sm:$0xf]
      %v551 = vld [vmem:[%s543 + $0x4] sm:$0xf]
      %v552 = vld [vmem:[%s543 + $0x8] sm:$0xf]
      %v553 = vunpack.c.l.bf16 %v550
      %v554 = vunpack.c.l.bf16 %v551
      %v555 = vunpack.c.l.bf16 %v552
      %v556 = vld [vmem:[%s5] sm:$0x1]
      %v557 = vld [vmem:[%s6] sm:$0x1]
      %558 = vadd.xlane.f32.xlu0 %v553
      %v559 = vpop.xlane.xlu0 %558
      %560 = vadd.xlane.f32.xlu0 %v554
      %v561 = vpop.xlane.xlu0 %560
      %562 = vadd.xlane.f32.xlu0 %v555
      %v563 = vpop.xlane.xlu0 %562
      %v564 = vrcp.pop 128.0
      %v565 = vmul.f32 %v559, %v564
      %v566 = vmul.f32 %v561, %v564
      %v567 = vmul.f32 %v563, %v564
      %v568 = vsub.f32 %v553, %v565
      %v569 = vsub.f32 %v554, %v566
      %v570 = vsub.f32 %v555, %v567
      %v571 = vmul.f32 %v568, %v568
      %v572 = vmul.f32 %v569, %v569
      %v573 = vmul.f32 %v570, %v570
      %574 = vadd.xlane.f32.xlu0 %v571
      %v575 = vpop.xlane.xlu0 %574
      %576 = vadd.xlane.f32.xlu0 %v572
      %v577 = vpop.xlane.xlu0 %576
      %578 = vadd.xlane.f32.xlu0 %v573
      %v579 = vpop.xlane.xlu0 %578
      %v580 = vmul.f32 %v575, %v564
      %v581 = vmul.f32 %v577, %v564
      %v582 = vmul.f32 %v579, %v564
      %v583 = vadd.f32 %v580, 1e-06
      %v584 = vadd.f32 %v581, 1e-06
      %v585 = vadd.f32 %v582, 1e-06
      %v586 = vrsqrt.pop %v583
      %v587 = vrsqrt.pop %v584
      %v588 = vrsqrt.pop %v585
      %v589 = vmul.f32 %v568, %v586
      %v590 = vmul.f32 %v569, %v587
      %v591 = vmul.f32 %v570, %v588
      %v593 = vlaneseq
      %v594 = vshrl.u32 %v593, 7
      %v595 = vsub.s32 0, %v594
      %v596 = vrot.slane %v556, %v595
      %v598 = vmul.f32 %v589, %v596
      %v599 = vmul.f32 %v590, %v596
      %v600 = vmul.f32 %v591, %v596
      %v602 = vlaneseq
      %v603 = vshrl.u32 %v602, 7
      %v604 = vsub.s32 0, %v603
      %v605 = vrot.slane %v557, %v604
      %v607 = vadd.f32 %v598, %v605
      %v608 = vadd.f32 %v599, %v605
      %v609 = vadd.f32 %v600, %v605
      %v610 = vpack.c.bf16 %v608, %v607
      %v611 = vpack.c.bf16 %v609, %v609
      %v612 = vld [vmem:[%s7] sm:$0xff]
      %v613 = vld [vmem:[%s7 + $0x8] sm:$0xf]
      %v614 = vld [vmem:[%s7 + $0xc] sm:$0xff]
      %v615 = vld [vmem:[%s7 + $0x14] sm:$0xf]
      %v616 = vld [vmem:[%s7 + $0x18] sm:$0xff]
      %v617 = vld [vmem:[%s7 + $0x20] sm:$0xf]
      %v618 = vld [vmem:[%s7 + $0x24] sm:$0xff]
      %v619 = vld [vmem:[%s7 + $0x2c] sm:$0xf]
      %v620 = vld [vmem:[%s7 + $0x30] sm:$0xff]
      %v621 = vld [vmem:[%s7 + $0x38] sm:$0xf]
      %v622 = vld [vmem:[%s7 + $0x3c] sm:$0xff]
      %v623 = vld [vmem:[%s7 + $0x44] sm:$0xf]
      %v624 = vld [vmem:[%s7 + $0x48] sm:$0xff]
      %v625 = vld [vmem:[%s7 + $0x50] sm:$0xf]
      %v626 = vld [vmem:[%s7 + $0x54] sm:$0xff]
      %v627 = vld [vmem:[%s7 + $0x5c] sm:$0xf]
      %v628 = vld [vmem:[%s7 + $0x60] sm:$0xff]
      %v629 = vld [vmem:[%s7 + $0x68] sm:$0xf]
      %v630 = vld [vmem:[%s7 + $0x6c] sm:$0xff]
      %v631 = vld [vmem:[%s7 + $0x74] sm:$0xf]
      %v632 = vld [vmem:[%s7 + $0x78] sm:$0xff]
      %v633 = vld [vmem:[%s7 + $0x80] sm:$0xf]
      %v634 = vld [vmem:[%s7 + $0x84] sm:$0xff]
      %v635 = vld [vmem:[%s7 + $0x8c] sm:$0xf]
      %v636 = vld [vmem:[%s7 + $0x90] sm:$0xff]
      %v637 = vld [vmem:[%s7 + $0x98] sm:$0xf]
      %v638 = vld [vmem:[%s7 + $0x9c] sm:$0xff]
      %v639 = vld [vmem:[%s7 + $0xa4] sm:$0xf]
      %v640 = vld [vmem:[%s7 + $0xa8] sm:$0xff]
      %v641 = vld [vmem:[%s7 + $0xb0] sm:$0xf]
      %v642 = vld [vmem:[%s7 + $0xb4] sm:$0xff]
      %v643 = vld [vmem:[%s7 + $0xbc] sm:$0xf]
      %v644 = vld [vmem:[%s8] sm:$0x7]
      %v646 = vlaneseq
      %v647 = vshrl.u32 %v646, 7
      %v648 = vsub.s32 0, %v647
      %v649 = vrot.slane %v644, %v648
      %v650 = vlaneseq
      %v651 = vshrl.u32 %v650, 7
      %v652 = vsub.s32 1, %v651
      %v653 = vrot.slane %v644, %v652
      %v654 = vlaneseq
      %v655 = vshrl.u32 %v654, 7
      %v656 = vsub.s32 2, %v655
      %v657 = vrot.slane %v644, %v656
      %v693 = vunpack.c.l.b16 %v612
      %v694 = vunpack.c.h.b16 %v612
      %v695 = vunpack.c.l.b16 %v613
      %v696 = vunpack.c.l.b16 %v614
      %v697 = vunpack.c.h.b16 %v614
      %v698 = vunpack.c.l.b16 %v615
      %v699 = vunpack.c.l.b16 %v616
      %v700 = vunpack.c.h.b16 %v616
      %v701 = vunpack.c.l.b16 %v617
      %v702 = vunpack.c.l.b16 %v618
      %v703 = vunpack.c.h.b16 %v618
      %v704 = vunpack.c.l.b16 %v619
      %v705 = vunpack.c.l.b16 %v620
      %v706 = vunpack.c.h.b16 %v620
      %v707 = vunpack.c.l.b16 %v621
      %v708 = vunpack.c.l.b16 %v622
      %v709 = vunpack.c.h.b16 %v622
      %v710 = vunpack.c.l.b16 %v623
      %v711 = vunpack.c.l.b16 %v624
      %v712 = vunpack.c.h.b16 %v624
      %v713 = vunpack.c.l.b16 %v625
      %v714 = vunpack.c.l.b16 %v626
      %v715 = vunpack.c.h.b16 %v626
      %v716 = vunpack.c.l.b16 %v627
      %v717 = vunpack.c.l.b16 %v628
      %v718 = vunpack.c.h.b16 %v628
      %v719 = vunpack.c.l.b16 %v629
      %v720 = vunpack.c.l.b16 %v630
      %v721 = vunpack.c.h.b16 %v630
      %v722 = vunpack.c.l.b16 %v631
      %v723 = vunpack.c.l.b16 %v632
      %v724 = vunpack.c.h.b16 %v632
      %v725 = vunpack.c.l.b16 %v633
      %v726 = vunpack.c.l.b16 %v634
      %v727 = vunpack.c.h.b16 %v634
      %v728 = vunpack.c.l.b16 %v635
      %v729 = vunpack.c.l.b16 %v636
      %v730 = vunpack.c.h.b16 %v636
      %v731 = vunpack.c.l.b16 %v637
      %v732 = vunpack.c.l.b16 %v638
      %v733 = vunpack.c.h.b16 %v638
      %v734 = vunpack.c.l.b16 %v639
      %v735 = vunpack.c.l.b16 %v640
      %v736 = vunpack.c.h.b16 %v640
      %v737 = vunpack.c.l.b16 %v641
      %v738 = vunpack.c.l.b16 %v642
      %v739 = vunpack.c.h.b16 %v642
      %v740 = vunpack.c.l.b16 %v643
      %v741 = vpack.c.b16 %v696, %v693
      %v742 = vpack.c.b16 %v697, %v694
      %v743 = vpack.c.b16 %v698, %v695
      %v744 = vpack.c.b16 %v702, %v699
      %v745 = vpack.c.b16 %v703, %v700
      %v746 = vpack.c.b16 %v704, %v701
      %v747 = vpack.c.b16 %v708, %v705
      %v748 = vpack.c.b16 %v709, %v706
      %v749 = vpack.c.b16 %v710, %v707
      %v750 = vpack.c.b16 %v714, %v711
      %v751 = vpack.c.b16 %v715, %v712
      %v752 = vpack.c.b16 %v716, %v713
      %v753 = vpack.c.b16 %v720, %v717
      %v754 = vpack.c.b16 %v721, %v718
      %v755 = vpack.c.b16 %v722, %v719
      %v756 = vpack.c.b16 %v726, %v723
      %v757 = vpack.c.b16 %v727, %v724
      %v758 = vpack.c.b16 %v728, %v725
      %v759 = vpack.c.b16 %v732, %v729
      %v760 = vpack.c.b16 %v733, %v730
      %v761 = vpack.c.b16 %v734, %v731
      %v762 = vpack.c.b16 %v738, %v735
      %v763 = vpack.c.b16 %v739, %v736
      %v764 = vpack.c.b16 %v740, %v737
      %789 = vmatprep.subr.bf16.mxu0 %v742
      %790 = vmatpush1.bf16.msra.mxu0 %v741
      %791 = vmatprep.subr.bf16.mxu0 %v745
      %792 = vmatpush1.bf16.msra.mxu0 %v744
      %793 = vmatprep.subr.bf16.mxu0 %v748
      %794 = vmatpush1.bf16.msra.mxu0 %v747
      %795 = vmatprep.subr.bf16.mxu0 %v751
      %796 = vmatpush1.bf16.msra.mxu0 %v750
      %797 = vmatprep.subr.bf16.mxu0 %v754
      %798 = vmatpush1.bf16.msra.mxu0 %v753
      %799 = vmatprep.subr.bf16.mxu0 %v757
      %800 = vmatpush1.bf16.msra.mxu0 %v756
      %801 = vmatprep.subr.bf16.mxu0 %v760
      %802 = vmatpush1.bf16.msra.mxu0 %v759
      %803 = vmatprep.subr.bf16.mxu0 %v763
      %804 = vmatpush1.bf16.msra.mxu0 %v762
      %805 = vmatprep.subr.bf16.mxu0 0
      %806 = vmatpush1.bf16.msra.mxu0 0
      %807 = vmatprep.subr.bf16.mxu0 0
      %808 = vmatpush1.bf16.msra.mxu0 0
      %809 = vmatprep.subr.bf16.mxu0 0
      %810 = vmatpush1.bf16.msra.mxu0 0
      %811 = vmatprep.subr.bf16.mxu0 0
      %812 = vmatpush1.bf16.msra.mxu0 0
      %813 = vmatprep.subr.bf16.mxu0 0
      %814 = vmatpush1.bf16.msra.mxu0 0
      %815 = vmatprep.subr.bf16.mxu0 0
      %816 = vmatpush1.bf16.msra.mxu0 0
      %817 = vmatprep.subr.bf16.mxu0 0
      %818 = vmatpush1.bf16.msra.mxu0 0
      %819 = vmatprep.subr.bf16.mxu0 0
      %820 = vmatpush1.bf16.msra.mxu0 0
      %821 = vmatprep.mubr.bf16.mxu0 0
      %822 = vmatmul.mubr.bf16.gmra.mrb[0].mxu0 %v610
      %v823 = vpop.f32.mrb[0].mxu0
      %v824 = vadd.f32 %v649, %v823
      %v825 = vpop.f32.mrb[0].mxu0
      %v826 = vadd.f32 %v653, %v825
      %v827 = vpop.f32.mrb[0].mxu0
      %v828 = vadd.f32 %v649, %v827
      %v829 = vpop.f32.mrb[0].mxu0
      %v830 = vadd.f32 %v653, %v829
      %831 = vmatprep.mubr.bf16.mxu0 0
      %832 = vmatmul.mubr.bf16.gmra.mrb[0].mxu0 %v611
      %v833 = vpop.f32.mrb[0].mxu0
      %v834 = vadd.f32 %v649, %v833
      %v835 = vpop.f32.mrb[0].mxu0
      %v836 = vadd.f32 %v653, %v835
      %v837 = vpop.f32.mrb[0].mxu0
      %v838 = vpop.f32.mrb[0].mxu0
      %839 = vdwg.mxu0
      %840 = vmatprep.subr.bf16.mxu0 0
      %841 = vmatpush1.bf16.msra.mxu0 %v743
      %842 = vmatprep.subr.bf16.mxu0 0
      %843 = vmatpush1.bf16.msra.mxu0 %v746
      %844 = vmatprep.subr.bf16.mxu0 0
      %845 = vmatpush1.bf16.msra.mxu0 %v749
      %846 = vmatprep.subr.bf16.mxu0 0
      %847 = vmatpush1.bf16.msra.mxu0 %v752
      %848 = vmatprep.subr.bf16.mxu0 0
      %849 = vmatpush1.bf16.msra.mxu0 %v755
      %850 = vmatprep.subr.bf16.mxu0 0
      %851 = vmatpush1.bf16.msra.mxu0 %v758
      %852 = vmatprep.subr.bf16.mxu0 0
      %853 = vmatpush1.bf16.msra.mxu0 %v761
      %854 = vmatprep.subr.bf16.mxu0 0
      %855 = vmatpush1.bf16.msra.mxu0 %v764
      %856 = vmatprep.subr.bf16.mxu0 0
      %857 = vmatpush1.bf16.msra.mxu0 0
      %858 = vmatprep.subr.bf16.mxu0 0
      %859 = vmatpush1.bf16.msra.mxu0 0
      %860 = vmatprep.subr.bf16.mxu0 0
      %861 = vmatpush1.bf16.msra.mxu0 0
      %862 = vmatprep.subr.bf16.mxu0 0
      %863 = vmatpush1.bf16.msra.mxu0 0
      %864 = vmatprep.subr.bf16.mxu0 0
      %865 = vmatpush1.bf16.msra.mxu0 0
      %866 = vmatprep.subr.bf16.mxu0 0
      %867 = vmatpush1.bf16.msra.mxu0 0
      %868 = vmatprep.subr.bf16.mxu0 0
      %869 = vmatpush1.bf16.msra.mxu0 0
      %870 = vmatprep.subr.bf16.mxu0 0
      %871 = vmatpush1.bf16.msra.mxu0 0
      %872 = vmatprep.mubr.bf16.mxu0 0
      %873 = vmatmul.mubr.bf16.gmra.mrb[0].mxu0 %v610
      %v874 = vpop.f32.mrb[0].mxu0
      %v875 = vadd.f32 %v657, %v874
      %v876 = vpop.f32.mrb[0].mxu0
      %v877 = vpop.f32.mrb[0].mxu0
      %v878 = vadd.f32 %v657, %v877
      %v879 = vpop.f32.mrb[0].mxu0
      %880 = vmatprep.mubr.bf16.mxu0 0
      %881 = vmatmul.mubr.bf16.gmra.mrb[0].mxu0 %v611
      %v882 = vpop.f32.mrb[0].mxu0
      %v883 = vadd.f32 %v657, %v882
      %v884 = vpop.f32.mrb[0].mxu0
      %v885 = vpop.f32.mrb[0].mxu0
      %v886 = vpop.f32.mrb[0].mxu0
      %887 = vdwg.mxu0
      %s888 = scalar_lea.vmem %s0, %s28
      %v889 = vld [vmem:[%s888] sm:$0x1]
      %v890 = vld [vmem:[%s1] sm:$0xf]
      %v891 = vld [vmem:[%s2] sm:$0xf]
      %v892 = vlaneseq
      %v893 = vshrl.u32 %v892, 7
      %v894 = vsub.s32 0, %v893
      %v895 = vrot.slane %v889, %v894
      %v896 = vmul.f32 %v895, %v890
      %v897 = vmul.f32 %v896, %v896
      %vm898 = vcmask 1043456
      %v899 = vsel %vm898, %v897, 0.0
      %900 = vadd.xlane.f32.xlu0 %v899
      %v901 = vpop.xlane.xlu0 %900
      %v902 = vrsqrt.pop %v901
      %v903 = vmul.f32 %v901, %v902
      %vm904 = vcmp.eq.f32.partialorder %v901, inf
      %v905 = vsel %vm904, %v901, %v903
      %vm906 = vcmp.eq.f32.partialorder %v901, 0.0
      %v907 = vand.u32 %v901, 2147483648
      %v908 = vsel %vm906, %v907, %v905
      %v909 = vmax.f32 %v908, 1e-12
      %v910 = vrcp.pop %v909
      %v911 = vmul.f32 %v896, %v910
      %v912 = vmul.f32 %v911, %v891
      %v913 = vsel %vm898, %v912, 0.0
      %914 = vadd.xlane.f32.xlu0 %v913
      %v915 = vpop.xlane.xlu0 %914
      %v916 = vld [vmem:[%s3] sm:$0xff]
      %v917 = vunpack.c.l.bf16 %v916
      %v918 = vunpack.c.h.bf16 %v916
      %v921 = vcombine.high %v917, %v917
      %v922 = vcombine.high %v918, %v918
      %v925 = vmul.f32 %v915, %v917
      %v926 = vmul.f32 %v915, %v921
      %v927 = vmul.f32 %v915, %v918
      %v928 = vmul.f32 %v915, %v922
      %v929 = vsel %vm898, %v925, 0.0
      %v930 = vrot.slane %v929, 4
      %v931 = vadd.f32 %v929, %v930
      %v932 = vrot.slane %v931, 2
      %v933 = vadd.f32 %v931, %v932
      %v934 = vrot.slane %v933, 1
      %v935 = vadd.f32 %v933, %v934
      %v936 = vsel %vm898, %v926, 0.0
      %v937 = vrot.slane %v936, 4
      %v938 = vadd.f32 %v936, %v937
      %v939 = vrot.slane %v938, 2
      %v940 = vadd.f32 %v938, %v939
      %v941 = vrot.slane %v940, 1
      %v942 = vadd.f32 %v940, %v941
      %v943 = vsel %vm898, %v927, 0.0
      %v944 = vrot.slane %v943, 4
      %v945 = vadd.f32 %v943, %v944
      %v946 = vrot.slane %v945, 2
      %v947 = vadd.f32 %v945, %v946
      %v948 = vrot.slane %v947, 1
      %v949 = vadd.f32 %v947, %v948
      %v950 = vsel %vm898, %v928, 0.0
      %v951 = vrot.slane %v950, 4
      %v952 = vadd.f32 %v950, %v951
      %v953 = vrot.slane %v952, 2
      %v954 = vadd.f32 %v952, %v953
      %v955 = vrot.slane %v954, 1
      %v956 = vadd.f32 %v954, %v955
      %vm957 = vcmask 1040384
      %v958 = vsel %vm957, %v935, %v942
      %vm959 = vcmask 1041408
      %v960 = vsel %vm959, %v958, 0.0
      %v961 = vpack.c.bf16 %v830, %v826
      %v962 = vpack.c.bf16 %v960, %v836
      %v963 = vpack.c.bf16 0.0, 0.0
      %v964 = vsel %vm957, %v949, %v956
      %v965 = vsel %vm959, %v964, 0.0
      %v966 = vpack.c.bf16 %v878, %v875
      %v967 = vpack.c.bf16 %v965, %v883
      %v968 = vpack.c.bf16 %v828, %v824
      %v969 = vpack.c.bf16 %v834, %v834
      %v970 = vlaneseq
      %v971 = vand.u32 %v970, 127
      %vm972 = vcmp.lt.s32.totalorder %v971, 17
      %vm973 = vcmp.ge.s32.totalorder %v971, 24
      %vm974 = vcmp.lt.s32.totalorder %v971, 26
      %vm975 = vmand %vm973, %vm974
      %vm976 = vmor %vm972, %vm975
      %v977 = vsel %vm976, 0.0, -1e+30
      %vm978 = vcmask 261120
      %v980 = vsel %vm978, %v968, 0
      %v983 = vsel %vm978, %v969, 0
      %v986 = vsel %vm978, %v961, 0
      %v989 = vsel %vm978, %v962, 0
      %v992 = vsel %vm978, %v963, 0
      %994 = vmatprep.subr.bf16.mxu0 0
      %995 = vmatpush1.bf16.xpose.msra.mxu0 %v986
      %996 = vmatprep.subr.bf16.mxu0 0
      %997 = vmatpush1.bf16.xpose.msra.mxu0 %v989
      %998 = vmatprep.subr.bf16.mxu0 0
      %999 = vmatpush1.bf16.xpose.msra.mxu0 %v992
      %1000 = vmatprep.subr.bf16.mxu0 0
      %1001 = vmatpush1.bf16.xpose.msra.mxu0 %v992
      %1002 = vmatprep.subr.bf16.mxu0 0
      %1003 = vmatpush1.bf16.xpose.msra.mxu0 %v992
      %1004 = vmatprep.subr.bf16.mxu0 0
      %1005 = vmatpush1.bf16.xpose.msra.mxu0 %v992
      %1006 = vmatprep.subr.bf16.mxu0 0
      %1007 = vmatpush1.bf16.xpose.msra.mxu0 %v992
      %1008 = vmatprep.subr.bf16.mxu0 0
      %1009 = vmatpush1.bf16.xpose.msra.mxu0 %v992
      %1010 = vmatprep.subr.bf16.mxu0 0
      %1011 = vmatpush1.bf16.xpose.msra.mxu0 0
      %1012 = vmatprep.subr.bf16.mxu0 0
      %1013 = vmatpush1.bf16.xpose.msra.mxu0 0
      %1014 = vmatprep.subr.bf16.mxu0 0
      %1015 = vmatpush1.bf16.xpose.msra.mxu0 0
      %1016 = vmatprep.subr.bf16.mxu0 0
      %1017 = vmatpush1.bf16.xpose.msra.mxu0 0
      %1018 = vmatprep.subr.bf16.mxu0 0
      %1019 = vmatpush1.bf16.xpose.msra.mxu0 0
      %1020 = vmatprep.subr.bf16.mxu0 0
      %1021 = vmatpush1.bf16.xpose.msra.mxu0 0
      %1022 = vmatprep.subr.bf16.mxu0 0
      %1023 = vmatpush1.bf16.xpose.msra.mxu0 0
      %1024 = vmatprep.subr.bf16.mxu0 0
      %1025 = vmatpush1.bf16.xpose.msra.mxu0 0
      %1026 = vmatprep.mubr.bf16.mxu0 0
      %1027 = vmatmul.mubr.bf16.gmra.mrb[0].mxu0 %v980
      %v1028 = vpop.f32.mrb[0].mxu0
      %v1029 = vadd.f32 0.0, %v1028
      %v1030 = vpop.f32.mrb[0].mxu0
      %v1031 = vpop.f32.mrb[0].mxu0
      %v1032 = vadd.f32 0.0, %v1031
      %v1033 = vpop.f32.mrb[0].mxu0
      %1034 = vmatprep.mubr.bf16.mxu0 0
      %1035 = vmatmul.mubr.bf16.gmra.mrb[0].mxu0 %v983
      %v1036 = vpop.f32.mrb[0].mxu0
      %v1037 = vadd.f32 0.0, %v1036
      %v1038 = vpop.f32.mrb[0].mxu0
      %v1039 = vpop.f32.mrb[0].mxu0
      %v1040 = vpop.f32.mrb[0].mxu0
      %1041 = vdwg.mxu0
      %v1042 = vmul.f32 %v1029, 0.17677669
      %v1043 = vmul.f32 %v1032, 0.17677669
      %v1044 = vmul.f32 %v1037, 0.17677669
      %v1045 = vadd.f32 %v1042, %v977
      %v1046 = vadd.f32 %v1043, %v977
      %v1047 = vadd.f32 %v1044, %v977
      %1048 = vmax.xlane.f32.xlu0 %v1045
      %v1049 = vpop.xlane.xlu0 %1048
      %1050 = vmax.xlane.f32.xlu0 %v1046
      %v1051 = vpop.xlane.xlu0 %1050
      %1052 = vmax.xlane.f32.xlu0 %v1047
      %v1053 = vpop.xlane.xlu0 %1052
      %v1054 = vsub.f32 %v1045, %v1049
      %v1055 = vsub.f32 %v1046, %v1051
      %v1056 = vsub.f32 %v1047, %v1053
      %v1057 = vmul.f32 %v1054, 1.442695
      %v1058 = vpow.pop %v1057
      %v1059 = vmul.f32 %v1055, 1.442695
      %v1060 = vpow.pop %v1059
      %v1061 = vmul.f32 %v1056, 1.442695
      %v1062 = vpow.pop %v1061
      %1063 = vadd.xlane.f32.xlu0 %v1058
      %v1064 = vpop.xlane.xlu0 %1063
      %1065 = vadd.xlane.f32.xlu0 %v1060
      %v1066 = vpop.xlane.xlu0 %1065
      %1067 = vadd.xlane.f32.xlu0 %v1062
      %v1068 = vpop.xlane.xlu0 %1067
      %v1069 = vpack.c.bf16 %v1060, %v1058
      %v1070 = vpack.c.bf16 %v1062, %v1062
      %1071 = vmatprep.subr.bf16.mxu0 0
      %1072 = vmatpush1.bf16.msra.mxu0 %v966
      %1073 = vmatprep.subr.bf16.mxu0 0
      %1074 = vmatpush1.bf16.msra.mxu0 %v967
      %1075 = vmatprep.subr.bf16.mxu0 0
      %1076 = vmatpush1.bf16.msra.mxu0 %v963
      %1077 = vmatprep.subr.bf16.mxu0 0
      %1078 = vmatpush1.bf16.msra.mxu0 %v963
      %1079 = vmatprep.subr.bf16.mxu0 0
      %1080 = vmatpush1.bf16.msra.mxu0 %v963
      %1081 = vmatprep.subr.bf16.mxu0 0
      %1082 = vmatpush1.bf16.msra.mxu0 %v963
      %1083 = vmatprep.subr.bf16.mxu0 0
      %1084 = vmatpush1.bf16.msra.mxu0 %v963
      %1085 = vmatprep.subr.bf16.mxu0 0
      %1086 = vmatpush1.bf16.msra.mxu0 %v963
      %1087 = vmatprep.subr.bf16.mxu0 0
      %1088 = vmatpush1.bf16.msra.mxu0 0
      %1089 = vmatprep.subr.bf16.mxu0 0
      %1090 = vmatpush1.bf16.msra.mxu0 0
      %1091 = vmatprep.subr.bf16.mxu0 0
      %1092 = vmatpush1.bf16.msra.mxu0 0
      %1093 = vmatprep.subr.bf16.mxu0 0
      %1094 = vmatpush1.bf16.msra.mxu0 0
      %1095 = vmatprep.subr.bf16.mxu0 0
      %1096 = vmatpush1.bf16.msra.mxu0 0
      %1097 = vmatprep.subr.bf16.mxu0 0
      %1098 = vmatpush1.bf16.msra.mxu0 0
      %1099 = vmatprep.subr.bf16.mxu0 0
      %1100 = vmatpush1.bf16.msra.mxu0 0
      %1101 = vmatprep.subr.bf16.mxu0 0
      %1102 = vmatpush1.bf16.msra.mxu0 0
      %1103 = vmatprep.mubr.bf16.mxu0 0
      %1104 = vmatmul.mubr.bf16.gmra.mrb[0].mxu0 %v1069
      %v1105 = vpop.f32.mrb[0].mxu0
      %v1106 = vadd.f32 0.0, %v1105
      %v1107 = vpop.f32.mrb[0].mxu0
      %v1108 = vpop.f32.mrb[0].mxu0
      %v1109 = vadd.f32 0.0, %v1108
      %v1110 = vpop.f32.mrb[0].mxu0
      %1111 = vmatprep.mubr.bf16.mxu0 0
      %1112 = vmatmul.mubr.bf16.gmra.mrb[0].mxu0 %v1070
      %v1113 = vpop.f32.mrb[0].mxu0
      %v1114 = vadd.f32 0.0, %v1113
      %v1115 = vpop.f32.mrb[0].mxu0
      %v1116 = vpop.f32.mrb[0].mxu0
      %v1117 = vpop.f32.mrb[0].mxu0
      %1118 = vdwg.mxu0
      %v1119 = vrcp.pop %v1064
      %v1120 = vrcp.pop %v1066
      %v1121 = vrcp.pop %v1068
      %v1122 = vmul.f32 %v1106, %v1119
      %v1123 = vmul.f32 %v1109, %v1120
      %v1124 = vmul.f32 %v1114, %v1121
      %v1125 = vpack.c.bf16 %v1123, %v1122
      %v1126 = vpack.c.bf16 %v1124, %v1124
      %1129 = vrot.lane.b32.xlu0 %v968, 96
      %v1130 = vpop.permute.xlu0 %1129
      %1131 = vrot.lane.b32.xlu0 %v969, 96
      %v1132 = vpop.permute.xlu0 %1131
      %1136 = vrot.lane.b32.xlu0 %v961, 96
      %v1137 = vpop.permute.xlu0 %1136
      %1138 = vrot.lane.b32.xlu0 %v962, 96
      %v1139 = vpop.permute.xlu0 %1138
      %1140 = vrot.lane.b32.xlu0 %v963, 96
      %v1141 = vpop.permute.xlu0 %1140
      %v1143 = vsel %vm978, %v1130, 0
      %v1146 = vsel %vm978, %v1132, 0
      %v1149 = vsel %vm978, %v1137, 0
      %v1152 = vsel %vm978, %v1139, 0
      %v1155 = vsel %vm978, %v1141, 0
      %1157 = vmatprep.subr.bf16.mxu0 0
      %1158 = vmatpush1.bf16.xpose.msra.mxu0 %v1149
      %1159 = vmatprep.subr.bf16.mxu0 0
      %1160 = vmatpush1.bf16.xpose.msra.mxu0 %v1152
      %1161 = vmatprep.subr.bf16.mxu0 0
      %1162 = vmatpush1.bf16.xpose.msra.mxu0 %v1155
      %1163 = vmatprep.subr.bf16.mxu0 0
      %1164 = vmatpush1.bf16.xpose.msra.mxu0 %v1155
      %1165 = vmatprep.subr.bf16.mxu0 0
      %1166 = vmatpush1.bf16.xpose.msra.mxu0 %v1155
      %1167 = vmatprep.subr.bf16.mxu0 0
      %1168 = vmatpush1.bf16.xpose.msra.mxu0 %v1155
      %1169 = vmatprep.subr.bf16.mxu0 0
      %1170 = vmatpush1.bf16.xpose.msra.mxu0 %v1155
      %1171 = vmatprep.subr.bf16.mxu0 0
      %1172 = vmatpush1.bf16.xpose.msra.mxu0 %v1155
      %1173 = vmatprep.subr.bf16.mxu0 0
      %1174 = vmatpush1.bf16.xpose.msra.mxu0 0
      %1175 = vmatprep.subr.bf16.mxu0 0
      %1176 = vmatpush1.bf16.xpose.msra.mxu0 0
      %1177 = vmatprep.subr.bf16.mxu0 0
      %1178 = vmatpush1.bf16.xpose.msra.mxu0 0
      %1179 = vmatprep.subr.bf16.mxu0 0
      %1180 = vmatpush1.bf16.xpose.msra.mxu0 0
      %1181 = vmatprep.subr.bf16.mxu0 0
      %1182 = vmatpush1.bf16.xpose.msra.mxu0 0
      %1183 = vmatprep.subr.bf16.mxu0 0
      %1184 = vmatpush1.bf16.xpose.msra.mxu0 0
      %1185 = vmatprep.subr.bf16.mxu0 0
      %1186 = vmatpush1.bf16.xpose.msra.mxu0 0
      %1187 = vmatprep.subr.bf16.mxu0 0
      %1188 = vmatpush1.bf16.xpose.msra.mxu0 0
      %1189 = vmatprep.mubr.bf16.mxu0 0
      %1190 = vmatmul.mubr.bf16.gmra.mrb[0].mxu0 %v1143
      %v1191 = vpop.f32.mrb[0].mxu0
      %v1192 = vadd.f32 0.0, %v1191
      %v1193 = vpop.f32.mrb[0].mxu0
      %v1194 = vpop.f32.mrb[0].mxu0
      %v1195 = vadd.f32 0.0, %v1194
      %v1196 = vpop.f32.mrb[0].mxu0
      %1197 = vmatprep.mubr.bf16.mxu0 0
      %1198 = vmatmul.mubr.bf16.gmra.mrb[0].mxu0 %v1146
      %v1199 = vpop.f32.mrb[0].mxu0
      %v1200 = vadd.f32 0.0, %v1199
      %v1201 = vpop.f32.mrb[0].mxu0
      %v1202 = vpop.f32.mrb[0].mxu0
      %v1203 = vpop.f32.mrb[0].mxu0
      %1204 = vdwg.mxu0
      %v1205 = vmul.f32 %v1192, 0.17677669
      %v1206 = vmul.f32 %v1195, 0.17677669
      %v1207 = vmul.f32 %v1200, 0.17677669
      %v1208 = vadd.f32 %v1205, %v977
      %v1209 = vadd.f32 %v1206, %v977
      %v1210 = vadd.f32 %v1207, %v977
      %1211 = vmax.xlane.f32.xlu0 %v1208
      %v1212 = vpop.xlane.xlu0 %1211
      %1213 = vmax.xlane.f32.xlu0 %v1209
      %v1214 = vpop.xlane.xlu0 %1213
      %1215 = vmax.xlane.f32.xlu0 %v1210
      %v1216 = vpop.xlane.xlu0 %1215
      %v1217 = vsub.f32 %v1208, %v1212
      %v1218 = vsub.f32 %v1209, %v1214
      %v1219 = vsub.f32 %v1210, %v1216
      %v1220 = vmul.f32 %v1217, 1.442695
      %v1221 = vpow.pop %v1220
      %v1222 = vmul.f32 %v1218, 1.442695
      %v1223 = vpow.pop %v1222
      %v1224 = vmul.f32 %v1219, 1.442695
      %v1225 = vpow.pop %v1224
      %1226 = vadd.xlane.f32.xlu0 %v1221
      %v1227 = vpop.xlane.xlu0 %1226
      %1228 = vadd.xlane.f32.xlu0 %v1223
      %v1229 = vpop.xlane.xlu0 %1228
      %1230 = vadd.xlane.f32.xlu0 %v1225
      %v1231 = vpop.xlane.xlu0 %1230
      %v1232 = vpack.c.bf16 %v1223, %v1221
      %v1233 = vpack.c.bf16 %v1225, %v1225
      %1236 = vrot.lane.b32.xlu0 %v966, 96
      %v1237 = vpop.permute.xlu0 %1236
      %1238 = vrot.lane.b32.xlu0 %v967, 96
      %v1239 = vpop.permute.xlu0 %1238
      %1243 = vmatprep.subr.bf16.mxu0 0
      %1244 = vmatpush1.bf16.msra.mxu0 %v1237
      %1245 = vmatprep.subr.bf16.mxu0 0
      %1246 = vmatpush1.bf16.msra.mxu0 %v1239
      %1247 = vmatprep.subr.bf16.mxu0 0
      %1248 = vmatpush1.bf16.msra.mxu0 %v1141
      %1249 = vmatprep.subr.bf16.mxu0 0
      %1250 = vmatpush1.bf16.msra.mxu0 %v1141
      %1251 = vmatprep.subr.bf16.mxu0 0
      %1252 = vmatpush1.bf16.msra.mxu0 %v1141
      %1253 = vmatprep.subr.bf16.mxu0 0
      %1254 = vmatpush1.bf16.msra.mxu0 %v1141
      %1255 = vmatprep.subr.bf16.mxu0 0
      %1256 = vmatpush1.bf16.msra.mxu0 %v1141
      %1257 = vmatprep.subr.bf16.mxu0 0
      %1258 = vmatpush1.bf16.msra.mxu0 %v1141
      %1259 = vmatprep.subr.bf16.mxu0 0
      %1260 = vmatpush1.bf16.msra.mxu0 0
      %1261 = vmatprep.subr.bf16.mxu0 0
      %1262 = vmatpush1.bf16.msra.mxu0 0
      %1263 = vmatprep.subr.bf16.mxu0 0
      %1264 = vmatpush1.bf16.msra.mxu0 0
      %1265 = vmatprep.subr.bf16.mxu0 0
      %1266 = vmatpush1.bf16.msra.mxu0 0
      %1267 = vmatprep.subr.bf16.mxu0 0
      %1268 = vmatpush1.bf16.msra.mxu0 0
      %1269 = vmatprep.subr.bf16.mxu0 0
      %1270 = vmatpush1.bf16.msra.mxu0 0
      %1271 = vmatprep.subr.bf16.mxu0 0
      %1272 = vmatpush1.bf16.msra.mxu0 0
      %1273 = vmatprep.subr.bf16.mxu0 0
      %1274 = vmatpush1.bf16.msra.mxu0 0
      %1275 = vmatprep.mubr.bf16.mxu0 0
      %1276 = vmatmul.mubr.bf16.gmra.mrb[0].mxu0 %v1232
      %v1277 = vpop.f32.mrb[0].mxu0
      %v1278 = vadd.f32 0.0, %v1277
      %v1279 = vpop.f32.mrb[0].mxu0
      %v1280 = vpop.f32.mrb[0].mxu0
      %v1281 = vadd.f32 0.0, %v1280
      %v1282 = vpop.f32.mrb[0].mxu0
      %1283 = vmatprep.mubr.bf16.mxu0 0
      %1284 = vmatmul.mubr.bf16.gmra.mrb[0].mxu0 %v1233
      %v1285 = vpop.f32.mrb[0].mxu0
      %v1286 = vadd.f32 0.0, %v1285
      %v1287 = vpop.f32.mrb[0].mxu0
      %v1288 = vpop.f32.mrb[0].mxu0
      %v1289 = vpop.f32.mrb[0].mxu0
      %1290 = vdwg.mxu0
      %v1291 = vrcp.pop %v1227
      %v1292 = vrcp.pop %v1229
      %v1293 = vrcp.pop %v1231
      %v1294 = vmul.f32 %v1278, %v1291
      %v1295 = vmul.f32 %v1281, %v1292
      %v1296 = vmul.f32 %v1286, %v1293
      %v1297 = vpack.c.bf16 %v1295, %v1294
      %v1298 = vpack.c.bf16 %v1296, %v1296
      %1299 = vrot.lane.b32.xlu0 %v968, 64
      %v1300 = vpop.permute.xlu0 %1299
      %1301 = vrot.lane.b32.xlu0 %v969, 64
      %v1302 = vpop.permute.xlu0 %1301
      %1303 = vrot.lane.b32.xlu0 %v961, 64
      %v1304 = vpop.permute.xlu0 %1303
      %1305 = vrot.lane.b32.xlu0 %v962, 64
      %v1306 = vpop.permute.xlu0 %1305
      %1307 = vrot.lane.b32.xlu0 %v963, 64
      %v1308 = vpop.permute.xlu0 %1307
      %v1310 = vsel %vm978, %v1300, 0
      %v1313 = vsel %vm978, %v1302, 0
      %v1316 = vsel %vm978, %v1304, 0
      %v1319 = vsel %vm978, %v1306, 0
      %v1322 = vsel %vm978, %v1308, 0
      %1324 = vmatprep.subr.bf16.mxu0 0
      %1325 = vmatpush1.bf16.xpose.msra.mxu0 %v1316
      %1326 = vmatprep.subr.bf16.mxu0 0
      %1327 = vmatpush1.bf16.xpose.msra.mxu0 %v1319
      %1328 = vmatprep.subr.bf16.mxu0 0
      %1329 = vmatpush1.bf16.xpose.msra.mxu0 %v1322
      %1330 = vmatprep.subr.bf16.mxu0 0
      %1331 = vmatpush1.bf16.xpose.msra.mxu0 %v1322
      %1332 = vmatprep.subr.bf16.mxu0 0
      %1333 = vmatpush1.bf16.xpose.msra.mxu0 %v1322
      %1334 = vmatprep.subr.bf16.mxu0 0
      %1335 = vmatpush1.bf16.xpose.msra.mxu0 %v1322
      %1336 = vmatprep.subr.bf16.mxu0 0
      %1337 = vmatpush1.bf16.xpose.msra.mxu0 %v1322
      %1338 = vmatprep.subr.bf16.mxu0 0
      %1339 = vmatpush1.bf16.xpose.msra.mxu0 %v1322
      %1340 = vmatprep.subr.bf16.mxu0 0
      %1341 = vmatpush1.bf16.xpose.msra.mxu0 0
      %1342 = vmatprep.subr.bf16.mxu0 0
      %1343 = vmatpush1.bf16.xpose.msra.mxu0 0
      %1344 = vmatprep.subr.bf16.mxu0 0
      %1345 = vmatpush1.bf16.xpose.msra.mxu0 0
      %1346 = vmatprep.subr.bf16.mxu0 0
      %1347 = vmatpush1.bf16.xpose.msra.mxu0 0
      %1348 = vmatprep.subr.bf16.mxu0 0
      %1349 = vmatpush1.bf16.xpose.msra.mxu0 0
      %1350 = vmatprep.subr.bf16.mxu0 0
      %1351 = vmatpush1.bf16.xpose.msra.mxu0 0
      %1352 = vmatprep.subr.bf16.mxu0 0
      %1353 = vmatpush1.bf16.xpose.msra.mxu0 0
      %1354 = vmatprep.subr.bf16.mxu0 0
      %1355 = vmatpush1.bf16.xpose.msra.mxu0 0
      %1356 = vmatprep.mubr.bf16.mxu0 0
      %1357 = vmatmul.mubr.bf16.gmra.mrb[0].mxu0 %v1310
      %v1358 = vpop.f32.mrb[0].mxu0
      %v1359 = vadd.f32 0.0, %v1358
      %v1360 = vpop.f32.mrb[0].mxu0
      %v1361 = vpop.f32.mrb[0].mxu0
      %v1362 = vadd.f32 0.0, %v1361
      %v1363 = vpop.f32.mrb[0].mxu0
      %1364 = vmatprep.mubr.bf16.mxu0 0
      %1365 = vmatmul.mubr.bf16.gmra.mrb[0].mxu0 %v1313
      %v1366 = vpop.f32.mrb[0].mxu0
      %v1367 = vadd.f32 0.0, %v1366
      %v1368 = vpop.f32.mrb[0].mxu0
      %v1369 = vpop.f32.mrb[0].mxu0
      %v1370 = vpop.f32.mrb[0].mxu0
      %1371 = vdwg.mxu0
      %v1372 = vmul.f32 %v1359, 0.17677669
      %v1373 = vmul.f32 %v1362, 0.17677669
      %v1374 = vmul.f32 %v1367, 0.17677669
      %v1375 = vadd.f32 %v1372, %v977
      %v1376 = vadd.f32 %v1373, %v977
      %v1377 = vadd.f32 %v1374, %v977
      %1378 = vmax.xlane.f32.xlu0 %v1375
      %v1379 = vpop.xlane.xlu0 %1378
      %1380 = vmax.xlane.f32.xlu0 %v1376
      %v1381 = vpop.xlane.xlu0 %1380
      %1382 = vmax.xlane.f32.xlu0 %v1377
      %v1383 = vpop.xlane.xlu0 %1382
      %v1384 = vsub.f32 %v1375, %v1379
      %v1385 = vsub.f32 %v1376, %v1381
      %v1386 = vsub.f32 %v1377, %v1383
      %v1387 = vmul.f32 %v1384, 1.442695
      %v1388 = vpow.pop %v1387
      %v1389 = vmul.f32 %v1385, 1.442695
      %v1390 = vpow.pop %v1389
      %v1391 = vmul.f32 %v1386, 1.442695
      %v1392 = vpow.pop %v1391
      %1393 = vadd.xlane.f32.xlu0 %v1388
      %v1394 = vpop.xlane.xlu0 %1393
      %1395 = vadd.xlane.f32.xlu0 %v1390
      %v1396 = vpop.xlane.xlu0 %1395
      %1397 = vadd.xlane.f32.xlu0 %v1392
      %v1398 = vpop.xlane.xlu0 %1397
      %v1399 = vpack.c.bf16 %v1390, %v1388
      %v1400 = vpack.c.bf16 %v1392, %v1392
      %1401 = vrot.lane.b32.xlu0 %v966, 64
      %v1402 = vpop.permute.xlu0 %1401
      %1403 = vrot.lane.b32.xlu0 %v967, 64
      %v1404 = vpop.permute.xlu0 %1403
      %1408 = vmatprep.subr.bf16.mxu0 0
      %1409 = vmatpush1.bf16.msra.mxu0 %v1402
      %1410 = vmatprep.subr.bf16.mxu0 0
      %1411 = vmatpush1.bf16.msra.mxu0 %v1404
      %1412 = vmatprep.subr.bf16.mxu0 0
      %1413 = vmatpush1.bf16.msra.mxu0 %v1308
      %1414 = vmatprep.subr.bf16.mxu0 0
      %1415 = vmatpush1.bf16.msra.mxu0 %v1308
      %1416 = vmatprep.subr.bf16.mxu0 0
      %1417 = vmatpush1.bf16.msra.mxu0 %v1308
      %1418 = vmatprep.subr.bf16.mxu0 0
      %1419 = vmatpush1.bf16.msra.mxu0 %v1308
      %1420 = vmatprep.subr.bf16.mxu0 0
      %1421 = vmatpush1.bf16.msra.mxu0 %v1308
      %1422 = vmatprep.subr.bf16.mxu0 0
      %1423 = vmatpush1.bf16.msra.mxu0 %v1308
      %1424 = vmatprep.subr.bf16.mxu0 0
      %1425 = vmatpush1.bf16.msra.mxu0 0
      %1426 = vmatprep.subr.bf16.mxu0 0
      %1427 = vmatpush1.bf16.msra.mxu0 0
      %1428 = vmatprep.subr.bf16.mxu0 0
      %1429 = vmatpush1.bf16.msra.mxu0 0
      %1430 = vmatprep.subr.bf16.mxu0 0
      %1431 = vmatpush1.bf16.msra.mxu0 0
      %1432 = vmatprep.subr.bf16.mxu0 0
      %1433 = vmatpush1.bf16.msra.mxu0 0
      %1434 = vmatprep.subr.bf16.mxu0 0
      %1435 = vmatpush1.bf16.msra.mxu0 0
      %1436 = vmatprep.subr.bf16.mxu0 0
      %1437 = vmatpush1.bf16.msra.mxu0 0
      %1438 = vmatprep.subr.bf16.mxu0 0
      %1439 = vmatpush1.bf16.msra.mxu0 0
      %1440 = vmatprep.mubr.bf16.mxu0 0
      %1441 = vmatmul.mubr.bf16.gmra.mrb[0].mxu0 %v1399
      %v1442 = vpop.f32.mrb[0].mxu0
      %v1443 = vadd.f32 0.0, %v1442
      %v1444 = vpop.f32.mrb[0].mxu0
      %v1445 = vpop.f32.mrb[0].mxu0
      %v1446 = vadd.f32 0.0, %v1445
      %v1447 = vpop.f32.mrb[0].mxu0
      %1448 = vmatprep.mubr.bf16.mxu0 0
      %1449 = vmatmul.mubr.bf16.gmra.mrb[0].mxu0 %v1400
      %v1450 = vpop.f32.mrb[0].mxu0
      %v1451 = vadd.f32 0.0, %v1450
      %v1452 = vpop.f32.mrb[0].mxu0
      %v1453 = vpop.f32.mrb[0].mxu0
      %v1454 = vpop.f32.mrb[0].mxu0
      %1455 = vdwg.mxu0
      %v1456 = vrcp.pop %v1394
      %v1457 = vrcp.pop %v1396
      %v1458 = vrcp.pop %v1398
      %v1459 = vmul.f32 %v1443, %v1456
      %v1460 = vmul.f32 %v1446, %v1457
      %v1461 = vmul.f32 %v1451, %v1458
      %v1462 = vpack.c.bf16 %v1460, %v1459
      %v1463 = vpack.c.bf16 %v1461, %v1461
      %1464 = vrot.lane.b32.xlu0 %v968, 32
      %v1465 = vpop.permute.xlu0 %1464
      %1466 = vrot.lane.b32.xlu0 %v969, 32
      %v1467 = vpop.permute.xlu0 %1466
      %1468 = vrot.lane.b32.xlu0 %v961, 32
      %v1469 = vpop.permute.xlu0 %1468
      %1470 = vrot.lane.b32.xlu0 %v962, 32
      %v1471 = vpop.permute.xlu0 %1470
      %1472 = vrot.lane.b32.xlu0 %v963, 32
      %v1473 = vpop.permute.xlu0 %1472
      %v1475 = vsel %vm978, %v1465, 0
      %v1478 = vsel %vm978, %v1467, 0
      %v1481 = vsel %vm978, %v1469, 0
      %v1484 = vsel %vm978, %v1471, 0
      %v1487 = vsel %vm978, %v1473, 0
      %1489 = vmatprep.subr.bf16.mxu0 0
      %1490 = vmatpush1.bf16.xpose.msra.mxu0 %v1481
      %1491 = vmatprep.subr.bf16.mxu0 0
      %1492 = vmatpush1.bf16.xpose.msra.mxu0 %v1484
      %1493 = vmatprep.subr.bf16.mxu0 0
      %1494 = vmatpush1.bf16.xpose.msra.mxu0 %v1487
      %1495 = vmatprep.subr.bf16.mxu0 0
      %1496 = vmatpush1.bf16.xpose.msra.mxu0 %v1487
      %1497 = vmatprep.subr.bf16.mxu0 0
      %1498 = vmatpush1.bf16.xpose.msra.mxu0 %v1487
      %1499 = vmatprep.subr.bf16.mxu0 0
      %1500 = vmatpush1.bf16.xpose.msra.mxu0 %v1487
      %1501 = vmatprep.subr.bf16.mxu0 0
      %1502 = vmatpush1.bf16.xpose.msra.mxu0 %v1487
      %1503 = vmatprep.subr.bf16.mxu0 0
      %1504 = vmatpush1.bf16.xpose.msra.mxu0 %v1487
      %1505 = vmatprep.subr.bf16.mxu0 0
      %1506 = vmatpush1.bf16.xpose.msra.mxu0 0
      %1507 = vmatprep.subr.bf16.mxu0 0
      %1508 = vmatpush1.bf16.xpose.msra.mxu0 0
      %1509 = vmatprep.subr.bf16.mxu0 0
      %1510 = vmatpush1.bf16.xpose.msra.mxu0 0
      %1511 = vmatprep.subr.bf16.mxu0 0
      %1512 = vmatpush1.bf16.xpose.msra.mxu0 0
      %1513 = vmatprep.subr.bf16.mxu0 0
      %1514 = vmatpush1.bf16.xpose.msra.mxu0 0
      %1515 = vmatprep.subr.bf16.mxu0 0
      %1516 = vmatpush1.bf16.xpose.msra.mxu0 0
      %1517 = vmatprep.subr.bf16.mxu0 0
      %1518 = vmatpush1.bf16.xpose.msra.mxu0 0
      %1519 = vmatprep.subr.bf16.mxu0 0
      %1520 = vmatpush1.bf16.xpose.msra.mxu0 0
      %1521 = vmatprep.mubr.bf16.mxu0 0
      %1522 = vmatmul.mubr.bf16.gmra.mrb[0].mxu0 %v1475
      %v1523 = vpop.f32.mrb[0].mxu0
      %v1524 = vadd.f32 0.0, %v1523
      %v1525 = vpop.f32.mrb[0].mxu0
      %v1526 = vpop.f32.mrb[0].mxu0
      %v1527 = vadd.f32 0.0, %v1526
      %v1528 = vpop.f32.mrb[0].mxu0
      %1529 = vmatprep.mubr.bf16.mxu0 0
      %1530 = vmatmul.mubr.bf16.gmra.mrb[0].mxu0 %v1478
      %v1531 = vpop.f32.mrb[0].mxu0
      %v1532 = vadd.f32 0.0, %v1531
      %v1533 = vpop.f32.mrb[0].mxu0
      %v1534 = vpop.f32.mrb[0].mxu0
      %v1535 = vpop.f32.mrb[0].mxu0
      %1536 = vdwg.mxu0
      %v1537 = vmul.f32 %v1524, 0.17677669
      %v1538 = vmul.f32 %v1527, 0.17677669
      %v1539 = vmul.f32 %v1532, 0.17677669
      %v1540 = vadd.f32 %v1537, %v977
      %v1541 = vadd.f32 %v1538, %v977
      %v1542 = vadd.f32 %v1539, %v977
      %1543 = vmax.xlane.f32.xlu0 %v1540
      %v1544 = vpop.xlane.xlu0 %1543
      %1545 = vmax.xlane.f32.xlu0 %v1541
      %v1546 = vpop.xlane.xlu0 %1545
      %1547 = vmax.xlane.f32.xlu0 %v1542
      %v1548 = vpop.xlane.xlu0 %1547
      %v1549 = vsub.f32 %v1540, %v1544
      %v1550 = vsub.f32 %v1541, %v1546
      %v1551 = vsub.f32 %v1542, %v1548
      %v1552 = vmul.f32 %v1549, 1.442695
      %v1553 = vpow.pop %v1552
      %v1554 = vmul.f32 %v1550, 1.442695
      %v1555 = vpow.pop %v1554
      %v1556 = vmul.f32 %v1551, 1.442695
      %v1557 = vpow.pop %v1556
      %1558 = vadd.xlane.f32.xlu0 %v1553
      %v1559 = vpop.xlane.xlu0 %1558
      %1560 = vadd.xlane.f32.xlu0 %v1555
      %v1561 = vpop.xlane.xlu0 %1560
      %1562 = vadd.xlane.f32.xlu0 %v1557
      %v1563 = vpop.xlane.xlu0 %1562
      %v1564 = vpack.c.bf16 %v1555, %v1553
      %v1565 = vpack.c.bf16 %v1557, %v1557
      %1566 = vrot.lane.b32.xlu0 %v966, 32
      %v1567 = vpop.permute.xlu0 %1566
      %1568 = vrot.lane.b32.xlu0 %v967, 32
      %v1569 = vpop.permute.xlu0 %1568
      %1573 = vmatprep.subr.bf16.mxu0 0
      %1574 = vmatpush1.bf16.msra.mxu0 %v1567
      %1575 = vmatprep.subr.bf16.mxu0 0
      %1576 = vmatpush1.bf16.msra.mxu0 %v1569
      %1577 = vmatprep.subr.bf16.mxu0 0
      %1578 = vmatpush1.bf16.msra.mxu0 %v1473
      %1579 = vmatprep.subr.bf16.mxu0 0
      %1580 = vmatpush1.bf16.msra.mxu0 %v1473
      %1581 = vmatprep.subr.bf16.mxu0 0
      %1582 = vmatpush1.bf16.msra.mxu0 %v1473
      %1583 = vmatprep.subr.bf16.mxu0 0
      %1584 = vmatpush1.bf16.msra.mxu0 %v1473
      %1585 = vmatprep.subr.bf16.mxu0 0
      %1586 = vmatpush1.bf16.msra.mxu0 %v1473
      %1587 = vmatprep.subr.bf16.mxu0 0
      %1588 = vmatpush1.bf16.msra.mxu0 %v1473
      %1589 = vmatprep.subr.bf16.mxu0 0
      %1590 = vmatpush1.bf16.msra.mxu0 0
      %1591 = vmatprep.subr.bf16.mxu0 0
      %1592 = vmatpush1.bf16.msra.mxu0 0
      %1593 = vmatprep.subr.bf16.mxu0 0
      %1594 = vmatpush1.bf16.msra.mxu0 0
      %1595 = vmatprep.subr.bf16.mxu0 0
      %1596 = vmatpush1.bf16.msra.mxu0 0
      %1597 = vmatprep.subr.bf16.mxu0 0
      %1598 = vmatpush1.bf16.msra.mxu0 0
      %1599 = vmatprep.subr.bf16.mxu0 0
      %1600 = vmatpush1.bf16.msra.mxu0 0
      %1601 = vmatprep.subr.bf16.mxu0 0
      %1602 = vmatpush1.bf16.msra.mxu0 0
      %1603 = vmatprep.subr.bf16.mxu0 0
      %1604 = vmatpush1.bf16.msra.mxu0 0
      %1605 = vmatprep.mubr.bf16.mxu0 0
      %1606 = vmatmul.mubr.bf16.gmra.mrb[0].mxu0 %v1564
      %v1607 = vpop.f32.mrb[0].mxu0
      %v1608 = vadd.f32 0.0, %v1607
      %v1609 = vpop.f32.mrb[0].mxu0
      %v1610 = vpop.f32.mrb[0].mxu0
      %v1611 = vadd.f32 0.0, %v1610
      %v1612 = vpop.f32.mrb[0].mxu0
      %1613 = vmatprep.mubr.bf16.mxu0 0
      %1614 = vmatmul.mubr.bf16.gmra.mrb[0].mxu0 %v1565
      %v1615 = vpop.f32.mrb[0].mxu0
      %v1616 = vadd.f32 0.0, %v1615
      %v1617 = vpop.f32.mrb[0].mxu0
      %v1618 = vpop.f32.mrb[0].mxu0
      %v1619 = vpop.f32.mrb[0].mxu0
      %1620 = vdwg.mxu0
      %v1621 = vrcp.pop %v1559
      %v1622 = vrcp.pop %v1561
      %v1623 = vrcp.pop %v1563
      %v1624 = vmul.f32 %v1608, %v1621
      %v1625 = vmul.f32 %v1611, %v1622
      %v1626 = vmul.f32 %v1616, %v1623
      %v1627 = vpack.c.bf16 %v1625, %v1624
      %v1628 = vpack.c.bf16 %v1626, %v1626
      %1631 = vrot.lane.b32.xlu0 %v1297, 32
      %v1632 = vpop.permute.xlu0 %1631
      %1633 = vrot.lane.b32.xlu0 %v1298, 32
      %v1634 = vpop.permute.xlu0 %1633
      %1637 = vrot.lane.b32.xlu0 %v1462, 64
      %v1638 = vpop.permute.xlu0 %1637
      %1639 = vrot.lane.b32.xlu0 %v1463, 64
      %v1640 = vpop.permute.xlu0 %1639
      %1643 = vrot.lane.b32.xlu0 %v1627, 96
      %v1644 = vpop.permute.xlu0 %1643
      %1645 = vrot.lane.b32.xlu0 %v1628, 96
      %v1646 = vpop.permute.xlu0 %1645
      %v1649 = vsel %vm978, %v1125, %v1632
      %v1652 = vsel %vm978, %v1126, %v1634
      %vm1653 = vcmask 523264
      %v1655 = vsel %vm1653, %v1649, %v1638
      %v1657 = vsel %vm1653, %v1652, %v1640
      %vm1658 = vcmask 785408
      %v1660 = vsel %vm1658, %v1655, %v1644
      %v1663 = vsel %vm1658, %v1657, %v1646
      %v1665 = vld [vmem:[%s9] sm:$0xf]
      %v1666 = vld [vmem:[%s9 + $0x4] sm:$0xf]
      %v1667 = vld [vmem:[%s9 + $0x8] sm:$0xf]
      %v1668 = vld [vmem:[%s9 + $0xc] sm:$0xf]
      %v1669 = vld [vmem:[%s9 + $0x10] sm:$0xf]
      %v1670 = vld [vmem:[%s9 + $0x14] sm:$0xf]
      %v1671 = vld [vmem:[%s9 + $0x18] sm:$0xf]
      %v1672 = vld [vmem:[%s9 + $0x1c] sm:$0xf]
      %v1673 = vld [vmem:[%s9 + $0x20] sm:$0xf]
      %v1674 = vld [vmem:[%s9 + $0x24] sm:$0xf]
      %v1675 = vld [vmem:[%s9 + $0x28] sm:$0xf]
      %v1676 = vld [vmem:[%s9 + $0x2c] sm:$0xf]
      %v1677 = vld [vmem:[%s9 + $0x30] sm:$0xf]
      %v1678 = vld [vmem:[%s9 + $0x34] sm:$0xf]
      %v1679 = vld [vmem:[%s9 + $0x38] sm:$0xf]
      %v1680 = vld [vmem:[%s9 + $0x3c] sm:$0xf]
      %v1697 = vunpack.c.l.b16 %v1665
      %v1698 = vunpack.c.l.b16 %v1666
      %v1699 = vunpack.c.l.b16 %v1667
      %v1700 = vunpack.c.l.b16 %v1668
      %v1701 = vunpack.c.l.b16 %v1669
      %v1702 = vunpack.c.l.b16 %v1670
      %v1703 = vunpack.c.l.b16 %v1671
      %v1704 = vunpack.c.l.b16 %v1672
      %v1705 = vunpack.c.l.b16 %v1673
      %v1706 = vunpack.c.l.b16 %v1674
      %v1707 = vunpack.c.l.b16 %v1675
      %v1708 = vunpack.c.l.b16 %v1676
      %v1709 = vunpack.c.l.b16 %v1677
      %v1710 = vunpack.c.l.b16 %v1678
      %v1711 = vunpack.c.l.b16 %v1679
      %v1712 = vunpack.c.l.b16 %v1680
      %v1713 = vpack.c.b16 %v1698, %v1697
      %v1714 = vpack.c.b16 %v1700, %v1699
      %v1715 = vpack.c.b16 %v1702, %v1701
      %v1716 = vpack.c.b16 %v1704, %v1703
      %v1717 = vpack.c.b16 %v1706, %v1705
      %v1718 = vpack.c.b16 %v1708, %v1707
      %v1719 = vpack.c.b16 %v1710, %v1709
      %v1720 = vpack.c.b16 %v1712, %v1711
      %1729 = vmatprep.subr.bf16.mxu0 0
      %1730 = vmatpush1.bf16.msra.mxu0 %v1713
      %1731 = vmatprep.subr.bf16.mxu0 0
      %1732 = vmatpush1.bf16.msra.mxu0 %v1714
      %1733 = vmatprep.subr.bf16.mxu0 0
      %1734 = vmatpush1.bf16.msra.mxu0 %v1715
      %1735 = vmatprep.subr.bf16.mxu0 0
      %1736 = vmatpush1.bf16.msra.mxu0 %v1716
      %1737 = vmatprep.subr.bf16.mxu0 0
      %1738 = vmatpush1.bf16.msra.mxu0 %v1717
      %1739 = vmatprep.subr.bf16.mxu0 0
      %1740 = vmatpush1.bf16.msra.mxu0 %v1718
      %1741 = vmatprep.subr.bf16.mxu0 0
      %1742 = vmatpush1.bf16.msra.mxu0 %v1719
      %1743 = vmatprep.subr.bf16.mxu0 0
      %1744 = vmatpush1.bf16.msra.mxu0 %v1720
      %1745 = vmatprep.subr.bf16.mxu0 0
      %1746 = vmatpush1.bf16.msra.mxu0 0
      %1747 = vmatprep.subr.bf16.mxu0 0
      %1748 = vmatpush1.bf16.msra.mxu0 0
      %1749 = vmatprep.subr.bf16.mxu0 0
      %1750 = vmatpush1.bf16.msra.mxu0 0
      %1751 = vmatprep.subr.bf16.mxu0 0
      %1752 = vmatpush1.bf16.msra.mxu0 0
      %1753 = vmatprep.subr.bf16.mxu0 0
      %1754 = vmatpush1.bf16.msra.mxu0 0
      %1755 = vmatprep.subr.bf16.mxu0 0
      %1756 = vmatpush1.bf16.msra.mxu0 0
      %1757 = vmatprep.subr.bf16.mxu0 0
      %1758 = vmatpush1.bf16.msra.mxu0 0
      %1759 = vmatprep.subr.bf16.mxu0 0
      %1760 = vmatpush1.bf16.msra.mxu0 0
      %1761 = vmatprep.mubr.bf16.mxu0 0
      %1762 = vmatmul.mubr.bf16.gmra.mrb[0].mxu0 %v1660
      %v1763 = vpop.f32.mrb[0].mxu0
      %v1764 = vadd.f32 0.0, %v1763
      %v1765 = vpop.f32.mrb[0].mxu0
      %v1766 = vpop.f32.mrb[0].mxu0
      %v1767 = vadd.f32 0.0, %v1766
      %v1768 = vpop.f32.mrb[0].mxu0
      %1769 = vmatprep.mubr.bf16.mxu0 0
      %1770 = vmatmul.mubr.bf16.gmra.mrb[0].mxu0 %v1663
      %v1771 = vpop.f32.mrb[0].mxu0
      %v1772 = vadd.f32 0.0, %v1771
      %v1773 = vpop.f32.mrb[0].mxu0
      %v1774 = vpop.f32.mrb[0].mxu0
      %v1775 = vpop.f32.mrb[0].mxu0
      %1776 = vdwg.mxu0
      %v1777 = vadd.f32 %v553, %v1764
      %v1778 = vadd.f32 %v554, %v1767
      %v1779 = vadd.f32 %v555, %v1772
      %v1780 = vld [vmem:[%s10] sm:$0x1]
      %v1782 = vlaneseq
      %v1783 = vshrl.u32 %v1782, 7
      %v1784 = vsub.s32 0, %v1783
      %v1785 = vrot.slane %v1780, %v1784
      %v1787 = vadd.f32 %v1777, %v1785
      %v1788 = vadd.f32 %v1778, %v1785
      %v1789 = vadd.f32 %v1779, %v1785
      %v1790 = vld [vmem:[%s11] sm:$0x1]
      %v1791 = vld [vmem:[%s12] sm:$0x1]
      %1792 = vadd.xlane.f32.xlu0 %v1787
      %v1793 = vpop.xlane.xlu0 %1792
      %1794 = vadd.xlane.f32.xlu0 %v1788
      %v1795 = vpop.xlane.xlu0 %1794
      %1796 = vadd.xlane.f32.xlu0 %v1789
      %v1797 = vpop.xlane.xlu0 %1796
      %v1798 = vmul.f32 %v1793, %v564
      %v1799 = vmul.f32 %v1795, %v564
      %v1800 = vmul.f32 %v1797, %v564
      %v1801 = vsub.f32 %v1787, %v1798
      %v1802 = vsub.f32 %v1788, %v1799
      %v1803 = vsub.f32 %v1789, %v1800
      %v1804 = vmul.f32 %v1801, %v1801
      %v1805 = vmul.f32 %v1802, %v1802
      %v1806 = vmul.f32 %v1803, %v1803
      %1807 = vadd.xlane.f32.xlu0 %v1804
      %v1808 = vpop.xlane.xlu0 %1807
      %1809 = vadd.xlane.f32.xlu0 %v1805
      %v1810 = vpop.xlane.xlu0 %1809
      %1811 = vadd.xlane.f32.xlu0 %v1806
      %v1812 = vpop.xlane.xlu0 %1811
      %v1813 = vmul.f32 %v1808, %v564
      %v1814 = vmul.f32 %v1810, %v564
      %v1815 = vmul.f32 %v1812, %v564
      %v1816 = vadd.f32 %v1813, 1e-06
      %v1817 = vadd.f32 %v1814, 1e-06
      %v1818 = vadd.f32 %v1815, 1e-06
      %v1819 = vrsqrt.pop %v1816
      %v1820 = vrsqrt.pop %v1817
      %v1821 = vrsqrt.pop %v1818
      %v1822 = vmul.f32 %v1801, %v1819
      %v1823 = vmul.f32 %v1802, %v1820
      %v1824 = vmul.f32 %v1803, %v1821
      %v1826 = vlaneseq
      %v1827 = vshrl.u32 %v1826, 7
      %v1828 = vsub.s32 0, %v1827
      %v1829 = vrot.slane %v1790, %v1828
      %v1831 = vmul.f32 %v1822, %v1829
      %v1832 = vmul.f32 %v1823, %v1829
      %v1833 = vmul.f32 %v1824, %v1829
      %v1835 = vlaneseq
      %v1836 = vshrl.u32 %v1835, 7
      %v1837 = vsub.s32 0, %v1836
      %v1838 = vrot.slane %v1791, %v1837
      %v1840 = vadd.f32 %v1831, %v1838
      %v1841 = vadd.f32 %v1832, %v1838
      %v1842 = vadd.f32 %v1833, %v1838
      %v1843 = vpack.c.bf16 %v1841, %v1840
      %v1844 = vpack.c.bf16 %v1842, %v1842
      %v1845 = vld [vmem:[%s13] sm:$0xff]
      %v1846 = vld [vmem:[%s13 + $0x8] sm:$0xff]
      %v1847 = vld [vmem:[%s13 + $0x10] sm:$0xff]
      %v1848 = vld [vmem:[%s13 + $0x18] sm:$0xff]
      %v1849 = vld [vmem:[%s13 + $0x20] sm:$0xff]
      %v1850 = vld [vmem:[%s13 + $0x28] sm:$0xff]
      %v1851 = vld [vmem:[%s13 + $0x30] sm:$0xff]
      %v1852 = vld [vmem:[%s13 + $0x38] sm:$0xff]
      %v1853 = vld [vmem:[%s13 + $0x40] sm:$0xff]
      %v1854 = vld [vmem:[%s13 + $0x48] sm:$0xff]
      %v1855 = vld [vmem:[%s13 + $0x50] sm:$0xff]
      %v1856 = vld [vmem:[%s13 + $0x58] sm:$0xff]
      %v1857 = vld [vmem:[%s13 + $0x60] sm:$0xff]
      %v1858 = vld [vmem:[%s13 + $0x68] sm:$0xff]
      %v1859 = vld [vmem:[%s13 + $0x70] sm:$0xff]
      %v1860 = vld [vmem:[%s13 + $0x78] sm:$0xff]
      %v1861 = vld [vmem:[%s13 + $0x80] sm:$0xff]
      %v1862 = vld [vmem:[%s13 + $0x88] sm:$0xff]
      %v1863 = vld [vmem:[%s13 + $0x90] sm:$0xff]
      %v1864 = vld [vmem:[%s13 + $0x98] sm:$0xff]
      %v1865 = vld [vmem:[%s13 + $0xa0] sm:$0xff]
      %v1866 = vld [vmem:[%s13 + $0xa8] sm:$0xff]
      %v1867 = vld [vmem:[%s13 + $0xb0] sm:$0xff]
      %v1868 = vld [vmem:[%s13 + $0xb8] sm:$0xff]
      %v1869 = vld [vmem:[%s13 + $0xc0] sm:$0xff]
      %v1870 = vld [vmem:[%s13 + $0xc8] sm:$0xff]
      %v1871 = vld [vmem:[%s13 + $0xd0] sm:$0xff]
      %v1872 = vld [vmem:[%s13 + $0xd8] sm:$0xff]
      %v1873 = vld [vmem:[%s13 + $0xe0] sm:$0xff]
      %v1874 = vld [vmem:[%s13 + $0xe8] sm:$0xff]
      %v1875 = vld [vmem:[%s13 + $0xf0] sm:$0xff]
      %v1876 = vld [vmem:[%s13 + $0xf8] sm:$0xff]
      %v1877 = vld [vmem:[%s14] sm:$0xf]
      %v1879 = vlaneseq
      %v1880 = vshrl.u32 %v1879, 7
      %v1881 = vsub.s32 0, %v1880
      %v1882 = vrot.slane %v1877, %v1881
      %v1883 = vlaneseq
      %v1884 = vshrl.u32 %v1883, 7
      %v1885 = vsub.s32 1, %v1884
      %v1886 = vrot.slane %v1877, %v1885
      %v1887 = vlaneseq
      %v1888 = vshrl.u32 %v1887, 7
      %v1889 = vsub.s32 2, %v1888
      %v1890 = vrot.slane %v1877, %v1889
      %v1891 = vlaneseq
      %v1892 = vshrl.u32 %v1891, 7
      %v1893 = vsub.s32 3, %v1892
      %v1894 = vrot.slane %v1877, %v1893
      %v1931 = vunpack.c.l.b16 %v1845
      %v1932 = vunpack.c.h.b16 %v1845
      %v1933 = vunpack.c.l.b16 %v1846
      %v1934 = vunpack.c.h.b16 %v1846
      %v1935 = vunpack.c.l.b16 %v1847
      %v1936 = vunpack.c.h.b16 %v1847
      %v1937 = vunpack.c.l.b16 %v1848
      %v1938 = vunpack.c.h.b16 %v1848
      %v1939 = vunpack.c.l.b16 %v1849
      %v1940 = vunpack.c.h.b16 %v1849
      %v1941 = vunpack.c.l.b16 %v1850
      %v1942 = vunpack.c.h.b16 %v1850
      %v1943 = vunpack.c.l.b16 %v1851
      %v1944 = vunpack.c.h.b16 %v1851
      %v1945 = vunpack.c.l.b16 %v1852
      %v1946 = vunpack.c.h.b16 %v1852
      %v1947 = vunpack.c.l.b16 %v1853
      %v1948 = vunpack.c.h.b16 %v1853
      %v1949 = vunpack.c.l.b16 %v1854
      %v1950 = vunpack.c.h.b16 %v1854
      %v1951 = vunpack.c.l.b16 %v1855
      %v1952 = vunpack.c.h.b16 %v1855
      %v1953 = vunpack.c.l.b16 %v1856
      %v1954 = vunpack.c.h.b16 %v1856
      %v1955 = vunpack.c.l.b16 %v1857
      %v1956 = vunpack.c.h.b16 %v1857
      %v1957 = vunpack.c.l.b16 %v1858
      %v1958 = vunpack.c.h.b16 %v1858
      %v1959 = vunpack.c.l.b16 %v1859
      %v1960 = vunpack.c.h.b16 %v1859
      %v1961 = vunpack.c.l.b16 %v1860
      %v1962 = vunpack.c.h.b16 %v1860
      %v1963 = vunpack.c.l.b16 %v1861
      %v1964 = vunpack.c.h.b16 %v1861
      %v1965 = vunpack.c.l.b16 %v1862
      %v1966 = vunpack.c.h.b16 %v1862
      %v1967 = vunpack.c.l.b16 %v1863
      %v1968 = vunpack.c.h.b16 %v1863
      %v1969 = vunpack.c.l.b16 %v1864
      %v1970 = vunpack.c.h.b16 %v1864
      %v1971 = vunpack.c.l.b16 %v1865
      %v1972 = vunpack.c.h.b16 %v1865
      %v1973 = vunpack.c.l.b16 %v1866
      %v1974 = vunpack.c.h.b16 %v1866
      %v1975 = vunpack.c.l.b16 %v1867
      %v1976 = vunpack.c.h.b16 %v1867
      %v1977 = vunpack.c.l.b16 %v1868
      %v1978 = vunpack.c.h.b16 %v1868
      %v1979 = vunpack.c.l.b16 %v1869
      %v1980 = vunpack.c.h.b16 %v1869
      %v1981 = vunpack.c.l.b16 %v1870
      %v1982 = vunpack.c.h.b16 %v1870
      %v1983 = vunpack.c.l.b16 %v1871
      %v1984 = vunpack.c.h.b16 %v1871
      %v1985 = vunpack.c.l.b16 %v1872
      %v1986 = vunpack.c.h.b16 %v1872
      %v1987 = vunpack.c.l.b16 %v1873
      %v1988 = vunpack.c.h.b16 %v1873
      %v1989 = vunpack.c.l.b16 %v1874
      %v1990 = vunpack.c.h.b16 %v1874
      %v1991 = vunpack.c.l.b16 %v1875
      %v1992 = vunpack.c.h.b16 %v1875
      %v1993 = vunpack.c.l.b16 %v1876
      %v1994 = vunpack.c.h.b16 %v1876
      %v1995 = vpack.c.b16 %v1935, %v1931
      %v1996 = vpack.c.b16 %v1936, %v1932
      %v1997 = vpack.c.b16 %v1937, %v1933
      %v1998 = vpack.c.b16 %v1938, %v1934
      %v1999 = vpack.c.b16 %v1943, %v1939
      %v2000 = vpack.c.b16 %v1944, %v1940
      %v2001 = vpack.c.b16 %v1945, %v1941
      %v2002 = vpack.c.b16 %v1946, %v1942
      %v2003 = vpack.c.b16 %v1951, %v1947
      %v2004 = vpack.c.b16 %v1952, %v1948
      %v2005 = vpack.c.b16 %v1953, %v1949
      %v2006 = vpack.c.b16 %v1954, %v1950
      %v2007 = vpack.c.b16 %v1959, %v1955
      %v2008 = vpack.c.b16 %v1960, %v1956
      %v2009 = vpack.c.b16 %v1961, %v1957
      %v2010 = vpack.c.b16 %v1962, %v1958
      %v2011 = vpack.c.b16 %v1967, %v1963
      %v2012 = vpack.c.b16 %v1968, %v1964
      %v2013 = vpack.c.b16 %v1969, %v1965
      %v2014 = vpack.c.b16 %v1970, %v1966
      %v2015 = vpack.c.b16 %v1975, %v1971
      %v2016 = vpack.c.b16 %v1976, %v1972
      %v2017 = vpack.c.b16 %v1977, %v1973
      %v2018 = vpack.c.b16 %v1978, %v1974
      %v2019 = vpack.c.b16 %v1983, %v1979
      %v2020 = vpack.c.b16 %v1984, %v1980
      %v2021 = vpack.c.b16 %v1985, %v1981
      %v2022 = vpack.c.b16 %v1986, %v1982
      %v2023 = vpack.c.b16 %v1991, %v1987
      %v2024 = vpack.c.b16 %v1992, %v1988
      %v2025 = vpack.c.b16 %v1993, %v1989
      %v2026 = vpack.c.b16 %v1994, %v1990
      %2059 = vmatprep.subr.bf16.mxu0 %v1996
      %2060 = vmatpush1.bf16.msra.mxu0 %v1995
      %2061 = vmatprep.subr.bf16.mxu0 %v2000
      %2062 = vmatpush1.bf16.msra.mxu0 %v1999
      %2063 = vmatprep.subr.bf16.mxu0 %v2004
      %2064 = vmatpush1.bf16.msra.mxu0 %v2003
      %2065 = vmatprep.subr.bf16.mxu0 %v2008
      %2066 = vmatpush1.bf16.msra.mxu0 %v2007
      %2067 = vmatprep.subr.bf16.mxu0 %v2012
      %2068 = vmatpush1.bf16.msra.mxu0 %v2011
      %2069 = vmatprep.subr.bf16.mxu0 %v2016
      %2070 = vmatpush1.bf16.msra.mxu0 %v2015
      %2071 = vmatprep.subr.bf16.mxu0 %v2020
      %2072 = vmatpush1.bf16.msra.mxu0 %v2019
      %2073 = vmatprep.subr.bf16.mxu0 %v2024
      %2074 = vmatpush1.bf16.msra.mxu0 %v2023
      %2075 = vmatprep.subr.bf16.mxu0 0
      %2076 = vmatpush1.bf16.msra.mxu0 0
      %2077 = vmatprep.subr.bf16.mxu0 0
      %2078 = vmatpush1.bf16.msra.mxu0 0
      %2079 = vmatprep.subr.bf16.mxu0 0
      %2080 = vmatpush1.bf16.msra.mxu0 0
      %2081 = vmatprep.subr.bf16.mxu0 0
      %2082 = vmatpush1.bf16.msra.mxu0 0
      %2083 = vmatprep.subr.bf16.mxu0 0
      %2084 = vmatpush1.bf16.msra.mxu0 0
      %2085 = vmatprep.subr.bf16.mxu0 0
      %2086 = vmatpush1.bf16.msra.mxu0 0
      %2087 = vmatprep.subr.bf16.mxu0 0
      %2088 = vmatpush1.bf16.msra.mxu0 0
      %2089 = vmatprep.subr.bf16.mxu0 0
      %2090 = vmatpush1.bf16.msra.mxu0 0
      %2091 = vmatprep.mubr.bf16.mxu0 0
      %2092 = vmatmul.mubr.bf16.gmra.mrb[0].mxu0 %v1843
      %v2093 = vpop.f32.mrb[0].mxu0
      %v2094 = vadd.f32 %v1882, %v2093
      %v2095 = vpop.f32.mrb[0].mxu0
      %v2096 = vadd.f32 %v1886, %v2095
      %v2097 = vpop.f32.mrb[0].mxu0
      %v2098 = vadd.f32 %v1882, %v2097
      %v2099 = vpop.f32.mrb[0].mxu0
      %v2100 = vadd.f32 %v1886, %v2099
      %2101 = vmatprep.mubr.bf16.mxu0 0
      %2102 = vmatmul.mubr.bf16.gmra.mrb[0].mxu0 %v1844
      %v2103 = vpop.f32.mrb[0].mxu0
      %v2104 = vadd.f32 %v1882, %v2103
      %v2105 = vpop.f32.mrb[0].mxu0
      %v2106 = vadd.f32 %v1886, %v2105
      %v2107 = vpop.f32.mrb[0].mxu0
      %v2108 = vpop.f32.mrb[0].mxu0
      %2109 = vdwg.mxu0
      %2110 = vmatprep.subr.bf16.mxu0 %v1998
      %2111 = vmatpush1.bf16.msra.mxu0 %v1997
      %2112 = vmatprep.subr.bf16.mxu0 %v2002
      %2113 = vmatpush1.bf16.msra.mxu0 %v2001
      %2114 = vmatprep.subr.bf16.mxu0 %v2006
      %2115 = vmatpush1.bf16.msra.mxu0 %v2005
      %2116 = vmatprep.subr.bf16.mxu0 %v2010
      %2117 = vmatpush1.bf16.msra.mxu0 %v2009
      %2118 = vmatprep.subr.bf16.mxu0 %v2014
      %2119 = vmatpush1.bf16.msra.mxu0 %v2013
      %2120 = vmatprep.subr.bf16.mxu0 %v2018
      %2121 = vmatpush1.bf16.msra.mxu0 %v2017
      %2122 = vmatprep.subr.bf16.mxu0 %v2022
      %2123 = vmatpush1.bf16.msra.mxu0 %v2021
      %2124 = vmatprep.subr.bf16.mxu0 %v2026
      %2125 = vmatpush1.bf16.msra.mxu0 %v2025
      %2126 = vmatprep.subr.bf16.mxu0 0
      %2127 = vmatpush1.bf16.msra.mxu0 0
      %2128 = vmatprep.subr.bf16.mxu0 0
      %2129 = vmatpush1.bf16.msra.mxu0 0
      %2130 = vmatprep.subr.bf16.mxu0 0
      %2131 = vmatpush1.bf16.msra.mxu0 0
      %2132 = vmatprep.subr.bf16.mxu0 0
      %2133 = vmatpush1.bf16.msra.mxu0 0
      %2134 = vmatprep.subr.bf16.mxu0 0
      %2135 = vmatpush1.bf16.msra.mxu0 0
      %2136 = vmatprep.subr.bf16.mxu0 0
      %2137 = vmatpush1.bf16.msra.mxu0 0
      %2138 = vmatprep.subr.bf16.mxu0 0
      %2139 = vmatpush1.bf16.msra.mxu0 0
      %2140 = vmatprep.subr.bf16.mxu0 0
      %2141 = vmatpush1.bf16.msra.mxu0 0
      %2142 = vmatprep.mubr.bf16.mxu0 0
      %2143 = vmatmul.mubr.bf16.gmra.mrb[0].mxu0 %v1843
      %v2144 = vpop.f32.mrb[0].mxu0
      %v2145 = vadd.f32 %v1890, %v2144
      %v2146 = vpop.f32.mrb[0].mxu0
      %v2147 = vadd.f32 %v1894, %v2146
      %v2148 = vpop.f32.mrb[0].mxu0
      %v2149 = vadd.f32 %v1890, %v2148
      %v2150 = vpop.f32.mrb[0].mxu0
      %v2151 = vadd.f32 %v1894, %v2150
      %2152 = vmatprep.mubr.bf16.mxu0 0
      %2153 = vmatmul.mubr.bf16.gmra.mrb[0].mxu0 %v1844
      %v2154 = vpop.f32.mrb[0].mxu0
      %v2155 = vadd.f32 %v1890, %v2154
      %v2156 = vpop.f32.mrb[0].mxu0
      %v2157 = vadd.f32 %v1894, %v2156
      %v2158 = vpop.f32.mrb[0].mxu0
      %v2159 = vpop.f32.mrb[0].mxu0
      %2160 = vdwg.mxu0
      %v2161 = vmul.f32 %v2094, 0.5
      %v2162 = vmul.f32 %v2096, 0.5
      %v2163 = vmul.f32 %v2145, 0.5
      %v2164 = vmul.f32 %v2147, 0.5
      %v2165 = vmul.f32 %v2098, 0.5
      %v2166 = vmul.f32 %v2100, 0.5
      %v2167 = vmul.f32 %v2149, 0.5
      %v2168 = vmul.f32 %v2151, 0.5
      %v2169 = vmul.f32 %v2104, 0.5
      %v2170 = vmul.f32 %v2106, 0.5
      %v2171 = vmul.f32 %v2155, 0.5
      %v2172 = vmul.f32 %v2157, 0.5
      %v2173 = vmul.f32 %v2094, 0.70710677
      %v2174 = vmul.f32 %v2096, 0.70710677
      %v2175 = vmul.f32 %v2145, 0.70710677
      %v2176 = vmul.f32 %v2147, 0.70710677
      %v2177 = vmul.f32 %v2098, 0.70710677
      %v2178 = vmul.f32 %v2100, 0.70710677
      %v2179 = vmul.f32 %v2149, 0.70710677
      %v2180 = vmul.f32 %v2151, 0.70710677
      %v2181 = vmul.f32 %v2104, 0.70710677
      %v2182 = vmul.f32 %v2106, 0.70710677
      %v2183 = vmul.f32 %v2155, 0.70710677
      %v2184 = vmul.f32 %v2157, 0.70710677
      %v2185 = verf.f32.pop %v2173
      %v2186 = verf.f32.pop %v2174
      %v2187 = verf.f32.pop %v2175
      %v2188 = verf.f32.pop %v2176
      %v2189 = verf.f32.pop %v2177
      %v2190 = verf.f32.pop %v2178
      %v2191 = verf.f32.pop %v2179
      %v2192 = verf.f32.pop %v2180
      %v2193 = verf.f32.pop %v2181
      %v2194 = verf.f32.pop %v2182
      %v2195 = verf.f32.pop %v2183
      %v2196 = verf.f32.pop %v2184
      %v2197 = vadd.f32 %v2185, 1.0
      %v2198 = vadd.f32 %v2186, 1.0
      %v2199 = vadd.f32 %v2187, 1.0
      %v2200 = vadd.f32 %v2188, 1.0
      %v2201 = vadd.f32 %v2189, 1.0
      %v2202 = vadd.f32 %v2190, 1.0
      %v2203 = vadd.f32 %v2191, 1.0
      %v2204 = vadd.f32 %v2192, 1.0
      %v2205 = vadd.f32 %v2193, 1.0
      %v2206 = vadd.f32 %v2194, 1.0
      %v2207 = vadd.f32 %v2195, 1.0
      %v2208 = vadd.f32 %v2196, 1.0
      %v2209 = vmul.f32 %v2161, %v2197
      %v2210 = vmul.f32 %v2162, %v2198
      %v2211 = vmul.f32 %v2163, %v2199
      %v2212 = vmul.f32 %v2164, %v2200
      %v2213 = vmul.f32 %v2165, %v2201
      %v2214 = vmul.f32 %v2166, %v2202
      %v2215 = vmul.f32 %v2167, %v2203
      %v2216 = vmul.f32 %v2168, %v2204
      %v2217 = vmul.f32 %v2169, %v2205
      %v2218 = vmul.f32 %v2170, %v2206
      %v2219 = vmul.f32 %v2171, %v2207
      %v2220 = vmul.f32 %v2172, %v2208
      %v2221 = vpack.c.bf16 %v2213, %v2209
      %v2222 = vpack.c.bf16 %v2214, %v2210
      %v2223 = vpack.c.bf16 %v2215, %v2211
      %v2224 = vpack.c.bf16 %v2216, %v2212
      %v2225 = vpack.c.bf16 %v2217, %v2217
      %v2226 = vpack.c.bf16 %v2218, %v2218
      %v2227 = vpack.c.bf16 %v2219, %v2219
      %v2228 = vpack.c.bf16 %v2220, %v2220
      %v2229 = vld [vmem:[%s15] sm:$0xf]
      %v2230 = vld [vmem:[%s15 + $0x4] sm:$0xf]
      %v2231 = vld [vmem:[%s15 + $0x8] sm:$0xf]
      %v2232 = vld [vmem:[%s15 + $0xc] sm:$0xf]
      %v2233 = vld [vmem:[%s15 + $0x10] sm:$0xf]
      %v2234 = vld [vmem:[%s15 + $0x14] sm:$0xf]
      %v2235 = vld [vmem:[%s15 + $0x18] sm:$0xf]
      %v2236 = vld [vmem:[%s15 + $0x1c] sm:$0xf]
      %v2237 = vld [vmem:[%s15 + $0x20] sm:$0xf]
      %v2238 = vld [vmem:[%s15 + $0x24] sm:$0xf]
      %v2239 = vld [vmem:[%s15 + $0x28] sm:$0xf]
      %v2240 = vld [vmem:[%s15 + $0x2c] sm:$0xf]
      %v2241 = vld [vmem:[%s15 + $0x30] sm:$0xf]
      %v2242 = vld [vmem:[%s15 + $0x34] sm:$0xf]
      %v2243 = vld [vmem:[%s15 + $0x38] sm:$0xf]
      %v2244 = vld [vmem:[%s15 + $0x3c] sm:$0xf]
      %v2245 = vld [vmem:[%s15 + $0x40] sm:$0xf]
      %v2246 = vld [vmem:[%s15 + $0x44] sm:$0xf]
      %v2247 = vld [vmem:[%s15 + $0x48] sm:$0xf]
      %v2248 = vld [vmem:[%s15 + $0x4c] sm:$0xf]
      %v2249 = vld [vmem:[%s15 + $0x50] sm:$0xf]
      %v2250 = vld [vmem:[%s15 + $0x54] sm:$0xf]
      %v2251 = vld [vmem:[%s15 + $0x58] sm:$0xf]
      %v2252 = vld [vmem:[%s15 + $0x5c] sm:$0xf]
      %v2253 = vld [vmem:[%s15 + $0x60] sm:$0xf]
      %v2254 = vld [vmem:[%s15 + $0x64] sm:$0xf]
      %v2255 = vld [vmem:[%s15 + $0x68] sm:$0xf]
      %v2256 = vld [vmem:[%s15 + $0x6c] sm:$0xf]
      %v2257 = vld [vmem:[%s15 + $0x70] sm:$0xf]
      %v2258 = vld [vmem:[%s15 + $0x74] sm:$0xf]
      %v2259 = vld [vmem:[%s15 + $0x78] sm:$0xf]
      %v2260 = vld [vmem:[%s15 + $0x7c] sm:$0xf]
      %v2261 = vld [vmem:[%s15 + $0x80] sm:$0xf]
      %v2262 = vld [vmem:[%s15 + $0x84] sm:$0xf]
      %v2263 = vld [vmem:[%s15 + $0x88] sm:$0xf]
      %v2264 = vld [vmem:[%s15 + $0x8c] sm:$0xf]
      %v2265 = vld [vmem:[%s15 + $0x90] sm:$0xf]
      %v2266 = vld [vmem:[%s15 + $0x94] sm:$0xf]
      %v2267 = vld [vmem:[%s15 + $0x98] sm:$0xf]
      %v2268 = vld [vmem:[%s15 + $0x9c] sm:$0xf]
      %v2269 = vld [vmem:[%s15 + $0xa0] sm:$0xf]
      %v2270 = vld [vmem:[%s15 + $0xa4] sm:$0xf]
      %v2271 = vld [vmem:[%s15 + $0xa8] sm:$0xf]
      %v2272 = vld [vmem:[%s15 + $0xac] sm:$0xf]
      %v2273 = vld [vmem:[%s15 + $0xb0] sm:$0xf]
      %v2274 = vld [vmem:[%s15 + $0xb4] sm:$0xf]
      %v2275 = vld [vmem:[%s15 + $0xb8] sm:$0xf]
      %v2276 = vld [vmem:[%s15 + $0xbc] sm:$0xf]
      %v2277 = vld [vmem:[%s15 + $0xc0] sm:$0xf]
      %v2278 = vld [vmem:[%s15 + $0xc4] sm:$0xf]
      %v2279 = vld [vmem:[%s15 + $0xc8] sm:$0xf]
      %v2280 = vld [vmem:[%s15 + $0xcc] sm:$0xf]
      %v2281 = vld [vmem:[%s15 + $0xd0] sm:$0xf]
      %v2282 = vld [vmem:[%s15 + $0xd4] sm:$0xf]
      %v2283 = vld [vmem:[%s15 + $0xd8] sm:$0xf]
      %v2284 = vld [vmem:[%s15 + $0xdc] sm:$0xf]
      %v2285 = vld [vmem:[%s15 + $0xe0] sm:$0xf]
      %v2286 = vld [vmem:[%s15 + $0xe4] sm:$0xf]
      %v2287 = vld [vmem:[%s15 + $0xe8] sm:$0xf]
      %v2288 = vld [vmem:[%s15 + $0xec] sm:$0xf]
      %v2289 = vld [vmem:[%s15 + $0xf0] sm:$0xf]
      %v2290 = vld [vmem:[%s15 + $0xf4] sm:$0xf]
      %v2291 = vld [vmem:[%s15 + $0xf8] sm:$0xf]
      %v2292 = vld [vmem:[%s15 + $0xfc] sm:$0xf]
      %v2293 = vld [vmem:[%s16] sm:$0x1]
      %v2295 = vlaneseq
      %v2296 = vshrl.u32 %v2295, 7
      %v2297 = vsub.s32 0, %v2296
      %v2298 = vrot.slane %v2293, %v2297
      %v2364 = vunpack.c.l.b16 %v2229
      %v2365 = vunpack.c.l.b16 %v2230
      %v2366 = vunpack.c.l.b16 %v2231
      %v2367 = vunpack.c.l.b16 %v2232
      %v2368 = vunpack.c.l.b16 %v2233
      %v2369 = vunpack.c.l.b16 %v2234
      %v2370 = vunpack.c.l.b16 %v2235
      %v2371 = vunpack.c.l.b16 %v2236
      %v2372 = vunpack.c.l.b16 %v2237
      %v2373 = vunpack.c.l.b16 %v2238
      %v2374 = vunpack.c.l.b16 %v2239
      %v2375 = vunpack.c.l.b16 %v2240
      %v2376 = vunpack.c.l.b16 %v2241
      %v2377 = vunpack.c.l.b16 %v2242
      %v2378 = vunpack.c.l.b16 %v2243
      %v2379 = vunpack.c.l.b16 %v2244
      %v2380 = vunpack.c.l.b16 %v2245
      %v2381 = vunpack.c.l.b16 %v2246
      %v2382 = vunpack.c.l.b16 %v2247
      %v2383 = vunpack.c.l.b16 %v2248
      %v2384 = vunpack.c.l.b16 %v2249
      %v2385 = vunpack.c.l.b16 %v2250
      %v2386 = vunpack.c.l.b16 %v2251
      %v2387 = vunpack.c.l.b16 %v2252
      %v2388 = vunpack.c.l.b16 %v2253
      %v2389 = vunpack.c.l.b16 %v2254
      %v2390 = vunpack.c.l.b16 %v2255
      %v2391 = vunpack.c.l.b16 %v2256
      %v2392 = vunpack.c.l.b16 %v2257
      %v2393 = vunpack.c.l.b16 %v2258
      %v2394 = vunpack.c.l.b16 %v2259
      %v2395 = vunpack.c.l.b16 %v2260
      %v2396 = vunpack.c.l.b16 %v2261
      %v2397 = vunpack.c.l.b16 %v2262
      %v2398 = vunpack.c.l.b16 %v2263
      %v2399 = vunpack.c.l.b16 %v2264
      %v2400 = vunpack.c.l.b16 %v2265
      %v2401 = vunpack.c.l.b16 %v2266
      %v2402 = vunpack.c.l.b16 %v2267
      %v2403 = vunpack.c.l.b16 %v2268
      %v2404 = vunpack.c.l.b16 %v2269
      %v2405 = vunpack.c.l.b16 %v2270
      %v2406 = vunpack.c.l.b16 %v2271
      %v2407 = vunpack.c.l.b16 %v2272
      %v2408 = vunpack.c.l.b16 %v2273
      %v2409 = vunpack.c.l.b16 %v2274
      %v2410 = vunpack.c.l.b16 %v2275
      %v2411 = vunpack.c.l.b16 %v2276
      %v2412 = vunpack.c.l.b16 %v2277
      %v2413 = vunpack.c.l.b16 %v2278
      %v2414 = vunpack.c.l.b16 %v2279
      %v2415 = vunpack.c.l.b16 %v2280
      %v2416 = vunpack.c.l.b16 %v2281
      %v2417 = vunpack.c.l.b16 %v2282
      %v2418 = vunpack.c.l.b16 %v2283
      %v2419 = vunpack.c.l.b16 %v2284
      %v2420 = vunpack.c.l.b16 %v2285
      %v2421 = vunpack.c.l.b16 %v2286
      %v2422 = vunpack.c.l.b16 %v2287
      %v2423 = vunpack.c.l.b16 %v2288
      %v2424 = vunpack.c.l.b16 %v2289
      %v2425 = vunpack.c.l.b16 %v2290
      %v2426 = vunpack.c.l.b16 %v2291
      %v2427 = vunpack.c.l.b16 %v2292
      %v2428 = vpack.c.b16 %v2365, %v2364
      %v2429 = vpack.c.b16 %v2367, %v2366
      %v2430 = vpack.c.b16 %v2369, %v2368
      %v2431 = vpack.c.b16 %v2371, %v2370
      %v2432 = vpack.c.b16 %v2373, %v2372
      %v2433 = vpack.c.b16 %v2375, %v2374
      %v2434 = vpack.c.b16 %v2377, %v2376
      %v2435 = vpack.c.b16 %v2379, %v2378
      %v2436 = vpack.c.b16 %v2381, %v2380
      %v2437 = vpack.c.b16 %v2383, %v2382
      %v2438 = vpack.c.b16 %v2385, %v2384
      %v2439 = vpack.c.b16 %v2387, %v2386
      %v2440 = vpack.c.b16 %v2389, %v2388
      %v2441 = vpack.c.b16 %v2391, %v2390
      %v2442 = vpack.c.b16 %v2393, %v2392
      %v2443 = vpack.c.b16 %v2395, %v2394
      %v2444 = vpack.c.b16 %v2397, %v2396
      %v2445 = vpack.c.b16 %v2399, %v2398
      %v2446 = vpack.c.b16 %v2401, %v2400
      %v2447 = vpack.c.b16 %v2403, %v2402
      %v2448 = vpack.c.b16 %v2405, %v2404
      %v2449 = vpack.c.b16 %v2407, %v2406
      %v2450 = vpack.c.b16 %v2409, %v2408
      %v2451 = vpack.c.b16 %v2411, %v2410
      %v2452 = vpack.c.b16 %v2413, %v2412
      %v2453 = vpack.c.b16 %v2415, %v2414
      %v2454 = vpack.c.b16 %v2417, %v2416
      %v2455 = vpack.c.b16 %v2419, %v2418
      %v2456 = vpack.c.b16 %v2421, %v2420
      %v2457 = vpack.c.b16 %v2423, %v2422
      %v2458 = vpack.c.b16 %v2425, %v2424
      %v2459 = vpack.c.b16 %v2427, %v2426
      %2492 = vmatprep.subr.bf16.mxu0 0
      %2493 = vmatpush1.bf16.msra.mxu0 %v2428
      %2494 = vmatprep.subr.bf16.mxu0 0
      %2495 = vmatpush1.bf16.msra.mxu0 %v2429
      %2496 = vmatprep.subr.bf16.mxu0 0
      %2497 = vmatpush1.bf16.msra.mxu0 %v2430
      %2498 = vmatprep.subr.bf16.mxu0 0
      %2499 = vmatpush1.bf16.msra.mxu0 %v2431
      %2500 = vmatprep.subr.bf16.mxu0 0
      %2501 = vmatpush1.bf16.msra.mxu0 %v2432
      %2502 = vmatprep.subr.bf16.mxu0 0
      %2503 = vmatpush1.bf16.msra.mxu0 %v2433
      %2504 = vmatprep.subr.bf16.mxu0 0
      %2505 = vmatpush1.bf16.msra.mxu0 %v2434
      %2506 = vmatprep.subr.bf16.mxu0 0
      %2507 = vmatpush1.bf16.msra.mxu0 %v2435
      %2508 = vmatprep.subr.bf16.mxu0 0
      %2509 = vmatpush1.bf16.msra.mxu0 %v2436
      %2510 = vmatprep.subr.bf16.mxu0 0
      %2511 = vmatpush1.bf16.msra.mxu0 %v2437
      %2512 = vmatprep.subr.bf16.mxu0 0
      %2513 = vmatpush1.bf16.msra.mxu0 %v2438
      %2514 = vmatprep.subr.bf16.mxu0 0
      %2515 = vmatpush1.bf16.msra.mxu0 %v2439
      %2516 = vmatprep.subr.bf16.mxu0 0
      %2517 = vmatpush1.bf16.msra.mxu0 %v2440
      %2518 = vmatprep.subr.bf16.mxu0 0
      %2519 = vmatpush1.bf16.msra.mxu0 %v2441
      %2520 = vmatprep.subr.bf16.mxu0 0
      %2521 = vmatpush1.bf16.msra.mxu0 %v2442
      %2522 = vmatprep.subr.bf16.mxu0 0
      %2523 = vmatpush1.bf16.msra.mxu0 %v2443
      %2524 = vmatprep.mubr.bf16.mxu0 %v2222
      %2525 = vmatmul.mubr.bf16.gmra.mrb[0].mxu0 %v2221
      %v2526 = vpop.f32.mrb[0].mxu0
      %v2527 = vadd.f32 %v2298, %v2526
      %v2528 = vpop.f32.mrb[0].mxu0
      %v2529 = vpop.f32.mrb[0].mxu0
      %v2530 = vadd.f32 %v2298, %v2529
      %v2531 = vpop.f32.mrb[0].mxu0
      %2532 = vmatprep.mubr.bf16.mxu0 %v2226
      %2533 = vmatmul.mubr.bf16.gmra.mrb[0].mxu0 %v2225
      %v2534 = vpop.f32.mrb[0].mxu0
      %v2535 = vadd.f32 %v2298, %v2534
      %v2536 = vpop.f32.mrb[0].mxu0
      %v2537 = vpop.f32.mrb[0].mxu0
      %v2538 = vpop.f32.mrb[0].mxu0
      %2539 = vdwg.mxu0
      %2540 = vmatprep.subr.bf16.mxu0 0
      %2541 = vmatpush1.bf16.msra.mxu0 %v2444
      %2542 = vmatprep.subr.bf16.mxu0 0
      %2543 = vmatpush1.bf16.msra.mxu0 %v2445
      %2544 = vmatprep.subr.bf16.mxu0 0
      %2545 = vmatpush1.bf16.msra.mxu0 %v2446
      %2546 = vmatprep.subr.bf16.mxu0 0
      %2547 = vmatpush1.bf16.msra.mxu0 %v2447
      %2548 = vmatprep.subr.bf16.mxu0 0
      %2549 = vmatpush1.bf16.msra.mxu0 %v2448
      %2550 = vmatprep.subr.bf16.mxu0 0
      %2551 = vmatpush1.bf16.msra.mxu0 %v2449
      %2552 = vmatprep.subr.bf16.mxu0 0
      %2553 = vmatpush1.bf16.msra.mxu0 %v2450
      %2554 = vmatprep.subr.bf16.mxu0 0
      %2555 = vmatpush1.bf16.msra.mxu0 %v2451
      %2556 = vmatprep.subr.bf16.mxu0 0
      %2557 = vmatpush1.bf16.msra.mxu0 %v2452
      %2558 = vmatprep.subr.bf16.mxu0 0
      %2559 = vmatpush1.bf16.msra.mxu0 %v2453
      %2560 = vmatprep.subr.bf16.mxu0 0
      %2561 = vmatpush1.bf16.msra.mxu0 %v2454
      %2562 = vmatprep.subr.bf16.mxu0 0
      %2563 = vmatpush1.bf16.msra.mxu0 %v2455
      %2564 = vmatprep.subr.bf16.mxu0 0
      %2565 = vmatpush1.bf16.msra.mxu0 %v2456
      %2566 = vmatprep.subr.bf16.mxu0 0
      %2567 = vmatpush1.bf16.msra.mxu0 %v2457
      %2568 = vmatprep.subr.bf16.mxu0 0
      %2569 = vmatpush1.bf16.msra.mxu0 %v2458
      %2570 = vmatprep.subr.bf16.mxu0 0
      %2571 = vmatpush1.bf16.msra.mxu0 %v2459
      %2572 = vmatprep.mubr.bf16.mxu0 %v2224
      %2573 = vmatmul.mubr.bf16.gmra.mrb[0].mxu0 %v2223
      %v2574 = vpop.f32.mrb[0].mxu0
      %v2575 = vadd.f32 %v2527, %v2574
      %v2576 = vpop.f32.mrb[0].mxu0
      %v2577 = vpop.f32.mrb[0].mxu0
      %v2578 = vadd.f32 %v2530, %v2577
      %v2579 = vpop.f32.mrb[0].mxu0
      %2580 = vmatprep.mubr.bf16.mxu0 %v2228
      %2581 = vmatmul.mubr.bf16.gmra.mrb[0].mxu0 %v2227
      %v2582 = vpop.f32.mrb[0].mxu0
      %v2583 = vadd.f32 %v2535, %v2582
      %v2584 = vpop.f32.mrb[0].mxu0
      %v2585 = vpop.f32.mrb[0].mxu0
      %v2586 = vpop.f32.mrb[0].mxu0
      %2587 = vdwg.mxu0
      %v2588 = vadd.f32 %v1787, %v2575
      %v2589 = vadd.f32 %v1788, %v2578
      %v2590 = vadd.f32 %v1789, %v2583
      %v2591 = vpack.c.bf16 %v2589, %v2588
      %v2592 = vpack.c.bf16 %v2590, %v2590
      %v2595 = vunpack.c.l.b16 %v2591
      %v2596 = vunpack.c.h.b16 %v2591
      %v2597 = vunpack.c.l.b16 %v2592
      %v2598 = vpack.c.b16 %v2595, %v2595
      %v2599 = vpack.c.b16 %v2596, %v2596
      %v2600 = vpack.c.b16 %v2597, %v2597
      %2604 = vst [vmem:[%s548] sm:$0xf] %v2598
      %2605 = vst [vmem:[%s548 + $0x4] sm:$0xf] %v2599
      %2606 = vst [vmem:[%s548 + $0x8] sm:$0xf] %v2600
      %p2607 = scmp.lt.s32.totalorder %s28, 1
      %s2608 = scalar_select %p2607, %s28, 1
      %s2609 = smul.addr %s2608, 3
      %s2610 = smul.addr %s2609, 4
      %s2611 = scalar_lea.vmem %s17, %s2610
      // Predicated region
      $region89: #{vit_zoo_forward.11} parent=87 // pred_check
        %p2612 = pneg %p408
      $region90: #{vit_zoo_forward.11} parent=87 // pred_check_branch
        %2614 = sbr.rel (%p2612) target = $region92
      $region91: #{vit_zoo_forward.11} parent=87 // pred_region
        _
      $region92: #{vit_zoo_forward.11} parent=87 // pred_fallthru
        _
    $region88: #{vit_zoo_forward.11} parent=5 // pred_fallthru
      _
    %p2615 = scmp.le.s32.totalorder 2, %s23
    // Predicated region
    $region93: #{vit_zoo_forward.11} parent=5 // pred_check
      %p2616 = pneg %p2615
    $region94: #{vit_zoo_forward.11} parent=5 // pred_check_branch
      %2618 = sbr.rel (%p2616) target = $region96
    $region95: #{vit_zoo_forward.11} parent=5 // pred_region
      %s2619 = ssub.s32 %s23, 2
      // Predicated region
      $region97: #{vit_zoo_forward.11} parent=95 // pred_check
        %p2620 = pneg %p414
      $region98: #{vit_zoo_forward.11} parent=95 // pred_check_branch
        %2622 = sbr.rel (%p2620) target = $region100
      $region99: #{vit_zoo_forward.11} parent=95 // pred_region
        %p2623 = scmp.lt.s32.totalorder %s29, 1
        %s2624 = scalar_select %p2623, %s29, 1
        %s2625 = smul.addr %s2624, 3
        %s2626 = smul.addr %s2625, 4
        %s2627 = scalar_lea.vmem %s17, %s2626
      $region100: #{vit_zoo_forward.11} parent=95 // pred_fallthru
        _
    $region96: #{vit_zoo_forward.11} parent=5 // pred_fallthru
      _
  $region6: #{vit_zoo_forward.11} parent=0 // loop_footer
    %s27 = sadd.s32 1, %s23
  $region7: #{vit_zoo_forward.11} parent=0 // loop_footer_branch
    %22 = sbr.rel target = $region3
  $region8: #{vit_zoo_forward.11} parent=0 // loop_exit
    _

</llo_original>
